<compile_context>
chip_gen: v6e
topology: v6e:2x2x1
jax: 0.10.0
libtpu: 0.0.40
codegen_flags: <defaults>
</compile_context>

<pallas_src>
import functools

import numpy as np

import jax
import jax.numpy as jnp
from jax.experimental import pallas as pl
from jax.experimental.pallas import tpu as pltpu

DECAY = 0.9
POOL_SIZE = (8, 4, 2, 1)
OUTW = 128          # per-image feature lanes in the kernel output (85 padded to 128)


# ----------------------------------------------------------------------------
# Fused forward kernel: one grid step == `bb` images folded onto the lane axis.
# ----------------------------------------------------------------------------
def _fused_forward_kernel(
        x_ref, c0w_ref, c0b_ref,
        dec_ref, mask0_ref, selrow_ref, selcol_ref,
        spread_ref, pick_ref, gatherc_ref, mask9_ref,
        c1w_ref, c1b_ref, c1s_ref, c1t_ref,
        c2w_ref, c2b_ref, c2s_ref, c2t_ref,
        c3w_ref, c3b_ref, c3s_ref, c3t_ref,
        sel8_ref, sel4_ref, p8_ref, p4_ref, s2p_ref, s1p_ref,
        out_ref, *, ps, cdt):
    f32 = jnp.float32
    C, H, Wp = x_ref.shape            # (2, 48, bb*48)
    N = mask9_ref.shape[1]            # bb * 256 flattened 16x16 spatial lanes

    def dot(a, b):
        return jnp.dot(a, b, preferred_element_type=f32)

    # ---- recurrence: h[r] = x[r] + DECAY*h[r-1]  ==  dec @ x (per channel) --
    dec = dec_ref[...]
    rec = [dot(dec, x_ref[c]) for c in range(C)]

    # ---- conv block 0: Conv(C->C, 3x3, pad 1) + ReLU (VPU, SMEM scalars) ----
    m0 = [None if t == 4 else mask0_ref[t] for t in range(9)]          # hoisted
    acc0 = [jnp.zeros((H, Wp), f32) for _ in range(C)]
    for ci in range(C):
        for dy in range(3):
            oy = dy - 1
            sh = rec[ci] if oy == 0 else pltpu.roll(rec[ci], (-oy) % H, axis=0)
            for dx in range(3):
                ox = dx - 1
                t = dy * 3 + dx
                tap = sh if ox == 0 else pltpu.roll(sh, (-ox) % Wp, axis=1)
                if t != 4:
                    tap = tap * m0[t]
                for co in range(C):
                    acc0[co] = acc0[co] + tap * c0w_ref[(t * C + ci) * C + co]
    z0 = [jnp.maximum(acc0[co] + c0b_ref[co], 0.0) for co in range(C)]

    # ---- MaxPool2d(3): roll-max + hoisted 0/1 row/column selector matmuls ---
    selrow = selrow_ref[...]
    selcol = selcol_ref[...]
    pooled = []
    for c in range(C):
        z = z0[c]
        mh = jnp.maximum(jnp.maximum(z, pltpu.roll(z, H - 1, axis=0)),
                         pltpu.roll(z, H - 2, axis=0))
        hp = dot(selrow, mh)                                   # (16, bb*48)
        mw = jnp.maximum(jnp.maximum(hp, pltpu.roll(hp, Wp - 1, axis=1)),
                         pltpu.roll(hp, Wp - 2, axis=1))
        pooled.append(dot(mw, selcol))                         # (16, bb*16)

    # ---- flatten pooled planes into channel-major (C, bb*256) lane layout ---
    planes = jnp.concatenate(pooled, axis=0)                   # (C*16, bb*16)
    rep = dot(planes, spread_ref[...])                         # (C*16, N)
    act = dot(gatherc_ref[...], rep * pick_ref[...])           # (C, N)

    # ---- conv blocks 1..3: Conv(3x3)->ReLU->BatchNorm, ONE im2col matmul ----
    m9 = [None if t == 4 else mask9_ref[t:t + 1, :] for t in range(9)]
    def conv_block(a, wq_ref, b_ref, s_ref, sh_ref):
        taps = []
        for t in range(9):
            off = (t // 3 - 1) * ps + (t % 3 - 1)
            tap = a if off == 0 else pltpu.roll(a, (-off) % N, axis=1)
            if off != 0:
                tap = tap * m9[t]
            taps.append(tap.astype(cdt))
        im = jnp.concatenate(taps, axis=0)                     # (9*Cin, N) im2col
        y = dot(wq_ref[...], im)                               # (Cout, N), f32 acc
        y = jnp.maximum(y + b_ref[...], 0.0)                   # conv bias -> ReLU
        return y * s_ref[...] + sh_ref[...]                    # eval-mode BatchNorm

    act = conv_block(act, c1w_ref, c1b_ref, c1s_ref, c1t_ref)  # (32, N)
    act = conv_block(act, c2w_ref, c2b_ref, c2s_ref, c2t_ref)
    act = conv_block(act, c3w_ref, c3b_ref, c3s_ref, c3t_ref)
    # TODO(synk): Dropout2d(0.2) -> identity (eval mode).

    # ---- spatial pyramid max pooling (8,4,2,1): hierarchical 2x2 roll-max ---
    def pool_max(a, side):
        L = a.shape[1]
        m = a
        for off in (1, side, side + 1):
            m = jnp.maximum(m, pltpu.roll(a, L - off, axis=1))
        return m

    lvl8 = dot(pool_max(act, ps), sel8_ref[...])               # (32, bb*64)
    lvl4 = dot(pool_max(lvl8, ps // 2), sel4_ref[...])         # (32, bb*16)
    m2 = pool_max(lvl4, ps // 4)                               # 2x2 max of 4x4 grid
    # level-1 per-image global max: doubling roll-max over each 16-lane block
    L4 = lvl4.shape[1]
    m1 = lvl4
    for off in (1, 2, 4, 8):
        m1 = jnp.maximum(m1, pltpu.roll(m1, L4 - off, axis=1))

    # ---- assemble lane-dense (32, bb*128) feature slab, single dense store --
    out_ref[...] = (dot(lvl8, p8_ref[...]) + dot(lvl4, p4_ref[...]) +
                    dot(m2, s2p_ref[...]) + dot(m1, s1p_ref[...]))


# ----------------------------------------------------------------------------
# Host-built constants (all selection / mask / placement matrices).
# ----------------------------------------------------------------------------
def _build_constants(H, W, ps, bb, C):
    hw = ps * ps
    Wp = bb * W
    N = bb * hw
    eye_b = np.eye(bb, dtype=np.float32)

    # lower-triangular decay matrix: recurrence == dec @ image (per channel)
    i = np.arange(H)[:, None]
    k = np.arange(H)[None, :]
    dec = np.where(i >= k, DECAY ** np.maximum(i - k, 0), 0.0).astype(np.float32)

    # conv0 border masks (per tap), lane index is (image, col) with col = lane % W
    mask0 = np.zeros((9, H, Wp), np.float32)
    hh = np.arange(H)
    cc = np.arange(Wp) % W
    for t in range(9):
        oy, ox = t // 3 - 1, t % 3 - 1
        hv = ((hh + oy >= 0) & (hh + oy < H)).astype(np.float32)
        wv = ((cc + ox >= 0) & (cc + ox < W)).astype(np.float32)
        mask0[t] = hv[:, None] * wv[None, :]

    # MaxPool2d(3) selectors
    selrow = np.zeros((ps, H), np.float32)
    selrow[np.arange(ps), 3 * np.arange(ps)] = 1.0
    selcol1 = np.zeros((W, ps), np.float32)
    selcol1[3 * np.arange(ps), np.arange(ps)] = 1.0
    selcol = np.kron(eye_b, selcol1)                           # (bb*48, bb*16)

    # flatten (pooled (16, bb*16) planes -> channel-major (C, bb*256)) helpers
    n_idx = np.arange(N)
    img = n_idx // hw
    hn = (n_idx % hw) // ps
    wn = n_idx % ps
    spread = np.zeros((bb * ps, N), np.float32)
    for r in range(bb * ps):
        spread[r] = ((img == r // ps) & (wn == r % ps)).astype(np.float32)
    pick = np.zeros((C * ps, N), np.float32)
    for r in range(C * ps):
        pick[r] = (hn == r % ps).astype(np.float32)
    gatherc = np.kron(np.eye(C, dtype=np.float32), np.ones((1, ps), np.float32))

    # conv1..3 tap border masks on the flattened (i, h, w) lane layout
    mask9 = np.zeros((9, N), np.float32)
    for t in range(9):
        oy, ox = t // 3 - 1, t % 3 - 1
        mask9[t] = ((hn + oy >= 0) & (hn + oy < ps) &
                    (wn + ox >= 0) & (wn + ox < ps)).astype(np.float32)

    # spatial-pyramid 2x2 selectors
    def pool_sel(side):
        n, half = side * side, side // 2
        s = np.zeros((n, half * half), np.float32)
        for r in range(half):
            for c in range(half):
                s[2 * r * side + 2 * c, r * half + c] = 1.0
        return s

    sel8 = np.kron(eye_b, pool_sel(ps))            # (bb*256, bb*64)
    sel4 = np.kron(eye_b, pool_sel(ps // 2))       # (bb*64,  bb*16)

    # lane-dense placement matrices into the (32, bb*128) output slab
    def place(width, offset):
        p = np.zeros((width, OUTW), np.float32)
        p[np.arange(width), offset + np.arange(width)] = 1.0
        return np.kron(eye_b, p)

    p8 = place(64, 0)                              # level 8 -> lanes [0, 64)
    p4 = place(16, 64)                             # level 4 -> lanes [64, 80)
    s2p1 = np.zeros((16, OUTW), np.float32)        # select-and-place level 2
    for r in range(2):
        for c in range(2):
            s2p1[2 * r * 4 + 2 * c, 80 + r * 2 + c] = 1.0
    s2p = np.kron(eye_b, s2p1)
    s1p1 = np.zeros((16, OUTW), np.float32)        # select-and-place level 1
    s1p1[0, 84] = 1.0
    s1p = np.kron(eye_b, s1p1)

    consts = [dec, mask0, selrow, selcol, spread, pick, gatherc, mask9]
    pyramid = [sel8, sel4, p8, p4, s2p, s1p]
    return ([jnp.asarray(a) for a in consts], [jnp.asarray(a) for a in pyramid])


def _choose_images_per_step(batch):
    # v7x has 2 TensorCores/chip: keep a parallel grid with 1 image per core.
    # v5e/v6e have a single TC: fold the whole (small) batch onto the lane axis.
    try:
        kind = jax.devices()[0].device_kind.lower()
    except Exception:
        kind = ""
    n_tc = 2 if "v7" in kind else 1
    return max(1, min(8, -(-batch // n_tc)))


# ----------------------------------------------------------------------------
# Parameter initialization (deterministic, synthetic).
# ----------------------------------------------------------------------------
def init_params(key, in_channels, num_outputs, pool_size):
    layers = [in_channels, in_channels, 32, 32, 32]
    conv_params = []
    for i, (cin, cout) in enumerate(zip(layers, layers[1:])):
        key, k1, k2, k3, k4, k5, k6 = jax.random.split(key, 7)
        w = 0.1 * jax.random.normal(k1, (3, 3, cin, cout), jnp.float32)
        b = 0.1 * jax.random.normal(k2, (cout,), jnp.float32)
        if i > 0:  # blocks 1..3 have BatchNorm2d (eval mode)
            gamma = 1.0 + 0.1 * jax.random.normal(k3, (cout,), jnp.float32)
            beta = 0.1 * jax.random.normal(k4, (cout,), jnp.float32)
            mean = 0.1 * jax.random.normal(k5, (cout,), jnp.float32)
            var = 0.5 + jax.random.uniform(k6, (cout,), jnp.float32)
            scale = gamma / jnp.sqrt(var + 1e-5)
            shift = beta - mean * scale
        else:
            scale = jnp.ones((cout,), jnp.float32)
            shift = jnp.zeros((cout,), jnp.float32)
        conv_params.append((w, b, scale, shift))
    total = sum(layers[-1] * p * p for p in pool_size)  # 32 * 85 = 2720
    key, kf1, kf2 = jax.random.split(key, 3)
    wfc = 0.05 * jax.random.normal(kf1, (total, num_outputs), jnp.float32)
    bfc = 0.05 * jax.random.normal(kf2, (num_outputs,), jnp.float32)
    return conv_params, (wfc, bfc)


# ----------------------------------------------------------------------------
# Full forward pass: one fused Pallas kernel + tiny XLA Linear at the end.
# ----------------------------------------------------------------------------
def spacial_recurrence_forward(x, conv_params, fc_params, pool_size=POOL_SIZE,
                               images_per_step=None, matmul_dtype=jnp.bfloat16):
    B, C, H, W = x.shape
    ps = H // 3
    hw = ps * ps
    assert H == W and H % 3 == 0 and ps == 16 and tuple(pool_size) == POOL_SIZE

    bb = _choose_images_per_step(B) if images_per_step is None else int(images_per_step)
    bb = max(1, min(bb, B))
    while B % bb:
        bb -= 1
    nsteps = B // bb
    Wp = bb * W

    # batch folded onto lanes: xp[g, c, h, i*W + w] = x[g*bb + i, c, h, w]
    xp = x.reshape(nsteps, bb, C, H, W).transpose(0, 2, 3, 1, 4)
    xp = xp.reshape(nsteps, C, H, Wp)

    # conv0 scalars -> SMEM (indexed [t*C*C + ci*C + co])
    w0, b0, _, _ = conv_params[0]
    c0w = w0.reshape(-1)
    c0b = b0.reshape(-1)

    # conv1..3: im2col weights (Cout, 9*Cin) in the matmul dtype + f32 affine
    conv_packed = []
    for (w, b, s, t) in conv_params[1:]:
        cin, cout = w.shape[2], w.shape[3]
        wq = jnp.transpose(w.reshape(9, cin, cout), (2, 0, 1)).reshape(cout, 9 * cin)
        conv_packed += [wq.astype(matmul_dtype), b.reshape(cout, 1),
                        s.reshape(cout, 1), t.reshape(cout, 1)]

    consts, pyramid = _build_constants(H, W, ps, bb, C)
    c_last = conv_params[-1][0].shape[-1]                     # 32

    kernel = functools.partial(_fused_forward_kernel, ps=ps, cdt=matmul_dtype)

    vmem_args = consts + conv_packed + pyramid
    in_specs = [pl.BlockSpec((None, C, H, Wp), lambda g: (g, 0, 0, 0)),
                pl.BlockSpec(memory_space=pltpu.MemorySpace.SMEM),
                pl.BlockSpec(memory_space=pltpu.MemorySpace.SMEM)]
    for a in vmem_args:   # constants/weights: constant index maps (no re-DMA)
        in_specs.append(pl.BlockSpec(a.shape, lambda g, _nd=a.ndim: (0,) * _nd))

    out = pl.pallas_call(
        kernel,
        out_shape=jax.ShapeDtypeStruct((nsteps, c_last, bb * OUTW), jnp.float32),
        grid=(nsteps,),
        in_specs=in_specs,
        out_specs=pl.BlockSpec((None, c_last, bb * OUTW), lambda g: (g, 0, 0)),
        compiler_params=pltpu.CompilerParams(dimension_semantics=("parallel",)),
    )(xp, c0w, c0b, *vmem_args)

    # un-fold the batch: (nsteps, 32, bb*128) -> (B, 32, 128)
    feats = out.reshape(nsteps, c_last, bb, OUTW).transpose(0, 2, 1, 3)
    feats = feats.reshape(B, c_last, OUTW)

    # Flatten each pyramid level in PyTorch (C, p, p) order and apply the FC.
    # (tiny (B, 2720) @ (2720, N); left to plain XLA per the perf review)
    wfc, bfc = fc_params
    blocks, off = [], 0
    for p in pool_size:
        pp = p * p
        blocks.append(feats[:, :, off:off + pp].reshape(B, c_last * pp))
        off += pp
    flat = jnp.concatenate(blocks, axis=1)                    # (B, 2720)
    return flat @ wfc + bfc


if __name__ == "__main__":
    B, C, H, W = 2, 2, 48, 48   # 48 -> conv(48) -> maxpool3 -> 16 -> pools 8/4/2/1
    num_outputs = 10

    key = jax.random.PRNGKey(0)
    kx, kp = jax.random.split(key)
    x = jax.random.normal(kx, (B, C, H, W), jnp.float32)
    conv_params, fc_params = init_params(kp, C, num_outputs, POOL_SIZE)

    fwd = jax.jit(functools.partial(spacial_recurrence_forward,
                                    pool_size=POOL_SIZE))
    out = fwd(x, conv_params, fc_params)
    jax.block_until_ready(out)
    assert out.shape == (B, num_outputs), out.shape
    assert bool(jnp.all(jnp.isfinite(out)))
    print("KERNEL_OK")
</pallas_src>

<mosaic_0001>
module attributes {stable_mosaic.version = 11 : i64} {
  func.func @_fused_forward_kernel(%arg0: i32, %arg1: memref<1x2x48x96xf32, #tpu.memory_space<vmem>>, %arg2: memref<36xf32, #tpu.memory_space<smem>>, %arg3: memref<2xf32, #tpu.memory_space<smem>>, %arg4: memref<48x48xf32, #tpu.memory_space<vmem>>, %arg5: memref<9x48x96xf32, #tpu.memory_space<vmem>>, %arg6: memref<16x48xf32, #tpu.memory_space<vmem>>, %arg7: memref<96x32xf32, #tpu.memory_space<vmem>>, %arg8: memref<32x512xf32, #tpu.memory_space<vmem>>, %arg9: memref<32x512xf32, #tpu.memory_space<vmem>>, %arg10: memref<2x32xf32, #tpu.memory_space<vmem>>, %arg11: memref<9x512xf32, #tpu.memory_space<vmem>>, %arg12: memref<32x18xbf16, #tpu.memory_space<vmem>>, %arg13: memref<32x1xf32, #tpu.memory_space<vmem>>, %arg14: memref<32x1xf32, #tpu.memory_space<vmem>>, %arg15: memref<32x1xf32, #tpu.memory_space<vmem>>, %arg16: memref<32x288xbf16, #tpu.memory_space<vmem>>, %arg17: memref<32x1xf32, #tpu.memory_space<vmem>>, %arg18: memref<32x1xf32, #tpu.memory_space<vmem>>, %arg19: memref<32x1xf32, #tpu.memory_space<vmem>>, %arg20: memref<32x288xbf16, #tpu.memory_space<vmem>>, %arg21: memref<32x1xf32, #tpu.memory_space<vmem>>, %arg22: memref<32x1xf32, #tpu.memory_space<vmem>>, %arg23: memref<32x1xf32, #tpu.memory_space<vmem>>, %arg24: memref<512x128xf32, #tpu.memory_space<vmem>>, %arg25: memref<128x32xf32, #tpu.memory_space<vmem>>, %arg26: memref<128x256xf32, #tpu.memory_space<vmem>>, %arg27: memref<32x256xf32, #tpu.memory_space<vmem>>, %arg28: memref<32x256xf32, #tpu.memory_space<vmem>>, %arg29: memref<32x256xf32, #tpu.memory_space<vmem>>, %arg30: memref<1x32x256xf32, #tpu.memory_space<vmem>>) attributes {dimension_semantics = [#tpu.dimension_semantics<parallel>], iteration_bounds = array<i64: 1>, scalar_prefetch = 0 : i64, scratch_operands = 0 : i64, tpu.core_type = #tpu.core_type<tc>, window_params = [{transform_indices = @transform_0, window_bounds = array<i64: 1, 2, 48, 96>}, {transform_indices = @transform_1, window_bounds = array<i64: 36>}, {transform_indices = @transform_2, window_bounds = array<i64: 2>}, {pipeline_mode = #tpu.pipeline_mode<synchronous>, transform_indices = @transform_3, window_bounds = array<i64: 48, 48>}, {pipeline_mode = #tpu.pipeline_mode<synchronous>, transform_indices = @transform_4, window_bounds = array<i64: 9, 48, 96>}, {pipeline_mode = #tpu.pipeline_mode<synchronous>, transform_indices = @transform_5, window_bounds = array<i64: 16, 48>}, {pipeline_mode = #tpu.pipeline_mode<synchronous>, transform_indices = @transform_6, window_bounds = array<i64: 96, 32>}, {pipeline_mode = #tpu.pipeline_mode<synchronous>, transform_indices = @transform_7, window_bounds = array<i64: 32, 512>}, {pipeline_mode = #tpu.pipeline_mode<synchronous>, transform_indices = @transform_8, window_bounds = array<i64: 32, 512>}, {pipeline_mode = #tpu.pipeline_mode<synchronous>, transform_indices = @transform_9, window_bounds = array<i64: 2, 32>}, {pipeline_mode = #tpu.pipeline_mode<synchronous>, transform_indices = @transform_10, window_bounds = array<i64: 9, 512>}, {pipeline_mode = #tpu.pipeline_mode<synchronous>, transform_indices = @transform_11, window_bounds = array<i64: 32, 18>}, {pipeline_mode = #tpu.pipeline_mode<synchronous>, transform_indices = @transform_12, window_bounds = array<i64: 32, 1>}, {pipeline_mode = #tpu.pipeline_mode<synchronous>, transform_indices = @transform_13, window_bounds = array<i64: 32, 1>}, {pipeline_mode = #tpu.pipeline_mode<synchronous>, transform_indices = @transform_14, window_bounds = array<i64: 32, 1>}, {pipeline_mode = #tpu.pipeline_mode<synchronous>, transform_indices = @transform_15, window_bounds = array<i64: 32, 288>}, {pipeline_mode = #tpu.pipeline_mode<synchronous>, transform_indices = @transform_16, window_bounds = array<i64: 32, 1>}, {pipeline_mode = #tpu.pipeline_mode<synchronous>, transform_indices = @transform_17, window_bounds = array<i64: 32, 1>}, {pipeline_mode = #tpu.pipeline_mode<synchronous>, transform_indices = @transform_18, window_bounds = array<i64: 32, 1>}, {pipeline_mode = #tpu.pipeline_mode<synchronous>, transform_indices = @transform_19, window_bounds = array<i64: 32, 288>}, {pipeline_mode = #tpu.pipeline_mode<synchronous>, transform_indices = @transform_20, window_bounds = array<i64: 32, 1>}, {pipeline_mode = #tpu.pipeline_mode<synchronous>, transform_indices = @transform_21, window_bounds = array<i64: 32, 1>}, {pipeline_mode = #tpu.pipeline_mode<synchronous>, transform_indices = @transform_22, window_bounds = array<i64: 32, 1>}, {pipeline_mode = #tpu.pipeline_mode<synchronous>, transform_indices = @transform_23, window_bounds = array<i64: 512, 128>}, {pipeline_mode = #tpu.pipeline_mode<synchronous>, transform_indices = @transform_24, window_bounds = array<i64: 128, 32>}, {pipeline_mode = #tpu.pipeline_mode<synchronous>, transform_indices = @transform_25, window_bounds = array<i64: 128, 256>}, {pipeline_mode = #tpu.pipeline_mode<synchronous>, transform_indices = @transform_26, window_bounds = array<i64: 32, 256>}, {pipeline_mode = #tpu.pipeline_mode<synchronous>, transform_indices = @transform_27, window_bounds = array<i64: 32, 256>}, {pipeline_mode = #tpu.pipeline_mode<synchronous>, transform_indices = @transform_28, window_bounds = array<i64: 32, 256>}, {transform_indices = @transform_29, window_bounds = array<i64: 1, 32, 256>}]} {
    %c0 = arith.constant 0 : index
    %c0_0 = arith.constant 0 : index
    %0 = vector.load %arg4[%c0, %c0_0] : memref<48x48xf32, #tpu.memory_space<vmem>>, vector<48x48xf32>
    %c0_1 = arith.constant 0 : index
    %c0_2 = arith.constant 0 : index
    %c0_3 = arith.constant 0 : index
    %c0_4 = arith.constant 0 : index
    %1 = vector.load %arg1[%c0_1, %c0_2, %c0_3, %c0_4] : memref<1x2x48x96xf32, #tpu.memory_space<vmem>>, vector<1x1x48x96xf32>
    %2 = vector.shape_cast %1 : vector<1x1x48x96xf32> to vector<48x96xf32>
    %cst = arith.constant dense<0.000000e+00> : vector<48x96xf32>
    %3 = tpu.matmul %0, %2, %cst {dimension_numbers = #tpu.dot_dimension_numbers<[1], [0], [0], [1], [0, 0, 1, 1], [], []>} : vector<48x48xf32>, vector<48x96xf32>, vector<48x96xf32> -> vector<48x96xf32>
    %c0_5 = arith.constant 0 : index
    %c1 = arith.constant 1 : index
    %c0_6 = arith.constant 0 : index
    %c0_7 = arith.constant 0 : index
    %4 = vector.load %arg1[%c0_5, %c1, %c0_6, %c0_7] : memref<1x2x48x96xf32, #tpu.memory_space<vmem>>, vector<1x1x48x96xf32>
    %5 = vector.shape_cast %4 : vector<1x1x48x96xf32> to vector<48x96xf32>
    %cst_8 = arith.constant dense<0.000000e+00> : vector<48x96xf32>
    %6 = tpu.matmul %0, %5, %cst_8 {dimension_numbers = #tpu.dot_dimension_numbers<[1], [0], [0], [1], [0, 0, 1, 1], [], []>} : vector<48x48xf32>, vector<48x96xf32>, vector<48x96xf32> -> vector<48x96xf32>
    %c0_9 = arith.constant 0 : index
    %c0_10 = arith.constant 0 : index
    %c0_11 = arith.constant 0 : index
    %7 = vector.load %arg5[%c0_9, %c0_10, %c0_11] : memref<9x48x96xf32, #tpu.memory_space<vmem>>, vector<1x48x96xf32>
    %8 = vector.shape_cast %7 : vector<1x48x96xf32> to vector<48x96xf32>
    %c1_12 = arith.constant 1 : index
    %c0_13 = arith.constant 0 : index
    %c0_14 = arith.constant 0 : index
    %9 = vector.load %arg5[%c1_12, %c0_13, %c0_14] : memref<9x48x96xf32, #tpu.memory_space<vmem>>, vector<1x48x96xf32>
    %10 = vector.shape_cast %9 : vector<1x48x96xf32> to vector<48x96xf32>
    %c2 = arith.constant 2 : index
    %c0_15 = arith.constant 0 : index
    %c0_16 = arith.constant 0 : index
    %11 = vector.load %arg5[%c2, %c0_15, %c0_16] : memref<9x48x96xf32, #tpu.memory_space<vmem>>, vector<1x48x96xf32>
    %12 = vector.shape_cast %11 : vector<1x48x96xf32> to vector<48x96xf32>
    %c3 = arith.constant 3 : index
    %c0_17 = arith.constant 0 : index
    %c0_18 = arith.constant 0 : index
    %13 = vector.load %arg5[%c3, %c0_17, %c0_18] : memref<9x48x96xf32, #tpu.memory_space<vmem>>, vector<1x48x96xf32>
    %14 = vector.shape_cast %13 : vector<1x48x96xf32> to vector<48x96xf32>
    %c5 = arith.constant 5 : index
    %c0_19 = arith.constant 0 : index
    %c0_20 = arith.constant 0 : index
    %15 = vector.load %arg5[%c5, %c0_19, %c0_20] : memref<9x48x96xf32, #tpu.memory_space<vmem>>, vector<1x48x96xf32>
    %16 = vector.shape_cast %15 : vector<1x48x96xf32> to vector<48x96xf32>
    %c6 = arith.constant 6 : index
    %c0_21 = arith.constant 0 : index
    %c0_22 = arith.constant 0 : index
    %17 = vector.load %arg5[%c6, %c0_21, %c0_22] : memref<9x48x96xf32, #tpu.memory_space<vmem>>, vector<1x48x96xf32>
    %18 = vector.shape_cast %17 : vector<1x48x96xf32> to vector<48x96xf32>
    %c7 = arith.constant 7 : index
    %c0_23 = arith.constant 0 : index
    %c0_24 = arith.constant 0 : index
    %19 = vector.load %arg5[%c7, %c0_23, %c0_24] : memref<9x48x96xf32, #tpu.memory_space<vmem>>, vector<1x48x96xf32>
    %20 = vector.shape_cast %19 : vector<1x48x96xf32> to vector<48x96xf32>
    %c8 = arith.constant 8 : index
    %c0_25 = arith.constant 0 : index
    %c0_26 = arith.constant 0 : index
    %21 = vector.load %arg5[%c8, %c0_25, %c0_26] : memref<9x48x96xf32, #tpu.memory_space<vmem>>, vector<1x48x96xf32>
    %22 = vector.shape_cast %21 : vector<1x48x96xf32> to vector<48x96xf32>
    %cst_27 = arith.constant 0.000000e+00 : f32
    %23 = vector.broadcast %cst_27 : f32 to vector<48x96xf32>
    %cst_28 = arith.constant 0.000000e+00 : f32
    %24 = vector.broadcast %cst_28 : f32 to vector<48x96xf32>
    %c1_i32 = arith.constant 1 : i32
    %25 = tpu.dynamic_rotate %3 by %c1_i32 dim 0 : vector<48x96xf32>, i32 -> vector<48x96xf32>
    %c1_i32_29 = arith.constant 1 : i32
    %26 = tpu.dynamic_rotate %25 by %c1_i32_29 dim 1 : vector<48x96xf32>, i32 -> vector<48x96xf32>
    %27 = arith.mulf %26, %8 : vector<48x96xf32>
    %c0_30 = arith.constant 0 : index
    %28 = memref.load %arg2[%c0_30] : memref<36xf32, #tpu.memory_space<smem>>
    %29 = vector.broadcast %28 : f32 to vector<48x96xf32>
    %30 = arith.mulf %27, %29 : vector<48x96xf32>
    %31 = arith.addf %23, %30 : vector<48x96xf32>
    %c1_31 = arith.constant 1 : index
    %32 = memref.load %arg2[%c1_31] : memref<36xf32, #tpu.memory_space<smem>>
    %33 = vector.broadcast %32 : f32 to vector<48x96xf32>
    %34 = arith.mulf %27, %33 : vector<48x96xf32>
    %35 = arith.addf %24, %34 : vector<48x96xf32>
    %36 = arith.mulf %25, %10 : vector<48x96xf32>
    %c4 = arith.constant 4 : index
    %37 = memref.load %arg2[%c4] : memref<36xf32, #tpu.memory_space<smem>>
    %38 = vector.broadcast %37 : f32 to vector<48x96xf32>
    %39 = arith.mulf %36, %38 : vector<48x96xf32>
    %40 = arith.addf %31, %39 : vector<48x96xf32>
    %c5_32 = arith.constant 5 : index
    %41 = memref.load %arg2[%c5_32] : memref<36xf32, #tpu.memory_space<smem>>
    %42 = vector.broadcast %41 : f32 to vector<48x96xf32>
    %43 = arith.mulf %36, %42 : vector<48x96xf32>
    %44 = arith.addf %35, %43 : vector<48x96xf32>
    %c95_i32 = arith.constant 95 : i32
    %45 = tpu.dynamic_rotate %25 by %c95_i32 dim 1 : vector<48x96xf32>, i32 -> vector<48x96xf32>
    %46 = arith.mulf %45, %12 : vector<48x96xf32>
    %c8_33 = arith.constant 8 : index
    %47 = memref.load %arg2[%c8_33] : memref<36xf32, #tpu.memory_space<smem>>
    %48 = vector.broadcast %47 : f32 to vector<48x96xf32>
    %49 = arith.mulf %46, %48 : vector<48x96xf32>
    %50 = arith.addf %40, %49 : vector<48x96xf32>
    %c9 = arith.constant 9 : index
    %51 = memref.load %arg2[%c9] : memref<36xf32, #tpu.memory_space<smem>>
    %52 = vector.broadcast %51 : f32 to vector<48x96xf32>
    %53 = arith.mulf %46, %52 : vector<48x96xf32>
    %54 = arith.addf %44, %53 : vector<48x96xf32>
    %c1_i32_34 = arith.constant 1 : i32
    %55 = tpu.dynamic_rotate %3 by %c1_i32_34 dim 1 : vector<48x96xf32>, i32 -> vector<48x96xf32>
    %56 = arith.mulf %55, %14 : vector<48x96xf32>
    %c12 = arith.constant 12 : index
    %57 = memref.load %arg2[%c12] : memref<36xf32, #tpu.memory_space<smem>>
    %58 = vector.broadcast %57 : f32 to vector<48x96xf32>
    %59 = arith.mulf %56, %58 : vector<48x96xf32>
    %60 = arith.addf %50, %59 : vector<48x96xf32>
    %c13 = arith.constant 13 : index
    %61 = memref.load %arg2[%c13] : memref<36xf32, #tpu.memory_space<smem>>
    %62 = vector.broadcast %61 : f32 to vector<48x96xf32>
    %63 = arith.mulf %56, %62 : vector<48x96xf32>
    %64 = arith.addf %54, %63 : vector<48x96xf32>
    %c16 = arith.constant 16 : index
    %65 = memref.load %arg2[%c16] : memref<36xf32, #tpu.memory_space<smem>>
    %66 = vector.broadcast %65 : f32 to vector<48x96xf32>
    %67 = arith.mulf %3, %66 : vector<48x96xf32>
    %68 = arith.addf %60, %67 : vector<48x96xf32>
    %c17 = arith.constant 17 : index
    %69 = memref.load %arg2[%c17] : memref<36xf32, #tpu.memory_space<smem>>
    %70 = vector.broadcast %69 : f32 to vector<48x96xf32>
    %71 = arith.mulf %3, %70 : vector<48x96xf32>
    %72 = arith.addf %64, %71 : vector<48x96xf32>
    %c95_i32_35 = arith.constant 95 : i32
    %73 = tpu.dynamic_rotate %3 by %c95_i32_35 dim 1 : vector<48x96xf32>, i32 -> vector<48x96xf32>
    %74 = arith.mulf %73, %16 : vector<48x96xf32>
    %c20 = arith.constant 20 : index
    %75 = memref.load %arg2[%c20] : memref<36xf32, #tpu.memory_space<smem>>
    %76 = vector.broadcast %75 : f32 to vector<48x96xf32>
    %77 = arith.mulf %74, %76 : vector<48x96xf32>
    %78 = arith.addf %68, %77 : vector<48x96xf32>
    %c21 = arith.constant 21 : index
    %79 = memref.load %arg2[%c21] : memref<36xf32, #tpu.memory_space<smem>>
    %80 = vector.broadcast %79 : f32 to vector<48x96xf32>
    %81 = arith.mulf %74, %80 : vector<48x96xf32>
    %82 = arith.addf %72, %81 : vector<48x96xf32>
    %c47_i32 = arith.constant 47 : i32
    %83 = tpu.dynamic_rotate %3 by %c47_i32 dim 0 : vector<48x96xf32>, i32 -> vector<48x96xf32>
    %c1_i32_36 = arith.constant 1 : i32
    %84 = tpu.dynamic_rotate %83 by %c1_i32_36 dim 1 : vector<48x96xf32>, i32 -> vector<48x96xf32>
    %85 = arith.mulf %84, %18 : vector<48x96xf32>
    %c24 = arith.constant 24 : index
    %86 = memref.load %arg2[%c24] : memref<36xf32, #tpu.memory_space<smem>>
    %87 = vector.broadcast %86 : f32 to vector<48x96xf32>
    %88 = arith.mulf %85, %87 : vector<48x96xf32>
    %89 = arith.addf %78, %88 : vector<48x96xf32>
    %c25 = arith.constant 25 : index
    %90 = memref.load %arg2[%c25] : memref<36xf32, #tpu.memory_space<smem>>
    %91 = vector.broadcast %90 : f32 to vector<48x96xf32>
    %92 = arith.mulf %85, %91 : vector<48x96xf32>
    %93 = arith.addf %82, %92 : vector<48x96xf32>
    %94 = arith.mulf %83, %20 : vector<48x96xf32>
    %c28 = arith.constant 28 : index
    %95 = memref.load %arg2[%c28] : memref<36xf32, #tpu.memory_space<smem>>
    %96 = vector.broadcast %95 : f32 to vector<48x96xf32>
    %97 = arith.mulf %94, %96 : vector<48x96xf32>
    %98 = arith.addf %89, %97 : vector<48x96xf32>
    %c29 = arith.constant 29 : index
    %99 = memref.load %arg2[%c29] : memref<36xf32, #tpu.memory_space<smem>>
    %100 = vector.broadcast %99 : f32 to vector<48x96xf32>
    %101 = arith.mulf %94, %100 : vector<48x96xf32>
    %102 = arith.addf %93, %101 : vector<48x96xf32>
    %c95_i32_37 = arith.constant 95 : i32
    %103 = tpu.dynamic_rotate %83 by %c95_i32_37 dim 1 : vector<48x96xf32>, i32 -> vector<48x96xf32>
    %104 = arith.mulf %103, %22 : vector<48x96xf32>
    %c32 = arith.constant 32 : index
    %105 = memref.load %arg2[%c32] : memref<36xf32, #tpu.memory_space<smem>>
    %106 = vector.broadcast %105 : f32 to vector<48x96xf32>
    %107 = arith.mulf %104, %106 : vector<48x96xf32>
    %108 = arith.addf %98, %107 : vector<48x96xf32>
    %c33 = arith.constant 33 : index
    %109 = memref.load %arg2[%c33] : memref<36xf32, #tpu.memory_space<smem>>
    %110 = vector.broadcast %109 : f32 to vector<48x96xf32>
    %111 = arith.mulf %104, %110 : vector<48x96xf32>
    %112 = arith.addf %102, %111 : vector<48x96xf32>
    %c1_i32_38 = arith.constant 1 : i32
    %113 = tpu.dynamic_rotate %6 by %c1_i32_38 dim 0 : vector<48x96xf32>, i32 -> vector<48x96xf32>
    %c1_i32_39 = arith.constant 1 : i32
    %114 = tpu.dynamic_rotate %113 by %c1_i32_39 dim 1 : vector<48x96xf32>, i32 -> vector<48x96xf32>
    %115 = arith.mulf %114, %8 : vector<48x96xf32>
    %c2_40 = arith.constant 2 : index
    %116 = memref.load %arg2[%c2_40] : memref<36xf32, #tpu.memory_space<smem>>
    %117 = vector.broadcast %116 : f32 to vector<48x96xf32>
    %118 = arith.mulf %115, %117 : vector<48x96xf32>
    %119 = arith.addf %108, %118 : vector<48x96xf32>
    %c3_41 = arith.constant 3 : index
    %120 = memref.load %arg2[%c3_41] : memref<36xf32, #tpu.memory_space<smem>>
    %121 = vector.broadcast %120 : f32 to vector<48x96xf32>
    %122 = arith.mulf %115, %121 : vector<48x96xf32>
    %123 = arith.addf %112, %122 : vector<48x96xf32>
    %124 = arith.mulf %113, %10 : vector<48x96xf32>
    %c6_42 = arith.constant 6 : index
    %125 = memref.load %arg2[%c6_42] : memref<36xf32, #tpu.memory_space<smem>>
    %126 = vector.broadcast %125 : f32 to vector<48x96xf32>
    %127 = arith.mulf %124, %126 : vector<48x96xf32>
    %128 = arith.addf %119, %127 : vector<48x96xf32>
    %c7_43 = arith.constant 7 : index
    %129 = memref.load %arg2[%c7_43] : memref<36xf32, #tpu.memory_space<smem>>
    %130 = vector.broadcast %129 : f32 to vector<48x96xf32>
    %131 = arith.mulf %124, %130 : vector<48x96xf32>
    %132 = arith.addf %123, %131 : vector<48x96xf32>
    %c95_i32_44 = arith.constant 95 : i32
    %133 = tpu.dynamic_rotate %113 by %c95_i32_44 dim 1 : vector<48x96xf32>, i32 -> vector<48x96xf32>
    %134 = arith.mulf %133, %12 : vector<48x96xf32>
    %c10 = arith.constant 10 : index
    %135 = memref.load %arg2[%c10] : memref<36xf32, #tpu.memory_space<smem>>
    %136 = vector.broadcast %135 : f32 to vector<48x96xf32>
    %137 = arith.mulf %134, %136 : vector<48x96xf32>
    %138 = arith.addf %128, %137 : vector<48x96xf32>
    %c11 = arith.constant 11 : index
    %139 = memref.load %arg2[%c11] : memref<36xf32, #tpu.memory_space<smem>>
    %140 = vector.broadcast %139 : f32 to vector<48x96xf32>
    %141 = arith.mulf %134, %140 : vector<48x96xf32>
    %142 = arith.addf %132, %141 : vector<48x96xf32>
    %c1_i32_45 = arith.constant 1 : i32
    %143 = tpu.dynamic_rotate %6 by %c1_i32_45 dim 1 : vector<48x96xf32>, i32 -> vector<48x96xf32>
    %144 = arith.mulf %143, %14 : vector<48x96xf32>
    %c14 = arith.constant 14 : index
    %145 = memref.load %arg2[%c14] : memref<36xf32, #tpu.memory_space<smem>>
    %146 = vector.broadcast %145 : f32 to vector<48x96xf32>
    %147 = arith.mulf %144, %146 : vector<48x96xf32>
    %148 = arith.addf %138, %147 : vector<48x96xf32>
    %c15 = arith.constant 15 : index
    %149 = memref.load %arg2[%c15] : memref<36xf32, #tpu.memory_space<smem>>
    %150 = vector.broadcast %149 : f32 to vector<48x96xf32>
    %151 = arith.mulf %144, %150 : vector<48x96xf32>
    %152 = arith.addf %142, %151 : vector<48x96xf32>
    %c18 = arith.constant 18 : index
    %153 = memref.load %arg2[%c18] : memref<36xf32, #tpu.memory_space<smem>>
    %154 = vector.broadcast %153 : f32 to vector<48x96xf32>
    %155 = arith.mulf %6, %154 : vector<48x96xf32>
    %156 = arith.addf %148, %155 : vector<48x96xf32>
    %c19 = arith.constant 19 : index
    %157 = memref.load %arg2[%c19] : memref<36xf32, #tpu.memory_space<smem>>
    %158 = vector.broadcast %157 : f32 to vector<48x96xf32>
    %159 = arith.mulf %6, %158 : vector<48x96xf32>
    %160 = arith.addf %152, %159 : vector<48x96xf32>
    %c95_i32_46 = arith.constant 95 : i32
    %161 = tpu.dynamic_rotate %6 by %c95_i32_46 dim 1 : vector<48x96xf32>, i32 -> vector<48x96xf32>
    %162 = arith.mulf %161, %16 : vector<48x96xf32>
    %c22 = arith.constant 22 : index
    %163 = memref.load %arg2[%c22] : memref<36xf32, #tpu.memory_space<smem>>
    %164 = vector.broadcast %163 : f32 to vector<48x96xf32>
    %165 = arith.mulf %162, %164 : vector<48x96xf32>
    %166 = arith.addf %156, %165 : vector<48x96xf32>
    %c23 = arith.constant 23 : index
    %167 = memref.load %arg2[%c23] : memref<36xf32, #tpu.memory_space<smem>>
    %168 = vector.broadcast %167 : f32 to vector<48x96xf32>
    %169 = arith.mulf %162, %168 : vector<48x96xf32>
    %170 = arith.addf %160, %169 : vector<48x96xf32>
    %c47_i32_47 = arith.constant 47 : i32
    %171 = tpu.dynamic_rotate %6 by %c47_i32_47 dim 0 : vector<48x96xf32>, i32 -> vector<48x96xf32>
    %c1_i32_48 = arith.constant 1 : i32
    %172 = tpu.dynamic_rotate %171 by %c1_i32_48 dim 1 : vector<48x96xf32>, i32 -> vector<48x96xf32>
    %173 = arith.mulf %172, %18 : vector<48x96xf32>
    %c26 = arith.constant 26 : index
    %174 = memref.load %arg2[%c26] : memref<36xf32, #tpu.memory_space<smem>>
    %175 = vector.broadcast %174 : f32 to vector<48x96xf32>
    %176 = arith.mulf %173, %175 : vector<48x96xf32>
    %177 = arith.addf %166, %176 : vector<48x96xf32>
    %c27 = arith.constant 27 : index
    %178 = memref.load %arg2[%c27] : memref<36xf32, #tpu.memory_space<smem>>
    %179 = vector.broadcast %178 : f32 to vector<48x96xf32>
    %180 = arith.mulf %173, %179 : vector<48x96xf32>
    %181 = arith.addf %170, %180 : vector<48x96xf32>
    %182 = arith.mulf %171, %20 : vector<48x96xf32>
    %c30 = arith.constant 30 : index
    %183 = memref.load %arg2[%c30] : memref<36xf32, #tpu.memory_space<smem>>
    %184 = vector.broadcast %183 : f32 to vector<48x96xf32>
    %185 = arith.mulf %182, %184 : vector<48x96xf32>
    %186 = arith.addf %177, %185 : vector<48x96xf32>
    %c31 = arith.constant 31 : index
    %187 = memref.load %arg2[%c31] : memref<36xf32, #tpu.memory_space<smem>>
    %188 = vector.broadcast %187 : f32 to vector<48x96xf32>
    %189 = arith.mulf %182, %188 : vector<48x96xf32>
    %190 = arith.addf %181, %189 : vector<48x96xf32>
    %c95_i32_49 = arith.constant 95 : i32
    %191 = tpu.dynamic_rotate %171 by %c95_i32_49 dim 1 : vector<48x96xf32>, i32 -> vector<48x96xf32>
    %192 = arith.mulf %191, %22 : vector<48x96xf32>
    %c34 = arith.constant 34 : index
    %193 = memref.load %arg2[%c34] : memref<36xf32, #tpu.memory_space<smem>>
    %194 = vector.broadcast %193 : f32 to vector<48x96xf32>
    %195 = arith.mulf %192, %194 : vector<48x96xf32>
    %196 = arith.addf %186, %195 : vector<48x96xf32>
    %c35 = arith.constant 35 : index
    %197 = memref.load %arg2[%c35] : memref<36xf32, #tpu.memory_space<smem>>
    %198 = vector.broadcast %197 : f32 to vector<48x96xf32>
    %199 = arith.mulf %192, %198 : vector<48x96xf32>
    %200 = arith.addf %190, %199 : vector<48x96xf32>
    %c0_50 = arith.constant 0 : index
    %201 = memref.load %arg3[%c0_50] : memref<2xf32, #tpu.memory_space<smem>>
    %202 = vector.broadcast %201 : f32 to vector<48x96xf32>
    %203 = arith.addf %196, %202 : vector<48x96xf32>
    %cst_51 = arith.constant 0.000000e+00 : f32
    %204 = vector.broadcast %cst_51 : f32 to vector<48x96xf32>
    %205 = arith.maximumf %203, %204 : vector<48x96xf32>
    %c1_52 = arith.constant 1 : index
    %206 = memref.load %arg3[%c1_52] : memref<2xf32, #tpu.memory_space<smem>>
    %207 = vector.broadcast %206 : f32 to vector<48x96xf32>
    %208 = arith.addf %200, %207 : vector<48x96xf32>
    %cst_53 = arith.constant 0.000000e+00 : f32
    %209 = vector.broadcast %cst_53 : f32 to vector<48x96xf32>
    %210 = arith.maximumf %208, %209 : vector<48x96xf32>
    %c0_54 = arith.constant 0 : index
    %c0_55 = arith.constant 0 : index
    %211 = vector.load %arg6[%c0_54, %c0_55] : memref<16x48xf32, #tpu.memory_space<vmem>>, vector<16x48xf32>
    %c0_56 = arith.constant 0 : index
    %c0_57 = arith.constant 0 : index
    %212 = vector.load %arg7[%c0_56, %c0_57] : memref<96x32xf32, #tpu.memory_space<vmem>>, vector<96x32xf32>
    %c47_i32_58 = arith.constant 47 : i32
    %213 = tpu.dynamic_rotate %205 by %c47_i32_58 dim 0 : vector<48x96xf32>, i32 -> vector<48x96xf32>
    %214 = arith.maximumf %205, %213 : vector<48x96xf32>
    %c46_i32 = arith.constant 46 : i32
    %215 = tpu.dynamic_rotate %205 by %c46_i32 dim 0 : vector<48x96xf32>, i32 -> vector<48x96xf32>
    %216 = arith.maximumf %214, %215 : vector<48x96xf32>
    %cst_59 = arith.constant dense<0.000000e+00> : vector<16x96xf32>
    %217 = tpu.matmul %211, %216, %cst_59 {dimension_numbers = #tpu.dot_dimension_numbers<[1], [0], [0], [1], [0, 0, 1, 1], [], []>} : vector<16x48xf32>, vector<48x96xf32>, vector<16x96xf32> -> vector<16x96xf32>
    %c95_i32_60 = arith.constant 95 : i32
    %218 = tpu.dynamic_rotate %217 by %c95_i32_60 dim 1 : vector<16x96xf32>, i32 -> vector<16x96xf32>
    %219 = arith.maximumf %217, %218 : vector<16x96xf32>
    %c94_i32 = arith.constant 94 : i32
    %220 = tpu.dynamic_rotate %217 by %c94_i32 dim 1 : vector<16x96xf32>, i32 -> vector<16x96xf32>
    %221 = arith.maximumf %219, %220 : vector<16x96xf32>
    %cst_61 = arith.constant dense<0.000000e+00> : vector<16x32xf32>
    %222 = tpu.matmul %221, %212, %cst_61 {dimension_numbers = #tpu.dot_dimension_numbers<[1], [0], [0], [1], [0, 0, 1, 1], [], []>} : vector<16x96xf32>, vector<96x32xf32>, vector<16x32xf32> -> vector<16x32xf32>
    %c47_i32_62 = arith.constant 47 : i32
    %223 = tpu.dynamic_rotate %210 by %c47_i32_62 dim 0 : vector<48x96xf32>, i32 -> vector<48x96xf32>
    %224 = arith.maximumf %210, %223 : vector<48x96xf32>
    %c46_i32_63 = arith.constant 46 : i32
    %225 = tpu.dynamic_rotate %210 by %c46_i32_63 dim 0 : vector<48x96xf32>, i32 -> vector<48x96xf32>
    %226 = arith.maximumf %224, %225 : vector<48x96xf32>
    %cst_64 = arith.constant dense<0.000000e+00> : vector<16x96xf32>
    %227 = tpu.matmul %211, %226, %cst_64 {dimension_numbers = #tpu.dot_dimension_numbers<[1], [0], [0], [1], [0, 0, 1, 1], [], []>} : vector<16x48xf32>, vector<48x96xf32>, vector<16x96xf32> -> vector<16x96xf32>
    %c95_i32_65 = arith.constant 95 : i32
    %228 = tpu.dynamic_rotate %227 by %c95_i32_65 dim 1 : vector<16x96xf32>, i32 -> vector<16x96xf32>
    %229 = arith.maximumf %227, %228 : vector<16x96xf32>
    %c94_i32_66 = arith.constant 94 : i32
    %230 = tpu.dynamic_rotate %227 by %c94_i32_66 dim 1 : vector<16x96xf32>, i32 -> vector<16x96xf32>
    %231 = arith.maximumf %229, %230 : vector<16x96xf32>
    %cst_67 = arith.constant dense<0.000000e+00> : vector<16x32xf32>
    %232 = tpu.matmul %231, %212, %cst_67 {dimension_numbers = #tpu.dot_dimension_numbers<[1], [0], [0], [1], [0, 0, 1, 1], [], []>} : vector<16x96xf32>, vector<96x32xf32>, vector<16x32xf32> -> vector<16x32xf32>
    %233 = tpu.concatenate %222, %232 in 0 : vector<16x32xf32>, vector<16x32xf32> -> vector<32x32xf32>
    %c0_68 = arith.constant 0 : index
    %c0_69 = arith.constant 0 : index
    %234 = vector.load %arg8[%c0_68, %c0_69] : memref<32x512xf32, #tpu.memory_space<vmem>>, vector<32x512xf32>
    %cst_70 = arith.constant dense<0.000000e+00> : vector<32x512xf32>
    %235 = tpu.matmul %233, %234, %cst_70 {dimension_numbers = #tpu.dot_dimension_numbers<[1], [0], [0], [1], [0, 0, 1, 1], [], []>} : vector<32x32xf32>, vector<32x512xf32>, vector<32x512xf32> -> vector<32x512xf32>
    %c0_71 = arith.constant 0 : index
    %c0_72 = arith.constant 0 : index
    %236 = vector.load %arg10[%c0_71, %c0_72] : memref<2x32xf32, #tpu.memory_space<vmem>>, vector<2x32xf32>
    %c0_73 = arith.constant 0 : index
    %c0_74 = arith.constant 0 : index
    %237 = vector.load %arg9[%c0_73, %c0_74] : memref<32x512xf32, #tpu.memory_space<vmem>>, vector<32x512xf32>
    %238 = arith.mulf %235, %237 : vector<32x512xf32>
    %cst_75 = arith.constant dense<0.000000e+00> : vector<2x512xf32>
    %239 = tpu.matmul %236, %238, %cst_75 {dimension_numbers = #tpu.dot_dimension_numbers<[1], [0], [0], [1], [0, 0, 1, 1], [], []>} : vector<2x32xf32>, vector<32x512xf32>, vector<2x512xf32> -> vector<2x512xf32>
    %c0_76 = arith.constant 0 : index
    %c0_77 = arith.constant 0 : index
    %240 = vector.load %arg11[%c0_76, %c0_77] : memref<9x512xf32, #tpu.memory_space<vmem>>, vector<1x512xf32>
    %c1_78 = arith.constant 1 : index
    %c0_79 = arith.constant 0 : index
    %241 = vector.load %arg11[%c1_78, %c0_79] : memref<9x512xf32, #tpu.memory_space<vmem>>, vector<1x512xf32>
    %c2_80 = arith.constant 2 : index
    %c0_81 = arith.constant 0 : index
    %242 = vector.load %arg11[%c2_80, %c0_81] : memref<9x512xf32, #tpu.memory_space<vmem>>, vector<1x512xf32>
    %c3_82 = arith.constant 3 : index
    %c0_83 = arith.constant 0 : index
    %243 = vector.load %arg11[%c3_82, %c0_83] : memref<9x512xf32, #tpu.memory_space<vmem>>, vector<1x512xf32>
    %c5_84 = arith.constant 5 : index
    %c0_85 = arith.constant 0 : index
    %244 = vector.load %arg11[%c5_84, %c0_85] : memref<9x512xf32, #tpu.memory_space<vmem>>, vector<1x512xf32>
    %c6_86 = arith.constant 6 : index
    %c0_87 = arith.constant 0 : index
    %245 = vector.load %arg11[%c6_86, %c0_87] : memref<9x512xf32, #tpu.memory_space<vmem>>, vector<1x512xf32>
    %c7_88 = arith.constant 7 : index
    %c0_89 = arith.constant 0 : index
    %246 = vector.load %arg11[%c7_88, %c0_89] : memref<9x512xf32, #tpu.memory_space<vmem>>, vector<1x512xf32>
    %c8_90 = arith.constant 8 : index
    %c0_91 = arith.constant 0 : index
    %247 = vector.load %arg11[%c8_90, %c0_91] : memref<9x512xf32, #tpu.memory_space<vmem>>, vector<1x512xf32>
    %c17_i32 = arith.constant 17 : i32
    %248 = tpu.dynamic_rotate %239 by %c17_i32 dim 1 : vector<2x512xf32>, i32 -> vector<2x512xf32>
    %249 = vector.broadcast %240 : vector<1x512xf32> to vector<2x512xf32>
    %250 = arith.mulf %248, %249 : vector<2x512xf32>
    %251 = arith.truncf %250 : vector<2x512xf32> to vector<2x512xbf16>
    %c16_i32 = arith.constant 16 : i32
    %252 = tpu.dynamic_rotate %239 by %c16_i32 dim 1 : vector<2x512xf32>, i32 -> vector<2x512xf32>
    %253 = vector.broadcast %241 : vector<1x512xf32> to vector<2x512xf32>
    %254 = arith.mulf %252, %253 : vector<2x512xf32>
    %255 = arith.truncf %254 : vector<2x512xf32> to vector<2x512xbf16>
    %c15_i32 = arith.constant 15 : i32
    %256 = tpu.dynamic_rotate %239 by %c15_i32 dim 1 : vector<2x512xf32>, i32 -> vector<2x512xf32>
    %257 = vector.broadcast %242 : vector<1x512xf32> to vector<2x512xf32>
    %258 = arith.mulf %256, %257 : vector<2x512xf32>
    %259 = arith.truncf %258 : vector<2x512xf32> to vector<2x512xbf16>
    %c1_i32_92 = arith.constant 1 : i32
    %260 = tpu.dynamic_rotate %239 by %c1_i32_92 dim 1 : vector<2x512xf32>, i32 -> vector<2x512xf32>
    %261 = vector.broadcast %243 : vector<1x512xf32> to vector<2x512xf32>
    %262 = arith.mulf %260, %261 : vector<2x512xf32>
    %263 = arith.truncf %262 : vector<2x512xf32> to vector<2x512xbf16>
    %264 = arith.truncf %239 : vector<2x512xf32> to vector<2x512xbf16>
    %c511_i32 = arith.constant 511 : i32
    %265 = tpu.dynamic_rotate %239 by %c511_i32 dim 1 : vector<2x512xf32>, i32 -> vector<2x512xf32>
    %266 = vector.broadcast %244 : vector<1x512xf32> to vector<2x512xf32>
    %267 = arith.mulf %265, %266 : vector<2x512xf32>
    %268 = arith.truncf %267 : vector<2x512xf32> to vector<2x512xbf16>
    %c497_i32 = arith.constant 497 : i32
    %269 = tpu.dynamic_rotate %239 by %c497_i32 dim 1 : vector<2x512xf32>, i32 -> vector<2x512xf32>
    %270 = vector.broadcast %245 : vector<1x512xf32> to vector<2x512xf32>
    %271 = arith.mulf %269, %270 : vector<2x512xf32>
    %272 = arith.truncf %271 : vector<2x512xf32> to vector<2x512xbf16>
    %c496_i32 = arith.constant 496 : i32
    %273 = tpu.dynamic_rotate %239 by %c496_i32 dim 1 : vector<2x512xf32>, i32 -> vector<2x512xf32>
    %274 = vector.broadcast %246 : vector<1x512xf32> to vector<2x512xf32>
    %275 = arith.mulf %273, %274 : vector<2x512xf32>
    %276 = arith.truncf %275 : vector<2x512xf32> to vector<2x512xbf16>
    %c495_i32 = arith.constant 495 : i32
    %277 = tpu.dynamic_rotate %239 by %c495_i32 dim 1 : vector<2x512xf32>, i32 -> vector<2x512xf32>
    %278 = vector.broadcast %247 : vector<1x512xf32> to vector<2x512xf32>
    %279 = arith.mulf %277, %278 : vector<2x512xf32>
    %280 = arith.truncf %279 : vector<2x512xf32> to vector<2x512xbf16>
    %281 = tpu.concatenate %251, %255, %259, %263, %264, %268, %272, %276, %280 in 0 : vector<2x512xbf16>, vector<2x512xbf16>, vector<2x512xbf16>, vector<2x512xbf16>, vector<2x512xbf16>, vector<2x512xbf16>, vector<2x512xbf16>, vector<2x512xbf16>, vector<2x512xbf16> -> vector<18x512xbf16>
    %c0_93 = arith.constant 0 : index
    %c0_94 = arith.constant 0 : index
    %282 = vector.load %arg12[%c0_93, %c0_94] : memref<32x18xbf16, #tpu.memory_space<vmem>>, vector<32x18xbf16>
    %cst_95 = arith.constant dense<0.000000e+00> : vector<32x512xf32>
    %283 = tpu.matmul %282, %281, %cst_95 {dimension_numbers = #tpu.dot_dimension_numbers<[1], [0], [0], [1], [0, 0, 1, 1], [], []>} : vector<32x18xbf16>, vector<18x512xbf16>, vector<32x512xf32> -> vector<32x512xf32>
    %c0_96 = arith.constant 0 : index
    %c0_97 = arith.constant 0 : index
    %284 = vector.load %arg13[%c0_96, %c0_97] : memref<32x1xf32, #tpu.memory_space<vmem>>, vector<32x1xf32>
    %285 = vector.broadcast %284 : vector<32x1xf32> to vector<32x512xf32>
    %286 = arith.addf %283, %285 : vector<32x512xf32>
    %cst_98 = arith.constant 0.000000e+00 : f32
    %287 = vector.broadcast %cst_98 : f32 to vector<32x512xf32>
    %288 = arith.maximumf %286, %287 : vector<32x512xf32>
    %c0_99 = arith.constant 0 : index
    %c0_100 = arith.constant 0 : index
    %289 = vector.load %arg14[%c0_99, %c0_100] : memref<32x1xf32, #tpu.memory_space<vmem>>, vector<32x1xf32>
    %290 = vector.broadcast %289 : vector<32x1xf32> to vector<32x512xf32>
    %291 = arith.mulf %288, %290 : vector<32x512xf32>
    %c0_101 = arith.constant 0 : index
    %c0_102 = arith.constant 0 : index
    %292 = vector.load %arg15[%c0_101, %c0_102] : memref<32x1xf32, #tpu.memory_space<vmem>>, vector<32x1xf32>
    %293 = vector.broadcast %292 : vector<32x1xf32> to vector<32x512xf32>
    %294 = arith.addf %291, %293 : vector<32x512xf32>
    %c17_i32_103 = arith.constant 17 : i32
    %295 = tpu.dynamic_rotate %294 by %c17_i32_103 dim 1 : vector<32x512xf32>, i32 -> vector<32x512xf32>
    %296 = vector.broadcast %240 : vector<1x512xf32> to vector<32x512xf32>
    %297 = arith.mulf %295, %296 : vector<32x512xf32>
    %298 = arith.truncf %297 : vector<32x512xf32> to vector<32x512xbf16>
    %c16_i32_104 = arith.constant 16 : i32
    %299 = tpu.dynamic_rotate %294 by %c16_i32_104 dim 1 : vector<32x512xf32>, i32 -> vector<32x512xf32>
    %300 = vector.broadcast %241 : vector<1x512xf32> to vector<32x512xf32>
    %301 = arith.mulf %299, %300 : vector<32x512xf32>
    %302 = arith.truncf %301 : vector<32x512xf32> to vector<32x512xbf16>
    %c15_i32_105 = arith.constant 15 : i32
    %303 = tpu.dynamic_rotate %294 by %c15_i32_105 dim 1 : vector<32x512xf32>, i32 -> vector<32x512xf32>
    %304 = vector.broadcast %242 : vector<1x512xf32> to vector<32x512xf32>
    %305 = arith.mulf %303, %304 : vector<32x512xf32>
    %306 = arith.truncf %305 : vector<32x512xf32> to vector<32x512xbf16>
    %c1_i32_106 = arith.constant 1 : i32
    %307 = tpu.dynamic_rotate %294 by %c1_i32_106 dim 1 : vector<32x512xf32>, i32 -> vector<32x512xf32>
    %308 = vector.broadcast %243 : vector<1x512xf32> to vector<32x512xf32>
    %309 = arith.mulf %307, %308 : vector<32x512xf32>
    %310 = arith.truncf %309 : vector<32x512xf32> to vector<32x512xbf16>
    %311 = arith.truncf %294 : vector<32x512xf32> to vector<32x512xbf16>
    %c511_i32_107 = arith.constant 511 : i32
    %312 = tpu.dynamic_rotate %294 by %c511_i32_107 dim 1 : vector<32x512xf32>, i32 -> vector<32x512xf32>
    %313 = vector.broadcast %244 : vector<1x512xf32> to vector<32x512xf32>
    %314 = arith.mulf %312, %313 : vector<32x512xf32>
    %315 = arith.truncf %314 : vector<32x512xf32> to vector<32x512xbf16>
    %c497_i32_108 = arith.constant 497 : i32
    %316 = tpu.dynamic_rotate %294 by %c497_i32_108 dim 1 : vector<32x512xf32>, i32 -> vector<32x512xf32>
    %317 = vector.broadcast %245 : vector<1x512xf32> to vector<32x512xf32>
    %318 = arith.mulf %316, %317 : vector<32x512xf32>
    %319 = arith.truncf %318 : vector<32x512xf32> to vector<32x512xbf16>
    %c496_i32_109 = arith.constant 496 : i32
    %320 = tpu.dynamic_rotate %294 by %c496_i32_109 dim 1 : vector<32x512xf32>, i32 -> vector<32x512xf32>
    %321 = vector.broadcast %246 : vector<1x512xf32> to vector<32x512xf32>
    %322 = arith.mulf %320, %321 : vector<32x512xf32>
    %323 = arith.truncf %322 : vector<32x512xf32> to vector<32x512xbf16>
    %c495_i32_110 = arith.constant 495 : i32
    %324 = tpu.dynamic_rotate %294 by %c495_i32_110 dim 1 : vector<32x512xf32>, i32 -> vector<32x512xf32>
    %325 = vector.broadcast %247 : vector<1x512xf32> to vector<32x512xf32>
    %326 = arith.mulf %324, %325 : vector<32x512xf32>
    %327 = arith.truncf %326 : vector<32x512xf32> to vector<32x512xbf16>
    %328 = tpu.concatenate %298, %302, %306, %310, %311, %315, %319, %323, %327 in 0 : vector<32x512xbf16>, vector<32x512xbf16>, vector<32x512xbf16>, vector<32x512xbf16>, vector<32x512xbf16>, vector<32x512xbf16>, vector<32x512xbf16>, vector<32x512xbf16>, vector<32x512xbf16> -> vector<288x512xbf16>
    %c0_111 = arith.constant 0 : index
    %c0_112 = arith.constant 0 : index
    %329 = vector.load %arg16[%c0_111, %c0_112] : memref<32x288xbf16, #tpu.memory_space<vmem>>, vector<32x288xbf16>
    %cst_113 = arith.constant dense<0.000000e+00> : vector<32x512xf32>
    %330 = tpu.matmul %329, %328, %cst_113 {dimension_numbers = #tpu.dot_dimension_numbers<[1], [0], [0], [1], [0, 0, 1, 1], [], []>} : vector<32x288xbf16>, vector<288x512xbf16>, vector<32x512xf32> -> vector<32x512xf32>
    %c0_114 = arith.constant 0 : index
    %c0_115 = arith.constant 0 : index
    %331 = vector.load %arg17[%c0_114, %c0_115] : memref<32x1xf32, #tpu.memory_space<vmem>>, vector<32x1xf32>
    %332 = vector.broadcast %331 : vector<32x1xf32> to vector<32x512xf32>
    %333 = arith.addf %330, %332 : vector<32x512xf32>
    %cst_116 = arith.constant 0.000000e+00 : f32
    %334 = vector.broadcast %cst_116 : f32 to vector<32x512xf32>
    %335 = arith.maximumf %333, %334 : vector<32x512xf32>
    %c0_117 = arith.constant 0 : index
    %c0_118 = arith.constant 0 : index
    %336 = vector.load %arg18[%c0_117, %c0_118] : memref<32x1xf32, #tpu.memory_space<vmem>>, vector<32x1xf32>
    %337 = vector.broadcast %336 : vector<32x1xf32> to vector<32x512xf32>
    %338 = arith.mulf %335, %337 : vector<32x512xf32>
    %c0_119 = arith.constant 0 : index
    %c0_120 = arith.constant 0 : index
    %339 = vector.load %arg19[%c0_119, %c0_120] : memref<32x1xf32, #tpu.memory_space<vmem>>, vector<32x1xf32>
    %340 = vector.broadcast %339 : vector<32x1xf32> to vector<32x512xf32>
    %341 = arith.addf %338, %340 : vector<32x512xf32>
    %c17_i32_121 = arith.constant 17 : i32
    %342 = tpu.dynamic_rotate %341 by %c17_i32_121 dim 1 : vector<32x512xf32>, i32 -> vector<32x512xf32>
    %343 = vector.broadcast %240 : vector<1x512xf32> to vector<32x512xf32>
    %344 = arith.mulf %342, %343 : vector<32x512xf32>
    %345 = arith.truncf %344 : vector<32x512xf32> to vector<32x512xbf16>
    %c16_i32_122 = arith.constant 16 : i32
    %346 = tpu.dynamic_rotate %341 by %c16_i32_122 dim 1 : vector<32x512xf32>, i32 -> vector<32x512xf32>
    %347 = vector.broadcast %241 : vector<1x512xf32> to vector<32x512xf32>
    %348 = arith.mulf %346, %347 : vector<32x512xf32>
    %349 = arith.truncf %348 : vector<32x512xf32> to vector<32x512xbf16>
    %c15_i32_123 = arith.constant 15 : i32
    %350 = tpu.dynamic_rotate %341 by %c15_i32_123 dim 1 : vector<32x512xf32>, i32 -> vector<32x512xf32>
    %351 = vector.broadcast %242 : vector<1x512xf32> to vector<32x512xf32>
    %352 = arith.mulf %350, %351 : vector<32x512xf32>
    %353 = arith.truncf %352 : vector<32x512xf32> to vector<32x512xbf16>
    %c1_i32_124 = arith.constant 1 : i32
    %354 = tpu.dynamic_rotate %341 by %c1_i32_124 dim 1 : vector<32x512xf32>, i32 -> vector<32x512xf32>
    %355 = vector.broadcast %243 : vector<1x512xf32> to vector<32x512xf32>
    %356 = arith.mulf %354, %355 : vector<32x512xf32>
    %357 = arith.truncf %356 : vector<32x512xf32> to vector<32x512xbf16>
    %358 = arith.truncf %341 : vector<32x512xf32> to vector<32x512xbf16>
    %c511_i32_125 = arith.constant 511 : i32
    %359 = tpu.dynamic_rotate %341 by %c511_i32_125 dim 1 : vector<32x512xf32>, i32 -> vector<32x512xf32>
    %360 = vector.broadcast %244 : vector<1x512xf32> to vector<32x512xf32>
    %361 = arith.mulf %359, %360 : vector<32x512xf32>
    %362 = arith.truncf %361 : vector<32x512xf32> to vector<32x512xbf16>
    %c497_i32_126 = arith.constant 497 : i32
    %363 = tpu.dynamic_rotate %341 by %c497_i32_126 dim 1 : vector<32x512xf32>, i32 -> vector<32x512xf32>
    %364 = vector.broadcast %245 : vector<1x512xf32> to vector<32x512xf32>
    %365 = arith.mulf %363, %364 : vector<32x512xf32>
    %366 = arith.truncf %365 : vector<32x512xf32> to vector<32x512xbf16>
    %c496_i32_127 = arith.constant 496 : i32
    %367 = tpu.dynamic_rotate %341 by %c496_i32_127 dim 1 : vector<32x512xf32>, i32 -> vector<32x512xf32>
    %368 = vector.broadcast %246 : vector<1x512xf32> to vector<32x512xf32>
    %369 = arith.mulf %367, %368 : vector<32x512xf32>
    %370 = arith.truncf %369 : vector<32x512xf32> to vector<32x512xbf16>
    %c495_i32_128 = arith.constant 495 : i32
    %371 = tpu.dynamic_rotate %341 by %c495_i32_128 dim 1 : vector<32x512xf32>, i32 -> vector<32x512xf32>
    %372 = vector.broadcast %247 : vector<1x512xf32> to vector<32x512xf32>
    %373 = arith.mulf %371, %372 : vector<32x512xf32>
    %374 = arith.truncf %373 : vector<32x512xf32> to vector<32x512xbf16>
    %375 = tpu.concatenate %345, %349, %353, %357, %358, %362, %366, %370, %374 in 0 : vector<32x512xbf16>, vector<32x512xbf16>, vector<32x512xbf16>, vector<32x512xbf16>, vector<32x512xbf16>, vector<32x512xbf16>, vector<32x512xbf16>, vector<32x512xbf16>, vector<32x512xbf16> -> vector<288x512xbf16>
    %c0_129 = arith.constant 0 : index
    %c0_130 = arith.constant 0 : index
    %376 = vector.load %arg20[%c0_129, %c0_130] : memref<32x288xbf16, #tpu.memory_space<vmem>>, vector<32x288xbf16>
    %cst_131 = arith.constant dense<0.000000e+00> : vector<32x512xf32>
    %377 = tpu.matmul %376, %375, %cst_131 {dimension_numbers = #tpu.dot_dimension_numbers<[1], [0], [0], [1], [0, 0, 1, 1], [], []>} : vector<32x288xbf16>, vector<288x512xbf16>, vector<32x512xf32> -> vector<32x512xf32>
    %c0_132 = arith.constant 0 : index
    %c0_133 = arith.constant 0 : index
    %378 = vector.load %arg21[%c0_132, %c0_133] : memref<32x1xf32, #tpu.memory_space<vmem>>, vector<32x1xf32>
    %379 = vector.broadcast %378 : vector<32x1xf32> to vector<32x512xf32>
    %380 = arith.addf %377, %379 : vector<32x512xf32>
    %cst_134 = arith.constant 0.000000e+00 : f32
    %381 = vector.broadcast %cst_134 : f32 to vector<32x512xf32>
    %382 = arith.maximumf %380, %381 : vector<32x512xf32>
    %c0_135 = arith.constant 0 : index
    %c0_136 = arith.constant 0 : index
    %383 = vector.load %arg22[%c0_135, %c0_136] : memref<32x1xf32, #tpu.memory_space<vmem>>, vector<32x1xf32>
    %384 = vector.broadcast %383 : vector<32x1xf32> to vector<32x512xf32>
    %385 = arith.mulf %382, %384 : vector<32x512xf32>
    %c0_137 = arith.constant 0 : index
    %c0_138 = arith.constant 0 : index
    %386 = vector.load %arg23[%c0_137, %c0_138] : memref<32x1xf32, #tpu.memory_space<vmem>>, vector<32x1xf32>
    %387 = vector.broadcast %386 : vector<32x1xf32> to vector<32x512xf32>
    %388 = arith.addf %385, %387 : vector<32x512xf32>
    %c511_i32_139 = arith.constant 511 : i32
    %389 = tpu.dynamic_rotate %388 by %c511_i32_139 dim 1 : vector<32x512xf32>, i32 -> vector<32x512xf32>
    %390 = arith.maximumf %388, %389 : vector<32x512xf32>
    %c496_i32_140 = arith.constant 496 : i32
    %391 = tpu.dynamic_rotate %388 by %c496_i32_140 dim 1 : vector<32x512xf32>, i32 -> vector<32x512xf32>
    %392 = arith.maximumf %390, %391 : vector<32x512xf32>
    %c495_i32_141 = arith.constant 495 : i32
    %393 = tpu.dynamic_rotate %388 by %c495_i32_141 dim 1 : vector<32x512xf32>, i32 -> vector<32x512xf32>
    %394 = arith.maximumf %392, %393 : vector<32x512xf32>
    %c0_142 = arith.constant 0 : index
    %c0_143 = arith.constant 0 : index
    %395 = vector.load %arg24[%c0_142, %c0_143] : memref<512x128xf32, #tpu.memory_space<vmem>>, vector<512x128xf32>
    %cst_144 = arith.constant dense<0.000000e+00> : vector<32x128xf32>
    %396 = tpu.matmul %394, %395, %cst_144 {dimension_numbers = #tpu.dot_dimension_numbers<[1], [0], [0], [1], [0, 0, 1, 1], [], []>} : vector<32x512xf32>, vector<512x128xf32>, vector<32x128xf32> -> vector<32x128xf32>
    %c127_i32 = arith.constant 127 : i32
    %397 = tpu.dynamic_rotate %396 by %c127_i32 dim 1 : vector<32x128xf32>, i32 -> vector<32x128xf32>
    %398 = arith.maximumf %396, %397 : vector<32x128xf32>
    %c120_i32 = arith.constant 120 : i32
    %399 = tpu.dynamic_rotate %396 by %c120_i32 dim 1 : vector<32x128xf32>, i32 -> vector<32x128xf32>
    %400 = arith.maximumf %398, %399 : vector<32x128xf32>
    %c119_i32 = arith.constant 119 : i32
    %401 = tpu.dynamic_rotate %396 by %c119_i32 dim 1 : vector<32x128xf32>, i32 -> vector<32x128xf32>
    %402 = arith.maximumf %400, %401 : vector<32x128xf32>
    %c0_145 = arith.constant 0 : index
    %c0_146 = arith.constant 0 : index
    %403 = vector.load %arg25[%c0_145, %c0_146] : memref<128x32xf32, #tpu.memory_space<vmem>>, vector<128x32xf32>
    %cst_147 = arith.constant dense<0.000000e+00> : vector<32x32xf32>
    %404 = tpu.matmul %402, %403, %cst_147 {dimension_numbers = #tpu.dot_dimension_numbers<[1], [0], [0], [1], [0, 0, 1, 1], [], []>} : vector<32x128xf32>, vector<128x32xf32>, vector<32x32xf32> -> vector<32x32xf32>
    %c31_i32 = arith.constant 31 : i32
    %405 = tpu.dynamic_rotate %404 by %c31_i32 dim 1 : vector<32x32xf32>, i32 -> vector<32x32xf32>
    %406 = arith.maximumf %404, %405 : vector<32x32xf32>
    %c28_i32 = arith.constant 28 : i32
    %407 = tpu.dynamic_rotate %404 by %c28_i32 dim 1 : vector<32x32xf32>, i32 -> vector<32x32xf32>
    %408 = arith.maximumf %406, %407 : vector<32x32xf32>
    %c27_i32 = arith.constant 27 : i32
    %409 = tpu.dynamic_rotate %404 by %c27_i32 dim 1 : vector<32x32xf32>, i32 -> vector<32x32xf32>
    %410 = arith.maximumf %408, %409 : vector<32x32xf32>
    %c31_i32_148 = arith.constant 31 : i32
    %411 = tpu.dynamic_rotate %404 by %c31_i32_148 dim 1 : vector<32x32xf32>, i32 -> vector<32x32xf32>
    %412 = arith.maximumf %404, %411 : vector<32x32xf32>
    %c30_i32 = arith.constant 30 : i32
    %413 = tpu.dynamic_rotate %412 by %c30_i32 dim 1 : vector<32x32xf32>, i32 -> vector<32x32xf32>
    %414 = arith.maximumf %412, %413 : vector<32x32xf32>
    %c28_i32_149 = arith.constant 28 : i32
    %415 = tpu.dynamic_rotate %414 by %c28_i32_149 dim 1 : vector<32x32xf32>, i32 -> vector<32x32xf32>
    %416 = arith.maximumf %414, %415 : vector<32x32xf32>
    %c24_i32 = arith.constant 24 : i32
    %417 = tpu.dynamic_rotate %416 by %c24_i32 dim 1 : vector<32x32xf32>, i32 -> vector<32x32xf32>
    %418 = arith.maximumf %416, %417 : vector<32x32xf32>
    %c0_150 = arith.constant 0 : index
    %c0_151 = arith.constant 0 : index
    %419 = vector.load %arg26[%c0_150, %c0_151] : memref<128x256xf32, #tpu.memory_space<vmem>>, vector<128x256xf32>
    %cst_152 = arith.constant dense<0.000000e+00> : vector<32x256xf32>
    %420 = tpu.matmul %396, %419, %cst_152 {dimension_numbers = #tpu.dot_dimension_numbers<[1], [0], [0], [1], [0, 0, 1, 1], [], []>} : vector<32x128xf32>, vector<128x256xf32>, vector<32x256xf32> -> vector<32x256xf32>
    %c0_153 = arith.constant 0 : index
    %c0_154 = arith.constant 0 : index
    %421 = vector.load %arg27[%c0_153, %c0_154] : memref<32x256xf32, #tpu.memory_space<vmem>>, vector<32x256xf32>
    %cst_155 = arith.constant dense<0.000000e+00> : vector<32x256xf32>
    %422 = tpu.matmul %404, %421, %cst_155 {dimension_numbers = #tpu.dot_dimension_numbers<[1], [0], [0], [1], [0, 0, 1, 1], [], []>} : vector<32x32xf32>, vector<32x256xf32>, vector<32x256xf32> -> vector<32x256xf32>
    %423 = arith.addf %420, %422 : vector<32x256xf32>
    %c0_156 = arith.constant 0 : index
    %c0_157 = arith.constant 0 : index
    %424 = vector.load %arg28[%c0_156, %c0_157] : memref<32x256xf32, #tpu.memory_space<vmem>>, vector<32x256xf32>
    %cst_158 = arith.constant dense<0.000000e+00> : vector<32x256xf32>
    %425 = tpu.matmul %410, %424, %cst_158 {dimension_numbers = #tpu.dot_dimension_numbers<[1], [0], [0], [1], [0, 0, 1, 1], [], []>} : vector<32x32xf32>, vector<32x256xf32>, vector<32x256xf32> -> vector<32x256xf32>
    %426 = arith.addf %423, %425 : vector<32x256xf32>
    %c0_159 = arith.constant 0 : index
    %c0_160 = arith.constant 0 : index
    %427 = vector.load %arg29[%c0_159, %c0_160] : memref<32x256xf32, #tpu.memory_space<vmem>>, vector<32x256xf32>
    %cst_161 = arith.constant dense<0.000000e+00> : vector<32x256xf32>
    %428 = tpu.matmul %418, %427, %cst_161 {dimension_numbers = #tpu.dot_dimension_numbers<[1], [0], [0], [1], [0, 0, 1, 1], [], []>} : vector<32x32xf32>, vector<32x256xf32>, vector<32x256xf32> -> vector<32x256xf32>
    %429 = arith.addf %426, %428 : vector<32x256xf32>
    %c0_162 = arith.constant 0 : index
    %c0_163 = arith.constant 0 : index
    %c0_164 = arith.constant 0 : index
    %430 = vector.load %arg30[%c0_162, %c0_163, %c0_164] : memref<1x32x256xf32, #tpu.memory_space<vmem>>, vector<1x32x256xf32>
    %431 = vector.shape_cast %430 : vector<1x32x256xf32> to vector<32x256xf32>
    %432 = vector.shape_cast %429 : vector<32x256xf32> to vector<1x32x256xf32>
    tpu.vector_store %arg30[%c0_162, %c0_163, %c0_164], %432 {strides = array<i32>} : memref<1x32x256xf32, #tpu.memory_space<vmem>>, vector<1x32x256xf32>,
    return
  }
  func.func @transform_0(%arg0: i32) -> (i32, i32, i32, i32) {
    %c0_i32 = arith.constant 0 : i32
    %c0_i32_0 = arith.constant 0 : i32
    %c0_i32_1 = arith.constant 0 : i32
    %c0_i32_2 = arith.constant 0 : i32
    return %arg0, %c0_i32, %c0_i32_0, %c0_i32_1 : i32, i32, i32, i32
  }
  func.func @transform_1(%arg0: i32) -> i32 {
    %c0_i32 = arith.constant 0 : i32
    %c0_i32_0 = arith.constant 0 : i32
    return %c0_i32 : i32
  }
  func.func @transform_2(%arg0: i32) -> i32 {
    %c0_i32 = arith.constant 0 : i32
    %c0_i32_0 = arith.constant 0 : i32
    return %c0_i32 : i32
  }
  func.func @transform_3(%arg0: i32) -> (i32, i32) {
    %c0_i32 = arith.constant 0 : i32
    %c0_i32_0 = arith.constant 0 : i32
    %c0_i32_1 = arith.constant 0 : i32
    return %c0_i32, %c0_i32_0 : i32, i32
  }
  func.func @transform_4(%arg0: i32) -> (i32, i32, i32) {
    %c0_i32 = arith.constant 0 : i32
    %c0_i32_0 = arith.constant 0 : i32
    %c0_i32_1 = arith.constant 0 : i32
    %c0_i32_2 = arith.constant 0 : i32
    return %c0_i32, %c0_i32_0, %c0_i32_1 : i32, i32, i32
  }
  func.func @transform_5(%arg0: i32) -> (i32, i32) {
    %c0_i32 = arith.constant 0 : i32
    %c0_i32_0 = arith.constant 0 : i32
    %c0_i32_1 = arith.constant 0 : i32
    return %c0_i32, %c0_i32_0 : i32, i32
  }
  func.func @transform_6(%arg0: i32) -> (i32, i32) {
    %c0_i32 = arith.constant 0 : i32
    %c0_i32_0 = arith.constant 0 : i32
    %c0_i32_1 = arith.constant 0 : i32
    return %c0_i32, %c0_i32_0 : i32, i32
  }
  func.func @transform_7(%arg0: i32) -> (i32, i32) {
    %c0_i32 = arith.constant 0 : i32
    %c0_i32_0 = arith.constant 0 : i32
    %c0_i32_1 = arith.constant 0 : i32
    return %c0_i32, %c0_i32_0 : i32, i32
  }
  func.func @transform_8(%arg0: i32) -> (i32, i32) {
    %c0_i32 = arith.constant 0 : i32
    %c0_i32_0 = arith.constant 0 : i32
    %c0_i32_1 = arith.constant 0 : i32
    return %c0_i32, %c0_i32_0 : i32, i32
  }
  func.func @transform_9(%arg0: i32) -> (i32, i32) {
    %c0_i32 = arith.constant 0 : i32
    %c0_i32_0 = arith.constant 0 : i32
    %c0_i32_1 = arith.constant 0 : i32
    return %c0_i32, %c0_i32_0 : i32, i32
  }
  func.func @transform_10(%arg0: i32) -> (i32, i32) {
    %c0_i32 = arith.constant 0 : i32
    %c0_i32_0 = arith.constant 0 : i32
    %c0_i32_1 = arith.constant 0 : i32
    return %c0_i32, %c0_i32_0 : i32, i32
  }
  func.func @transform_11(%arg0: i32) -> (i32, i32) {
    %c0_i32 = arith.constant 0 : i32
    %c0_i32_0 = arith.constant 0 : i32
    %c0_i32_1 = arith.constant 0 : i32
    return %c0_i32, %c0_i32_0 : i32, i32
  }
  func.func @transform_12(%arg0: i32) -> (i32, i32) {
    %c0_i32 = arith.constant 0 : i32
    %c0_i32_0 = arith.constant 0 : i32
    %c0_i32_1 = arith.constant 0 : i32
    return %c0_i32, %c0_i32_0 : i32, i32
  }
  func.func @transform_13(%arg0: i32) -> (i32, i32) {
    %c0_i32 = arith.constant 0 : i32
    %c0_i32_0 = arith.constant 0 : i32
    %c0_i32_1 = arith.constant 0 : i32
    return %c0_i32, %c0_i32_0 : i32, i32
  }
  func.func @transform_14(%arg0: i32) -> (i32, i32) {
    %c0_i32 = arith.constant 0 : i32
    %c0_i32_0 = arith.constant 0 : i32
    %c0_i32_1 = arith.constant 0 : i32
    return %c0_i32, %c0_i32_0 : i32, i32
  }
  func.func @transform_15(%arg0: i32) -> (i32, i32) {
    %c0_i32 = arith.constant 0 : i32
    %c0_i32_0 = arith.constant 0 : i32
    %c0_i32_1 = arith.constant 0 : i32
    return %c0_i32, %c0_i32_0 : i32, i32
  }
  func.func @transform_16(%arg0: i32) -> (i32, i32) {
    %c0_i32 = arith.constant 0 : i32
    %c0_i32_0 = arith.constant 0 : i32
    %c0_i32_1 = arith.constant 0 : i32
    return %c0_i32, %c0_i32_0 : i32, i32
  }
  func.func @transform_17(%arg0: i32) -> (i32, i32) {
    %c0_i32 = arith.constant 0 : i32
    %c0_i32_0 = arith.constant 0 : i32
    %c0_i32_1 = arith.constant 0 : i32
    return %c0_i32, %c0_i32_0 : i32, i32
  }
  func.func @transform_18(%arg0: i32) -> (i32, i32) {
    %c0_i32 = arith.constant 0 : i32
    %c0_i32_0 = arith.constant 0 : i32
    %c0_i32_1 = arith.constant 0 : i32
    return %c0_i32, %c0_i32_0 : i32, i32
  }
  func.func @transform_19(%arg0: i32) -> (i32, i32) {
    %c0_i32 = arith.constant 0 : i32
    %c0_i32_0 = arith.constant 0 : i32
    %c0_i32_1 = arith.constant 0 : i32
    return %c0_i32, %c0_i32_0 : i32, i32
  }
  func.func @transform_20(%arg0: i32) -> (i32, i32) {
    %c0_i32 = arith.constant 0 : i32
    %c0_i32_0 = arith.constant 0 : i32
    %c0_i32_1 = arith.constant 0 : i32
    return %c0_i32, %c0_i32_0 : i32, i32
  }
  func.func @transform_21(%arg0: i32) -> (i32, i32) {
    %c0_i32 = arith.constant 0 : i32
    %c0_i32_0 = arith.constant 0 : i32
    %c0_i32_1 = arith.constant 0 : i32
    return %c0_i32, %c0_i32_0 : i32, i32
  }
  func.func @transform_22(%arg0: i32) -> (i32, i32) {
    %c0_i32 = arith.constant 0 : i32
    %c0_i32_0 = arith.constant 0 : i32
    %c0_i32_1 = arith.constant 0 : i32
    return %c0_i32, %c0_i32_0 : i32, i32
  }
  func.func @transform_23(%arg0: i32) -> (i32, i32) {
    %c0_i32 = arith.constant 0 : i32
    %c0_i32_0 = arith.constant 0 : i32
    %c0_i32_1 = arith.constant 0 : i32
    return %c0_i32, %c0_i32_0 : i32, i32
  }
  func.func @transform_24(%arg0: i32) -> (i32, i32) {
    %c0_i32 = arith.constant 0 : i32
    %c0_i32_0 = arith.constant 0 : i32
    %c0_i32_1 = arith.constant 0 : i32
    return %c0_i32, %c0_i32_0 : i32, i32
  }
  func.func @transform_25(%arg0: i32) -> (i32, i32) {
    %c0_i32 = arith.constant 0 : i32
    %c0_i32_0 = arith.constant 0 : i32
    %c0_i32_1 = arith.constant 0 : i32
    return %c0_i32, %c0_i32_0 : i32, i32
  }
  func.func @transform_26(%arg0: i32) -> (i32, i32) {
    %c0_i32 = arith.constant 0 : i32
    %c0_i32_0 = arith.constant 0 : i32
    %c0_i32_1 = arith.constant 0 : i32
    return %c0_i32, %c0_i32_0 : i32, i32
  }
  func.func @transform_27(%arg0: i32) -> (i32, i32) {
    %c0_i32 = arith.constant 0 : i32
    %c0_i32_0 = arith.constant 0 : i32
    %c0_i32_1 = arith.constant 0 : i32
    return %c0_i32, %c0_i32_0 : i32, i32
  }
  func.func @transform_28(%arg0: i32) -> (i32, i32) {
    %c0_i32 = arith.constant 0 : i32
    %c0_i32_0 = arith.constant 0 : i32
    %c0_i32_1 = arith.constant 0 : i32
    return %c0_i32, %c0_i32_0 : i32, i32
  }
  func.func @transform_29(%arg0: i32) -> (i32, i32, i32) {
    %c0_i32 = arith.constant 0 : i32
    %c0_i32_0 = arith.constant 0 : i32
    %c0_i32_1 = arith.constant 0 : i32
    return %arg0, %c0_i32, %c0_i32_0 : i32, i32, i32
  }
}

</mosaic_0001>

<llo_original>
// kernel: spacial_recurrence_forward.1
$region0: #{spacial_recurrence_forward.1}
  #allocation0 [shape = 'u32[]', space=smem, size = 0x4, offset = 0x4, fixed_abs, tag = 'smem constant byte address 0x4 - core index']
  #allocation1 [shape = 'u32[144,128]{1,0:T(1,128)}', space=vmem, size = 0x12000, scoped, tag = 'internal scratch']
  %s0 = inlined_call_operand.smem [shape: u32[30], index: -1, kind: input, shape index: {}]
  %s1 = sld [smem:[%s0]]
  %s2 = scalar_lea.smem %s0, 1
  %s3 = sld [smem:[%s2]]
  %s4 = scalar_lea.smem %s0, 2
  %s5 = sld [smem:[%s4]]
  %s6 = scalar_lea.smem %s0, 3
  %s7 = sld [smem:[%s6]]
  %s8 = scalar_lea.smem %s0, 4
  %s9 = sld [smem:[%s8]]
  %s10 = scalar_lea.smem %s0, 5
  %s11 = sld [smem:[%s10]]
  %s12 = scalar_lea.smem %s0, 6
  %s13 = sld [smem:[%s12]]
  %s14 = scalar_lea.smem %s0, 7
  %s15 = sld [smem:[%s14]]
  %s16 = scalar_lea.smem %s0, 8
  %s17 = sld [smem:[%s16]]
  %s18 = scalar_lea.smem %s0, 9
  %s19 = sld [smem:[%s18]]
  %s20 = scalar_lea.smem %s0, 10
  %s21 = sld [smem:[%s20]]
  %s22 = scalar_lea.smem %s0, 11
  %s23 = sld [smem:[%s22]]
  %s24 = scalar_lea.smem %s0, 12
  %s25 = sld [smem:[%s24]]
  %s26 = scalar_lea.smem %s0, 13
  %s27 = sld [smem:[%s26]]
  %s28 = scalar_lea.smem %s0, 14
  %s29 = sld [smem:[%s28]]
  %s30 = scalar_lea.smem %s0, 15
  %s31 = sld [smem:[%s30]]
  %s32 = scalar_lea.smem %s0, 16
  %s33 = sld [smem:[%s32]]
  %s34 = scalar_lea.smem %s0, 17
  %s35 = sld [smem:[%s34]]
  %s36 = scalar_lea.smem %s0, 18
  %s37 = sld [smem:[%s36]]
  %s38 = scalar_lea.smem %s0, 19
  %s39 = sld [smem:[%s38]]
  %s40 = scalar_lea.smem %s0, 20
  %s41 = sld [smem:[%s40]]
  %s42 = scalar_lea.smem %s0, 21
  %s43 = sld [smem:[%s42]]
  %s44 = scalar_lea.smem %s0, 22
  %s45 = sld [smem:[%s44]]
  %s46 = scalar_lea.smem %s0, 23
  %s47 = sld [smem:[%s46]]
  %s48 = scalar_lea.smem %s0, 24
  %s49 = sld [smem:[%s48]]
  %s50 = scalar_lea.smem %s0, 25
  %s51 = sld [smem:[%s50]]
  %s52 = scalar_lea.smem %s0, 26
  %s53 = sld [smem:[%s52]]
  %s54 = scalar_lea.smem %s0, 27
  %s55 = sld [smem:[%s54]]
  %s56 = scalar_lea.smem %s0, 28
  %s57 = sld [smem:[%s56]]
  %s58 = scalar_lea.smem %s0, 29
  %s59 = sld [smem:[%s58]]
  %s60 = sld [smem:[#allocation0]]
  $region146: #{spacial_recurrence_forward.1} parent=0
    _
  %s62 = ssub.s32 1, %s60
  %s63 = scalar_select 0, %s62, %s60
  $region1: #{spacial_recurrence_forward.1} parent=0
    #allocation2 [shape = 'u8[512]{0}', space=smem, size = 0x200, scoped, tag = 'input window, operand 1, single buffered']
    #allocation3 [shape = 's32[1]{0}', space=sflag, size = 0x4, scoped, tag = 'scoped memory for spacial_recurrence_forward.1']
    #allocation4 [shape = 's32[1]{0}', space=sflag, size = 0x4, scoped, tag = 'scoped memory for spacial_recurrence_forward.1']
    #allocation5 [shape = 'u8[512]{0}', space=smem, size = 0x200, scoped, tag = 'input window, operand 2, single buffered']
    #allocation6 [shape = 's32[1]{0}', space=sflag, size = 0x4, scoped, tag = 'scoped memory for spacial_recurrence_forward.1']
    #allocation7 [shape = 'u8[24576]{0}', space=vmem, size = 0x6000, scoped, tag = 'input window, operand 3, single buffered']
    #allocation8 [shape = 'u8[32768]{0}', space=vmem, size = 0x8000, scoped, tag = 'input window, operand 27, single buffered']
    #allocation9 [shape = 's32[1]{0}', space=sflag, size = 0x4, scoped, tag = 'scoped memory for spacial_recurrence_forward.1']
    #allocation10 [shape = 'u8[32768]{0}', space=vmem, size = 0x8000, scoped, tag = 'input window, operand 28, single buffered']
    %64 = vsyncpa [#allocation4], 0
    %65 = vsyncpa [#allocation6], 0
    %66 = vsyncpa [#allocation3], 0
    %67 = vsyncpa [#allocation9], 0
    // Predicated region
    $region2: #{spacial_recurrence_forward.1} parent=1 // pred_check
      _
    $region3: #{spacial_recurrence_forward.1} parent=1 // pred_check_branch
      %69 = sbr.rel (0) target = $region5
    $region4: #{spacial_recurrence_forward.1} parent=1 // pred_region
      _
    $region5: #{spacial_recurrence_forward.1} parent=1 // pred_fallthru
      _
    // Predicated region
    $region6: #{spacial_recurrence_forward.1} parent=1 // pred_check
      _
    $region7: #{spacial_recurrence_forward.1} parent=1 // pred_check_branch
      %71 = sbr.rel (0) target = $region9
    $region8: #{spacial_recurrence_forward.1} parent=1 // pred_region
      %s73 = ssub.s32 16, 16
      %74 = vsyncadd [#allocation4], %s73
      %s76 = sshll.u32 %s3, 4
      %s77 = int_to_ptr.vmem [resolvable:$true] %s76
      %79 = dma.vmem_to_smem %s77, 16, [#allocation2], [#allocation4]
    $region9: #{spacial_recurrence_forward.1} parent=1 // pred_fallthru
      _
    // Predicated region
    $region10: #{spacial_recurrence_forward.1} parent=1 // pred_check
      _
    $region11: #{spacial_recurrence_forward.1} parent=1 // pred_check_branch
      %81 = sbr.rel (0) target = $region13
    $region12: #{spacial_recurrence_forward.1} parent=1 // pred_region
      %s83 = ssub.s32 16, 16
      %84 = vsyncadd [#allocation6], %s83
      %s86 = sshll.u32 %s5, 4
      %s87 = int_to_ptr.vmem [resolvable:$true] %s86
      %89 = dma.vmem_to_smem %s87, 16, [#allocation5], [#allocation6]
    $region13: #{spacial_recurrence_forward.1} parent=1 // pred_fallthru
      _
    // Predicated region
    $region14: #{spacial_recurrence_forward.1} parent=1 // pred_check
      _
    $region15: #{spacial_recurrence_forward.1} parent=1 // pred_check_branch
      %91 = sbr.rel (0) target = $region17
    $region16: #{spacial_recurrence_forward.1} parent=1 // pred_region
      %s93 = ssub.s32 768, 768
      %94 = vsyncadd [#allocation3], %s93
      %s95 = sshll.u32 [#allocation7], 4
      %s96 = int_to_ptr.vmem [resolvable:$true] %s95
      %101 = dma.hbm_to_vmem [thread:$0]  %s7, 768, %s96, [#allocation3], 128, 128, 8
    $region17: #{spacial_recurrence_forward.1} parent=1 // pred_fallthru
      _
    // Predicated region
    $region18: #{spacial_recurrence_forward.1} parent=1 // pred_check
      _
    $region19: #{spacial_recurrence_forward.1} parent=1 // pred_check_branch
      %103 = sbr.rel (0) target = $region21
    $region20: #{spacial_recurrence_forward.1} parent=1 // pred_region
      _
    $region21: #{spacial_recurrence_forward.1} parent=1 // pred_fallthru
      _
    // Predicated region
    $region22: #{spacial_recurrence_forward.1} parent=1 // pred_check
      _
    $region23: #{spacial_recurrence_forward.1} parent=1 // pred_check_branch
      %105 = sbr.rel (0) target = $region25
    $region24: #{spacial_recurrence_forward.1} parent=1 // pred_region
      _
    $region25: #{spacial_recurrence_forward.1} parent=1 // pred_fallthru
      _
    // Predicated region
    $region26: #{spacial_recurrence_forward.1} parent=1 // pred_check
      _
    $region27: #{spacial_recurrence_forward.1} parent=1 // pred_check_branch
      %107 = sbr.rel (0) target = $region29
    $region28: #{spacial_recurrence_forward.1} parent=1 // pred_region
      _
    $region29: #{spacial_recurrence_forward.1} parent=1 // pred_fallthru
      _
    // Predicated region
    $region30: #{spacial_recurrence_forward.1} parent=1 // pred_check
      _
    $region31: #{spacial_recurrence_forward.1} parent=1 // pred_check_branch
      %109 = sbr.rel (0) target = $region33
    $region32: #{spacial_recurrence_forward.1} parent=1 // pred_region
      _
    $region33: #{spacial_recurrence_forward.1} parent=1 // pred_fallthru
      _
    // Predicated region
    $region34: #{spacial_recurrence_forward.1} parent=1 // pred_check
      _
    $region35: #{spacial_recurrence_forward.1} parent=1 // pred_check_branch
      %111 = sbr.rel (0) target = $region37
    $region36: #{spacial_recurrence_forward.1} parent=1 // pred_region
      _
    $region37: #{spacial_recurrence_forward.1} parent=1 // pred_fallthru
      _
    // Predicated region
    $region38: #{spacial_recurrence_forward.1} parent=1 // pred_check
      _
    $region39: #{spacial_recurrence_forward.1} parent=1 // pred_check_branch
      %113 = sbr.rel (0) target = $region41
    $region40: #{spacial_recurrence_forward.1} parent=1 // pred_region
      _
    $region41: #{spacial_recurrence_forward.1} parent=1 // pred_fallthru
      _
    // Predicated region
    $region42: #{spacial_recurrence_forward.1} parent=1 // pred_check
      _
    $region43: #{spacial_recurrence_forward.1} parent=1 // pred_check_branch
      %115 = sbr.rel (0) target = $region45
    $region44: #{spacial_recurrence_forward.1} parent=1 // pred_region
      _
    $region45: #{spacial_recurrence_forward.1} parent=1 // pred_fallthru
      _
    // Predicated region
    $region46: #{spacial_recurrence_forward.1} parent=1 // pred_check
      _
    $region47: #{spacial_recurrence_forward.1} parent=1 // pred_check_branch
      %117 = sbr.rel (0) target = $region49
    $region48: #{spacial_recurrence_forward.1} parent=1 // pred_region
      _
    $region49: #{spacial_recurrence_forward.1} parent=1 // pred_fallthru
      _
    // Predicated region
    $region50: #{spacial_recurrence_forward.1} parent=1 // pred_check
      _
    $region51: #{spacial_recurrence_forward.1} parent=1 // pred_check_branch
      %119 = sbr.rel (0) target = $region53
    $region52: #{spacial_recurrence_forward.1} parent=1 // pred_region
      _
    $region53: #{spacial_recurrence_forward.1} parent=1 // pred_fallthru
      _
    // Predicated region
    $region54: #{spacial_recurrence_forward.1} parent=1 // pred_check
      _
    $region55: #{spacial_recurrence_forward.1} parent=1 // pred_check_branch
      %121 = sbr.rel (0) target = $region57
    $region56: #{spacial_recurrence_forward.1} parent=1 // pred_region
      _
    $region57: #{spacial_recurrence_forward.1} parent=1 // pred_fallthru
      _
    // Predicated region
    $region58: #{spacial_recurrence_forward.1} parent=1 // pred_check
      _
    $region59: #{spacial_recurrence_forward.1} parent=1 // pred_check_branch
      %123 = sbr.rel (0) target = $region61
    $region60: #{spacial_recurrence_forward.1} parent=1 // pred_region
      _
    $region61: #{spacial_recurrence_forward.1} parent=1 // pred_fallthru
      _
    // Predicated region
    $region62: #{spacial_recurrence_forward.1} parent=1 // pred_check
      _
    $region63: #{spacial_recurrence_forward.1} parent=1 // pred_check_branch
      %125 = sbr.rel (0) target = $region65
    $region64: #{spacial_recurrence_forward.1} parent=1 // pred_region
      _
    $region65: #{spacial_recurrence_forward.1} parent=1 // pred_fallthru
      _
    // Predicated region
    $region66: #{spacial_recurrence_forward.1} parent=1 // pred_check
      _
    $region67: #{spacial_recurrence_forward.1} parent=1 // pred_check_branch
      %127 = sbr.rel (0) target = $region69
    $region68: #{spacial_recurrence_forward.1} parent=1 // pred_region
      _
    $region69: #{spacial_recurrence_forward.1} parent=1 // pred_fallthru
      _
    // Predicated region
    $region70: #{spacial_recurrence_forward.1} parent=1 // pred_check
      _
    $region71: #{spacial_recurrence_forward.1} parent=1 // pred_check_branch
      %129 = sbr.rel (0) target = $region73
    $region72: #{spacial_recurrence_forward.1} parent=1 // pred_region
      _
    $region73: #{spacial_recurrence_forward.1} parent=1 // pred_fallthru
      _
    // Predicated region
    $region74: #{spacial_recurrence_forward.1} parent=1 // pred_check
      _
    $region75: #{spacial_recurrence_forward.1} parent=1 // pred_check_branch
      %131 = sbr.rel (0) target = $region77
    $region76: #{spacial_recurrence_forward.1} parent=1 // pred_region
      _
    $region77: #{spacial_recurrence_forward.1} parent=1 // pred_fallthru
      _
    // Predicated region
    $region78: #{spacial_recurrence_forward.1} parent=1 // pred_check
      _
    $region79: #{spacial_recurrence_forward.1} parent=1 // pred_check_branch
      %133 = sbr.rel (0) target = $region81
    $region80: #{spacial_recurrence_forward.1} parent=1 // pred_region
      _
    $region81: #{spacial_recurrence_forward.1} parent=1 // pred_fallthru
      _
    // Predicated region
    $region82: #{spacial_recurrence_forward.1} parent=1 // pred_check
      _
    $region83: #{spacial_recurrence_forward.1} parent=1 // pred_check_branch
      %135 = sbr.rel (0) target = $region85
    $region84: #{spacial_recurrence_forward.1} parent=1 // pred_region
      _
    $region85: #{spacial_recurrence_forward.1} parent=1 // pred_fallthru
      _
    // Predicated region
    $region86: #{spacial_recurrence_forward.1} parent=1 // pred_check
      _
    $region87: #{spacial_recurrence_forward.1} parent=1 // pred_check_branch
      %137 = sbr.rel (0) target = $region89
    $region88: #{spacial_recurrence_forward.1} parent=1 // pred_region
      _
    $region89: #{spacial_recurrence_forward.1} parent=1 // pred_fallthru
      _
    // Predicated region
    $region90: #{spacial_recurrence_forward.1} parent=1 // pred_check
      _
    $region91: #{spacial_recurrence_forward.1} parent=1 // pred_check_branch
      %139 = sbr.rel (0) target = $region93
    $region92: #{spacial_recurrence_forward.1} parent=1 // pred_region
      _
    $region93: #{spacial_recurrence_forward.1} parent=1 // pred_fallthru
      _
    // Predicated region
    $region94: #{spacial_recurrence_forward.1} parent=1 // pred_check
      _
    $region95: #{spacial_recurrence_forward.1} parent=1 // pred_check_branch
      %141 = sbr.rel (0) target = $region97
    $region96: #{spacial_recurrence_forward.1} parent=1 // pred_region
      _
    $region97: #{spacial_recurrence_forward.1} parent=1 // pred_fallthru
      _
    // Predicated region
    $region98: #{spacial_recurrence_forward.1} parent=1 // pred_check
      _
    $region99: #{spacial_recurrence_forward.1} parent=1 // pred_check_branch
      %143 = sbr.rel (0) target = $region101
    $region100: #{spacial_recurrence_forward.1} parent=1 // pred_region
      _
    $region101: #{spacial_recurrence_forward.1} parent=1 // pred_fallthru
      _
    // Predicated region
    $region102: #{spacial_recurrence_forward.1} parent=1 // pred_check
      _
    $region103: #{spacial_recurrence_forward.1} parent=1 // pred_check_branch
      %145 = sbr.rel (0) target = $region105
    $region104: #{spacial_recurrence_forward.1} parent=1 // pred_region
      _
    $region105: #{spacial_recurrence_forward.1} parent=1 // pred_fallthru
      _
    // Predicated region
    $region106: #{spacial_recurrence_forward.1} parent=1 // pred_check
      _
    $region107: #{spacial_recurrence_forward.1} parent=1 // pred_check_branch
      %147 = sbr.rel (0) target = $region109
    $region108: #{spacial_recurrence_forward.1} parent=1 // pred_region
      _
    $region109: #{spacial_recurrence_forward.1} parent=1 // pred_fallthru
      _
    // Predicated region
    $region110: #{spacial_recurrence_forward.1} parent=1 // pred_check
      _
    $region111: #{spacial_recurrence_forward.1} parent=1 // pred_check_branch
      %149 = sbr.rel (0) target = $region113
    $region112: #{spacial_recurrence_forward.1} parent=1 // pred_region
      %s151 = ssub.s32 1024, 1024
      %152 = vsyncadd [#allocation9], %s151
      %s153 = sshll.u32 [#allocation8], 4
      %s154 = int_to_ptr.vmem [resolvable:$true] %s153
      %159 = dma.hbm_to_vmem [thread:$0]  %s55, 1024, %s154, [#allocation9], 256, 256, 16
    $region113: #{spacial_recurrence_forward.1} parent=1 // pred_fallthru
      _
    // Predicated region
    $region114: #{spacial_recurrence_forward.1} parent=1 // pred_check
      _
    $region115: #{spacial_recurrence_forward.1} parent=1 // pred_check_branch
      %161 = sbr.rel (0) target = $region117
    $region116: #{spacial_recurrence_forward.1} parent=1 // pred_region
      %s163 = ssub.s32 1024, 1024
      %164 = vsyncadd [#allocation9], %s163
      %s165 = sshll.u32 [#allocation10], 4
      %s166 = int_to_ptr.vmem [resolvable:$true] %s165
      %171 = dma.hbm_to_vmem [thread:$0]  %s57, 1024, %s166, [#allocation9], 256, 256, 16
    $region117: #{spacial_recurrence_forward.1} parent=1 // pred_fallthru
      _
    // Predicated region
    $region118: #{spacial_recurrence_forward.1} parent=1 // pred_check
      _
    $region119: #{spacial_recurrence_forward.1} parent=1 // pred_check_branch
      %173 = sbr.rel (0) target = $region121
    $region120: #{spacial_recurrence_forward.1} parent=1 // pred_region
      %174 = dma.done [#allocation4], 16
    $region121: #{spacial_recurrence_forward.1} parent=1 // pred_fallthru
      _
    // Predicated region
    $region122: #{spacial_recurrence_forward.1} parent=1 // pred_check
      _
    $region123: #{spacial_recurrence_forward.1} parent=1 // pred_check_branch
      %176 = sbr.rel (0) target = $region125
    $region124: #{spacial_recurrence_forward.1} parent=1 // pred_region
      %177 = dma.done [#allocation6], 16
    $region125: #{spacial_recurrence_forward.1} parent=1 // pred_fallthru
      _
    // Predicated region
    $region126: #{spacial_recurrence_forward.1} parent=1 // pred_check
      _
    $region127: #{spacial_recurrence_forward.1} parent=1 // pred_check_branch
      %179 = sbr.rel (0) target = $region129
    $region128: #{spacial_recurrence_forward.1} parent=1 // pred_region
      %180 = dma.done [#allocation3], 768
    $region129: #{spacial_recurrence_forward.1} parent=1 // pred_fallthru
      _
    // Predicated region
    $region130: #{spacial_recurrence_forward.1} parent=1 // pred_check
      _
    $region131: #{spacial_recurrence_forward.1} parent=1 // pred_check_branch
      %182 = sbr.rel (0) target = $region133
    $region132: #{spacial_recurrence_forward.1} parent=1 // pred_region
      %183 = dma.done [#allocation9], 1024
    $region133: #{spacial_recurrence_forward.1} parent=1 // pred_fallthru
      _
    // Predicated region
    $region134: #{spacial_recurrence_forward.1} parent=1 // pred_check
      _
    $region135: #{spacial_recurrence_forward.1} parent=1 // pred_check_branch
      %185 = sbr.rel (0) target = $region137
    $region136: #{spacial_recurrence_forward.1} parent=1 // pred_region
      %186 = dma.done [#allocation9], 1024
    $region137: #{spacial_recurrence_forward.1} parent=1 // pred_fallthru
      _
    %187 = sfence
    %v189 = vld [vmem:[#allocation7] sm:$0xff]
    %v190 = vld [vmem:[#allocation7 + $0x8] sm:$0xff]
    %v191 = vld [vmem:[#allocation7 + $0x10] sm:$0xff]
    %v192 = vld [vmem:[#allocation7 + $0x18] sm:$0xff]
    %v193 = vld [vmem:[#allocation7 + $0x20] sm:$0xff]
    %v194 = vld [vmem:[#allocation7 + $0x28] sm:$0xff]
    %v195 = vld [vmem:[%s1] sm:$0xff]
    %v196 = vld [vmem:[%s1 + $0x8] sm:$0xff]
    %v197 = vld [vmem:[%s1 + $0x10] sm:$0xff]
    %v198 = vld [vmem:[%s1 + $0x18] sm:$0xff]
    %v199 = vld [vmem:[%s1 + $0x20] sm:$0xff]
    %v200 = vld [vmem:[%s1 + $0x28] sm:$0xff]
    %vm201 = vcmask 392192
    %v203 = vsel %vm201, %v189, 0
    %v206 = vsel %vm201, %v190, 0
    %v209 = vsel %vm201, %v191, 0
    %v212 = vsel %vm201, %v192, 0
    %v215 = vsel %vm201, %v193, 0
    %v218 = vsel %vm201, %v194, 0
    %220 = vmatprep.subr.mxu0 0.0
    %221 = vmatpush1.msra.mxu0 0.0
    %222 = vmatprep.subr.mxu0 0.0
    %223 = vmatpush1.msra.mxu0 0.0
    %224 = vmatprep.subr.mxu0 0.0
    %225 = vmatpush1.msra.mxu0 0.0
    %226 = vmatprep.subr.mxu0 0.0
    %227 = vmatpush1.msra.mxu0 0.0
    %228 = vmatprep.subr.mxu0 0.0
    %229 = vmatpush1.msra.mxu0 0.0
    %230 = vmatprep.subr.mxu0 0.0
    %231 = vmatpush1.msra.mxu0 0.0
    %232 = vmatprep.subr.mxu0 0.0
    %233 = vmatpush1.msra.mxu0 0.0
    %234 = vmatprep.subr.mxu0 0.0
    %235 = vmatpush1.msra.mxu0 0.0
    %236 = vmatprep.subr.mxu0 0.0
    %237 = vmatpush1.msra.mxu0 0.0
    %238 = vmatprep.subr.mxu0 0.0
    %239 = vmatpush1.msra.mxu0 0.0
    %240 = vmatprep.subr.mxu0 0.0
    %241 = vmatpush1.msra.mxu0 %v200
    %242 = vmatprep.subr.mxu0 0.0
    %243 = vmatpush1.msra.mxu0 %v199
    %244 = vmatprep.subr.mxu0 0.0
    %245 = vmatpush1.msra.mxu0 %v198
    %246 = vmatprep.subr.mxu0 0.0
    %247 = vmatpush1.msra.mxu0 %v197
    %248 = vmatprep.subr.mxu0 0.0
    %249 = vmatpush1.msra.mxu0 %v196
    %250 = vmatprep.subr.mxu0 0.0
    %251 = vmatpush1.msra.mxu0 %v195
    %252 = vmatprep.subr.mxu0 0.0
    %253 = vmatpush2.msra.mxu0 0.0
    %254 = vmatprep.subr.mxu0 0.0
    %255 = vmatpush2.msra.mxu0 0.0
    %256 = vmatprep.subr.mxu0 0.0
    %257 = vmatpush2.msra.mxu0 0.0
    %258 = vmatprep.subr.mxu0 0.0
    %259 = vmatpush2.msra.mxu0 0.0
    %260 = vmatprep.subr.mxu0 0.0
    %261 = vmatpush2.msra.mxu0 0.0
    %262 = vmatprep.subr.mxu0 0.0
    %263 = vmatpush2.msra.mxu0 0.0
    %264 = vmatprep.subr.mxu0 0.0
    %265 = vmatpush2.msra.mxu0 0.0
    %266 = vmatprep.subr.mxu0 0.0
    %267 = vmatpush2.msra.mxu0 0.0
    %268 = vmatprep.subr.mxu0 0.0
    %269 = vmatpush2.msra.mxu0 0.0
    %270 = vmatprep.subr.mxu0 0.0
    %271 = vmatpush2.msra.mxu0 0.0
    %272 = vmatprep.subr.mxu0 0.0
    %273 = vmatpush2.msra.mxu0 0.0
    %274 = vmatprep.subr.mxu0 0.0
    %275 = vmatpush2.msra.mxu0 0.0
    %276 = vmatprep.subr.mxu0 0.0
    %277 = vmatpush2.msra.mxu0 0.0
    %278 = vmatprep.subr.mxu0 0.0
    %279 = vmatpush2.msra.mxu0 0.0
    %280 = vmatprep.subr.mxu0 0.0
    %281 = vmatpush2.msra.mxu0 0.0
    %282 = vmatprep.subr.mxu0 0.0
    %283 = vmatpush2.msra.mxu0 0.0
    %284 = vmatprep.mubr.f32.mxu0 0.0
    %285 = vmatmul.mubr.f32.gmra.mxu0 %v203
    %v286 = vpop.f32.mrf.mxu0
    %v287 = vadd.f32 0.0, %v286
    %v288 = vpop.f32.mrf.mxu0
    %289 = vmatprep.mubr.f32.mxu0 0.0
    %290 = vmatmul.mubr.f32.gmra.mxu0 %v206
    %v291 = vpop.f32.mrf.mxu0
    %v292 = vadd.f32 0.0, %v291
    %v293 = vpop.f32.mrf.mxu0
    %294 = vmatprep.mubr.f32.mxu0 0.0
    %295 = vmatmul.mubr.f32.gmra.mxu0 %v209
    %v296 = vpop.f32.mrf.mxu0
    %v297 = vadd.f32 0.0, %v296
    %v298 = vpop.f32.mrf.mxu0
    %299 = vmatprep.mubr.f32.mxu0 0.0
    %300 = vmatmul.mubr.f32.gmra.mxu0 %v212
    %v301 = vpop.f32.mrf.mxu0
    %v302 = vadd.f32 0.0, %v301
    %v303 = vpop.f32.mrf.mxu0
    %304 = vmatprep.mubr.f32.mxu0 0.0
    %305 = vmatmul.mubr.f32.gmra.mxu0 %v215
    %v306 = vpop.f32.mrf.mxu0
    %v307 = vadd.f32 0.0, %v306
    %v308 = vpop.f32.mrf.mxu0
    %309 = vmatprep.mubr.f32.mxu0 0.0
    %310 = vmatmul.mubr.f32.gmra.mxu0 %v218
    %v311 = vpop.f32.mrf.mxu0
    %v312 = vadd.f32 0.0, %v311
    %v313 = vpop.f32.mrf.mxu0
    %314 = vdwg.mxu0
    %s315 = scalar_lea.vmem %s1, 48
    %v316 = vld [vmem:[%s315] sm:$0xff]
    %v317 = vld [vmem:[%s315 + $0x8] sm:$0xff]
    %v318 = vld [vmem:[%s315 + $0x10] sm:$0xff]
    %v319 = vld [vmem:[%s315 + $0x18] sm:$0xff]
    %v320 = vld [vmem:[%s315 + $0x20] sm:$0xff]
    %v321 = vld [vmem:[%s315 + $0x28] sm:$0xff]
    %322 = vmatprep.subr.mxu0 0.0
    %323 = vmatpush1.msra.mxu0 0.0
    %324 = vmatprep.subr.mxu0 0.0
    %325 = vmatpush1.msra.mxu0 0.0
    %326 = vmatprep.subr.mxu0 0.0
    %327 = vmatpush1.msra.mxu0 0.0
    %328 = vmatprep.subr.mxu0 0.0
    %329 = vmatpush1.msra.mxu0 0.0
    %330 = vmatprep.subr.mxu0 0.0
    %331 = vmatpush1.msra.mxu0 0.0
    %332 = vmatprep.subr.mxu0 0.0
    %333 = vmatpush1.msra.mxu0 0.0
    %334 = vmatprep.subr.mxu0 0.0
    %335 = vmatpush1.msra.mxu0 0.0
    %336 = vmatprep.subr.mxu0 0.0
    %337 = vmatpush1.msra.mxu0 0.0
    %338 = vmatprep.subr.mxu0 0.0
    %339 = vmatpush1.msra.mxu0 0.0
    %340 = vmatprep.subr.mxu0 0.0
    %341 = vmatpush1.msra.mxu0 0.0
    %342 = vmatprep.subr.mxu0 0.0
    %343 = vmatpush1.msra.mxu0 %v321
    %344 = vmatprep.subr.mxu0 0.0
    %345 = vmatpush1.msra.mxu0 %v320
    %346 = vmatprep.subr.mxu0 0.0
    %347 = vmatpush1.msra.mxu0 %v319
    %348 = vmatprep.subr.mxu0 0.0
    %349 = vmatpush1.msra.mxu0 %v318
    %350 = vmatprep.subr.mxu0 0.0
    %351 = vmatpush1.msra.mxu0 %v317
    %352 = vmatprep.subr.mxu0 0.0
    %353 = vmatpush1.msra.mxu0 %v316
    %354 = vmatprep.subr.mxu0 0.0
    %355 = vmatpush2.msra.mxu0 0.0
    %356 = vmatprep.subr.mxu0 0.0
    %357 = vmatpush2.msra.mxu0 0.0
    %358 = vmatprep.subr.mxu0 0.0
    %359 = vmatpush2.msra.mxu0 0.0
    %360 = vmatprep.subr.mxu0 0.0
    %361 = vmatpush2.msra.mxu0 0.0
    %362 = vmatprep.subr.mxu0 0.0
    %363 = vmatpush2.msra.mxu0 0.0
    %364 = vmatprep.subr.mxu0 0.0
    %365 = vmatpush2.msra.mxu0 0.0
    %366 = vmatprep.subr.mxu0 0.0
    %367 = vmatpush2.msra.mxu0 0.0
    %368 = vmatprep.subr.mxu0 0.0
    %369 = vmatpush2.msra.mxu0 0.0
    %370 = vmatprep.subr.mxu0 0.0
    %371 = vmatpush2.msra.mxu0 0.0
    %372 = vmatprep.subr.mxu0 0.0
    %373 = vmatpush2.msra.mxu0 0.0
    %374 = vmatprep.subr.mxu0 0.0
    %375 = vmatpush2.msra.mxu0 0.0
    %376 = vmatprep.subr.mxu0 0.0
    %377 = vmatpush2.msra.mxu0 0.0
    %378 = vmatprep.subr.mxu0 0.0
    %379 = vmatpush2.msra.mxu0 0.0
    %380 = vmatprep.subr.mxu0 0.0
    %381 = vmatpush2.msra.mxu0 0.0
    %382 = vmatprep.subr.mxu0 0.0
    %383 = vmatpush2.msra.mxu0 0.0
    %384 = vmatprep.subr.mxu0 0.0
    %385 = vmatpush2.msra.mxu0 0.0
    %386 = vmatprep.mubr.f32.mxu0 0.0
    %387 = vmatmul.mubr.f32.gmra.mxu0 %v203
    %v388 = vpop.f32.mrf.mxu0
    %v389 = vadd.f32 0.0, %v388
    %v390 = vpop.f32.mrf.mxu0
    %391 = vmatprep.mubr.f32.mxu0 0.0
    %392 = vmatmul.mubr.f32.gmra.mxu0 %v206
    %v393 = vpop.f32.mrf.mxu0
    %v394 = vadd.f32 0.0, %v393
    %v395 = vpop.f32.mrf.mxu0
    %396 = vmatprep.mubr.f32.mxu0 0.0
    %397 = vmatmul.mubr.f32.gmra.mxu0 %v209
    %v398 = vpop.f32.mrf.mxu0
    %v399 = vadd.f32 0.0, %v398
    %v400 = vpop.f32.mrf.mxu0
    %401 = vmatprep.mubr.f32.mxu0 0.0
    %402 = vmatmul.mubr.f32.gmra.mxu0 %v212
    %v403 = vpop.f32.mrf.mxu0
    %v404 = vadd.f32 0.0, %v403
    %v405 = vpop.f32.mrf.mxu0
    %406 = vmatprep.mubr.f32.mxu0 0.0
    %407 = vmatmul.mubr.f32.gmra.mxu0 %v215
    %v408 = vpop.f32.mrf.mxu0
    %v409 = vadd.f32 0.0, %v408
    %v410 = vpop.f32.mrf.mxu0
    %411 = vmatprep.mubr.f32.mxu0 0.0
    %412 = vmatmul.mubr.f32.gmra.mxu0 %v218
    %v413 = vpop.f32.mrf.mxu0
    %v414 = vadd.f32 0.0, %v413
    %v415 = vpop.f32.mrf.mxu0
    %416 = vdwg.mxu0
    %v417 = vld [vmem:[%s9] sm:$0xff]
    %v418 = vld [vmem:[%s9 + $0x8] sm:$0xff]
    %v419 = vld [vmem:[%s9 + $0x10] sm:$0xff]
    %v420 = vld [vmem:[%s9 + $0x18] sm:$0xff]
    %v421 = vld [vmem:[%s9 + $0x20] sm:$0xff]
    %v422 = vld [vmem:[%s9 + $0x28] sm:$0xff]
    %s423 = scalar_lea.vmem %s9, 48
    %v424 = vld [vmem:[%s423] sm:$0xff]
    %v425 = vld [vmem:[%s423 + $0x8] sm:$0xff]
    %v426 = vld [vmem:[%s423 + $0x10] sm:$0xff]
    %v427 = vld [vmem:[%s423 + $0x18] sm:$0xff]
    %v428 = vld [vmem:[%s423 + $0x20] sm:$0xff]
    %v429 = vld [vmem:[%s423 + $0x28] sm:$0xff]
    %s430 = scalar_lea.vmem %s9, 96
    %v431 = vld [vmem:[%s430] sm:$0xff]
    %v432 = vld [vmem:[%s430 + $0x8] sm:$0xff]
    %v433 = vld [vmem:[%s430 + $0x10] sm:$0xff]
    %v434 = vld [vmem:[%s430 + $0x18] sm:$0xff]
    %v435 = vld [vmem:[%s430 + $0x20] sm:$0xff]
    %v436 = vld [vmem:[%s430 + $0x28] sm:$0xff]
    %s437 = scalar_lea.vmem %s9, 144
    %v438 = vld [vmem:[%s437] sm:$0xff]
    %v439 = vld [vmem:[%s437 + $0x8] sm:$0xff]
    %v440 = vld [vmem:[%s437 + $0x10] sm:$0xff]
    %v441 = vld [vmem:[%s437 + $0x18] sm:$0xff]
    %v442 = vld [vmem:[%s437 + $0x20] sm:$0xff]
    %v443 = vld [vmem:[%s437 + $0x28] sm:$0xff]
    %s444 = scalar_lea.vmem %s9, 240
    %v445 = vld [vmem:[%s444] sm:$0xff]
    %v446 = vld [vmem:[%s444 + $0x8] sm:$0xff]
    %v447 = vld [vmem:[%s444 + $0x10] sm:$0xff]
    %v448 = vld [vmem:[%s444 + $0x18] sm:$0xff]
    %v449 = vld [vmem:[%s444 + $0x20] sm:$0xff]
    %v450 = vld [vmem:[%s444 + $0x28] sm:$0xff]
    %s451 = scalar_lea.vmem %s9, 288
    %v452 = vld [vmem:[%s451] sm:$0xff]
    %v453 = vld [vmem:[%s451 + $0x8] sm:$0xff]
    %v454 = vld [vmem:[%s451 + $0x10] sm:$0xff]
    %v455 = vld [vmem:[%s451 + $0x18] sm:$0xff]
    %v456 = vld [vmem:[%s451 + $0x20] sm:$0xff]
    %v457 = vld [vmem:[%s451 + $0x28] sm:$0xff]
    %s458 = scalar_lea.vmem %s9, 336
    %v459 = vld [vmem:[%s458] sm:$0xff]
    %v460 = vld [vmem:[%s458 + $0x8] sm:$0xff]
    %v461 = vld [vmem:[%s458 + $0x10] sm:$0xff]
    %v462 = vld [vmem:[%s458 + $0x18] sm:$0xff]
    %v463 = vld [vmem:[%s458 + $0x20] sm:$0xff]
    %v464 = vld [vmem:[%s458 + $0x28] sm:$0xff]
    %s465 = scalar_lea.vmem %s9, 384
    %v466 = vld [vmem:[%s465] sm:$0xff]
    %v467 = vld [vmem:[%s465 + $0x8] sm:$0xff]
    %v468 = vld [vmem:[%s465 + $0x10] sm:$0xff]
    %v469 = vld [vmem:[%s465 + $0x18] sm:$0xff]
    %v470 = vld [vmem:[%s465 + $0x20] sm:$0xff]
    %v471 = vld [vmem:[%s465 + $0x28] sm:$0xff]
    %v472 = vrot.slane %v287, 7
    %v473 = vrot.slane %v292, 7
    %v474 = vrot.slane %v297, 7
    %v475 = vrot.slane %v302, 7
    %v476 = vrot.slane %v307, 7
    %v477 = vrot.slane %v312, 7
    %v478 = vlaneseq
    %v479 = vshrl.u32 %v478, 7
    %vm480 = vcmp.lt.s32.totalorder %v479, 1
    %v481 = vsel %vm480, %v476, %v477
    %v482 = vsel %vm480, %v475, %v476
    %v483 = vsel %vm480, %v474, %v475
    %v484 = vsel %vm480, %v473, %v474
    %v485 = vsel %vm480, %v472, %v473
    %v486 = vsel %vm480, %v477, %v472
    %vm487 = vcmask 1048320
    %488 = vrot.lane.b32.xlu0 %v486, 96
    %v489 = vpop.permute.xlu0 %488
    %v490 = vsel %vm487, %v489, %v486
    %491 = vrot.lane.b32.xlu0 %v485, 96
    %v492 = vpop.permute.xlu0 %491
    %v493 = vsel %vm487, %v492, %v485
    %494 = vrot.lane.b32.xlu0 %v484, 96
    %v495 = vpop.permute.xlu0 %494
    %v496 = vsel %vm487, %v495, %v484
    %497 = vrot.lane.b32.xlu0 %v483, 96
    %v498 = vpop.permute.xlu0 %497
    %v499 = vsel %vm487, %v498, %v483
    %500 = vrot.lane.b32.xlu0 %v482, 96
    %v501 = vpop.permute.xlu0 %500
    %v502 = vsel %vm487, %v501, %v482
    %503 = vrot.lane.b32.xlu0 %v481, 96
    %v504 = vpop.permute.xlu0 %503
    %v505 = vsel %vm487, %v504, %v481
    %506 = vrot.lane.b32.xlu0 %v490, 96
    %v507 = vpop.permute.xlu0 %506
    %508 = vrot.lane.b32.xlu0 %v493, 96
    %v509 = vpop.permute.xlu0 %508
    %510 = vrot.lane.b32.xlu0 %v496, 96
    %v511 = vpop.permute.xlu0 %510
    %512 = vrot.lane.b32.xlu0 %v499, 96
    %v513 = vpop.permute.xlu0 %512
    %514 = vrot.lane.b32.xlu0 %v502, 96
    %v515 = vpop.permute.xlu0 %514
    %516 = vrot.lane.b32.xlu0 %v505, 96
    %v517 = vpop.permute.xlu0 %516
    %v518 = vsel %vm487, %v507, %v486
    %v519 = vsel %vm487, %v509, %v485
    %v520 = vsel %vm487, %v511, %v484
    %v521 = vsel %vm487, %v513, %v483
    %v522 = vsel %vm487, %v515, %v482
    %v523 = vsel %vm487, %v517, %v481
    %530 = vrot.lane.b32.xlu0 %v417, 95
    %v531 = vpop.permute.xlu0 %530
    %532 = vrot.lane.b32.xlu0 %v418, 95
    %v533 = vpop.permute.xlu0 %532
    %534 = vrot.lane.b32.xlu0 %v419, 95
    %v535 = vpop.permute.xlu0 %534
    %536 = vrot.lane.b32.xlu0 %v420, 95
    %v537 = vpop.permute.xlu0 %536
    %538 = vrot.lane.b32.xlu0 %v421, 95
    %v539 = vpop.permute.xlu0 %538
    %540 = vrot.lane.b32.xlu0 %v422, 95
    %v541 = vpop.permute.xlu0 %540
    %v548 = vmul.f32 %v518, %v531
    %v549 = vmul.f32 %v507, %v531
    %v550 = vmul.f32 %v519, %v533
    %v551 = vmul.f32 %v509, %v533
    %v552 = vmul.f32 %v520, %v535
    %v553 = vmul.f32 %v511, %v535
    %v554 = vmul.f32 %v521, %v537
    %v555 = vmul.f32 %v513, %v537
    %v556 = vmul.f32 %v522, %v539
    %v557 = vmul.f32 %v515, %v539
    %v558 = vmul.f32 %v523, %v541
    %v559 = vmul.f32 %v517, %v541
    %s560 = sld [smem:[#allocation2]]
    %v561 = vstv %s560
    %v562 = vmul.f32 %v548, %v561
    %v563 = vmul.f32 %v549, %v561
    %v564 = vmul.f32 %v550, %v561
    %v565 = vmul.f32 %v551, %v561
    %v566 = vmul.f32 %v552, %v561
    %v567 = vmul.f32 %v553, %v561
    %v568 = vmul.f32 %v554, %v561
    %v569 = vmul.f32 %v555, %v561
    %v570 = vmul.f32 %v556, %v561
    %v571 = vmul.f32 %v557, %v561
    %v572 = vmul.f32 %v558, %v561
    %v573 = vmul.f32 %v559, %v561
    %v574 = vadd.f32 %v562, 0.0
    %v575 = vadd.f32 %v563, 0.0
    %v576 = vadd.f32 %v564, 0.0
    %v577 = vadd.f32 %v565, 0.0
    %v578 = vadd.f32 %v566, 0.0
    %v579 = vadd.f32 %v567, 0.0
    %v580 = vadd.f32 %v568, 0.0
    %v581 = vadd.f32 %v569, 0.0
    %v582 = vadd.f32 %v570, 0.0
    %v583 = vadd.f32 %v571, 0.0
    %v584 = vadd.f32 %v572, 0.0
    %v585 = vadd.f32 %v573, 0.0
    %s586 = sld [smem:[#allocation2 + $0x1]]
    %v587 = vstv %s586
    %v588 = vmul.f32 %v548, %v587
    %v589 = vmul.f32 %v549, %v587
    %v590 = vmul.f32 %v550, %v587
    %v591 = vmul.f32 %v551, %v587
    %v592 = vmul.f32 %v552, %v587
    %v593 = vmul.f32 %v553, %v587
    %v594 = vmul.f32 %v554, %v587
    %v595 = vmul.f32 %v555, %v587
    %v596 = vmul.f32 %v556, %v587
    %v597 = vmul.f32 %v557, %v587
    %v598 = vmul.f32 %v558, %v587
    %v599 = vmul.f32 %v559, %v587
    %v600 = vadd.f32 %v588, 0.0
    %v601 = vadd.f32 %v589, 0.0
    %v602 = vadd.f32 %v590, 0.0
    %v603 = vadd.f32 %v591, 0.0
    %v604 = vadd.f32 %v592, 0.0
    %v605 = vadd.f32 %v593, 0.0
    %v606 = vadd.f32 %v594, 0.0
    %v607 = vadd.f32 %v595, 0.0
    %v608 = vadd.f32 %v596, 0.0
    %v609 = vadd.f32 %v597, 0.0
    %v610 = vadd.f32 %v598, 0.0
    %v611 = vadd.f32 %v599, 0.0
    %v612 = vmul.f32 %v486, %v424
    %v613 = vmul.f32 %v485, %v425
    %v614 = vmul.f32 %v484, %v426
    %v615 = vmul.f32 %v483, %v427
    %v616 = vmul.f32 %v482, %v428
    %v617 = vmul.f32 %v481, %v429
    %s618 = sld [smem:[#allocation2 + $0x4]]
    %v619 = vstv %s618
    %v620 = vmul.f32 %v612, %v619
    %v621 = vmul.f32 %v613, %v619
    %v622 = vmul.f32 %v614, %v619
    %v623 = vmul.f32 %v615, %v619
    %v624 = vmul.f32 %v616, %v619
    %v625 = vmul.f32 %v617, %v619
    %632 = vrot.lane.b32.xlu0 %v620, 95
    %v633 = vpop.permute.xlu0 %632
    %634 = vrot.lane.b32.xlu0 %v621, 95
    %v635 = vpop.permute.xlu0 %634
    %636 = vrot.lane.b32.xlu0 %v622, 95
    %v637 = vpop.permute.xlu0 %636
    %638 = vrot.lane.b32.xlu0 %v623, 95
    %v639 = vpop.permute.xlu0 %638
    %640 = vrot.lane.b32.xlu0 %v624, 95
    %v641 = vpop.permute.xlu0 %640
    %642 = vrot.lane.b32.xlu0 %v625, 95
    %v643 = vpop.permute.xlu0 %642
    %v650 = vadd.f32 %v574, %v633
    %v651 = vadd.f32 %v575, %v633
    %v652 = vadd.f32 %v576, %v635
    %v653 = vadd.f32 %v577, %v635
    %v654 = vadd.f32 %v578, %v637
    %v655 = vadd.f32 %v579, %v637
    %v656 = vadd.f32 %v580, %v639
    %v657 = vadd.f32 %v581, %v639
    %v658 = vadd.f32 %v582, %v641
    %v659 = vadd.f32 %v583, %v641
    %v660 = vadd.f32 %v584, %v643
    %v661 = vadd.f32 %v585, %v643
    %s662 = sld [smem:[#allocation2 + $0x5]]
    %v663 = vstv %s662
    %v664 = vmul.f32 %v612, %v663
    %v665 = vmul.f32 %v613, %v663
    %v666 = vmul.f32 %v614, %v663
    %v667 = vmul.f32 %v615, %v663
    %v668 = vmul.f32 %v616, %v663
    %v669 = vmul.f32 %v617, %v663
    %676 = vrot.lane.b32.xlu0 %v664, 95
    %v677 = vpop.permute.xlu0 %676
    %678 = vrot.lane.b32.xlu0 %v665, 95
    %v679 = vpop.permute.xlu0 %678
    %680 = vrot.lane.b32.xlu0 %v666, 95
    %v681 = vpop.permute.xlu0 %680
    %682 = vrot.lane.b32.xlu0 %v667, 95
    %v683 = vpop.permute.xlu0 %682
    %684 = vrot.lane.b32.xlu0 %v668, 95
    %v685 = vpop.permute.xlu0 %684
    %686 = vrot.lane.b32.xlu0 %v669, 95
    %v687 = vpop.permute.xlu0 %686
    %v694 = vadd.f32 %v600, %v677
    %v695 = vadd.f32 %v601, %v677
    %v696 = vadd.f32 %v602, %v679
    %v697 = vadd.f32 %v603, %v679
    %v698 = vadd.f32 %v604, %v681
    %v699 = vadd.f32 %v605, %v681
    %v700 = vadd.f32 %v606, %v683
    %v701 = vadd.f32 %v607, %v683
    %v702 = vadd.f32 %v608, %v685
    %v703 = vadd.f32 %v609, %v685
    %v704 = vadd.f32 %v610, %v687
    %v705 = vadd.f32 %v611, %v687
    %712 = vrot.lane.b32.xlu0 %v431, 1
    %v713 = vpop.permute.xlu0 %712
    %714 = vrot.lane.b32.xlu0 %v432, 1
    %v715 = vpop.permute.xlu0 %714
    %716 = vrot.lane.b32.xlu0 %v433, 1
    %v717 = vpop.permute.xlu0 %716
    %718 = vrot.lane.b32.xlu0 %v434, 1
    %v719 = vpop.permute.xlu0 %718
    %720 = vrot.lane.b32.xlu0 %v435, 1
    %v721 = vpop.permute.xlu0 %720
    %722 = vrot.lane.b32.xlu0 %v436, 1
    %v723 = vpop.permute.xlu0 %722
    %v730 = vmul.f32 %v518, %v713
    %v731 = vmul.f32 %v519, %v715
    %v732 = vmul.f32 %v520, %v717
    %v733 = vmul.f32 %v521, %v719
    %v734 = vmul.f32 %v522, %v721
    %v735 = vmul.f32 %v523, %v723
    %s736 = sld [smem:[#allocation2 + $0x8]]
    %v737 = vstv %s736
    %v738 = vmul.f32 %v730, %v737
    %v739 = vmul.f32 %v731, %v737
    %v740 = vmul.f32 %v732, %v737
    %v741 = vmul.f32 %v733, %v737
    %v742 = vmul.f32 %v734, %v737
    %v743 = vmul.f32 %v735, %v737
    %750 = vrot.lane.b32.xlu0 %v738, 94
    %v751 = vpop.permute.xlu0 %750
    %752 = vrot.lane.b32.xlu0 %v739, 94
    %v753 = vpop.permute.xlu0 %752
    %754 = vrot.lane.b32.xlu0 %v740, 94
    %v755 = vpop.permute.xlu0 %754
    %756 = vrot.lane.b32.xlu0 %v741, 94
    %v757 = vpop.permute.xlu0 %756
    %758 = vrot.lane.b32.xlu0 %v742, 94
    %v759 = vpop.permute.xlu0 %758
    %760 = vrot.lane.b32.xlu0 %v743, 94
    %v761 = vpop.permute.xlu0 %760
    %v768 = vadd.f32 %v650, %v751
    %v769 = vadd.f32 %v651, %v751
    %v770 = vadd.f32 %v652, %v753
    %v771 = vadd.f32 %v653, %v753
    %v772 = vadd.f32 %v654, %v755
    %v773 = vadd.f32 %v655, %v755
    %v774 = vadd.f32 %v656, %v757
    %v775 = vadd.f32 %v657, %v757
    %v776 = vadd.f32 %v658, %v759
    %v777 = vadd.f32 %v659, %v759
    %v778 = vadd.f32 %v660, %v761
    %v779 = vadd.f32 %v661, %v761
    %s780 = sld [smem:[#allocation2 + $0x9]]
    %v781 = vstv %s780
    %v782 = vmul.f32 %v730, %v781
    %v783 = vmul.f32 %v731, %v781
    %v784 = vmul.f32 %v732, %v781
    %v785 = vmul.f32 %v733, %v781
    %v786 = vmul.f32 %v734, %v781
    %v787 = vmul.f32 %v735, %v781
    %794 = vrot.lane.b32.xlu0 %v782, 94
    %v795 = vpop.permute.xlu0 %794
    %796 = vrot.lane.b32.xlu0 %v783, 94
    %v797 = vpop.permute.xlu0 %796
    %798 = vrot.lane.b32.xlu0 %v784, 94
    %v799 = vpop.permute.xlu0 %798
    %800 = vrot.lane.b32.xlu0 %v785, 94
    %v801 = vpop.permute.xlu0 %800
    %802 = vrot.lane.b32.xlu0 %v786, 94
    %v803 = vpop.permute.xlu0 %802
    %804 = vrot.lane.b32.xlu0 %v787, 94
    %v805 = vpop.permute.xlu0 %804
    %v812 = vadd.f32 %v694, %v795
    %v813 = vadd.f32 %v695, %v795
    %v814 = vadd.f32 %v696, %v797
    %v815 = vadd.f32 %v697, %v797
    %v816 = vadd.f32 %v698, %v799
    %v817 = vadd.f32 %v699, %v799
    %v818 = vadd.f32 %v700, %v801
    %v819 = vadd.f32 %v701, %v801
    %v820 = vadd.f32 %v702, %v803
    %v821 = vadd.f32 %v703, %v803
    %v822 = vadd.f32 %v704, %v805
    %v823 = vadd.f32 %v705, %v805
    %824 = vrot.lane.b32.xlu0 %v287, 96
    %v825 = vpop.permute.xlu0 %824
    %v826 = vsel %vm487, %v825, %v287
    %827 = vrot.lane.b32.xlu0 %v292, 96
    %v828 = vpop.permute.xlu0 %827
    %v829 = vsel %vm487, %v828, %v292
    %830 = vrot.lane.b32.xlu0 %v297, 96
    %v831 = vpop.permute.xlu0 %830
    %v832 = vsel %vm487, %v831, %v297
    %833 = vrot.lane.b32.xlu0 %v302, 96
    %v834 = vpop.permute.xlu0 %833
    %v835 = vsel %vm487, %v834, %v302
    %836 = vrot.lane.b32.xlu0 %v307, 96
    %v837 = vpop.permute.xlu0 %836
    %v838 = vsel %vm487, %v837, %v307
    %839 = vrot.lane.b32.xlu0 %v312, 96
    %v840 = vpop.permute.xlu0 %839
    %v841 = vsel %vm487, %v840, %v312
    %842 = vrot.lane.b32.xlu0 %v826, 96
    %v843 = vpop.permute.xlu0 %842
    %844 = vrot.lane.b32.xlu0 %v829, 96
    %v845 = vpop.permute.xlu0 %844
    %846 = vrot.lane.b32.xlu0 %v832, 96
    %v847 = vpop.permute.xlu0 %846
    %848 = vrot.lane.b32.xlu0 %v835, 96
    %v849 = vpop.permute.xlu0 %848
    %850 = vrot.lane.b32.xlu0 %v838, 96
    %v851 = vpop.permute.xlu0 %850
    %852 = vrot.lane.b32.xlu0 %v841, 96
    %v853 = vpop.permute.xlu0 %852
    %v854 = vsel %vm487, %v843, %v287
    %v855 = vsel %vm487, %v845, %v292
    %v856 = vsel %vm487, %v847, %v297
    %v857 = vsel %vm487, %v849, %v302
    %v858 = vsel %vm487, %v851, %v307
    %v859 = vsel %vm487, %v853, %v312
    %866 = vrot.lane.b32.xlu0 %v438, 95
    %v867 = vpop.permute.xlu0 %866
    %868 = vrot.lane.b32.xlu0 %v439, 95
    %v869 = vpop.permute.xlu0 %868
    %870 = vrot.lane.b32.xlu0 %v440, 95
    %v871 = vpop.permute.xlu0 %870
    %872 = vrot.lane.b32.xlu0 %v441, 95
    %v873 = vpop.permute.xlu0 %872
    %874 = vrot.lane.b32.xlu0 %v442, 95
    %v875 = vpop.permute.xlu0 %874
    %876 = vrot.lane.b32.xlu0 %v443, 95
    %v877 = vpop.permute.xlu0 %876
    %v884 = vmul.f32 %v854, %v867
    %v885 = vmul.f32 %v843, %v867
    %v886 = vmul.f32 %v855, %v869
    %v887 = vmul.f32 %v845, %v869
    %v888 = vmul.f32 %v856, %v871
    %v889 = vmul.f32 %v847, %v871
    %v890 = vmul.f32 %v857, %v873
    %v891 = vmul.f32 %v849, %v873
    %v892 = vmul.f32 %v858, %v875
    %v893 = vmul.f32 %v851, %v875
    %v894 = vmul.f32 %v859, %v877
    %v895 = vmul.f32 %v853, %v877
    %s896 = sld [smem:[#allocation2 + $0xc]]
    %v897 = vstv %s896
    %v898 = vmul.f32 %v884, %v897
    %v899 = vmul.f32 %v885, %v897
    %v900 = vmul.f32 %v886, %v897
    %v901 = vmul.f32 %v887, %v897
    %v902 = vmul.f32 %v888, %v897
    %v903 = vmul.f32 %v889, %v897
    %v904 = vmul.f32 %v890, %v897
    %v905 = vmul.f32 %v891, %v897
    %v906 = vmul.f32 %v892, %v897
    %v907 = vmul.f32 %v893, %v897
    %v908 = vmul.f32 %v894, %v897
    %v909 = vmul.f32 %v895, %v897
    %v910 = vadd.f32 %v768, %v898
    %v911 = vadd.f32 %v769, %v899
    %v912 = vadd.f32 %v770, %v900
    %v913 = vadd.f32 %v771, %v901
    %v914 = vadd.f32 %v772, %v902
    %v915 = vadd.f32 %v773, %v903
    %v916 = vadd.f32 %v774, %v904
    %v917 = vadd.f32 %v775, %v905
    %v918 = vadd.f32 %v776, %v906
    %v919 = vadd.f32 %v777, %v907
    %v920 = vadd.f32 %v778, %v908
    %v921 = vadd.f32 %v779, %v909
    %s922 = sld [smem:[#allocation2 + $0xd]]
    %v923 = vstv %s922
    %v924 = vmul.f32 %v884, %v923
    %v925 = vmul.f32 %v885, %v923
    %v926 = vmul.f32 %v886, %v923
    %v927 = vmul.f32 %v887, %v923
    %v928 = vmul.f32 %v888, %v923
    %v929 = vmul.f32 %v889, %v923
    %v930 = vmul.f32 %v890, %v923
    %v931 = vmul.f32 %v891, %v923
    %v932 = vmul.f32 %v892, %v923
    %v933 = vmul.f32 %v893, %v923
    %v934 = vmul.f32 %v894, %v923
    %v935 = vmul.f32 %v895, %v923
    %v936 = vadd.f32 %v812, %v924
    %v937 = vadd.f32 %v813, %v925
    %v938 = vadd.f32 %v814, %v926
    %v939 = vadd.f32 %v815, %v927
    %v940 = vadd.f32 %v816, %v928
    %v941 = vadd.f32 %v817, %v929
    %v942 = vadd.f32 %v818, %v930
    %v943 = vadd.f32 %v819, %v931
    %v944 = vadd.f32 %v820, %v932
    %v945 = vadd.f32 %v821, %v933
    %v946 = vadd.f32 %v822, %v934
    %v947 = vadd.f32 %v823, %v935
    %s948 = sld [smem:[#allocation2 + $0x10]]
    %v949 = vstv %s948
    %v950 = vmul.f32 %v287, %v949
    %v951 = vmul.f32 %v292, %v949
    %v952 = vmul.f32 %v297, %v949
    %v953 = vmul.f32 %v302, %v949
    %v954 = vmul.f32 %v307, %v949
    %v955 = vmul.f32 %v312, %v949
    %962 = vrot.lane.b32.xlu0 %v950, 95
    %v963 = vpop.permute.xlu0 %962
    %964 = vrot.lane.b32.xlu0 %v951, 95
    %v965 = vpop.permute.xlu0 %964
    %966 = vrot.lane.b32.xlu0 %v952, 95
    %v967 = vpop.permute.xlu0 %966
    %968 = vrot.lane.b32.xlu0 %v953, 95
    %v969 = vpop.permute.xlu0 %968
    %970 = vrot.lane.b32.xlu0 %v954, 95
    %v971 = vpop.permute.xlu0 %970
    %972 = vrot.lane.b32.xlu0 %v955, 95
    %v973 = vpop.permute.xlu0 %972
    %v980 = vadd.f32 %v910, %v963
    %v981 = vadd.f32 %v911, %v963
    %v982 = vadd.f32 %v912, %v965
    %v983 = vadd.f32 %v913, %v965
    %v984 = vadd.f32 %v914, %v967
    %v985 = vadd.f32 %v915, %v967
    %v986 = vadd.f32 %v916, %v969
    %v987 = vadd.f32 %v917, %v969
    %v988 = vadd.f32 %v918, %v971
    %v989 = vadd.f32 %v919, %v971
    %v990 = vadd.f32 %v920, %v973
    %v991 = vadd.f32 %v921, %v973
    %s992 = sld [smem:[#allocation2 + $0x11]]
    %v993 = vstv %s992
    %v994 = vmul.f32 %v287, %v993
    %v995 = vmul.f32 %v292, %v993
    %v996 = vmul.f32 %v297, %v993
    %v997 = vmul.f32 %v302, %v993
    %v998 = vmul.f32 %v307, %v993
    %v999 = vmul.f32 %v312, %v993
    %1006 = vrot.lane.b32.xlu0 %v994, 95
    %v1007 = vpop.permute.xlu0 %1006
    %1008 = vrot.lane.b32.xlu0 %v995, 95
    %v1009 = vpop.permute.xlu0 %1008
    %1010 = vrot.lane.b32.xlu0 %v996, 95
    %v1011 = vpop.permute.xlu0 %1010
    %1012 = vrot.lane.b32.xlu0 %v997, 95
    %v1013 = vpop.permute.xlu0 %1012
    %1014 = vrot.lane.b32.xlu0 %v998, 95
    %v1015 = vpop.permute.xlu0 %1014
    %1016 = vrot.lane.b32.xlu0 %v999, 95
    %v1017 = vpop.permute.xlu0 %1016
    %v1024 = vadd.f32 %v936, %v1007
    %v1025 = vadd.f32 %v937, %v1007
    %v1026 = vadd.f32 %v938, %v1009
    %v1027 = vadd.f32 %v939, %v1009
    %v1028 = vadd.f32 %v940, %v1011
    %v1029 = vadd.f32 %v941, %v1011
    %v1030 = vadd.f32 %v942, %v1013
    %v1031 = vadd.f32 %v943, %v1013
    %v1032 = vadd.f32 %v944, %v1015
    %v1033 = vadd.f32 %v945, %v1015
    %v1034 = vadd.f32 %v946, %v1017
    %v1035 = vadd.f32 %v947, %v1017
    %1042 = vrot.lane.b32.xlu0 %v445, 1
    %v1043 = vpop.permute.xlu0 %1042
    %1044 = vrot.lane.b32.xlu0 %v446, 1
    %v1045 = vpop.permute.xlu0 %1044
    %1046 = vrot.lane.b32.xlu0 %v447, 1
    %v1047 = vpop.permute.xlu0 %1046
    %1048 = vrot.lane.b32.xlu0 %v448, 1
    %v1049 = vpop.permute.xlu0 %1048
    %1050 = vrot.lane.b32.xlu0 %v449, 1
    %v1051 = vpop.permute.xlu0 %1050
    %1052 = vrot.lane.b32.xlu0 %v450, 1
    %v1053 = vpop.permute.xlu0 %1052
    %v1060 = vmul.f32 %v854, %v1043
    %v1061 = vmul.f32 %v855, %v1045
    %v1062 = vmul.f32 %v856, %v1047
    %v1063 = vmul.f32 %v857, %v1049
    %v1064 = vmul.f32 %v858, %v1051
    %v1065 = vmul.f32 %v859, %v1053
    %s1066 = sld [smem:[#allocation2 + $0x14]]
    %v1067 = vstv %s1066
    %v1068 = vmul.f32 %v1060, %v1067
    %v1069 = vmul.f32 %v1061, %v1067
    %v1070 = vmul.f32 %v1062, %v1067
    %v1071 = vmul.f32 %v1063, %v1067
    %v1072 = vmul.f32 %v1064, %v1067
    %v1073 = vmul.f32 %v1065, %v1067
    %1080 = vrot.lane.b32.xlu0 %v1068, 94
    %v1081 = vpop.permute.xlu0 %1080
    %1082 = vrot.lane.b32.xlu0 %v1069, 94
    %v1083 = vpop.permute.xlu0 %1082
    %1084 = vrot.lane.b32.xlu0 %v1070, 94
    %v1085 = vpop.permute.xlu0 %1084
    %1086 = vrot.lane.b32.xlu0 %v1071, 94
    %v1087 = vpop.permute.xlu0 %1086
    %1088 = vrot.lane.b32.xlu0 %v1072, 94
    %v1089 = vpop.permute.xlu0 %1088
    %1090 = vrot.lane.b32.xlu0 %v1073, 94
    %v1091 = vpop.permute.xlu0 %1090
    %v1098 = vadd.f32 %v980, %v1081
    %v1099 = vadd.f32 %v981, %v1081
    %v1100 = vadd.f32 %v982, %v1083
    %v1101 = vadd.f32 %v983, %v1083
    %v1102 = vadd.f32 %v984, %v1085
    %v1103 = vadd.f32 %v985, %v1085
    %v1104 = vadd.f32 %v986, %v1087
    %v1105 = vadd.f32 %v987, %v1087
    %v1106 = vadd.f32 %v988, %v1089
    %v1107 = vadd.f32 %v989, %v1089
    %v1108 = vadd.f32 %v990, %v1091
    %v1109 = vadd.f32 %v991, %v1091
    %s1110 = sld [smem:[#allocation2 + $0x15]]
    %v1111 = vstv %s1110
    %v1112 = vmul.f32 %v1060, %v1111
    %v1113 = vmul.f32 %v1061, %v1111
    %v1114 = vmul.f32 %v1062, %v1111
    %v1115 = vmul.f32 %v1063, %v1111
    %v1116 = vmul.f32 %v1064, %v1111
    %v1117 = vmul.f32 %v1065, %v1111
    %1124 = vrot.lane.b32.xlu0 %v1112, 94
    %v1125 = vpop.permute.xlu0 %1124
    %1126 = vrot.lane.b32.xlu0 %v1113, 94
    %v1127 = vpop.permute.xlu0 %1126
    %1128 = vrot.lane.b32.xlu0 %v1114, 94
    %v1129 = vpop.permute.xlu0 %1128
    %1130 = vrot.lane.b32.xlu0 %v1115, 94
    %v1131 = vpop.permute.xlu0 %1130
    %1132 = vrot.lane.b32.xlu0 %v1116, 94
    %v1133 = vpop.permute.xlu0 %1132
    %1134 = vrot.lane.b32.xlu0 %v1117, 94
    %v1135 = vpop.permute.xlu0 %1134
    %v1142 = vadd.f32 %v1024, %v1125
    %v1143 = vadd.f32 %v1025, %v1125
    %v1144 = vadd.f32 %v1026, %v1127
    %v1145 = vadd.f32 %v1027, %v1127
    %v1146 = vadd.f32 %v1028, %v1129
    %v1147 = vadd.f32 %v1029, %v1129
    %v1148 = vadd.f32 %v1030, %v1131
    %v1149 = vadd.f32 %v1031, %v1131
    %v1150 = vadd.f32 %v1032, %v1133
    %v1151 = vadd.f32 %v1033, %v1133
    %v1152 = vadd.f32 %v1034, %v1135
    %v1153 = vadd.f32 %v1035, %v1135
    %v1154 = vrot.slane %v287, 1
    %v1155 = vrot.slane %v292, 1
    %v1156 = vrot.slane %v297, 1
    %v1157 = vrot.slane %v302, 1
    %v1158 = vrot.slane %v307, 1
    %v1159 = vrot.slane %v312, 1
    %vm1160 = vcmp.lt.s32.totalorder %v479, 7
    %v1161 = vsel %vm1160, %v1158, %v1159
    %v1162 = vsel %vm1160, %v1157, %v1158
    %v1163 = vsel %vm1160, %v1156, %v1157
    %v1164 = vsel %vm1160, %v1155, %v1156
    %v1165 = vsel %vm1160, %v1154, %v1155
    %v1166 = vsel %vm1160, %v1159, %v1154
    %1167 = vrot.lane.b32.xlu0 %v1165, 96
    %v1168 = vpop.permute.xlu0 %1167
    %v1169 = vsel %vm487, %v1168, %v1165
    %1170 = vrot.lane.b32.xlu0 %v1164, 96
    %v1171 = vpop.permute.xlu0 %1170
    %v1172 = vsel %vm487, %v1171, %v1164
    %1173 = vrot.lane.b32.xlu0 %v1163, 96
    %v1174 = vpop.permute.xlu0 %1173
    %v1175 = vsel %vm487, %v1174, %v1163
    %1176 = vrot.lane.b32.xlu0 %v1162, 96
    %v1177 = vpop.permute.xlu0 %1176
    %v1178 = vsel %vm487, %v1177, %v1162
    %1179 = vrot.lane.b32.xlu0 %v1161, 96
    %v1180 = vpop.permute.xlu0 %1179
    %v1181 = vsel %vm487, %v1180, %v1161
    %1182 = vrot.lane.b32.xlu0 %v1166, 96
    %v1183 = vpop.permute.xlu0 %1182
    %v1184 = vsel %vm487, %v1183, %v1166
    %1185 = vrot.lane.b32.xlu0 %v1169, 96
    %v1186 = vpop.permute.xlu0 %1185
    %1187 = vrot.lane.b32.xlu0 %v1172, 96
    %v1188 = vpop.permute.xlu0 %1187
    %1189 = vrot.lane.b32.xlu0 %v1175, 96
    %v1190 = vpop.permute.xlu0 %1189
    %1191 = vrot.lane.b32.xlu0 %v1178, 96
    %v1192 = vpop.permute.xlu0 %1191
    %1193 = vrot.lane.b32.xlu0 %v1181, 96
    %v1194 = vpop.permute.xlu0 %1193
    %1195 = vrot.lane.b32.xlu0 %v1184, 96
    %v1196 = vpop.permute.xlu0 %1195
    %v1197 = vsel %vm487, %v1186, %v1165
    %v1198 = vsel %vm487, %v1188, %v1164
    %v1199 = vsel %vm487, %v1190, %v1163
    %v1200 = vsel %vm487, %v1192, %v1162
    %v1201 = vsel %vm487, %v1194, %v1161
    %v1202 = vsel %vm487, %v1196, %v1166
    %1209 = vrot.lane.b32.xlu0 %v452, 95
    %v1210 = vpop.permute.xlu0 %1209
    %1211 = vrot.lane.b32.xlu0 %v453, 95
    %v1212 = vpop.permute.xlu0 %1211
    %1213 = vrot.lane.b32.xlu0 %v454, 95
    %v1214 = vpop.permute.xlu0 %1213
    %1215 = vrot.lane.b32.xlu0 %v455, 95
    %v1216 = vpop.permute.xlu0 %1215
    %1217 = vrot.lane.b32.xlu0 %v456, 95
    %v1218 = vpop.permute.xlu0 %1217
    %1219 = vrot.lane.b32.xlu0 %v457, 95
    %v1220 = vpop.permute.xlu0 %1219
    %v1227 = vmul.f32 %v1197, %v1210
    %v1228 = vmul.f32 %v1186, %v1210
    %v1229 = vmul.f32 %v1198, %v1212
    %v1230 = vmul.f32 %v1188, %v1212
    %v1231 = vmul.f32 %v1199, %v1214
    %v1232 = vmul.f32 %v1190, %v1214
    %v1233 = vmul.f32 %v1200, %v1216
    %v1234 = vmul.f32 %v1192, %v1216
    %v1235 = vmul.f32 %v1201, %v1218
    %v1236 = vmul.f32 %v1194, %v1218
    %v1237 = vmul.f32 %v1202, %v1220
    %v1238 = vmul.f32 %v1196, %v1220
    %s1239 = sld [smem:[#allocation2 + $0x18]]
    %v1240 = vstv %s1239
    %v1241 = vmul.f32 %v1227, %v1240
    %v1242 = vmul.f32 %v1228, %v1240
    %v1243 = vmul.f32 %v1229, %v1240
    %v1244 = vmul.f32 %v1230, %v1240
    %v1245 = vmul.f32 %v1231, %v1240
    %v1246 = vmul.f32 %v1232, %v1240
    %v1247 = vmul.f32 %v1233, %v1240
    %v1248 = vmul.f32 %v1234, %v1240
    %v1249 = vmul.f32 %v1235, %v1240
    %v1250 = vmul.f32 %v1236, %v1240
    %v1251 = vmul.f32 %v1237, %v1240
    %v1252 = vmul.f32 %v1238, %v1240
    %v1253 = vadd.f32 %v1098, %v1241
    %v1254 = vadd.f32 %v1099, %v1242
    %v1255 = vadd.f32 %v1100, %v1243
    %v1256 = vadd.f32 %v1101, %v1244
    %v1257 = vadd.f32 %v1102, %v1245
    %v1258 = vadd.f32 %v1103, %v1246
    %v1259 = vadd.f32 %v1104, %v1247
    %v1260 = vadd.f32 %v1105, %v1248
    %v1261 = vadd.f32 %v1106, %v1249
    %v1262 = vadd.f32 %v1107, %v1250
    %v1263 = vadd.f32 %v1108, %v1251
    %v1264 = vadd.f32 %v1109, %v1252
    %s1265 = sld [smem:[#allocation2 + $0x19]]
    %v1266 = vstv %s1265
    %v1267 = vmul.f32 %v1227, %v1266
    %v1268 = vmul.f32 %v1228, %v1266
    %v1269 = vmul.f32 %v1229, %v1266
    %v1270 = vmul.f32 %v1230, %v1266
    %v1271 = vmul.f32 %v1231, %v1266
    %v1272 = vmul.f32 %v1232, %v1266
    %v1273 = vmul.f32 %v1233, %v1266
    %v1274 = vmul.f32 %v1234, %v1266
    %v1275 = vmul.f32 %v1235, %v1266
    %v1276 = vmul.f32 %v1236, %v1266
    %v1277 = vmul.f32 %v1237, %v1266
    %v1278 = vmul.f32 %v1238, %v1266
    %v1279 = vadd.f32 %v1142, %v1267
    %v1280 = vadd.f32 %v1143, %v1268
    %v1281 = vadd.f32 %v1144, %v1269
    %v1282 = vadd.f32 %v1145, %v1270
    %v1283 = vadd.f32 %v1146, %v1271
    %v1284 = vadd.f32 %v1147, %v1272
    %v1285 = vadd.f32 %v1148, %v1273
    %v1286 = vadd.f32 %v1149, %v1274
    %v1287 = vadd.f32 %v1150, %v1275
    %v1288 = vadd.f32 %v1151, %v1276
    %v1289 = vadd.f32 %v1152, %v1277
    %v1290 = vadd.f32 %v1153, %v1278
    %v1291 = vmul.f32 %v1165, %v459
    %v1292 = vmul.f32 %v1164, %v460
    %v1293 = vmul.f32 %v1163, %v461
    %v1294 = vmul.f32 %v1162, %v462
    %v1295 = vmul.f32 %v1161, %v463
    %v1296 = vmul.f32 %v1166, %v464
    %s1297 = sld [smem:[#allocation2 + $0x1c]]
    %v1298 = vstv %s1297
    %v1299 = vmul.f32 %v1291, %v1298
    %v1300 = vmul.f32 %v1292, %v1298
    %v1301 = vmul.f32 %v1293, %v1298
    %v1302 = vmul.f32 %v1294, %v1298
    %v1303 = vmul.f32 %v1295, %v1298
    %v1304 = vmul.f32 %v1296, %v1298
    %1311 = vrot.lane.b32.xlu0 %v1299, 95
    %v1312 = vpop.permute.xlu0 %1311
    %1313 = vrot.lane.b32.xlu0 %v1300, 95
    %v1314 = vpop.permute.xlu0 %1313
    %1315 = vrot.lane.b32.xlu0 %v1301, 95
    %v1316 = vpop.permute.xlu0 %1315
    %1317 = vrot.lane.b32.xlu0 %v1302, 95
    %v1318 = vpop.permute.xlu0 %1317
    %1319 = vrot.lane.b32.xlu0 %v1303, 95
    %v1320 = vpop.permute.xlu0 %1319
    %1321 = vrot.lane.b32.xlu0 %v1304, 95
    %v1322 = vpop.permute.xlu0 %1321
    %v1329 = vadd.f32 %v1253, %v1312
    %v1330 = vadd.f32 %v1254, %v1312
    %v1331 = vadd.f32 %v1255, %v1314
    %v1332 = vadd.f32 %v1256, %v1314
    %v1333 = vadd.f32 %v1257, %v1316
    %v1334 = vadd.f32 %v1258, %v1316
    %v1335 = vadd.f32 %v1259, %v1318
    %v1336 = vadd.f32 %v1260, %v1318
    %v1337 = vadd.f32 %v1261, %v1320
    %v1338 = vadd.f32 %v1262, %v1320
    %v1339 = vadd.f32 %v1263, %v1322
    %v1340 = vadd.f32 %v1264, %v1322
    %s1341 = sld [smem:[#allocation2 + $0x1d]]
    %v1342 = vstv %s1341
    %v1343 = vmul.f32 %v1291, %v1342
    %v1344 = vmul.f32 %v1292, %v1342
    %v1345 = vmul.f32 %v1293, %v1342
    %v1346 = vmul.f32 %v1294, %v1342
    %v1347 = vmul.f32 %v1295, %v1342
    %v1348 = vmul.f32 %v1296, %v1342
    %1355 = vrot.lane.b32.xlu0 %v1343, 95
    %v1356 = vpop.permute.xlu0 %1355
    %1357 = vrot.lane.b32.xlu0 %v1344, 95
    %v1358 = vpop.permute.xlu0 %1357
    %1359 = vrot.lane.b32.xlu0 %v1345, 95
    %v1360 = vpop.permute.xlu0 %1359
    %1361 = vrot.lane.b32.xlu0 %v1346, 95
    %v1362 = vpop.permute.xlu0 %1361
    %1363 = vrot.lane.b32.xlu0 %v1347, 95
    %v1364 = vpop.permute.xlu0 %1363
    %1365 = vrot.lane.b32.xlu0 %v1348, 95
    %v1366 = vpop.permute.xlu0 %1365
    %v1373 = vadd.f32 %v1279, %v1356
    %v1374 = vadd.f32 %v1280, %v1356
    %v1375 = vadd.f32 %v1281, %v1358
    %v1376 = vadd.f32 %v1282, %v1358
    %v1377 = vadd.f32 %v1283, %v1360
    %v1378 = vadd.f32 %v1284, %v1360
    %v1379 = vadd.f32 %v1285, %v1362
    %v1380 = vadd.f32 %v1286, %v1362
    %v1381 = vadd.f32 %v1287, %v1364
    %v1382 = vadd.f32 %v1288, %v1364
    %v1383 = vadd.f32 %v1289, %v1366
    %v1384 = vadd.f32 %v1290, %v1366
    %1391 = vrot.lane.b32.xlu0 %v466, 1
    %v1392 = vpop.permute.xlu0 %1391
    %1393 = vrot.lane.b32.xlu0 %v467, 1
    %v1394 = vpop.permute.xlu0 %1393
    %1395 = vrot.lane.b32.xlu0 %v468, 1
    %v1396 = vpop.permute.xlu0 %1395
    %1397 = vrot.lane.b32.xlu0 %v469, 1
    %v1398 = vpop.permute.xlu0 %1397
    %1399 = vrot.lane.b32.xlu0 %v470, 1
    %v1400 = vpop.permute.xlu0 %1399
    %1401 = vrot.lane.b32.xlu0 %v471, 1
    %v1402 = vpop.permute.xlu0 %1401
    %v1409 = vmul.f32 %v1197, %v1392
    %v1410 = vmul.f32 %v1198, %v1394
    %v1411 = vmul.f32 %v1199, %v1396
    %v1412 = vmul.f32 %v1200, %v1398
    %v1413 = vmul.f32 %v1201, %v1400
    %v1414 = vmul.f32 %v1202, %v1402
    %s1415 = sld [smem:[#allocation2 + $0x20]]
    %v1416 = vstv %s1415
    %v1417 = vmul.f32 %v1409, %v1416
    %v1418 = vmul.f32 %v1410, %v1416
    %v1419 = vmul.f32 %v1411, %v1416
    %v1420 = vmul.f32 %v1412, %v1416
    %v1421 = vmul.f32 %v1413, %v1416
    %v1422 = vmul.f32 %v1414, %v1416
    %1429 = vrot.lane.b32.xlu0 %v1417, 94
    %v1430 = vpop.permute.xlu0 %1429
    %1431 = vrot.lane.b32.xlu0 %v1418, 94
    %v1432 = vpop.permute.xlu0 %1431
    %1433 = vrot.lane.b32.xlu0 %v1419, 94
    %v1434 = vpop.permute.xlu0 %1433
    %1435 = vrot.lane.b32.xlu0 %v1420, 94
    %v1436 = vpop.permute.xlu0 %1435
    %1437 = vrot.lane.b32.xlu0 %v1421, 94
    %v1438 = vpop.permute.xlu0 %1437
    %1439 = vrot.lane.b32.xlu0 %v1422, 94
    %v1440 = vpop.permute.xlu0 %1439
    %v1447 = vadd.f32 %v1329, %v1430
    %v1448 = vadd.f32 %v1330, %v1430
    %v1449 = vadd.f32 %v1331, %v1432
    %v1450 = vadd.f32 %v1332, %v1432
    %v1451 = vadd.f32 %v1333, %v1434
    %v1452 = vadd.f32 %v1334, %v1434
    %v1453 = vadd.f32 %v1335, %v1436
    %v1454 = vadd.f32 %v1336, %v1436
    %v1455 = vadd.f32 %v1337, %v1438
    %v1456 = vadd.f32 %v1338, %v1438
    %v1457 = vadd.f32 %v1339, %v1440
    %v1458 = vadd.f32 %v1340, %v1440
    %s1459 = sld [smem:[#allocation2 + $0x21]]
    %v1460 = vstv %s1459
    %v1461 = vmul.f32 %v1409, %v1460
    %v1462 = vmul.f32 %v1410, %v1460
    %v1463 = vmul.f32 %v1411, %v1460
    %v1464 = vmul.f32 %v1412, %v1460
    %v1465 = vmul.f32 %v1413, %v1460
    %v1466 = vmul.f32 %v1414, %v1460
    %1473 = vrot.lane.b32.xlu0 %v1461, 94
    %v1474 = vpop.permute.xlu0 %1473
    %1475 = vrot.lane.b32.xlu0 %v1462, 94
    %v1476 = vpop.permute.xlu0 %1475
    %1477 = vrot.lane.b32.xlu0 %v1463, 94
    %v1478 = vpop.permute.xlu0 %1477
    %1479 = vrot.lane.b32.xlu0 %v1464, 94
    %v1480 = vpop.permute.xlu0 %1479
    %1481 = vrot.lane.b32.xlu0 %v1465, 94
    %v1482 = vpop.permute.xlu0 %1481
    %1483 = vrot.lane.b32.xlu0 %v1466, 94
    %v1484 = vpop.permute.xlu0 %1483
    %v1491 = vadd.f32 %v1373, %v1474
    %v1492 = vadd.f32 %v1374, %v1474
    %v1493 = vadd.f32 %v1375, %v1476
    %v1494 = vadd.f32 %v1376, %v1476
    %v1495 = vadd.f32 %v1377, %v1478
    %v1496 = vadd.f32 %v1378, %v1478
    %v1497 = vadd.f32 %v1379, %v1480
    %v1498 = vadd.f32 %v1380, %v1480
    %v1499 = vadd.f32 %v1381, %v1482
    %v1500 = vadd.f32 %v1382, %v1482
    %v1501 = vadd.f32 %v1383, %v1484
    %v1502 = vadd.f32 %v1384, %v1484
    %v1503 = vrot.slane %v389, 7
    %v1504 = vrot.slane %v394, 7
    %v1505 = vrot.slane %v399, 7
    %v1506 = vrot.slane %v404, 7
    %v1507 = vrot.slane %v409, 7
    %v1508 = vrot.slane %v414, 7
    %v1509 = vsel %vm480, %v1507, %v1508
    %v1510 = vsel %vm480, %v1506, %v1507
    %v1511 = vsel %vm480, %v1505, %v1506
    %v1512 = vsel %vm480, %v1504, %v1505
    %v1513 = vsel %vm480, %v1503, %v1504
    %v1514 = vsel %vm480, %v1508, %v1503
    %1515 = vrot.lane.b32.xlu0 %v1514, 96
    %v1516 = vpop.permute.xlu0 %1515
    %v1517 = vsel %vm487, %v1516, %v1514
    %1518 = vrot.lane.b32.xlu0 %v1513, 96
    %v1519 = vpop.permute.xlu0 %1518
    %v1520 = vsel %vm487, %v1519, %v1513
    %1521 = vrot.lane.b32.xlu0 %v1512, 96
    %v1522 = vpop.permute.xlu0 %1521
    %v1523 = vsel %vm487, %v1522, %v1512
    %1524 = vrot.lane.b32.xlu0 %v1511, 96
    %v1525 = vpop.permute.xlu0 %1524
    %v1526 = vsel %vm487, %v1525, %v1511
    %1527 = vrot.lane.b32.xlu0 %v1510, 96
    %v1528 = vpop.permute.xlu0 %1527
    %v1529 = vsel %vm487, %v1528, %v1510
    %1530 = vrot.lane.b32.xlu0 %v1509, 96
    %v1531 = vpop.permute.xlu0 %1530
    %v1532 = vsel %vm487, %v1531, %v1509
    %1533 = vrot.lane.b32.xlu0 %v1517, 96
    %v1534 = vpop.permute.xlu0 %1533
    %1535 = vrot.lane.b32.xlu0 %v1520, 96
    %v1536 = vpop.permute.xlu0 %1535
    %1537 = vrot.lane.b32.xlu0 %v1523, 96
    %v1538 = vpop.permute.xlu0 %1537
    %1539 = vrot.lane.b32.xlu0 %v1526, 96
    %v1540 = vpop.permute.xlu0 %1539
    %1541 = vrot.lane.b32.xlu0 %v1529, 96
    %v1542 = vpop.permute.xlu0 %1541
    %1543 = vrot.lane.b32.xlu0 %v1532, 96
    %v1544 = vpop.permute.xlu0 %1543
    %v1545 = vsel %vm487, %v1534, %v1514
    %v1546 = vsel %vm487, %v1536, %v1513
    %v1547 = vsel %vm487, %v1538, %v1512
    %v1548 = vsel %vm487, %v1540, %v1511
    %v1549 = vsel %vm487, %v1542, %v1510
    %v1550 = vsel %vm487, %v1544, %v1509
    %v1551 = vmul.f32 %v1545, %v531
    %v1552 = vmul.f32 %v1534, %v531
    %v1553 = vmul.f32 %v1546, %v533
    %v1554 = vmul.f32 %v1536, %v533
    %v1555 = vmul.f32 %v1547, %v535
    %v1556 = vmul.f32 %v1538, %v535
    %v1557 = vmul.f32 %v1548, %v537
    %v1558 = vmul.f32 %v1540, %v537
    %v1559 = vmul.f32 %v1549, %v539
    %v1560 = vmul.f32 %v1542, %v539
    %v1561 = vmul.f32 %v1550, %v541
    %v1562 = vmul.f32 %v1544, %v541
    %s1563 = sld [smem:[#allocation2 + $0x2]]
    %v1564 = vstv %s1563
    %v1565 = vmul.f32 %v1551, %v1564
    %v1566 = vmul.f32 %v1552, %v1564
    %v1567 = vmul.f32 %v1553, %v1564
    %v1568 = vmul.f32 %v1554, %v1564
    %v1569 = vmul.f32 %v1555, %v1564
    %v1570 = vmul.f32 %v1556, %v1564
    %v1571 = vmul.f32 %v1557, %v1564
    %v1572 = vmul.f32 %v1558, %v1564
    %v1573 = vmul.f32 %v1559, %v1564
    %v1574 = vmul.f32 %v1560, %v1564
    %v1575 = vmul.f32 %v1561, %v1564
    %v1576 = vmul.f32 %v1562, %v1564
    %v1577 = vadd.f32 %v1447, %v1565
    %v1578 = vadd.f32 %v1448, %v1566
    %v1579 = vadd.f32 %v1449, %v1567
    %v1580 = vadd.f32 %v1450, %v1568
    %v1581 = vadd.f32 %v1451, %v1569
    %v1582 = vadd.f32 %v1452, %v1570
    %v1583 = vadd.f32 %v1453, %v1571
    %v1584 = vadd.f32 %v1454, %v1572
    %v1585 = vadd.f32 %v1455, %v1573
    %v1586 = vadd.f32 %v1456, %v1574
    %v1587 = vadd.f32 %v1457, %v1575
    %v1588 = vadd.f32 %v1458, %v1576
    %s1589 = sld [smem:[#allocation2 + $0x3]]
    %v1590 = vstv %s1589
    %v1591 = vmul.f32 %v1551, %v1590
    %v1592 = vmul.f32 %v1552, %v1590
    %v1593 = vmul.f32 %v1553, %v1590
    %v1594 = vmul.f32 %v1554, %v1590
    %v1595 = vmul.f32 %v1555, %v1590
    %v1596 = vmul.f32 %v1556, %v1590
    %v1597 = vmul.f32 %v1557, %v1590
    %v1598 = vmul.f32 %v1558, %v1590
    %v1599 = vmul.f32 %v1559, %v1590
    %v1600 = vmul.f32 %v1560, %v1590
    %v1601 = vmul.f32 %v1561, %v1590
    %v1602 = vmul.f32 %v1562, %v1590
    %v1603 = vadd.f32 %v1491, %v1591
    %v1604 = vadd.f32 %v1492, %v1592
    %v1605 = vadd.f32 %v1493, %v1593
    %v1606 = vadd.f32 %v1494, %v1594
    %v1607 = vadd.f32 %v1495, %v1595
    %v1608 = vadd.f32 %v1496, %v1596
    %v1609 = vadd.f32 %v1497, %v1597
    %v1610 = vadd.f32 %v1498, %v1598
    %v1611 = vadd.f32 %v1499, %v1599
    %v1612 = vadd.f32 %v1500, %v1600
    %v1613 = vadd.f32 %v1501, %v1601
    %v1614 = vadd.f32 %v1502, %v1602
    %v1615 = vmul.f32 %v1514, %v424
    %v1616 = vmul.f32 %v1513, %v425
    %v1617 = vmul.f32 %v1512, %v426
    %v1618 = vmul.f32 %v1511, %v427
    %v1619 = vmul.f32 %v1510, %v428
    %v1620 = vmul.f32 %v1509, %v429
    %s1621 = sld [smem:[#allocation2 + $0x6]]
    %v1622 = vstv %s1621
    %v1623 = vmul.f32 %v1615, %v1622
    %v1624 = vmul.f32 %v1616, %v1622
    %v1625 = vmul.f32 %v1617, %v1622
    %v1626 = vmul.f32 %v1618, %v1622
    %v1627 = vmul.f32 %v1619, %v1622
    %v1628 = vmul.f32 %v1620, %v1622
    %1635 = vrot.lane.b32.xlu0 %v1623, 95
    %v1636 = vpop.permute.xlu0 %1635
    %1637 = vrot.lane.b32.xlu0 %v1624, 95
    %v1638 = vpop.permute.xlu0 %1637
    %1639 = vrot.lane.b32.xlu0 %v1625, 95
    %v1640 = vpop.permute.xlu0 %1639
    %1641 = vrot.lane.b32.xlu0 %v1626, 95
    %v1642 = vpop.permute.xlu0 %1641
    %1643 = vrot.lane.b32.xlu0 %v1627, 95
    %v1644 = vpop.permute.xlu0 %1643
    %1645 = vrot.lane.b32.xlu0 %v1628, 95
    %v1646 = vpop.permute.xlu0 %1645
    %v1653 = vadd.f32 %v1577, %v1636
    %v1654 = vadd.f32 %v1578, %v1636
    %v1655 = vadd.f32 %v1579, %v1638
    %v1656 = vadd.f32 %v1580, %v1638
    %v1657 = vadd.f32 %v1581, %v1640
    %v1658 = vadd.f32 %v1582, %v1640
    %v1659 = vadd.f32 %v1583, %v1642
    %v1660 = vadd.f32 %v1584, %v1642
    %v1661 = vadd.f32 %v1585, %v1644
    %v1662 = vadd.f32 %v1586, %v1644
    %v1663 = vadd.f32 %v1587, %v1646
    %v1664 = vadd.f32 %v1588, %v1646
    %s1665 = sld [smem:[#allocation2 + $0x7]]
    %v1666 = vstv %s1665
    %v1667 = vmul.f32 %v1615, %v1666
    %v1668 = vmul.f32 %v1616, %v1666
    %v1669 = vmul.f32 %v1617, %v1666
    %v1670 = vmul.f32 %v1618, %v1666
    %v1671 = vmul.f32 %v1619, %v1666
    %v1672 = vmul.f32 %v1620, %v1666
    %1679 = vrot.lane.b32.xlu0 %v1667, 95
    %v1680 = vpop.permute.xlu0 %1679
    %1681 = vrot.lane.b32.xlu0 %v1668, 95
    %v1682 = vpop.permute.xlu0 %1681
    %1683 = vrot.lane.b32.xlu0 %v1669, 95
    %v1684 = vpop.permute.xlu0 %1683
    %1685 = vrot.lane.b32.xlu0 %v1670, 95
    %v1686 = vpop.permute.xlu0 %1685
    %1687 = vrot.lane.b32.xlu0 %v1671, 95
    %v1688 = vpop.permute.xlu0 %1687
    %1689 = vrot.lane.b32.xlu0 %v1672, 95
    %v1690 = vpop.permute.xlu0 %1689
    %v1697 = vadd.f32 %v1603, %v1680
    %v1698 = vadd.f32 %v1604, %v1680
    %v1699 = vadd.f32 %v1605, %v1682
    %v1700 = vadd.f32 %v1606, %v1682
    %v1701 = vadd.f32 %v1607, %v1684
    %v1702 = vadd.f32 %v1608, %v1684
    %v1703 = vadd.f32 %v1609, %v1686
    %v1704 = vadd.f32 %v1610, %v1686
    %v1705 = vadd.f32 %v1611, %v1688
    %v1706 = vadd.f32 %v1612, %v1688
    %v1707 = vadd.f32 %v1613, %v1690
    %v1708 = vadd.f32 %v1614, %v1690
    %v1709 = vmul.f32 %v1545, %v713
    %v1710 = vmul.f32 %v1546, %v715
    %v1711 = vmul.f32 %v1547, %v717
    %v1712 = vmul.f32 %v1548, %v719
    %v1713 = vmul.f32 %v1549, %v721
    %v1714 = vmul.f32 %v1550, %v723
    %s1715 = sld [smem:[#allocation2 + $0xa]]
    %v1716 = vstv %s1715
    %v1717 = vmul.f32 %v1709, %v1716
    %v1718 = vmul.f32 %v1710, %v1716
    %v1719 = vmul.f32 %v1711, %v1716
    %v1720 = vmul.f32 %v1712, %v1716
    %v1721 = vmul.f32 %v1713, %v1716
    %v1722 = vmul.f32 %v1714, %v1716
    %1729 = vrot.lane.b32.xlu0 %v1717, 94
    %v1730 = vpop.permute.xlu0 %1729
    %1731 = vrot.lane.b32.xlu0 %v1718, 94
    %v1732 = vpop.permute.xlu0 %1731
    %1733 = vrot.lane.b32.xlu0 %v1719, 94
    %v1734 = vpop.permute.xlu0 %1733
    %1735 = vrot.lane.b32.xlu0 %v1720, 94
    %v1736 = vpop.permute.xlu0 %1735
    %1737 = vrot.lane.b32.xlu0 %v1721, 94
    %v1738 = vpop.permute.xlu0 %1737
    %1739 = vrot.lane.b32.xlu0 %v1722, 94
    %v1740 = vpop.permute.xlu0 %1739
    %v1747 = vadd.f32 %v1653, %v1730
    %v1748 = vadd.f32 %v1654, %v1730
    %v1749 = vadd.f32 %v1655, %v1732
    %v1750 = vadd.f32 %v1656, %v1732
    %v1751 = vadd.f32 %v1657, %v1734
    %v1752 = vadd.f32 %v1658, %v1734
    %v1753 = vadd.f32 %v1659, %v1736
    %v1754 = vadd.f32 %v1660, %v1736
    %v1755 = vadd.f32 %v1661, %v1738
    %v1756 = vadd.f32 %v1662, %v1738
    %v1757 = vadd.f32 %v1663, %v1740
    %v1758 = vadd.f32 %v1664, %v1740
    %s1759 = sld [smem:[#allocation2 + $0xb]]
    %v1760 = vstv %s1759
    %v1761 = vmul.f32 %v1709, %v1760
    %v1762 = vmul.f32 %v1710, %v1760
    %v1763 = vmul.f32 %v1711, %v1760
    %v1764 = vmul.f32 %v1712, %v1760
    %v1765 = vmul.f32 %v1713, %v1760
    %v1766 = vmul.f32 %v1714, %v1760
    %1773 = vrot.lane.b32.xlu0 %v1761, 94
    %v1774 = vpop.permute.xlu0 %1773
    %1775 = vrot.lane.b32.xlu0 %v1762, 94
    %v1776 = vpop.permute.xlu0 %1775
    %1777 = vrot.lane.b32.xlu0 %v1763, 94
    %v1778 = vpop.permute.xlu0 %1777
    %1779 = vrot.lane.b32.xlu0 %v1764, 94
    %v1780 = vpop.permute.xlu0 %1779
    %1781 = vrot.lane.b32.xlu0 %v1765, 94
    %v1782 = vpop.permute.xlu0 %1781
    %1783 = vrot.lane.b32.xlu0 %v1766, 94
    %v1784 = vpop.permute.xlu0 %1783
    %v1791 = vadd.f32 %v1697, %v1774
    %v1792 = vadd.f32 %v1698, %v1774
    %v1793 = vadd.f32 %v1699, %v1776
    %v1794 = vadd.f32 %v1700, %v1776
    %v1795 = vadd.f32 %v1701, %v1778
    %v1796 = vadd.f32 %v1702, %v1778
    %v1797 = vadd.f32 %v1703, %v1780
    %v1798 = vadd.f32 %v1704, %v1780
    %v1799 = vadd.f32 %v1705, %v1782
    %v1800 = vadd.f32 %v1706, %v1782
    %v1801 = vadd.f32 %v1707, %v1784
    %v1802 = vadd.f32 %v1708, %v1784
    %1803 = vrot.lane.b32.xlu0 %v389, 96
    %v1804 = vpop.permute.xlu0 %1803
    %v1805 = vsel %vm487, %v1804, %v389
    %1806 = vrot.lane.b32.xlu0 %v394, 96
    %v1807 = vpop.permute.xlu0 %1806
    %v1808 = vsel %vm487, %v1807, %v394
    %1809 = vrot.lane.b32.xlu0 %v399, 96
    %v1810 = vpop.permute.xlu0 %1809
    %v1811 = vsel %vm487, %v1810, %v399
    %1812 = vrot.lane.b32.xlu0 %v404, 96
    %v1813 = vpop.permute.xlu0 %1812
    %v1814 = vsel %vm487, %v1813, %v404
    %1815 = vrot.lane.b32.xlu0 %v409, 96
    %v1816 = vpop.permute.xlu0 %1815
    %v1817 = vsel %vm487, %v1816, %v409
    %1818 = vrot.lane.b32.xlu0 %v414, 96
    %v1819 = vpop.permute.xlu0 %1818
    %v1820 = vsel %vm487, %v1819, %v414
    %1821 = vrot.lane.b32.xlu0 %v1805, 96
    %v1822 = vpop.permute.xlu0 %1821
    %1823 = vrot.lane.b32.xlu0 %v1808, 96
    %v1824 = vpop.permute.xlu0 %1823
    %1825 = vrot.lane.b32.xlu0 %v1811, 96
    %v1826 = vpop.permute.xlu0 %1825
    %1827 = vrot.lane.b32.xlu0 %v1814, 96
    %v1828 = vpop.permute.xlu0 %1827
    %1829 = vrot.lane.b32.xlu0 %v1817, 96
    %v1830 = vpop.permute.xlu0 %1829
    %1831 = vrot.lane.b32.xlu0 %v1820, 96
    %v1832 = vpop.permute.xlu0 %1831
    %v1833 = vsel %vm487, %v1822, %v389
    %v1834 = vsel %vm487, %v1824, %v394
    %v1835 = vsel %vm487, %v1826, %v399
    %v1836 = vsel %vm487, %v1828, %v404
    %v1837 = vsel %vm487, %v1830, %v409
    %v1838 = vsel %vm487, %v1832, %v414
    %v1839 = vmul.f32 %v1833, %v867
    %v1840 = vmul.f32 %v1822, %v867
    %v1841 = vmul.f32 %v1834, %v869
    %v1842 = vmul.f32 %v1824, %v869
    %v1843 = vmul.f32 %v1835, %v871
    %v1844 = vmul.f32 %v1826, %v871
    %v1845 = vmul.f32 %v1836, %v873
    %v1846 = vmul.f32 %v1828, %v873
    %v1847 = vmul.f32 %v1837, %v875
    %v1848 = vmul.f32 %v1830, %v875
    %v1849 = vmul.f32 %v1838, %v877
    %v1850 = vmul.f32 %v1832, %v877
    %s1851 = sld [smem:[#allocation2 + $0xe]]
    %v1852 = vstv %s1851
    %v1853 = vmul.f32 %v1839, %v1852
    %v1854 = vmul.f32 %v1840, %v1852
    %v1855 = vmul.f32 %v1841, %v1852
    %v1856 = vmul.f32 %v1842, %v1852
    %v1857 = vmul.f32 %v1843, %v1852
    %v1858 = vmul.f32 %v1844, %v1852
    %v1859 = vmul.f32 %v1845, %v1852
    %v1860 = vmul.f32 %v1846, %v1852
    %v1861 = vmul.f32 %v1847, %v1852
    %v1862 = vmul.f32 %v1848, %v1852
    %v1863 = vmul.f32 %v1849, %v1852
    %v1864 = vmul.f32 %v1850, %v1852
    %v1865 = vadd.f32 %v1747, %v1853
    %v1866 = vadd.f32 %v1748, %v1854
    %v1867 = vadd.f32 %v1749, %v1855
    %v1868 = vadd.f32 %v1750, %v1856
    %v1869 = vadd.f32 %v1751, %v1857
    %v1870 = vadd.f32 %v1752, %v1858
    %v1871 = vadd.f32 %v1753, %v1859
    %v1872 = vadd.f32 %v1754, %v1860
    %v1873 = vadd.f32 %v1755, %v1861
    %v1874 = vadd.f32 %v1756, %v1862
    %v1875 = vadd.f32 %v1757, %v1863
    %v1876 = vadd.f32 %v1758, %v1864
    %s1877 = sld [smem:[#allocation2 + $0xf]]
    %v1878 = vstv %s1877
    %v1879 = vmul.f32 %v1839, %v1878
    %v1880 = vmul.f32 %v1840, %v1878
    %v1881 = vmul.f32 %v1841, %v1878
    %v1882 = vmul.f32 %v1842, %v1878
    %v1883 = vmul.f32 %v1843, %v1878
    %v1884 = vmul.f32 %v1844, %v1878
    %v1885 = vmul.f32 %v1845, %v1878
    %v1886 = vmul.f32 %v1846, %v1878
    %v1887 = vmul.f32 %v1847, %v1878
    %v1888 = vmul.f32 %v1848, %v1878
    %v1889 = vmul.f32 %v1849, %v1878
    %v1890 = vmul.f32 %v1850, %v1878
    %v1891 = vadd.f32 %v1791, %v1879
    %v1892 = vadd.f32 %v1792, %v1880
    %v1893 = vadd.f32 %v1793, %v1881
    %v1894 = vadd.f32 %v1794, %v1882
    %v1895 = vadd.f32 %v1795, %v1883
    %v1896 = vadd.f32 %v1796, %v1884
    %v1897 = vadd.f32 %v1797, %v1885
    %v1898 = vadd.f32 %v1798, %v1886
    %v1899 = vadd.f32 %v1799, %v1887
    %v1900 = vadd.f32 %v1800, %v1888
    %v1901 = vadd.f32 %v1801, %v1889
    %v1902 = vadd.f32 %v1802, %v1890
    %s1903 = sld [smem:[#allocation2 + $0x12]]
    %v1904 = vstv %s1903
    %v1905 = vmul.f32 %v389, %v1904
    %v1906 = vmul.f32 %v394, %v1904
    %v1907 = vmul.f32 %v399, %v1904
    %v1908 = vmul.f32 %v404, %v1904
    %v1909 = vmul.f32 %v409, %v1904
    %v1910 = vmul.f32 %v414, %v1904
    %1917 = vrot.lane.b32.xlu0 %v1905, 95
    %v1918 = vpop.permute.xlu0 %1917
    %1919 = vrot.lane.b32.xlu0 %v1906, 95
    %v1920 = vpop.permute.xlu0 %1919
    %1921 = vrot.lane.b32.xlu0 %v1907, 95
    %v1922 = vpop.permute.xlu0 %1921
    %1923 = vrot.lane.b32.xlu0 %v1908, 95
    %v1924 = vpop.permute.xlu0 %1923
    %1925 = vrot.lane.b32.xlu0 %v1909, 95
    %v1926 = vpop.permute.xlu0 %1925
    %1927 = vrot.lane.b32.xlu0 %v1910, 95
    %v1928 = vpop.permute.xlu0 %1927
    %v1935 = vadd.f32 %v1865, %v1918
    %v1936 = vadd.f32 %v1866, %v1918
    %v1937 = vadd.f32 %v1867, %v1920
    %v1938 = vadd.f32 %v1868, %v1920
    %v1939 = vadd.f32 %v1869, %v1922
    %v1940 = vadd.f32 %v1870, %v1922
    %v1941 = vadd.f32 %v1871, %v1924
    %v1942 = vadd.f32 %v1872, %v1924
    %v1943 = vadd.f32 %v1873, %v1926
    %v1944 = vadd.f32 %v1874, %v1926
    %v1945 = vadd.f32 %v1875, %v1928
    %v1946 = vadd.f32 %v1876, %v1928
    %s1947 = sld [smem:[#allocation2 + $0x13]]
    %v1948 = vstv %s1947
    %v1949 = vmul.f32 %v389, %v1948
    %v1950 = vmul.f32 %v394, %v1948
    %v1951 = vmul.f32 %v399, %v1948
    %v1952 = vmul.f32 %v404, %v1948
    %v1953 = vmul.f32 %v409, %v1948
    %v1954 = vmul.f32 %v414, %v1948
    %1961 = vrot.lane.b32.xlu0 %v1949, 95
    %v1962 = vpop.permute.xlu0 %1961
    %1963 = vrot.lane.b32.xlu0 %v1950, 95
    %v1964 = vpop.permute.xlu0 %1963
    %1965 = vrot.lane.b32.xlu0 %v1951, 95
    %v1966 = vpop.permute.xlu0 %1965
    %1967 = vrot.lane.b32.xlu0 %v1952, 95
    %v1968 = vpop.permute.xlu0 %1967
    %1969 = vrot.lane.b32.xlu0 %v1953, 95
    %v1970 = vpop.permute.xlu0 %1969
    %1971 = vrot.lane.b32.xlu0 %v1954, 95
    %v1972 = vpop.permute.xlu0 %1971
    %v1979 = vadd.f32 %v1891, %v1962
    %v1980 = vadd.f32 %v1892, %v1962
    %v1981 = vadd.f32 %v1893, %v1964
    %v1982 = vadd.f32 %v1894, %v1964
    %v1983 = vadd.f32 %v1895, %v1966
    %v1984 = vadd.f32 %v1896, %v1966
    %v1985 = vadd.f32 %v1897, %v1968
    %v1986 = vadd.f32 %v1898, %v1968
    %v1987 = vadd.f32 %v1899, %v1970
    %v1988 = vadd.f32 %v1900, %v1970
    %v1989 = vadd.f32 %v1901, %v1972
    %v1990 = vadd.f32 %v1902, %v1972
    %v1991 = vmul.f32 %v1833, %v1043
    %v1992 = vmul.f32 %v1834, %v1045
    %v1993 = vmul.f32 %v1835, %v1047
    %v1994 = vmul.f32 %v1836, %v1049
    %v1995 = vmul.f32 %v1837, %v1051
    %v1996 = vmul.f32 %v1838, %v1053
    %s1997 = sld [smem:[#allocation2 + $0x16]]
    %v1998 = vstv %s1997
    %v1999 = vmul.f32 %v1991, %v1998
    %v2000 = vmul.f32 %v1992, %v1998
    %v2001 = vmul.f32 %v1993, %v1998
    %v2002 = vmul.f32 %v1994, %v1998
    %v2003 = vmul.f32 %v1995, %v1998
    %v2004 = vmul.f32 %v1996, %v1998
    %2011 = vrot.lane.b32.xlu0 %v1999, 94
    %v2012 = vpop.permute.xlu0 %2011
    %2013 = vrot.lane.b32.xlu0 %v2000, 94
    %v2014 = vpop.permute.xlu0 %2013
    %2015 = vrot.lane.b32.xlu0 %v2001, 94
    %v2016 = vpop.permute.xlu0 %2015
    %2017 = vrot.lane.b32.xlu0 %v2002, 94
    %v2018 = vpop.permute.xlu0 %2017
    %2019 = vrot.lane.b32.xlu0 %v2003, 94
    %v2020 = vpop.permute.xlu0 %2019
    %2021 = vrot.lane.b32.xlu0 %v2004, 94
    %v2022 = vpop.permute.xlu0 %2021
    %v2029 = vadd.f32 %v1935, %v2012
    %v2030 = vadd.f32 %v1936, %v2012
    %v2031 = vadd.f32 %v1937, %v2014
    %v2032 = vadd.f32 %v1938, %v2014
    %v2033 = vadd.f32 %v1939, %v2016
    %v2034 = vadd.f32 %v1940, %v2016
    %v2035 = vadd.f32 %v1941, %v2018
    %v2036 = vadd.f32 %v1942, %v2018
    %v2037 = vadd.f32 %v1943, %v2020
    %v2038 = vadd.f32 %v1944, %v2020
    %v2039 = vadd.f32 %v1945, %v2022
    %v2040 = vadd.f32 %v1946, %v2022
    %s2041 = sld [smem:[#allocation2 + $0x17]]
    %v2042 = vstv %s2041
    %v2043 = vmul.f32 %v1991, %v2042
    %v2044 = vmul.f32 %v1992, %v2042
    %v2045 = vmul.f32 %v1993, %v2042
    %v2046 = vmul.f32 %v1994, %v2042
    %v2047 = vmul.f32 %v1995, %v2042
    %v2048 = vmul.f32 %v1996, %v2042
    %2055 = vrot.lane.b32.xlu0 %v2043, 94
    %v2056 = vpop.permute.xlu0 %2055
    %2057 = vrot.lane.b32.xlu0 %v2044, 94
    %v2058 = vpop.permute.xlu0 %2057
    %2059 = vrot.lane.b32.xlu0 %v2045, 94
    %v2060 = vpop.permute.xlu0 %2059
    %2061 = vrot.lane.b32.xlu0 %v2046, 94
    %v2062 = vpop.permute.xlu0 %2061
    %2063 = vrot.lane.b32.xlu0 %v2047, 94
    %v2064 = vpop.permute.xlu0 %2063
    %2065 = vrot.lane.b32.xlu0 %v2048, 94
    %v2066 = vpop.permute.xlu0 %2065
    %v2073 = vadd.f32 %v1979, %v2056
    %v2074 = vadd.f32 %v1980, %v2056
    %v2075 = vadd.f32 %v1981, %v2058
    %v2076 = vadd.f32 %v1982, %v2058
    %v2077 = vadd.f32 %v1983, %v2060
    %v2078 = vadd.f32 %v1984, %v2060
    %v2079 = vadd.f32 %v1985, %v2062
    %v2080 = vadd.f32 %v1986, %v2062
    %v2081 = vadd.f32 %v1987, %v2064
    %v2082 = vadd.f32 %v1988, %v2064
    %v2083 = vadd.f32 %v1989, %v2066
    %v2084 = vadd.f32 %v1990, %v2066
    %v2085 = vrot.slane %v389, 1
    %v2086 = vrot.slane %v394, 1
    %v2087 = vrot.slane %v399, 1
    %v2088 = vrot.slane %v404, 1
    %v2089 = vrot.slane %v409, 1
    %v2090 = vrot.slane %v414, 1
    %v2091 = vsel %vm1160, %v2089, %v2090
    %v2092 = vsel %vm1160, %v2088, %v2089
    %v2093 = vsel %vm1160, %v2087, %v2088
    %v2094 = vsel %vm1160, %v2086, %v2087
    %v2095 = vsel %vm1160, %v2085, %v2086
    %v2096 = vsel %vm1160, %v2090, %v2085
    %2097 = vrot.lane.b32.xlu0 %v2095, 96
    %v2098 = vpop.permute.xlu0 %2097
    %v2099 = vsel %vm487, %v2098, %v2095
    %2100 = vrot.lane.b32.xlu0 %v2094, 96
    %v2101 = vpop.permute.xlu0 %2100
    %v2102 = vsel %vm487, %v2101, %v2094
    %2103 = vrot.lane.b32.xlu0 %v2093, 96
    %v2104 = vpop.permute.xlu0 %2103
    %v2105 = vsel %vm487, %v2104, %v2093
    %2106 = vrot.lane.b32.xlu0 %v2092, 96
    %v2107 = vpop.permute.xlu0 %2106
    %v2108 = vsel %vm487, %v2107, %v2092
    %2109 = vrot.lane.b32.xlu0 %v2091, 96
    %v2110 = vpop.permute.xlu0 %2109
    %v2111 = vsel %vm487, %v2110, %v2091
    %2112 = vrot.lane.b32.xlu0 %v2096, 96
    %v2113 = vpop.permute.xlu0 %2112
    %v2114 = vsel %vm487, %v2113, %v2096
    %2115 = vrot.lane.b32.xlu0 %v2099, 96
    %v2116 = vpop.permute.xlu0 %2115
    %2117 = vrot.lane.b32.xlu0 %v2102, 96
    %v2118 = vpop.permute.xlu0 %2117
    %2119 = vrot.lane.b32.xlu0 %v2105, 96
    %v2120 = vpop.permute.xlu0 %2119
    %2121 = vrot.lane.b32.xlu0 %v2108, 96
    %v2122 = vpop.permute.xlu0 %2121
    %2123 = vrot.lane.b32.xlu0 %v2111, 96
    %v2124 = vpop.permute.xlu0 %2123
    %2125 = vrot.lane.b32.xlu0 %v2114, 96
    %v2126 = vpop.permute.xlu0 %2125
    %v2127 = vsel %vm487, %v2116, %v2095
    %v2128 = vsel %vm487, %v2118, %v2094
    %v2129 = vsel %vm487, %v2120, %v2093
    %v2130 = vsel %vm487, %v2122, %v2092
    %v2131 = vsel %vm487, %v2124, %v2091
    %v2132 = vsel %vm487, %v2126, %v2096
    %v2133 = vmul.f32 %v2127, %v1210
    %v2134 = vmul.f32 %v2116, %v1210
    %v2135 = vmul.f32 %v2128, %v1212
    %v2136 = vmul.f32 %v2118, %v1212
    %v2137 = vmul.f32 %v2129, %v1214
    %v2138 = vmul.f32 %v2120, %v1214
    %v2139 = vmul.f32 %v2130, %v1216
    %v2140 = vmul.f32 %v2122, %v1216
    %v2141 = vmul.f32 %v2131, %v1218
    %v2142 = vmul.f32 %v2124, %v1218
    %v2143 = vmul.f32 %v2132, %v1220
    %v2144 = vmul.f32 %v2126, %v1220
    %s2145 = sld [smem:[#allocation2 + $0x1a]]
    %v2146 = vstv %s2145
    %v2147 = vmul.f32 %v2133, %v2146
    %v2148 = vmul.f32 %v2134, %v2146
    %v2149 = vmul.f32 %v2135, %v2146
    %v2150 = vmul.f32 %v2136, %v2146
    %v2151 = vmul.f32 %v2137, %v2146
    %v2152 = vmul.f32 %v2138, %v2146
    %v2153 = vmul.f32 %v2139, %v2146
    %v2154 = vmul.f32 %v2140, %v2146
    %v2155 = vmul.f32 %v2141, %v2146
    %v2156 = vmul.f32 %v2142, %v2146
    %v2157 = vmul.f32 %v2143, %v2146
    %v2158 = vmul.f32 %v2144, %v2146
    %v2159 = vadd.f32 %v2029, %v2147
    %v2160 = vadd.f32 %v2030, %v2148
    %v2161 = vadd.f32 %v2031, %v2149
    %v2162 = vadd.f32 %v2032, %v2150
    %v2163 = vadd.f32 %v2033, %v2151
    %v2164 = vadd.f32 %v2034, %v2152
    %v2165 = vadd.f32 %v2035, %v2153
    %v2166 = vadd.f32 %v2036, %v2154
    %v2167 = vadd.f32 %v2037, %v2155
    %v2168 = vadd.f32 %v2038, %v2156
    %v2169 = vadd.f32 %v2039, %v2157
    %v2170 = vadd.f32 %v2040, %v2158
    %s2171 = sld [smem:[#allocation2 + $0x1b]]
    %v2172 = vstv %s2171
    %v2173 = vmul.f32 %v2133, %v2172
    %v2174 = vmul.f32 %v2134, %v2172
    %v2175 = vmul.f32 %v2135, %v2172
    %v2176 = vmul.f32 %v2136, %v2172
    %v2177 = vmul.f32 %v2137, %v2172
    %v2178 = vmul.f32 %v2138, %v2172
    %v2179 = vmul.f32 %v2139, %v2172
    %v2180 = vmul.f32 %v2140, %v2172
    %v2181 = vmul.f32 %v2141, %v2172
    %v2182 = vmul.f32 %v2142, %v2172
    %v2183 = vmul.f32 %v2143, %v2172
    %v2184 = vmul.f32 %v2144, %v2172
    %v2185 = vadd.f32 %v2073, %v2173
    %v2186 = vadd.f32 %v2074, %v2174
    %v2187 = vadd.f32 %v2075, %v2175
    %v2188 = vadd.f32 %v2076, %v2176
    %v2189 = vadd.f32 %v2077, %v2177
    %v2190 = vadd.f32 %v2078, %v2178
    %v2191 = vadd.f32 %v2079, %v2179
    %v2192 = vadd.f32 %v2080, %v2180
    %v2193 = vadd.f32 %v2081, %v2181
    %v2194 = vadd.f32 %v2082, %v2182
    %v2195 = vadd.f32 %v2083, %v2183
    %v2196 = vadd.f32 %v2084, %v2184
    %v2197 = vmul.f32 %v2095, %v459
    %v2198 = vmul.f32 %v2094, %v460
    %v2199 = vmul.f32 %v2093, %v461
    %v2200 = vmul.f32 %v2092, %v462
    %v2201 = vmul.f32 %v2091, %v463
    %v2202 = vmul.f32 %v2096, %v464
    %s2203 = sld [smem:[#allocation2 + $0x1e]]
    %v2204 = vstv %s2203
    %v2205 = vmul.f32 %v2197, %v2204
    %v2206 = vmul.f32 %v2198, %v2204
    %v2207 = vmul.f32 %v2199, %v2204
    %v2208 = vmul.f32 %v2200, %v2204
    %v2209 = vmul.f32 %v2201, %v2204
    %v2210 = vmul.f32 %v2202, %v2204
    %2217 = vrot.lane.b32.xlu0 %v2205, 95
    %v2218 = vpop.permute.xlu0 %2217
    %2219 = vrot.lane.b32.xlu0 %v2206, 95
    %v2220 = vpop.permute.xlu0 %2219
    %2221 = vrot.lane.b32.xlu0 %v2207, 95
    %v2222 = vpop.permute.xlu0 %2221
    %2223 = vrot.lane.b32.xlu0 %v2208, 95
    %v2224 = vpop.permute.xlu0 %2223
    %2225 = vrot.lane.b32.xlu0 %v2209, 95
    %v2226 = vpop.permute.xlu0 %2225
    %2227 = vrot.lane.b32.xlu0 %v2210, 95
    %v2228 = vpop.permute.xlu0 %2227
    %v2235 = vadd.f32 %v2159, %v2218
    %v2236 = vadd.f32 %v2160, %v2218
    %v2237 = vadd.f32 %v2161, %v2220
    %v2238 = vadd.f32 %v2162, %v2220
    %v2239 = vadd.f32 %v2163, %v2222
    %v2240 = vadd.f32 %v2164, %v2222
    %v2241 = vadd.f32 %v2165, %v2224
    %v2242 = vadd.f32 %v2166, %v2224
    %v2243 = vadd.f32 %v2167, %v2226
    %v2244 = vadd.f32 %v2168, %v2226
    %v2245 = vadd.f32 %v2169, %v2228
    %v2246 = vadd.f32 %v2170, %v2228
    %s2247 = sld [smem:[#allocation2 + $0x1f]]
    %v2248 = vstv %s2247
    %v2249 = vmul.f32 %v2197, %v2248
    %v2250 = vmul.f32 %v2198, %v2248
    %v2251 = vmul.f32 %v2199, %v2248
    %v2252 = vmul.f32 %v2200, %v2248
    %v2253 = vmul.f32 %v2201, %v2248
    %v2254 = vmul.f32 %v2202, %v2248
    %2261 = vrot.lane.b32.xlu0 %v2249, 95
    %v2262 = vpop.permute.xlu0 %2261
    %2263 = vrot.lane.b32.xlu0 %v2250, 95
    %v2264 = vpop.permute.xlu0 %2263
    %2265 = vrot.lane.b32.xlu0 %v2251, 95
    %v2266 = vpop.permute.xlu0 %2265
    %2267 = vrot.lane.b32.xlu0 %v2252, 95
    %v2268 = vpop.permute.xlu0 %2267
    %2269 = vrot.lane.b32.xlu0 %v2253, 95
    %v2270 = vpop.permute.xlu0 %2269
    %2271 = vrot.lane.b32.xlu0 %v2254, 95
    %v2272 = vpop.permute.xlu0 %2271
    %v2279 = vadd.f32 %v2185, %v2262
    %v2280 = vadd.f32 %v2186, %v2262
    %v2281 = vadd.f32 %v2187, %v2264
    %v2282 = vadd.f32 %v2188, %v2264
    %v2283 = vadd.f32 %v2189, %v2266
    %v2284 = vadd.f32 %v2190, %v2266
    %v2285 = vadd.f32 %v2191, %v2268
    %v2286 = vadd.f32 %v2192, %v2268
    %v2287 = vadd.f32 %v2193, %v2270
    %v2288 = vadd.f32 %v2194, %v2270
    %v2289 = vadd.f32 %v2195, %v2272
    %v2290 = vadd.f32 %v2196, %v2272
    %v2291 = vmul.f32 %v2127, %v1392
    %v2292 = vmul.f32 %v2128, %v1394
    %v2293 = vmul.f32 %v2129, %v1396
    %v2294 = vmul.f32 %v2130, %v1398
    %v2295 = vmul.f32 %v2131, %v1400
    %v2296 = vmul.f32 %v2132, %v1402
    %s2297 = sld [smem:[#allocation2 + $0x22]]
    %v2298 = vstv %s2297
    %v2299 = vmul.f32 %v2291, %v2298
    %v2300 = vmul.f32 %v2292, %v2298
    %v2301 = vmul.f32 %v2293, %v2298
    %v2302 = vmul.f32 %v2294, %v2298
    %v2303 = vmul.f32 %v2295, %v2298
    %v2304 = vmul.f32 %v2296, %v2298
    %2311 = vrot.lane.b32.xlu0 %v2299, 94
    %v2312 = vpop.permute.xlu0 %2311
    %2313 = vrot.lane.b32.xlu0 %v2300, 94
    %v2314 = vpop.permute.xlu0 %2313
    %2315 = vrot.lane.b32.xlu0 %v2301, 94
    %v2316 = vpop.permute.xlu0 %2315
    %2317 = vrot.lane.b32.xlu0 %v2302, 94
    %v2318 = vpop.permute.xlu0 %2317
    %2319 = vrot.lane.b32.xlu0 %v2303, 94
    %v2320 = vpop.permute.xlu0 %2319
    %2321 = vrot.lane.b32.xlu0 %v2304, 94
    %v2322 = vpop.permute.xlu0 %2321
    %v2329 = vadd.f32 %v2235, %v2312
    %v2330 = vadd.f32 %v2236, %v2312
    %v2331 = vadd.f32 %v2237, %v2314
    %v2332 = vadd.f32 %v2238, %v2314
    %v2333 = vadd.f32 %v2239, %v2316
    %v2334 = vadd.f32 %v2240, %v2316
    %v2335 = vadd.f32 %v2241, %v2318
    %v2336 = vadd.f32 %v2242, %v2318
    %v2337 = vadd.f32 %v2243, %v2320
    %v2338 = vadd.f32 %v2244, %v2320
    %v2339 = vadd.f32 %v2245, %v2322
    %v2340 = vadd.f32 %v2246, %v2322
    %s2341 = sld [smem:[#allocation2 + $0x23]]
    %v2342 = vstv %s2341
    %v2343 = vmul.f32 %v2291, %v2342
    %v2344 = vmul.f32 %v2292, %v2342
    %v2345 = vmul.f32 %v2293, %v2342
    %v2346 = vmul.f32 %v2294, %v2342
    %v2347 = vmul.f32 %v2295, %v2342
    %v2348 = vmul.f32 %v2296, %v2342
    %2355 = vrot.lane.b32.xlu0 %v2343, 94
    %v2356 = vpop.permute.xlu0 %2355
    %2357 = vrot.lane.b32.xlu0 %v2344, 94
    %v2358 = vpop.permute.xlu0 %2357
    %2359 = vrot.lane.b32.xlu0 %v2345, 94
    %v2360 = vpop.permute.xlu0 %2359
    %2361 = vrot.lane.b32.xlu0 %v2346, 94
    %v2362 = vpop.permute.xlu0 %2361
    %2363 = vrot.lane.b32.xlu0 %v2347, 94
    %v2364 = vpop.permute.xlu0 %2363
    %2365 = vrot.lane.b32.xlu0 %v2348, 94
    %v2366 = vpop.permute.xlu0 %2365
    %v2373 = vadd.f32 %v2279, %v2356
    %v2374 = vadd.f32 %v2280, %v2356
    %v2375 = vadd.f32 %v2281, %v2358
    %v2376 = vadd.f32 %v2282, %v2358
    %v2377 = vadd.f32 %v2283, %v2360
    %v2378 = vadd.f32 %v2284, %v2360
    %v2379 = vadd.f32 %v2285, %v2362
    %v2380 = vadd.f32 %v2286, %v2362
    %v2381 = vadd.f32 %v2287, %v2364
    %v2382 = vadd.f32 %v2288, %v2364
    %v2383 = vadd.f32 %v2289, %v2366
    %v2384 = vadd.f32 %v2290, %v2366
    %s2385 = sld [smem:[#allocation5]]
    %v2386 = vstv %s2385
    %v2387 = vadd.f32 %v2329, %v2386
    %v2388 = vadd.f32 %v2330, %v2386
    %v2389 = vadd.f32 %v2331, %v2386
    %v2390 = vadd.f32 %v2332, %v2386
    %v2391 = vadd.f32 %v2333, %v2386
    %v2392 = vadd.f32 %v2334, %v2386
    %v2393 = vadd.f32 %v2335, %v2386
    %v2394 = vadd.f32 %v2336, %v2386
    %v2395 = vadd.f32 %v2337, %v2386
    %v2396 = vadd.f32 %v2338, %v2386
    %v2397 = vadd.f32 %v2339, %v2386
    %v2398 = vadd.f32 %v2340, %v2386
    %v2399 = vmax.f32 %v2387, 0.0
    %v2400 = vmax.f32 %v2388, 0.0
    %v2401 = vmax.f32 %v2389, 0.0
    %v2402 = vmax.f32 %v2390, 0.0
    %v2403 = vmax.f32 %v2391, 0.0
    %v2404 = vmax.f32 %v2392, 0.0
    %v2405 = vmax.f32 %v2393, 0.0
    %v2406 = vmax.f32 %v2394, 0.0
    %v2407 = vmax.f32 %v2395, 0.0
    %v2408 = vmax.f32 %v2396, 0.0
    %v2409 = vmax.f32 %v2397, 0.0
    %v2410 = vmax.f32 %v2398, 0.0
    %s2411 = sld [smem:[#allocation5 + $0x1]]
    %v2412 = vstv %s2411
    %v2413 = vadd.f32 %v2373, %v2412
    %v2414 = vadd.f32 %v2374, %v2412
    %v2415 = vadd.f32 %v2375, %v2412
    %v2416 = vadd.f32 %v2376, %v2412
    %v2417 = vadd.f32 %v2377, %v2412
    %v2418 = vadd.f32 %v2378, %v2412
    %v2419 = vadd.f32 %v2379, %v2412
    %v2420 = vadd.f32 %v2380, %v2412
    %v2421 = vadd.f32 %v2381, %v2412
    %v2422 = vadd.f32 %v2382, %v2412
    %v2423 = vadd.f32 %v2383, %v2412
    %v2424 = vadd.f32 %v2384, %v2412
    %v2425 = vmax.f32 %v2413, 0.0
    %v2426 = vmax.f32 %v2414, 0.0
    %v2427 = vmax.f32 %v2415, 0.0
    %v2428 = vmax.f32 %v2416, 0.0
    %v2429 = vmax.f32 %v2417, 0.0
    %v2430 = vmax.f32 %v2418, 0.0
    %v2431 = vmax.f32 %v2419, 0.0
    %v2432 = vmax.f32 %v2420, 0.0
    %v2433 = vmax.f32 %v2421, 0.0
    %v2434 = vmax.f32 %v2422, 0.0
    %v2435 = vmax.f32 %v2423, 0.0
    %v2436 = vmax.f32 %v2424, 0.0
    %v2437 = vld [vmem:[%s11] sm:$0xff]
    %v2438 = vld [vmem:[%s11 + $0x8] sm:$0xff]
    %v2439 = vld [vmem:[%s13] sm:$0xff]
    %v2440 = vld [vmem:[%s13 + $0x8] sm:$0xff]
    %v2441 = vld [vmem:[%s13 + $0x10] sm:$0xff]
    %v2442 = vld [vmem:[%s13 + $0x18] sm:$0xff]
    %v2443 = vld [vmem:[%s13 + $0x20] sm:$0xff]
    %v2444 = vld [vmem:[%s13 + $0x28] sm:$0xff]
    %v2445 = vld [vmem:[%s13 + $0x30] sm:$0xff]
    %v2446 = vld [vmem:[%s13 + $0x38] sm:$0xff]
    %v2447 = vld [vmem:[%s13 + $0x40] sm:$0xff]
    %v2448 = vld [vmem:[%s13 + $0x48] sm:$0xff]
    %v2449 = vld [vmem:[%s13 + $0x50] sm:$0xff]
    %v2450 = vld [vmem:[%s13 + $0x58] sm:$0xff]
    %2463 = vrot.lane.b32.xlu0 %v2399, 33
    %v2464 = vpop.permute.xlu0 %2463
    %2465 = vrot.lane.b32.xlu0 %v2400, 33
    %v2466 = vpop.permute.xlu0 %2465
    %2467 = vrot.lane.b32.xlu0 %v2401, 33
    %v2468 = vpop.permute.xlu0 %2467
    %2469 = vrot.lane.b32.xlu0 %v2402, 33
    %v2470 = vpop.permute.xlu0 %2469
    %2471 = vrot.lane.b32.xlu0 %v2403, 33
    %v2472 = vpop.permute.xlu0 %2471
    %2473 = vrot.lane.b32.xlu0 %v2404, 33
    %v2474 = vpop.permute.xlu0 %2473
    %2475 = vrot.lane.b32.xlu0 %v2405, 33
    %v2476 = vpop.permute.xlu0 %2475
    %2477 = vrot.lane.b32.xlu0 %v2406, 33
    %v2478 = vpop.permute.xlu0 %2477
    %2479 = vrot.lane.b32.xlu0 %v2407, 33
    %v2480 = vpop.permute.xlu0 %2479
    %2481 = vrot.lane.b32.xlu0 %v2408, 33
    %v2482 = vpop.permute.xlu0 %2481
    %2483 = vrot.lane.b32.xlu0 %v2409, 33
    %v2484 = vpop.permute.xlu0 %2483
    %2485 = vrot.lane.b32.xlu0 %v2410, 33
    %v2486 = vpop.permute.xlu0 %2485
    %vm2487 = vcmask 269312
    %v2488 = vsel %vm2487, %v2464, %v2466
    %v2489 = vsel %vm2487, %v2468, %v2470
    %v2490 = vsel %vm2487, %v2472, %v2474
    %v2491 = vsel %vm2487, %v2476, %v2478
    %v2492 = vsel %vm2487, %v2480, %v2482
    %v2493 = vsel %vm2487, %v2484, %v2486
    %v2500 = vrot.slane %v2488, 1
    %v2501 = vrot.slane %v2489, 1
    %v2502 = vrot.slane %v2490, 1
    %v2503 = vrot.slane %v2491, 1
    %v2504 = vrot.slane %v2492, 1
    %v2505 = vrot.slane %v2493, 1
    %v2506 = vsel %vm1160, %v2504, %v2505
    %v2507 = vsel %vm1160, %v2503, %v2504
    %v2508 = vsel %vm1160, %v2502, %v2503
    %v2509 = vsel %vm1160, %v2501, %v2502
    %v2510 = vsel %vm1160, %v2500, %v2501
    %v2511 = vsel %vm1160, %v2505, %v2500
    %2518 = vrot.lane.b32.xlu0 %v2510, 95
    %v2519 = vpop.permute.xlu0 %2518
    %2520 = vrot.lane.b32.xlu0 %v2509, 95
    %v2521 = vpop.permute.xlu0 %2520
    %2522 = vrot.lane.b32.xlu0 %v2508, 95
    %v2523 = vpop.permute.xlu0 %2522
    %2524 = vrot.lane.b32.xlu0 %v2507, 95
    %v2525 = vpop.permute.xlu0 %2524
    %2526 = vrot.lane.b32.xlu0 %v2506, 95
    %v2527 = vpop.permute.xlu0 %2526
    %2528 = vrot.lane.b32.xlu0 %v2511, 95
    %v2529 = vpop.permute.xlu0 %2528
    %v2536 = vmax.f32 %v2399, %v2519
    %v2537 = vmax.f32 %v2400, %v2519
    %v2538 = vmax.f32 %v2401, %v2521
    %v2539 = vmax.f32 %v2402, %v2521
    %v2540 = vmax.f32 %v2403, %v2523
    %v2541 = vmax.f32 %v2404, %v2523
    %v2542 = vmax.f32 %v2405, %v2525
    %v2543 = vmax.f32 %v2406, %v2525
    %v2544 = vmax.f32 %v2407, %v2527
    %v2545 = vmax.f32 %v2408, %v2527
    %v2546 = vmax.f32 %v2409, %v2529
    %v2547 = vmax.f32 %v2410, %v2529
    %v2548 = vrot.slane %v2488, 2
    %v2549 = vrot.slane %v2489, 2
    %v2550 = vrot.slane %v2490, 2
    %v2551 = vrot.slane %v2491, 2
    %v2552 = vrot.slane %v2492, 2
    %v2553 = vrot.slane %v2493, 2
    %vm2554 = vcmp.lt.s32.totalorder %v479, 6
    %v2555 = vsel %vm2554, %v2552, %v2553
    %v2556 = vsel %vm2554, %v2551, %v2552
    %v2557 = vsel %vm2554, %v2550, %v2551
    %v2558 = vsel %vm2554, %v2549, %v2550
    %v2559 = vsel %vm2554, %v2548, %v2549
    %v2560 = vsel %vm2554, %v2553, %v2548
    %2567 = vrot.lane.b32.xlu0 %v2559, 95
    %v2568 = vpop.permute.xlu0 %2567
    %2569 = vrot.lane.b32.xlu0 %v2558, 95
    %v2570 = vpop.permute.xlu0 %2569
    %2571 = vrot.lane.b32.xlu0 %v2557, 95
    %v2572 = vpop.permute.xlu0 %2571
    %2573 = vrot.lane.b32.xlu0 %v2556, 95
    %v2574 = vpop.permute.xlu0 %2573
    %2575 = vrot.lane.b32.xlu0 %v2555, 95
    %v2576 = vpop.permute.xlu0 %2575
    %2577 = vrot.lane.b32.xlu0 %v2560, 95
    %v2578 = vpop.permute.xlu0 %2577
    %v2585 = vmax.f32 %v2536, %v2568
    %v2586 = vmax.f32 %v2537, %v2568
    %v2587 = vmax.f32 %v2538, %v2570
    %v2588 = vmax.f32 %v2539, %v2570
    %v2589 = vmax.f32 %v2540, %v2572
    %v2590 = vmax.f32 %v2541, %v2572
    %v2591 = vmax.f32 %v2542, %v2574
    %v2592 = vmax.f32 %v2543, %v2574
    %v2593 = vmax.f32 %v2544, %v2576
    %v2594 = vmax.f32 %v2545, %v2576
    %v2595 = vmax.f32 %v2546, %v2578
    %v2596 = vmax.f32 %v2547, %v2578
    %2609 = vrot.lane.b32.xlu0 %v2585, 33
    %v2610 = vpop.permute.xlu0 %2609
    %2611 = vrot.lane.b32.xlu0 %v2586, 33
    %v2612 = vpop.permute.xlu0 %2611
    %2613 = vrot.lane.b32.xlu0 %v2587, 33
    %v2614 = vpop.permute.xlu0 %2613
    %2615 = vrot.lane.b32.xlu0 %v2588, 33
    %v2616 = vpop.permute.xlu0 %2615
    %2617 = vrot.lane.b32.xlu0 %v2589, 33
    %v2618 = vpop.permute.xlu0 %2617
    %2619 = vrot.lane.b32.xlu0 %v2590, 33
    %v2620 = vpop.permute.xlu0 %2619
    %2621 = vrot.lane.b32.xlu0 %v2591, 33
    %v2622 = vpop.permute.xlu0 %2621
    %2623 = vrot.lane.b32.xlu0 %v2592, 33
    %v2624 = vpop.permute.xlu0 %2623
    %2625 = vrot.lane.b32.xlu0 %v2593, 33
    %v2626 = vpop.permute.xlu0 %2625
    %2627 = vrot.lane.b32.xlu0 %v2594, 33
    %v2628 = vpop.permute.xlu0 %2627
    %2629 = vrot.lane.b32.xlu0 %v2595, 33
    %v2630 = vpop.permute.xlu0 %2629
    %2631 = vrot.lane.b32.xlu0 %v2596, 33
    %v2632 = vpop.permute.xlu0 %2631
    %v2633 = vsel %vm2487, %v2610, %v2612
    %v2634 = vsel %vm2487, %v2614, %v2616
    %v2635 = vsel %vm2487, %v2618, %v2620
    %v2636 = vsel %vm2487, %v2622, %v2624
    %v2637 = vsel %vm2487, %v2626, %v2628
    %v2638 = vsel %vm2487, %v2630, %v2632
    %v2646 = vsel %vm201, %v2437, 0
    %v2649 = vsel %vm201, %v2438, 0
    %2651 = vmatprep.subr.mxu0 0.0
    %2652 = vmatpush1.msra.mxu0 0.0
    %2653 = vmatprep.subr.mxu0 0.0
    %2654 = vmatpush1.msra.mxu0 0.0
    %2655 = vmatprep.subr.mxu0 0.0
    %2656 = vmatpush1.msra.mxu0 0.0
    %2657 = vmatprep.subr.mxu0 0.0
    %2658 = vmatpush1.msra.mxu0 0.0
    %2659 = vmatprep.subr.mxu0 0.0
    %2660 = vmatpush1.msra.mxu0 0.0
    %2661 = vmatprep.subr.mxu0 0.0
    %2662 = vmatpush1.msra.mxu0 0.0
    %2663 = vmatprep.subr.mxu0 0.0
    %2664 = vmatpush1.msra.mxu0 0.0
    %2665 = vmatprep.subr.mxu0 0.0
    %2666 = vmatpush1.msra.mxu0 0.0
    %2667 = vmatprep.subr.mxu0 0.0
    %2668 = vmatpush1.msra.mxu0 0.0
    %2669 = vmatprep.subr.mxu0 0.0
    %2670 = vmatpush1.msra.mxu0 0.0
    %2671 = vmatprep.subr.mxu0 0.0
    %2672 = vmatpush1.msra.mxu0 %v2638
    %2673 = vmatprep.subr.mxu0 0.0
    %2674 = vmatpush1.msra.mxu0 %v2637
    %2675 = vmatprep.subr.mxu0 0.0
    %2676 = vmatpush1.msra.mxu0 %v2636
    %2677 = vmatprep.subr.mxu0 0.0
    %2678 = vmatpush1.msra.mxu0 %v2635
    %2679 = vmatprep.subr.mxu0 0.0
    %2680 = vmatpush1.msra.mxu0 %v2634
    %2681 = vmatprep.subr.mxu0 0.0
    %2682 = vmatpush1.msra.mxu0 %v2633
    %2683 = vmatprep.subr.mxu0 0.0
    %2684 = vmatpush2.msra.mxu0 0.0
    %2685 = vmatprep.subr.mxu0 0.0
    %2686 = vmatpush2.msra.mxu0 0.0
    %2687 = vmatprep.subr.mxu0 0.0
    %2688 = vmatpush2.msra.mxu0 0.0
    %2689 = vmatprep.subr.mxu0 0.0
    %2690 = vmatpush2.msra.mxu0 0.0
    %2691 = vmatprep.subr.mxu0 0.0
    %2692 = vmatpush2.msra.mxu0 0.0
    %2693 = vmatprep.subr.mxu0 0.0
    %2694 = vmatpush2.msra.mxu0 0.0
    %2695 = vmatprep.subr.mxu0 0.0
    %2696 = vmatpush2.msra.mxu0 0.0
    %2697 = vmatprep.subr.mxu0 0.0
    %2698 = vmatpush2.msra.mxu0 0.0
    %2699 = vmatprep.subr.mxu0 0.0
    %2700 = vmatpush2.msra.mxu0 0.0
    %2701 = vmatprep.subr.mxu0 0.0
    %2702 = vmatpush2.msra.mxu0 0.0
    %2703 = vmatprep.subr.mxu0 0.0
    %2704 = vmatpush2.msra.mxu0 0.0
    %2705 = vmatprep.subr.mxu0 0.0
    %2706 = vmatpush2.msra.mxu0 0.0
    %2707 = vmatprep.subr.mxu0 0.0
    %2708 = vmatpush2.msra.mxu0 0.0
    %2709 = vmatprep.subr.mxu0 0.0
    %2710 = vmatpush2.msra.mxu0 0.0
    %2711 = vmatprep.subr.mxu0 0.0
    %2712 = vmatpush2.msra.mxu0 0.0
    %2713 = vmatprep.subr.mxu0 0.0
    %2714 = vmatpush2.msra.mxu0 0.0
    %2715 = vmatprep.mubr.f32.mxu0 0.0
    %2716 = vmatmul.mubr.f32.gmra.mxu0 %v2646
    %v2717 = vpop.f32.mrf.mxu0
    %v2718 = vadd.f32 0.0, %v2717
    %v2719 = vpop.f32.mrf.mxu0
    %2720 = vmatprep.mubr.f32.mxu0 0.0
    %2721 = vmatmul.mubr.f32.gmra.mxu0 %v2649
    %v2722 = vpop.f32.mrf.mxu0
    %v2723 = vadd.f32 0.0, %v2722
    %v2724 = vpop.f32.mrf.mxu0
    %2725 = vdwg.mxu0
    %2726 = vrot.lane.b32.xlu0 %v2718, 96
    %v2727 = vpop.permute.xlu0 %2726
    %v2728 = vsel %vm487, %v2727, %v2718
    %2729 = vrot.lane.b32.xlu0 %v2723, 96
    %v2730 = vpop.permute.xlu0 %2729
    %v2731 = vsel %vm487, %v2730, %v2723
    %2732 = vrot.lane.b32.xlu0 %v2728, 96
    %v2733 = vpop.permute.xlu0 %2732
    %2734 = vrot.lane.b32.xlu0 %v2731, 96
    %v2735 = vpop.permute.xlu0 %2734
    %v2736 = vsel %vm487, %v2733, %v2718
    %v2737 = vsel %vm487, %v2735, %v2723
    %2740 = vrot.lane.b32.xlu0 %v2736, 127
    %v2741 = vpop.permute.xlu0 %2740
    %2742 = vrot.lane.b32.xlu0 %v2737, 127
    %v2743 = vpop.permute.xlu0 %2742
    %v2746 = vmax.f32 %v2718, %v2741
    %v2747 = vmax.f32 %v2723, %v2743
    %2748 = vrot.lane.b32.xlu0 %v2736, 126
    %v2749 = vpop.permute.xlu0 %2748
    %2750 = vrot.lane.b32.xlu0 %v2737, 126
    %v2751 = vpop.permute.xlu0 %2750
    %v2754 = vmax.f32 %v2746, %v2749
    %v2755 = vmax.f32 %v2747, %v2751
    %vm2756 = vcmask 785408
    %v2758 = vsel %vm2756, %v2754, 0
    %v2761 = vsel %vm2756, %v2755, 0
    %2763 = vmatprep.subr.mxu0 0.0
    %2764 = vmatpush1.msra.mxu0 0.0
    %2765 = vmatprep.subr.mxu0 0.0
    %2766 = vmatpush1.msra.mxu0 0.0
    %2767 = vmatprep.subr.mxu0 0.0
    %2768 = vmatpush1.msra.mxu0 0.0
    %2769 = vmatprep.subr.mxu0 0.0
    %2770 = vmatpush1.msra.mxu0 0.0
    %2771 = vmatprep.subr.mxu0 0.0
    %2772 = vmatpush1.msra.mxu0 %v2450
    %2773 = vmatprep.subr.mxu0 0.0
    %2774 = vmatpush1.msra.mxu0 %v2449
    %2775 = vmatprep.subr.mxu0 0.0
    %2776 = vmatpush1.msra.mxu0 %v2448
    %2777 = vmatprep.subr.mxu0 0.0
    %2778 = vmatpush1.msra.mxu0 %v2447
    %2779 = vmatprep.subr.mxu0 0.0
    %2780 = vmatpush1.msra.mxu0 %v2446
    %2781 = vmatprep.subr.mxu0 0.0
    %2782 = vmatpush1.msra.mxu0 %v2445
    %2783 = vmatprep.subr.mxu0 0.0
    %2784 = vmatpush1.msra.mxu0 %v2444
    %2785 = vmatprep.subr.mxu0 0.0
    %2786 = vmatpush1.msra.mxu0 %v2443
    %2787 = vmatprep.subr.mxu0 0.0
    %2788 = vmatpush1.msra.mxu0 %v2442
    %2789 = vmatprep.subr.mxu0 0.0
    %2790 = vmatpush1.msra.mxu0 %v2441
    %2791 = vmatprep.subr.mxu0 0.0
    %2792 = vmatpush1.msra.mxu0 %v2440
    %2793 = vmatprep.subr.mxu0 0.0
    %2794 = vmatpush1.msra.mxu0 %v2439
    %2795 = vmatprep.subr.mxu0 0.0
    %2796 = vmatpush2.msra.mxu0 0.0
    %2797 = vmatprep.subr.mxu0 0.0
    %2798 = vmatpush2.msra.mxu0 0.0
    %2799 = vmatprep.subr.mxu0 0.0
    %2800 = vmatpush2.msra.mxu0 0.0
    %2801 = vmatprep.subr.mxu0 0.0
    %2802 = vmatpush2.msra.mxu0 0.0
    %2803 = vmatprep.subr.mxu0 0.0
    %2804 = vmatpush2.msra.mxu0 0.0
    %2805 = vmatprep.subr.mxu0 0.0
    %2806 = vmatpush2.msra.mxu0 0.0
    %2807 = vmatprep.subr.mxu0 0.0
    %2808 = vmatpush2.msra.mxu0 0.0
    %2809 = vmatprep.subr.mxu0 0.0
    %2810 = vmatpush2.msra.mxu0 0.0
    %2811 = vmatprep.subr.mxu0 0.0
    %2812 = vmatpush2.msra.mxu0 0.0
    %2813 = vmatprep.subr.mxu0 0.0
    %2814 = vmatpush2.msra.mxu0 0.0
    %2815 = vmatprep.subr.mxu0 0.0
    %2816 = vmatpush2.msra.mxu0 0.0
    %2817 = vmatprep.subr.mxu0 0.0
    %2818 = vmatpush2.msra.mxu0 0.0
    %2819 = vmatprep.subr.mxu0 0.0
    %2820 = vmatpush2.msra.mxu0 0.0
    %2821 = vmatprep.subr.mxu0 0.0
    %2822 = vmatpush2.msra.mxu0 0.0
    %2823 = vmatprep.subr.mxu0 0.0
    %2824 = vmatpush2.msra.mxu0 0.0
    %2825 = vmatprep.subr.mxu0 0.0
    %2826 = vmatpush2.msra.mxu0 0.0
    %2827 = vmatprep.mubr.f32.mxu0 0.0
    %2828 = vmatmul.mubr.f32.gmra.mxu0 %v2758
    %v2829 = vpop.f32.mrf.mxu0
    %v2830 = vadd.f32 0.0, %v2829
    %v2831 = vpop.f32.mrf.mxu0
    %2832 = vmatprep.mubr.f32.mxu0 0.0
    %2833 = vmatmul.mubr.f32.gmra.mxu0 %v2761
    %v2834 = vpop.f32.mrf.mxu0
    %v2835 = vadd.f32 0.0, %v2834
    %v2836 = vpop.f32.mrf.mxu0
    %2837 = vdwg.mxu0
    %2850 = vrot.lane.b32.xlu0 %v2425, 33
    %v2851 = vpop.permute.xlu0 %2850
    %2852 = vrot.lane.b32.xlu0 %v2426, 33
    %v2853 = vpop.permute.xlu0 %2852
    %2854 = vrot.lane.b32.xlu0 %v2427, 33
    %v2855 = vpop.permute.xlu0 %2854
    %2856 = vrot.lane.b32.xlu0 %v2428, 33
    %v2857 = vpop.permute.xlu0 %2856
    %2858 = vrot.lane.b32.xlu0 %v2429, 33
    %v2859 = vpop.permute.xlu0 %2858
    %2860 = vrot.lane.b32.xlu0 %v2430, 33
    %v2861 = vpop.permute.xlu0 %2860
    %2862 = vrot.lane.b32.xlu0 %v2431, 33
    %v2863 = vpop.permute.xlu0 %2862
    %2864 = vrot.lane.b32.xlu0 %v2432, 33
    %v2865 = vpop.permute.xlu0 %2864
    %2866 = vrot.lane.b32.xlu0 %v2433, 33
    %v2867 = vpop.permute.xlu0 %2866
    %2868 = vrot.lane.b32.xlu0 %v2434, 33
    %v2869 = vpop.permute.xlu0 %2868
    %2870 = vrot.lane.b32.xlu0 %v2435, 33
    %v2871 = vpop.permute.xlu0 %2870
    %2872 = vrot.lane.b32.xlu0 %v2436, 33
    %v2873 = vpop.permute.xlu0 %2872
    %v2874 = vsel %vm2487, %v2851, %v2853
    %v2875 = vsel %vm2487, %v2855, %v2857
    %v2876 = vsel %vm2487, %v2859, %v2861
    %v2877 = vsel %vm2487, %v2863, %v2865
    %v2878 = vsel %vm2487, %v2867, %v2869
    %v2879 = vsel %vm2487, %v2871, %v2873
    %v2886 = vrot.slane %v2874, 1
    %v2887 = vrot.slane %v2875, 1
    %v2888 = vrot.slane %v2876, 1
    %v2889 = vrot.slane %v2877, 1
    %v2890 = vrot.slane %v2878, 1
    %v2891 = vrot.slane %v2879, 1
    %v2892 = vsel %vm1160, %v2890, %v2891
    %v2893 = vsel %vm1160, %v2889, %v2890
    %v2894 = vsel %vm1160, %v2888, %v2889
    %v2895 = vsel %vm1160, %v2887, %v2888
    %v2896 = vsel %vm1160, %v2886, %v2887
    %v2897 = vsel %vm1160, %v2891, %v2886
    %2904 = vrot.lane.b32.xlu0 %v2896, 95
    %v2905 = vpop.permute.xlu0 %2904
    %2906 = vrot.lane.b32.xlu0 %v2895, 95
    %v2907 = vpop.permute.xlu0 %2906
    %2908 = vrot.lane.b32.xlu0 %v2894, 95
    %v2909 = vpop.permute.xlu0 %2908
    %2910 = vrot.lane.b32.xlu0 %v2893, 95
    %v2911 = vpop.permute.xlu0 %2910
    %2912 = vrot.lane.b32.xlu0 %v2892, 95
    %v2913 = vpop.permute.xlu0 %2912
    %2914 = vrot.lane.b32.xlu0 %v2897, 95
    %v2915 = vpop.permute.xlu0 %2914
    %v2922 = vmax.f32 %v2425, %v2905
    %v2923 = vmax.f32 %v2426, %v2905
    %v2924 = vmax.f32 %v2427, %v2907
    %v2925 = vmax.f32 %v2428, %v2907
    %v2926 = vmax.f32 %v2429, %v2909
    %v2927 = vmax.f32 %v2430, %v2909
    %v2928 = vmax.f32 %v2431, %v2911
    %v2929 = vmax.f32 %v2432, %v2911
    %v2930 = vmax.f32 %v2433, %v2913
    %v2931 = vmax.f32 %v2434, %v2913
    %v2932 = vmax.f32 %v2435, %v2915
    %v2933 = vmax.f32 %v2436, %v2915
    %v2934 = vrot.slane %v2874, 2
    %v2935 = vrot.slane %v2875, 2
    %v2936 = vrot.slane %v2876, 2
    %v2937 = vrot.slane %v2877, 2
    %v2938 = vrot.slane %v2878, 2
    %v2939 = vrot.slane %v2879, 2
    %v2940 = vsel %vm2554, %v2938, %v2939
    %v2941 = vsel %vm2554, %v2937, %v2938
    %v2942 = vsel %vm2554, %v2936, %v2937
    %v2943 = vsel %vm2554, %v2935, %v2936
    %v2944 = vsel %vm2554, %v2934, %v2935
    %v2945 = vsel %vm2554, %v2939, %v2934
    %2952 = vrot.lane.b32.xlu0 %v2944, 95
    %v2953 = vpop.permute.xlu0 %2952
    %2954 = vrot.lane.b32.xlu0 %v2943, 95
    %v2955 = vpop.permute.xlu0 %2954
    %2956 = vrot.lane.b32.xlu0 %v2942, 95
    %v2957 = vpop.permute.xlu0 %2956
    %2958 = vrot.lane.b32.xlu0 %v2941, 95
    %v2959 = vpop.permute.xlu0 %2958
    %2960 = vrot.lane.b32.xlu0 %v2940, 95
    %v2961 = vpop.permute.xlu0 %2960
    %2962 = vrot.lane.b32.xlu0 %v2945, 95
    %v2963 = vpop.permute.xlu0 %2962
    %v2970 = vmax.f32 %v2922, %v2953
    %v2971 = vmax.f32 %v2923, %v2953
    %v2972 = vmax.f32 %v2924, %v2955
    %v2973 = vmax.f32 %v2925, %v2955
    %v2974 = vmax.f32 %v2926, %v2957
    %v2975 = vmax.f32 %v2927, %v2957
    %v2976 = vmax.f32 %v2928, %v2959
    %v2977 = vmax.f32 %v2929, %v2959
    %v2978 = vmax.f32 %v2930, %v2961
    %v2979 = vmax.f32 %v2931, %v2961
    %v2980 = vmax.f32 %v2932, %v2963
    %v2981 = vmax.f32 %v2933, %v2963
    %2994 = vrot.lane.b32.xlu0 %v2970, 33
    %v2995 = vpop.permute.xlu0 %2994
    %2996 = vrot.lane.b32.xlu0 %v2971, 33
    %v2997 = vpop.permute.xlu0 %2996
    %2998 = vrot.lane.b32.xlu0 %v2972, 33
    %v2999 = vpop.permute.xlu0 %2998
    %3000 = vrot.lane.b32.xlu0 %v2973, 33
    %v3001 = vpop.permute.xlu0 %3000
    %3002 = vrot.lane.b32.xlu0 %v2974, 33
    %v3003 = vpop.permute.xlu0 %3002
    %3004 = vrot.lane.b32.xlu0 %v2975, 33
    %v3005 = vpop.permute.xlu0 %3004
    %3006 = vrot.lane.b32.xlu0 %v2976, 33
    %v3007 = vpop.permute.xlu0 %3006
    %3008 = vrot.lane.b32.xlu0 %v2977, 33
    %v3009 = vpop.permute.xlu0 %3008
    %3010 = vrot.lane.b32.xlu0 %v2978, 33
    %v3011 = vpop.permute.xlu0 %3010
    %3012 = vrot.lane.b32.xlu0 %v2979, 33
    %v3013 = vpop.permute.xlu0 %3012
    %3014 = vrot.lane.b32.xlu0 %v2980, 33
    %v3015 = vpop.permute.xlu0 %3014
    %3016 = vrot.lane.b32.xlu0 %v2981, 33
    %v3017 = vpop.permute.xlu0 %3016
    %v3018 = vsel %vm2487, %v2995, %v2997
    %v3019 = vsel %vm2487, %v2999, %v3001
    %v3020 = vsel %vm2487, %v3003, %v3005
    %v3021 = vsel %vm2487, %v3007, %v3009
    %v3022 = vsel %vm2487, %v3011, %v3013
    %v3023 = vsel %vm2487, %v3015, %v3017
    %3030 = vmatprep.subr.mxu0 0.0
    %3031 = vmatpush1.msra.mxu0 0.0
    %3032 = vmatprep.subr.mxu0 0.0
    %3033 = vmatpush1.msra.mxu0 0.0
    %3034 = vmatprep.subr.mxu0 0.0
    %3035 = vmatpush1.msra.mxu0 0.0
    %3036 = vmatprep.subr.mxu0 0.0
    %3037 = vmatpush1.msra.mxu0 0.0
    %3038 = vmatprep.subr.mxu0 0.0
    %3039 = vmatpush1.msra.mxu0 0.0
    %3040 = vmatprep.subr.mxu0 0.0
    %3041 = vmatpush1.msra.mxu0 0.0
    %3042 = vmatprep.subr.mxu0 0.0
    %3043 = vmatpush1.msra.mxu0 0.0
    %3044 = vmatprep.subr.mxu0 0.0
    %3045 = vmatpush1.msra.mxu0 0.0
    %3046 = vmatprep.subr.mxu0 0.0
    %3047 = vmatpush1.msra.mxu0 0.0
    %3048 = vmatprep.subr.mxu0 0.0
    %3049 = vmatpush1.msra.mxu0 0.0
    %3050 = vmatprep.subr.mxu0 0.0
    %3051 = vmatpush1.msra.mxu0 %v3023
    %3052 = vmatprep.subr.mxu0 0.0
    %3053 = vmatpush1.msra.mxu0 %v3022
    %3054 = vmatprep.subr.mxu0 0.0
    %3055 = vmatpush1.msra.mxu0 %v3021
    %3056 = vmatprep.subr.mxu0 0.0
    %3057 = vmatpush1.msra.mxu0 %v3020
    %3058 = vmatprep.subr.mxu0 0.0
    %3059 = vmatpush1.msra.mxu0 %v3019
    %3060 = vmatprep.subr.mxu0 0.0
    %3061 = vmatpush1.msra.mxu0 %v3018
    %3062 = vmatprep.subr.mxu0 0.0
    %3063 = vmatpush2.msra.mxu0 0.0
    %3064 = vmatprep.subr.mxu0 0.0
    %3065 = vmatpush2.msra.mxu0 0.0
    %3066 = vmatprep.subr.mxu0 0.0
    %3067 = vmatpush2.msra.mxu0 0.0
    %3068 = vmatprep.subr.mxu0 0.0
    %3069 = vmatpush2.msra.mxu0 0.0
    %3070 = vmatprep.subr.mxu0 0.0
    %3071 = vmatpush2.msra.mxu0 0.0
    %3072 = vmatprep.subr.mxu0 0.0
    %3073 = vmatpush2.msra.mxu0 0.0
    %3074 = vmatprep.subr.mxu0 0.0
    %3075 = vmatpush2.msra.mxu0 0.0
    %3076 = vmatprep.subr.mxu0 0.0
    %3077 = vmatpush2.msra.mxu0 0.0
    %3078 = vmatprep.subr.mxu0 0.0
    %3079 = vmatpush2.msra.mxu0 0.0
    %3080 = vmatprep.subr.mxu0 0.0
    %3081 = vmatpush2.msra.mxu0 0.0
    %3082 = vmatprep.subr.mxu0 0.0
    %3083 = vmatpush2.msra.mxu0 0.0
    %3084 = vmatprep.subr.mxu0 0.0
    %3085 = vmatpush2.msra.mxu0 0.0
    %3086 = vmatprep.subr.mxu0 0.0
    %3087 = vmatpush2.msra.mxu0 0.0
    %3088 = vmatprep.subr.mxu0 0.0
    %3089 = vmatpush2.msra.mxu0 0.0
    %3090 = vmatprep.subr.mxu0 0.0
    %3091 = vmatpush2.msra.mxu0 0.0
    %3092 = vmatprep.subr.mxu0 0.0
    %3093 = vmatpush2.msra.mxu0 0.0
    %3094 = vmatprep.mubr.f32.mxu0 0.0
    %3095 = vmatmul.mubr.f32.gmra.mxu0 %v2646
    %v3096 = vpop.f32.mrf.mxu0
    %v3097 = vadd.f32 0.0, %v3096
    %v3098 = vpop.f32.mrf.mxu0
    %3099 = vmatprep.mubr.f32.mxu0 0.0
    %3100 = vmatmul.mubr.f32.gmra.mxu0 %v2649
    %v3101 = vpop.f32.mrf.mxu0
    %v3102 = vadd.f32 0.0, %v3101
    %v3103 = vpop.f32.mrf.mxu0
    %3104 = vdwg.mxu0
    %3105 = vrot.lane.b32.xlu0 %v3097, 96
    %v3106 = vpop.permute.xlu0 %3105
    %v3107 = vsel %vm487, %v3106, %v3097
    %3108 = vrot.lane.b32.xlu0 %v3102, 96
    %v3109 = vpop.permute.xlu0 %3108
    %v3110 = vsel %vm487, %v3109, %v3102
    %3111 = vrot.lane.b32.xlu0 %v3107, 96
    %v3112 = vpop.permute.xlu0 %3111
    %3113 = vrot.lane.b32.xlu0 %v3110, 96
    %v3114 = vpop.permute.xlu0 %3113
    %v3115 = vsel %vm487, %v3112, %v3097
    %v3116 = vsel %vm487, %v3114, %v3102
    %3119 = vrot.lane.b32.xlu0 %v3115, 127
    %v3120 = vpop.permute.xlu0 %3119
    %3121 = vrot.lane.b32.xlu0 %v3116, 127
    %v3122 = vpop.permute.xlu0 %3121
    %v3125 = vmax.f32 %v3097, %v3120
    %v3126 = vmax.f32 %v3102, %v3122
    %3127 = vrot.lane.b32.xlu0 %v3115, 126
    %v3128 = vpop.permute.xlu0 %3127
    %3129 = vrot.lane.b32.xlu0 %v3116, 126
    %v3130 = vpop.permute.xlu0 %3129
    %v3133 = vmax.f32 %v3125, %v3128
    %v3134 = vmax.f32 %v3126, %v3130
    %v3136 = vsel %vm2756, %v3133, 0
    %v3139 = vsel %vm2756, %v3134, 0
    %3141 = vmatprep.subr.mxu0 0.0
    %3142 = vmatpush1.msra.mxu0 0.0
    %3143 = vmatprep.subr.mxu0 0.0
    %3144 = vmatpush1.msra.mxu0 0.0
    %3145 = vmatprep.subr.mxu0 0.0
    %3146 = vmatpush1.msra.mxu0 0.0
    %3147 = vmatprep.subr.mxu0 0.0
    %3148 = vmatpush1.msra.mxu0 0.0
    %3149 = vmatprep.subr.mxu0 0.0
    %3150 = vmatpush1.msra.mxu0 %v2450
    %3151 = vmatprep.subr.mxu0 0.0
    %3152 = vmatpush1.msra.mxu0 %v2449
    %3153 = vmatprep.subr.mxu0 0.0
    %3154 = vmatpush1.msra.mxu0 %v2448
    %3155 = vmatprep.subr.mxu0 0.0
    %3156 = vmatpush1.msra.mxu0 %v2447
    %3157 = vmatprep.subr.mxu0 0.0
    %3158 = vmatpush1.msra.mxu0 %v2446
    %3159 = vmatprep.subr.mxu0 0.0
    %3160 = vmatpush1.msra.mxu0 %v2445
    %3161 = vmatprep.subr.mxu0 0.0
    %3162 = vmatpush1.msra.mxu0 %v2444
    %3163 = vmatprep.subr.mxu0 0.0
    %3164 = vmatpush1.msra.mxu0 %v2443
    %3165 = vmatprep.subr.mxu0 0.0
    %3166 = vmatpush1.msra.mxu0 %v2442
    %3167 = vmatprep.subr.mxu0 0.0
    %3168 = vmatpush1.msra.mxu0 %v2441
    %3169 = vmatprep.subr.mxu0 0.0
    %3170 = vmatpush1.msra.mxu0 %v2440
    %3171 = vmatprep.subr.mxu0 0.0
    %3172 = vmatpush1.msra.mxu0 %v2439
    %3173 = vmatprep.subr.mxu0 0.0
    %3174 = vmatpush2.msra.mxu0 0.0
    %3175 = vmatprep.subr.mxu0 0.0
    %3176 = vmatpush2.msra.mxu0 0.0
    %3177 = vmatprep.subr.mxu0 0.0
    %3178 = vmatpush2.msra.mxu0 0.0
    %3179 = vmatprep.subr.mxu0 0.0
    %3180 = vmatpush2.msra.mxu0 0.0
    %3181 = vmatprep.subr.mxu0 0.0
    %3182 = vmatpush2.msra.mxu0 0.0
    %3183 = vmatprep.subr.mxu0 0.0
    %3184 = vmatpush2.msra.mxu0 0.0
    %3185 = vmatprep.subr.mxu0 0.0
    %3186 = vmatpush2.msra.mxu0 0.0
    %3187 = vmatprep.subr.mxu0 0.0
    %3188 = vmatpush2.msra.mxu0 0.0
    %3189 = vmatprep.subr.mxu0 0.0
    %3190 = vmatpush2.msra.mxu0 0.0
    %3191 = vmatprep.subr.mxu0 0.0
    %3192 = vmatpush2.msra.mxu0 0.0
    %3193 = vmatprep.subr.mxu0 0.0
    %3194 = vmatpush2.msra.mxu0 0.0
    %3195 = vmatprep.subr.mxu0 0.0
    %3196 = vmatpush2.msra.mxu0 0.0
    %3197 = vmatprep.subr.mxu0 0.0
    %3198 = vmatpush2.msra.mxu0 0.0
    %3199 = vmatprep.subr.mxu0 0.0
    %3200 = vmatpush2.msra.mxu0 0.0
    %3201 = vmatprep.subr.mxu0 0.0
    %3202 = vmatpush2.msra.mxu0 0.0
    %3203 = vmatprep.subr.mxu0 0.0
    %3204 = vmatpush2.msra.mxu0 0.0
    %3205 = vmatprep.mubr.f32.mxu0 0.0
    %3206 = vmatmul.mubr.f32.gmra.mxu0 %v3136
    %v3207 = vpop.f32.mrf.mxu0
    %v3208 = vadd.f32 0.0, %v3207
    %v3209 = vpop.f32.mrf.mxu0
    %3210 = vmatprep.mubr.f32.mxu0 0.0
    %3211 = vmatmul.mubr.f32.gmra.mxu0 %v3139
    %v3212 = vpop.f32.mrf.mxu0
    %v3213 = vadd.f32 0.0, %v3212
    %v3214 = vpop.f32.mrf.mxu0
    %3215 = vdwg.mxu0
    %v3216 = vld [vmem:[%s15] sm:$0xff]
    %v3217 = vld [vmem:[%s15 + $0x8] sm:$0xff]
    %v3218 = vld [vmem:[%s15 + $0x10] sm:$0xff]
    %v3219 = vld [vmem:[%s15 + $0x18] sm:$0xff]
    %v3220 = vld [vmem:[%s15 + $0x20] sm:$0xff]
    %v3221 = vld [vmem:[%s15 + $0x28] sm:$0xff]
    %v3222 = vld [vmem:[%s15 + $0x30] sm:$0xff]
    %v3223 = vld [vmem:[%s15 + $0x38] sm:$0xff]
    %v3224 = vld [vmem:[%s15 + $0x40] sm:$0xff]
    %v3225 = vld [vmem:[%s15 + $0x48] sm:$0xff]
    %v3226 = vld [vmem:[%s15 + $0x50] sm:$0xff]
    %v3227 = vld [vmem:[%s15 + $0x58] sm:$0xff]
    %v3228 = vld [vmem:[%s15 + $0x60] sm:$0xff]
    %v3229 = vld [vmem:[%s15 + $0x68] sm:$0xff]
    %v3230 = vld [vmem:[%s15 + $0x70] sm:$0xff]
    %v3231 = vld [vmem:[%s15 + $0x78] sm:$0xff]
    %vm3232 = vcmask 261120
    %v3234 = vsel %vm3232, %v2830, 0
    %v3237 = vsel %vm3232, %v2835, 0
    %v3240 = vsel %vm3232, %v3208, 0
    %v3243 = vsel %vm3232, %v3213, 0
    %3245 = vmatprep.subr.mxu0 0.0
    %3246 = vmatpush1.msra.mxu0 0.0
    %3247 = vmatprep.subr.mxu0 0.0
    %3248 = vmatpush1.msra.mxu0 0.0
    %3249 = vmatprep.subr.mxu0 0.0
    %3250 = vmatpush1.msra.mxu0 0.0
    %3251 = vmatprep.subr.mxu0 0.0
    %3252 = vmatpush1.msra.mxu0 0.0
    %3253 = vmatprep.subr.mxu0 0.0
    %3254 = vmatpush1.msra.mxu0 0.0
    %3255 = vmatprep.subr.mxu0 0.0
    %3256 = vmatpush1.msra.mxu0 0.0
    %3257 = vmatprep.subr.mxu0 0.0
    %3258 = vmatpush1.msra.mxu0 0.0
    %3259 = vmatprep.subr.mxu0 0.0
    %3260 = vmatpush1.msra.mxu0 0.0
    %3261 = vmatprep.subr.mxu0 0.0
    %3262 = vmatpush1.msra.mxu0 0.0
    %3263 = vmatprep.subr.mxu0 0.0
    %3264 = vmatpush1.msra.mxu0 0.0
    %3265 = vmatprep.subr.mxu0 0.0
    %3266 = vmatpush1.msra.mxu0 0.0
    %3267 = vmatprep.subr.mxu0 0.0
    %3268 = vmatpush1.msra.mxu0 0.0
    %3269 = vmatprep.subr.mxu0 %v3229
    %3270 = vmatpush1.msra.mxu0 %v3228
    %3271 = vmatprep.subr.mxu0 %v3225
    %3272 = vmatpush1.msra.mxu0 %v3224
    %3273 = vmatprep.subr.mxu0 %v3221
    %3274 = vmatpush1.msra.mxu0 %v3220
    %3275 = vmatprep.subr.mxu0 %v3217
    %3276 = vmatpush1.msra.mxu0 %v3216
    %3277 = vmatprep.subr.mxu0 0.0
    %3278 = vmatpush2.msra.mxu0 0.0
    %3279 = vmatprep.subr.mxu0 0.0
    %3280 = vmatpush2.msra.mxu0 0.0
    %3281 = vmatprep.subr.mxu0 0.0
    %3282 = vmatpush2.msra.mxu0 0.0
    %3283 = vmatprep.subr.mxu0 0.0
    %3284 = vmatpush2.msra.mxu0 0.0
    %3285 = vmatprep.subr.mxu0 0.0
    %3286 = vmatpush2.msra.mxu0 0.0
    %3287 = vmatprep.subr.mxu0 0.0
    %3288 = vmatpush2.msra.mxu0 0.0
    %3289 = vmatprep.subr.mxu0 0.0
    %3290 = vmatpush2.msra.mxu0 0.0
    %3291 = vmatprep.subr.mxu0 0.0
    %3292 = vmatpush2.msra.mxu0 0.0
    %3293 = vmatprep.subr.mxu0 0.0
    %3294 = vmatpush2.msra.mxu0 0.0
    %3295 = vmatprep.subr.mxu0 0.0
    %3296 = vmatpush2.msra.mxu0 0.0
    %3297 = vmatprep.subr.mxu0 0.0
    %3298 = vmatpush2.msra.mxu0 0.0
    %3299 = vmatprep.subr.mxu0 0.0
    %3300 = vmatpush2.msra.mxu0 0.0
    %3301 = vmatprep.subr.mxu0 0.0
    %3302 = vmatpush2.msra.mxu0 0.0
    %3303 = vmatprep.subr.mxu0 0.0
    %3304 = vmatpush2.msra.mxu0 0.0
    %3305 = vmatprep.subr.mxu0 0.0
    %3306 = vmatpush2.msra.mxu0 0.0
    %3307 = vmatprep.subr.mxu0 0.0
    %3308 = vmatpush2.msra.mxu0 0.0
    %3309 = vmatprep.mubr.f32.mxu0 0.0
    %3310 = vmatmul.mubr.f32.gmra.mxu0 %v3234
    %v3311 = vpop.f32.mrf.mxu0
    %v3312 = vadd.f32 0.0, %v3311
    %v3313 = vpop.f32.mrf.mxu0
    %v3314 = vadd.f32 0.0, %v3313
    %3315 = vmatprep.mubr.f32.mxu0 0.0
    %3316 = vmatmul.mubr.f32.gmra.mxu0 %v3237
    %v3317 = vpop.f32.mrf.mxu0
    %v3318 = vadd.f32 0.0, %v3317
    %v3319 = vpop.f32.mrf.mxu0
    %v3320 = vadd.f32 0.0, %v3319
    %3321 = vmatprep.mubr.f32.mxu0 0.0
    %3322 = vmatmul.mubr.f32.gmra.mxu0 %v3240
    %v3323 = vpop.f32.mrf.mxu0
    %v3324 = vadd.f32 0.0, %v3323
    %v3325 = vpop.f32.mrf.mxu0
    %v3326 = vadd.f32 0.0, %v3325
    %3327 = vmatprep.mubr.f32.mxu0 0.0
    %3328 = vmatmul.mubr.f32.gmra.mxu0 %v3243
    %v3329 = vpop.f32.mrf.mxu0
    %v3330 = vadd.f32 0.0, %v3329
    %v3331 = vpop.f32.mrf.mxu0
    %v3332 = vadd.f32 0.0, %v3331
    %3333 = vdwg.mxu0
    %3334 = vmatprep.subr.mxu0 0.0
    %3335 = vmatpush1.msra.mxu0 0.0
    %3336 = vmatprep.subr.mxu0 0.0
    %3337 = vmatpush1.msra.mxu0 0.0
    %3338 = vmatprep.subr.mxu0 0.0
    %3339 = vmatpush1.msra.mxu0 0.0
    %3340 = vmatprep.subr.mxu0 0.0
    %3341 = vmatpush1.msra.mxu0 0.0
    %3342 = vmatprep.subr.mxu0 0.0
    %3343 = vmatpush1.msra.mxu0 0.0
    %3344 = vmatprep.subr.mxu0 0.0
    %3345 = vmatpush1.msra.mxu0 0.0
    %3346 = vmatprep.subr.mxu0 0.0
    %3347 = vmatpush1.msra.mxu0 0.0
    %3348 = vmatprep.subr.mxu0 0.0
    %3349 = vmatpush1.msra.mxu0 0.0
    %3350 = vmatprep.subr.mxu0 0.0
    %3351 = vmatpush1.msra.mxu0 0.0
    %3352 = vmatprep.subr.mxu0 0.0
    %3353 = vmatpush1.msra.mxu0 0.0
    %3354 = vmatprep.subr.mxu0 0.0
    %3355 = vmatpush1.msra.mxu0 0.0
    %3356 = vmatprep.subr.mxu0 0.0
    %3357 = vmatpush1.msra.mxu0 0.0
    %3358 = vmatprep.subr.mxu0 %v3231
    %3359 = vmatpush1.msra.mxu0 %v3230
    %3360 = vmatprep.subr.mxu0 %v3227
    %3361 = vmatpush1.msra.mxu0 %v3226
    %3362 = vmatprep.subr.mxu0 %v3223
    %3363 = vmatpush1.msra.mxu0 %v3222
    %3364 = vmatprep.subr.mxu0 %v3219
    %3365 = vmatpush1.msra.mxu0 %v3218
    %3366 = vmatprep.subr.mxu0 0.0
    %3367 = vmatpush2.msra.mxu0 0.0
    %3368 = vmatprep.subr.mxu0 0.0
    %3369 = vmatpush2.msra.mxu0 0.0
    %3370 = vmatprep.subr.mxu0 0.0
    %3371 = vmatpush2.msra.mxu0 0.0
    %3372 = vmatprep.subr.mxu0 0.0
    %3373 = vmatpush2.msra.mxu0 0.0
    %3374 = vmatprep.subr.mxu0 0.0
    %3375 = vmatpush2.msra.mxu0 0.0
    %3376 = vmatprep.subr.mxu0 0.0
    %3377 = vmatpush2.msra.mxu0 0.0
    %3378 = vmatprep.subr.mxu0 0.0
    %3379 = vmatpush2.msra.mxu0 0.0
    %3380 = vmatprep.subr.mxu0 0.0
    %3381 = vmatpush2.msra.mxu0 0.0
    %3382 = vmatprep.subr.mxu0 0.0
    %3383 = vmatpush2.msra.mxu0 0.0
    %3384 = vmatprep.subr.mxu0 0.0
    %3385 = vmatpush2.msra.mxu0 0.0
    %3386 = vmatprep.subr.mxu0 0.0
    %3387 = vmatpush2.msra.mxu0 0.0
    %3388 = vmatprep.subr.mxu0 0.0
    %3389 = vmatpush2.msra.mxu0 0.0
    %3390 = vmatprep.subr.mxu0 0.0
    %3391 = vmatpush2.msra.mxu0 0.0
    %3392 = vmatprep.subr.mxu0 0.0
    %3393 = vmatpush2.msra.mxu0 0.0
    %3394 = vmatprep.subr.mxu0 0.0
    %3395 = vmatpush2.msra.mxu0 0.0
    %3396 = vmatprep.subr.mxu0 0.0
    %3397 = vmatpush2.msra.mxu0 0.0
    %3398 = vmatprep.mubr.f32.mxu0 0.0
    %3399 = vmatmul.mubr.f32.gmra.mxu0 %v3234
    %v3400 = vpop.f32.mrf.mxu0
    %v3401 = vadd.f32 0.0, %v3400
    %v3402 = vpop.f32.mrf.mxu0
    %v3403 = vadd.f32 0.0, %v3402
    %3404 = vmatprep.mubr.f32.mxu0 0.0
    %3405 = vmatmul.mubr.f32.gmra.mxu0 %v3237
    %v3406 = vpop.f32.mrf.mxu0
    %v3407 = vadd.f32 0.0, %v3406
    %v3408 = vpop.f32.mrf.mxu0
    %v3409 = vadd.f32 0.0, %v3408
    %3410 = vmatprep.mubr.f32.mxu0 0.0
    %3411 = vmatmul.mubr.f32.gmra.mxu0 %v3240
    %v3412 = vpop.f32.mrf.mxu0
    %v3413 = vadd.f32 0.0, %v3412
    %v3414 = vpop.f32.mrf.mxu0
    %v3415 = vadd.f32 0.0, %v3414
    %3416 = vmatprep.mubr.f32.mxu0 0.0
    %3417 = vmatmul.mubr.f32.gmra.mxu0 %v3243
    %v3418 = vpop.f32.mrf.mxu0
    %v3419 = vadd.f32 0.0, %v3418
    %v3420 = vpop.f32.mrf.mxu0
    %v3421 = vadd.f32 0.0, %v3420
    %3422 = vdwg.mxu0
    %v3423 = vld [vmem:[%s19] sm:$0x3]
    %v3424 = vld [vmem:[%s17] sm:$0xff]
    %v3425 = vld [vmem:[%s17 + $0x8] sm:$0xff]
    %v3426 = vld [vmem:[%s17 + $0x10] sm:$0xff]
    %v3427 = vld [vmem:[%s17 + $0x18] sm:$0xff]
    %v3428 = vld [vmem:[%s17 + $0x20] sm:$0xff]
    %v3429 = vld [vmem:[%s17 + $0x28] sm:$0xff]
    %v3430 = vld [vmem:[%s17 + $0x30] sm:$0xff]
    %v3431 = vld [vmem:[%s17 + $0x38] sm:$0xff]
    %v3432 = vld [vmem:[%s17 + $0x40] sm:$0xff]
    %v3433 = vld [vmem:[%s17 + $0x48] sm:$0xff]
    %v3434 = vld [vmem:[%s17 + $0x50] sm:$0xff]
    %v3435 = vld [vmem:[%s17 + $0x58] sm:$0xff]
    %v3436 = vld [vmem:[%s17 + $0x60] sm:$0xff]
    %v3437 = vld [vmem:[%s17 + $0x68] sm:$0xff]
    %v3438 = vld [vmem:[%s17 + $0x70] sm:$0xff]
    %v3439 = vld [vmem:[%s17 + $0x78] sm:$0xff]
    %v3440 = vmul.f32 %v3312, %v3424
    %v3441 = vmul.f32 %v3314, %v3425
    %v3442 = vmul.f32 %v3401, %v3426
    %v3443 = vmul.f32 %v3403, %v3427
    %v3444 = vmul.f32 %v3318, %v3428
    %v3445 = vmul.f32 %v3320, %v3429
    %v3446 = vmul.f32 %v3407, %v3430
    %v3447 = vmul.f32 %v3409, %v3431
    %v3448 = vmul.f32 %v3324, %v3432
    %v3449 = vmul.f32 %v3326, %v3433
    %v3450 = vmul.f32 %v3413, %v3434
    %v3451 = vmul.f32 %v3415, %v3435
    %v3452 = vmul.f32 %v3330, %v3436
    %v3453 = vmul.f32 %v3332, %v3437
    %v3454 = vmul.f32 %v3419, %v3438
    %v3455 = vmul.f32 %v3421, %v3439
    %v3457 = vsel %vm3232, %v3423, 0
    %3459 = vmatprep.subr.mxu0 0.0
    %3460 = vmatpush1.msra.mxu0 0.0
    %3461 = vmatprep.subr.mxu0 0.0
    %3462 = vmatpush1.msra.mxu0 0.0
    %3463 = vmatprep.subr.mxu0 0.0
    %3464 = vmatpush1.msra.mxu0 0.0
    %3465 = vmatprep.subr.mxu0 0.0
    %3466 = vmatpush1.msra.mxu0 0.0
    %3467 = vmatprep.subr.mxu0 0.0
    %3468 = vmatpush1.msra.mxu0 0.0
    %3469 = vmatprep.subr.mxu0 0.0
    %3470 = vmatpush1.msra.mxu0 0.0
    %3471 = vmatprep.subr.mxu0 0.0
    %3472 = vmatpush1.msra.mxu0 0.0
    %3473 = vmatprep.subr.mxu0 0.0
    %3474 = vmatpush1.msra.mxu0 0.0
    %3475 = vmatprep.subr.mxu0 0.0
    %3476 = vmatpush1.msra.mxu0 0.0
    %3477 = vmatprep.subr.mxu0 0.0
    %3478 = vmatpush1.msra.mxu0 0.0
    %3479 = vmatprep.subr.mxu0 0.0
    %3480 = vmatpush1.msra.mxu0 0.0
    %3481 = vmatprep.subr.mxu0 0.0
    %3482 = vmatpush1.msra.mxu0 0.0
    %3483 = vmatprep.subr.mxu0 %v3453
    %3484 = vmatpush1.msra.mxu0 %v3452
    %3485 = vmatprep.subr.mxu0 %v3449
    %3486 = vmatpush1.msra.mxu0 %v3448
    %3487 = vmatprep.subr.mxu0 %v3445
    %3488 = vmatpush1.msra.mxu0 %v3444
    %3489 = vmatprep.subr.mxu0 %v3441
    %3490 = vmatpush1.msra.mxu0 %v3440
    %3491 = vmatprep.subr.mxu0 0.0
    %3492 = vmatpush2.msra.mxu0 0.0
    %3493 = vmatprep.subr.mxu0 0.0
    %3494 = vmatpush2.msra.mxu0 0.0
    %3495 = vmatprep.subr.mxu0 0.0
    %3496 = vmatpush2.msra.mxu0 0.0
    %3497 = vmatprep.subr.mxu0 0.0
    %3498 = vmatpush2.msra.mxu0 0.0
    %3499 = vmatprep.subr.mxu0 0.0
    %3500 = vmatpush2.msra.mxu0 0.0
    %3501 = vmatprep.subr.mxu0 0.0
    %3502 = vmatpush2.msra.mxu0 0.0
    %3503 = vmatprep.subr.mxu0 0.0
    %3504 = vmatpush2.msra.mxu0 0.0
    %3505 = vmatprep.subr.mxu0 0.0
    %3506 = vmatpush2.msra.mxu0 0.0
    %3507 = vmatprep.subr.mxu0 0.0
    %3508 = vmatpush2.msra.mxu0 0.0
    %3509 = vmatprep.subr.mxu0 0.0
    %3510 = vmatpush2.msra.mxu0 0.0
    %3511 = vmatprep.subr.mxu0 0.0
    %3512 = vmatpush2.msra.mxu0 0.0
    %3513 = vmatprep.subr.mxu0 0.0
    %3514 = vmatpush2.msra.mxu0 0.0
    %3515 = vmatprep.subr.mxu0 0.0
    %3516 = vmatpush2.msra.mxu0 0.0
    %3517 = vmatprep.subr.mxu0 0.0
    %3518 = vmatpush2.msra.mxu0 0.0
    %3519 = vmatprep.subr.mxu0 0.0
    %3520 = vmatpush2.msra.mxu0 0.0
    %3521 = vmatprep.subr.mxu0 0.0
    %3522 = vmatpush2.msra.mxu0 0.0
    %3523 = vmatprep.mubr.f32.mxu0 0.0
    %3524 = vmatmul.mubr.f32.gmra.mxu0 %v3457
    %v3525 = vpop.f32.mrf.mxu0
    %v3526 = vadd.f32 0.0, %v3525
    %v3527 = vpop.f32.mrf.mxu0
    %v3528 = vadd.f32 0.0, %v3527
    %3529 = vdwg.mxu0
    %3530 = vmatprep.subr.mxu0 0.0
    %3531 = vmatpush1.msra.mxu0 0.0
    %3532 = vmatprep.subr.mxu0 0.0
    %3533 = vmatpush1.msra.mxu0 0.0
    %3534 = vmatprep.subr.mxu0 0.0
    %3535 = vmatpush1.msra.mxu0 0.0
    %3536 = vmatprep.subr.mxu0 0.0
    %3537 = vmatpush1.msra.mxu0 0.0
    %3538 = vmatprep.subr.mxu0 0.0
    %3539 = vmatpush1.msra.mxu0 0.0
    %3540 = vmatprep.subr.mxu0 0.0
    %3541 = vmatpush1.msra.mxu0 0.0
    %3542 = vmatprep.subr.mxu0 0.0
    %3543 = vmatpush1.msra.mxu0 0.0
    %3544 = vmatprep.subr.mxu0 0.0
    %3545 = vmatpush1.msra.mxu0 0.0
    %3546 = vmatprep.subr.mxu0 0.0
    %3547 = vmatpush1.msra.mxu0 0.0
    %3548 = vmatprep.subr.mxu0 0.0
    %3549 = vmatpush1.msra.mxu0 0.0
    %3550 = vmatprep.subr.mxu0 0.0
    %3551 = vmatpush1.msra.mxu0 0.0
    %3552 = vmatprep.subr.mxu0 0.0
    %3553 = vmatpush1.msra.mxu0 0.0
    %3554 = vmatprep.subr.mxu0 %v3455
    %3555 = vmatpush1.msra.mxu0 %v3454
    %3556 = vmatprep.subr.mxu0 %v3451
    %3557 = vmatpush1.msra.mxu0 %v3450
    %3558 = vmatprep.subr.mxu0 %v3447
    %3559 = vmatpush1.msra.mxu0 %v3446
    %3560 = vmatprep.subr.mxu0 %v3443
    %3561 = vmatpush1.msra.mxu0 %v3442
    %3562 = vmatprep.subr.mxu0 0.0
    %3563 = vmatpush2.msra.mxu0 0.0
    %3564 = vmatprep.subr.mxu0 0.0
    %3565 = vmatpush2.msra.mxu0 0.0
    %3566 = vmatprep.subr.mxu0 0.0
    %3567 = vmatpush2.msra.mxu0 0.0
    %3568 = vmatprep.subr.mxu0 0.0
    %3569 = vmatpush2.msra.mxu0 0.0
    %3570 = vmatprep.subr.mxu0 0.0
    %3571 = vmatpush2.msra.mxu0 0.0
    %3572 = vmatprep.subr.mxu0 0.0
    %3573 = vmatpush2.msra.mxu0 0.0
    %3574 = vmatprep.subr.mxu0 0.0
    %3575 = vmatpush2.msra.mxu0 0.0
    %3576 = vmatprep.subr.mxu0 0.0
    %3577 = vmatpush2.msra.mxu0 0.0
    %3578 = vmatprep.subr.mxu0 0.0
    %3579 = vmatpush2.msra.mxu0 0.0
    %3580 = vmatprep.subr.mxu0 0.0
    %3581 = vmatpush2.msra.mxu0 0.0
    %3582 = vmatprep.subr.mxu0 0.0
    %3583 = vmatpush2.msra.mxu0 0.0
    %3584 = vmatprep.subr.mxu0 0.0
    %3585 = vmatpush2.msra.mxu0 0.0
    %3586 = vmatprep.subr.mxu0 0.0
    %3587 = vmatpush2.msra.mxu0 0.0
    %3588 = vmatprep.subr.mxu0 0.0
    %3589 = vmatpush2.msra.mxu0 0.0
    %3590 = vmatprep.subr.mxu0 0.0
    %3591 = vmatpush2.msra.mxu0 0.0
    %3592 = vmatprep.subr.mxu0 0.0
    %3593 = vmatpush2.msra.mxu0 0.0
    %3594 = vmatprep.mubr.f32.mxu0 0.0
    %3595 = vmatmul.mubr.f32.gmra.mxu0 %v3457
    %v3596 = vpop.f32.mrf.mxu0
    %v3597 = vadd.f32 0.0, %v3596
    %v3598 = vpop.f32.mrf.mxu0
    %v3599 = vadd.f32 0.0, %v3598
    %3600 = vdwg.mxu0
    %v3601 = vld [vmem:[%s21] ss:$8 sm:$0xf]
    %s3602 = scalar_lea.vmem %s21, 1
    %v3603 = vld [vmem:[%s3602] ss:$8 sm:$0xf]
    %s3604 = scalar_lea.vmem %s21, 2
    %v3605 = vld [vmem:[%s3604] ss:$8 sm:$0xf]
    %s3606 = scalar_lea.vmem %s21, 3
    %v3607 = vld [vmem:[%s3606] ss:$8 sm:$0xf]
    %s3608 = scalar_lea.vmem %s21, 5
    %v3609 = vld [vmem:[%s3608] ss:$8 sm:$0xf]
    %s3610 = scalar_lea.vmem %s21, 6
    %v3611 = vld [vmem:[%s3610] ss:$8 sm:$0xf]
    %s3612 = scalar_lea.vmem %s21, 7
    %v3613 = vld [vmem:[%s3612] ss:$8 sm:$0xf]
    %s3614 = scalar_lea.vmem %s21, 32
    %v3615 = vld [vmem:[%s3614] ss:$8 sm:$0xf]
    %3616 = vrot.lane.b32.xlu0 %v3526, 17
    %v3617 = vpop.permute.xlu0 %3616
    %3618 = vrot.lane.b32.xlu0 %v3528, 17
    %v3619 = vpop.permute.xlu0 %3618
    %3620 = vrot.lane.b32.xlu0 %v3597, 17
    %v3621 = vpop.permute.xlu0 %3620
    %3622 = vrot.lane.b32.xlu0 %v3599, 17
    %v3623 = vpop.permute.xlu0 %3622
    %v3624 = vlaneseq
    %v3625 = vand.u32 %v3624, 127
    %vm3626 = vcmp.lt.s32.totalorder %v3625, 17
    %v3627 = vsel %vm3626, %v3621, %v3623
    %v3628 = vsel %vm3626, %v3619, %v3621
    %v3629 = vsel %vm3626, %v3617, %v3619
    %v3630 = vsel %vm3626, %v3623, %v3617
    %v3632 = vlaneseq
    %v3633 = vshrl.u32 %v3632, 7
    %v3634 = vsub.s32 0, %v3633
    %v3635 = vrot.slane %v3601, %v3634
    %v3636 = vlaneseq
    %v3637 = vshrl.u32 %v3636, 7
    %v3638 = vsub.s32 1, %v3637
    %v3639 = vrot.slane %v3601, %v3638
    %v3640 = vlaneseq
    %v3641 = vshrl.u32 %v3640, 7
    %v3642 = vsub.s32 2, %v3641
    %v3643 = vrot.slane %v3601, %v3642
    %v3644 = vlaneseq
    %v3645 = vshrl.u32 %v3644, 7
    %v3646 = vsub.s32 3, %v3645
    %v3647 = vrot.slane %v3601, %v3646
    %v3652 = vmul.f32 %v3630, %v3635
    %v3653 = vmul.f32 %v3629, %v3639
    %v3654 = vmul.f32 %v3628, %v3643
    %v3655 = vmul.f32 %v3627, %v3647
    %v3656 = vpack.c.bf16 %v3652, %v3652
    %v3657 = vpack.c.bf16 %v3653, %v3653
    %v3658 = vpack.c.bf16 %v3654, %v3654
    %v3659 = vpack.c.bf16 %v3655, %v3655
    %3660 = vrot.lane.b32.xlu0 %v3526, 16
    %v3661 = vpop.permute.xlu0 %3660
    %3662 = vrot.lane.b32.xlu0 %v3528, 16
    %v3663 = vpop.permute.xlu0 %3662
    %3664 = vrot.lane.b32.xlu0 %v3597, 16
    %v3665 = vpop.permute.xlu0 %3664
    %3666 = vrot.lane.b32.xlu0 %v3599, 16
    %v3667 = vpop.permute.xlu0 %3666
    %vm3668 = vcmp.lt.s32.totalorder %v3625, 16
    %v3669 = vsel %vm3668, %v3665, %v3667
    %v3670 = vsel %vm3668, %v3663, %v3665
    %v3671 = vsel %vm3668, %v3661, %v3663
    %v3672 = vsel %vm3668, %v3667, %v3661
    %v3674 = vlaneseq
    %v3675 = vshrl.u32 %v3674, 7
    %v3676 = vsub.s32 0, %v3675
    %v3677 = vrot.slane %v3603, %v3676
    %v3678 = vlaneseq
    %v3679 = vshrl.u32 %v3678, 7
    %v3680 = vsub.s32 1, %v3679
    %v3681 = vrot.slane %v3603, %v3680
    %v3682 = vlaneseq
    %v3683 = vshrl.u32 %v3682, 7
    %v3684 = vsub.s32 2, %v3683
    %v3685 = vrot.slane %v3603, %v3684
    %v3686 = vlaneseq
    %v3687 = vshrl.u32 %v3686, 7
    %v3688 = vsub.s32 3, %v3687
    %v3689 = vrot.slane %v3603, %v3688
    %v3694 = vmul.f32 %v3672, %v3677
    %v3695 = vmul.f32 %v3671, %v3681
    %v3696 = vmul.f32 %v3670, %v3685
    %v3697 = vmul.f32 %v3669, %v3689
    %v3698 = vpack.c.bf16 %v3694, %v3694
    %v3699 = vpack.c.bf16 %v3695, %v3695
    %v3700 = vpack.c.bf16 %v3696, %v3696
    %v3701 = vpack.c.bf16 %v3697, %v3697
    %3702 = vrot.lane.b32.xlu0 %v3526, 15
    %v3703 = vpop.permute.xlu0 %3702
    %3704 = vrot.lane.b32.xlu0 %v3528, 15
    %v3705 = vpop.permute.xlu0 %3704
    %3706 = vrot.lane.b32.xlu0 %v3597, 15
    %v3707 = vpop.permute.xlu0 %3706
    %3708 = vrot.lane.b32.xlu0 %v3599, 15
    %v3709 = vpop.permute.xlu0 %3708
    %vm3710 = vcmp.lt.s32.totalorder %v3625, 15
    %v3711 = vsel %vm3710, %v3707, %v3709
    %v3712 = vsel %vm3710, %v3705, %v3707
    %v3713 = vsel %vm3710, %v3703, %v3705
    %v3714 = vsel %vm3710, %v3709, %v3703
    %v3716 = vlaneseq
    %v3717 = vshrl.u32 %v3716, 7
    %v3718 = vsub.s32 0, %v3717
    %v3719 = vrot.slane %v3605, %v3718
    %v3720 = vlaneseq
    %v3721 = vshrl.u32 %v3720, 7
    %v3722 = vsub.s32 1, %v3721
    %v3723 = vrot.slane %v3605, %v3722
    %v3724 = vlaneseq
    %v3725 = vshrl.u32 %v3724, 7
    %v3726 = vsub.s32 2, %v3725
    %v3727 = vrot.slane %v3605, %v3726
    %v3728 = vlaneseq
    %v3729 = vshrl.u32 %v3728, 7
    %v3730 = vsub.s32 3, %v3729
    %v3731 = vrot.slane %v3605, %v3730
    %v3736 = vmul.f32 %v3714, %v3719
    %v3737 = vmul.f32 %v3713, %v3723
    %v3738 = vmul.f32 %v3712, %v3727
    %v3739 = vmul.f32 %v3711, %v3731
    %v3740 = vpack.c.bf16 %v3736, %v3736
    %v3741 = vpack.c.bf16 %v3737, %v3737
    %v3742 = vpack.c.bf16 %v3738, %v3738
    %v3743 = vpack.c.bf16 %v3739, %v3739
    %3744 = vrot.lane.b32.xlu0 %v3526, 1
    %v3745 = vpop.permute.xlu0 %3744
    %3746 = vrot.lane.b32.xlu0 %v3528, 1
    %v3747 = vpop.permute.xlu0 %3746
    %3748 = vrot.lane.b32.xlu0 %v3597, 1
    %v3749 = vpop.permute.xlu0 %3748
    %3750 = vrot.lane.b32.xlu0 %v3599, 1
    %v3751 = vpop.permute.xlu0 %3750
    %vm3752 = vcmp.lt.s32.totalorder %v3625, 1
    %v3753 = vsel %vm3752, %v3749, %v3751
    %v3754 = vsel %vm3752, %v3747, %v3749
    %v3755 = vsel %vm3752, %v3745, %v3747
    %v3756 = vsel %vm3752, %v3751, %v3745
    %v3758 = vlaneseq
    %v3759 = vshrl.u32 %v3758, 7
    %v3760 = vsub.s32 0, %v3759
    %v3761 = vrot.slane %v3607, %v3760
    %v3762 = vlaneseq
    %v3763 = vshrl.u32 %v3762, 7
    %v3764 = vsub.s32 1, %v3763
    %v3765 = vrot.slane %v3607, %v3764
    %v3766 = vlaneseq
    %v3767 = vshrl.u32 %v3766, 7
    %v3768 = vsub.s32 2, %v3767
    %v3769 = vrot.slane %v3607, %v3768
    %v3770 = vlaneseq
    %v3771 = vshrl.u32 %v3770, 7
    %v3772 = vsub.s32 3, %v3771
    %v3773 = vrot.slane %v3607, %v3772
    %v3778 = vmul.f32 %v3756, %v3761
    %v3779 = vmul.f32 %v3755, %v3765
    %v3780 = vmul.f32 %v3754, %v3769
    %v3781 = vmul.f32 %v3753, %v3773
    %v3782 = vpack.c.bf16 %v3778, %v3778
    %v3783 = vpack.c.bf16 %v3779, %v3779
    %v3784 = vpack.c.bf16 %v3780, %v3780
    %v3785 = vpack.c.bf16 %v3781, %v3781
    %v3786 = vpack.c.bf16 %v3526, %v3526
    %v3787 = vpack.c.bf16 %v3528, %v3528
    %v3788 = vpack.c.bf16 %v3597, %v3597
    %v3789 = vpack.c.bf16 %v3599, %v3599
    %3790 = vrot.lane.b32.xlu0 %v3526, 127
    %v3791 = vpop.permute.xlu0 %3790
    %3792 = vrot.lane.b32.xlu0 %v3528, 127
    %v3793 = vpop.permute.xlu0 %3792
    %3794 = vrot.lane.b32.xlu0 %v3597, 127
    %v3795 = vpop.permute.xlu0 %3794
    %3796 = vrot.lane.b32.xlu0 %v3599, 127
    %v3797 = vpop.permute.xlu0 %3796
    %vm3798 = vcmp.lt.s32.totalorder %v3625, 127
    %v3799 = vsel %vm3798, %v3795, %v3797
    %v3800 = vsel %vm3798, %v3793, %v3795
    %v3801 = vsel %vm3798, %v3791, %v3793
    %v3802 = vsel %vm3798, %v3797, %v3791
    %v3804 = vlaneseq
    %v3805 = vshrl.u32 %v3804, 7
    %v3806 = vsub.s32 0, %v3805
    %v3807 = vrot.slane %v3609, %v3806
    %v3808 = vlaneseq
    %v3809 = vshrl.u32 %v3808, 7
    %v3810 = vsub.s32 1, %v3809
    %v3811 = vrot.slane %v3609, %v3810
    %v3812 = vlaneseq
    %v3813 = vshrl.u32 %v3812, 7
    %v3814 = vsub.s32 2, %v3813
    %v3815 = vrot.slane %v3609, %v3814
    %v3816 = vlaneseq
    %v3817 = vshrl.u32 %v3816, 7
    %v3818 = vsub.s32 3, %v3817
    %v3819 = vrot.slane %v3609, %v3818
    %v3824 = vmul.f32 %v3801, %v3807
    %v3825 = vmul.f32 %v3800, %v3811
    %v3826 = vmul.f32 %v3799, %v3815
    %v3827 = vmul.f32 %v3802, %v3819
    %v3828 = vpack.c.bf16 %v3824, %v3824
    %v3829 = vpack.c.bf16 %v3825, %v3825
    %v3830 = vpack.c.bf16 %v3826, %v3826
    %v3831 = vpack.c.bf16 %v3827, %v3827
    %3832 = vrot.lane.b32.xlu0 %v3526, 113
    %v3833 = vpop.permute.xlu0 %3832
    %3834 = vrot.lane.b32.xlu0 %v3528, 113
    %v3835 = vpop.permute.xlu0 %3834
    %3836 = vrot.lane.b32.xlu0 %v3597, 113
    %v3837 = vpop.permute.xlu0 %3836
    %3838 = vrot.lane.b32.xlu0 %v3599, 113
    %v3839 = vpop.permute.xlu0 %3838
    %vm3840 = vcmp.lt.s32.totalorder %v3625, 113
    %v3841 = vsel %vm3840, %v3837, %v3839
    %v3842 = vsel %vm3840, %v3835, %v3837
    %v3843 = vsel %vm3840, %v3833, %v3835
    %v3844 = vsel %vm3840, %v3839, %v3833
    %v3846 = vlaneseq
    %v3847 = vshrl.u32 %v3846, 7
    %v3848 = vsub.s32 0, %v3847
    %v3849 = vrot.slane %v3611, %v3848
    %v3850 = vlaneseq
    %v3851 = vshrl.u32 %v3850, 7
    %v3852 = vsub.s32 1, %v3851
    %v3853 = vrot.slane %v3611, %v3852
    %v3854 = vlaneseq
    %v3855 = vshrl.u32 %v3854, 7
    %v3856 = vsub.s32 2, %v3855
    %v3857 = vrot.slane %v3611, %v3856
    %v3858 = vlaneseq
    %v3859 = vshrl.u32 %v3858, 7
    %v3860 = vsub.s32 3, %v3859
    %v3861 = vrot.slane %v3611, %v3860
    %v3866 = vmul.f32 %v3843, %v3849
    %v3867 = vmul.f32 %v3842, %v3853
    %v3868 = vmul.f32 %v3841, %v3857
    %v3869 = vmul.f32 %v3844, %v3861
    %v3870 = vpack.c.bf16 %v3866, %v3866
    %v3871 = vpack.c.bf16 %v3867, %v3867
    %v3872 = vpack.c.bf16 %v3868, %v3868
    %v3873 = vpack.c.bf16 %v3869, %v3869
    %3874 = vrot.lane.b32.xlu0 %v3526, 112
    %v3875 = vpop.permute.xlu0 %3874
    %3876 = vrot.lane.b32.xlu0 %v3528, 112
    %v3877 = vpop.permute.xlu0 %3876
    %3878 = vrot.lane.b32.xlu0 %v3597, 112
    %v3879 = vpop.permute.xlu0 %3878
    %3880 = vrot.lane.b32.xlu0 %v3599, 112
    %v3881 = vpop.permute.xlu0 %3880
    %vm3882 = vcmp.lt.s32.totalorder %v3625, 112
    %v3883 = vsel %vm3882, %v3879, %v3881
    %v3884 = vsel %vm3882, %v3877, %v3879
    %v3885 = vsel %vm3882, %v3875, %v3877
    %v3886 = vsel %vm3882, %v3881, %v3875
    %v3888 = vlaneseq
    %v3889 = vshrl.u32 %v3888, 7
    %v3890 = vsub.s32 0, %v3889
    %v3891 = vrot.slane %v3613, %v3890
    %v3892 = vlaneseq
    %v3893 = vshrl.u32 %v3892, 7
    %v3894 = vsub.s32 1, %v3893
    %v3895 = vrot.slane %v3613, %v3894
    %v3896 = vlaneseq
    %v3897 = vshrl.u32 %v3896, 7
    %v3898 = vsub.s32 2, %v3897
    %v3899 = vrot.slane %v3613, %v3898
    %v3900 = vlaneseq
    %v3901 = vshrl.u32 %v3900, 7
    %v3902 = vsub.s32 3, %v3901
    %v3903 = vrot.slane %v3613, %v3902
    %v3908 = vmul.f32 %v3885, %v3891
    %v3909 = vmul.f32 %v3884, %v3895
    %v3910 = vmul.f32 %v3883, %v3899
    %v3911 = vmul.f32 %v3886, %v3903
    %v3912 = vpack.c.bf16 %v3908, %v3908
    %v3913 = vpack.c.bf16 %v3909, %v3909
    %v3914 = vpack.c.bf16 %v3910, %v3910
    %v3915 = vpack.c.bf16 %v3911, %v3911
    %3916 = vrot.lane.b32.xlu0 %v3526, 111
    %v3917 = vpop.permute.xlu0 %3916
    %3918 = vrot.lane.b32.xlu0 %v3528, 111
    %v3919 = vpop.permute.xlu0 %3918
    %3920 = vrot.lane.b32.xlu0 %v3597, 111
    %v3921 = vpop.permute.xlu0 %3920
    %3922 = vrot.lane.b32.xlu0 %v3599, 111
    %v3923 = vpop.permute.xlu0 %3922
    %vm3924 = vcmp.lt.s32.totalorder %v3625, 111
    %v3925 = vsel %vm3924, %v3921, %v3923
    %v3926 = vsel %vm3924, %v3919, %v3921
    %v3927 = vsel %vm3924, %v3917, %v3919
    %v3928 = vsel %vm3924, %v3923, %v3917
    %v3930 = vlaneseq
    %v3931 = vshrl.u32 %v3930, 7
    %v3932 = vsub.s32 0, %v3931
    %v3933 = vrot.slane %v3615, %v3932
    %v3934 = vlaneseq
    %v3935 = vshrl.u32 %v3934, 7
    %v3936 = vsub.s32 1, %v3935
    %v3937 = vrot.slane %v3615, %v3936
    %v3938 = vlaneseq
    %v3939 = vshrl.u32 %v3938, 7
    %v3940 = vsub.s32 2, %v3939
    %v3941 = vrot.slane %v3615, %v3940
    %v3942 = vlaneseq
    %v3943 = vshrl.u32 %v3942, 7
    %v3944 = vsub.s32 3, %v3943
    %v3945 = vrot.slane %v3615, %v3944
    %v3950 = vmul.f32 %v3927, %v3933
    %v3951 = vmul.f32 %v3926, %v3937
    %v3952 = vmul.f32 %v3925, %v3941
    %v3953 = vmul.f32 %v3928, %v3945
    %v3954 = vpack.c.bf16 %v3950, %v3950
    %v3955 = vpack.c.bf16 %v3951, %v3951
    %v3956 = vpack.c.bf16 %v3952, %v3952
    %v3957 = vpack.c.bf16 %v3953, %v3953
    %v3962 = vrot.slane %v3698, 7
    %v3963 = vrot.slane %v3699, 7
    %v3964 = vrot.slane %v3700, 7
    %v3965 = vrot.slane %v3701, 7
    %v3970 = vrot.slane %v3740, 6
    %v3971 = vrot.slane %v3741, 6
    %v3972 = vrot.slane %v3742, 6
    %v3973 = vrot.slane %v3743, 6
    %v3978 = vrot.slane %v3782, 5
    %v3979 = vrot.slane %v3783, 5
    %v3980 = vrot.slane %v3784, 5
    %v3981 = vrot.slane %v3785, 5
    %v3986 = vrot.slane %v3786, 4
    %v3987 = vrot.slane %v3787, 4
    %v3988 = vrot.slane %v3788, 4
    %v3989 = vrot.slane %v3789, 4
    %v3994 = vrot.slane %v3828, 3
    %v3995 = vrot.slane %v3829, 3
    %v3996 = vrot.slane %v3830, 3
    %v3997 = vrot.slane %v3831, 3
    %v4002 = vrot.slane %v3870, 2
    %v4003 = vrot.slane %v3871, 2
    %v4004 = vrot.slane %v3872, 2
    %v4005 = vrot.slane %v3873, 2
    %v4010 = vrot.slane %v3912, 1
    %v4011 = vrot.slane %v3913, 1
    %v4012 = vrot.slane %v3914, 1
    %v4013 = vrot.slane %v3915, 1
    %vm4014 = vcmask 1040384
    %v4017 = vsel %vm4014, %v3656, %v3962
    %v4020 = vsel %vm4014, %v3657, %v3963
    %v4023 = vsel %vm4014, %v3658, %v3964
    %v4026 = vsel %vm4014, %v3659, %v3965
    %vm4027 = vcmask 1041408
    %v4029 = vsel %vm4027, %v4017, %v3970
    %v4031 = vsel %vm4027, %v4020, %v3971
    %v4033 = vsel %vm4027, %v4023, %v3972
    %v4035 = vsel %vm4027, %v4026, %v3973
    %vm4036 = vcmask 1042432
    %v4038 = vsel %vm4036, %v4029, %v3978
    %v4040 = vsel %vm4036, %v4031, %v3979
    %v4042 = vsel %vm4036, %v4033, %v3980
    %v4044 = vsel %vm4036, %v4035, %v3981
    %vm4045 = vcmask 1043456
    %v4047 = vsel %vm4045, %v4038, %v3986
    %v4049 = vsel %vm4045, %v4040, %v3987
    %v4051 = vsel %vm4045, %v4042, %v3988
    %v4053 = vsel %vm4045, %v4044, %v3989
    %vm4054 = vcmask 1044480
    %v4056 = vsel %vm4054, %v4047, %v3994
    %v4058 = vsel %vm4054, %v4049, %v3995
    %v4060 = vsel %vm4054, %v4051, %v3996
    %v4062 = vsel %vm4054, %v4053, %v3997
    %vm4063 = vcmask 1045504
    %v4065 = vsel %vm4063, %v4056, %v4002
    %v4067 = vsel %vm4063, %v4058, %v4003
    %v4069 = vsel %vm4063, %v4060, %v4004
    %v4071 = vsel %vm4063, %v4062, %v4005
    %vm4072 = vcmask 1046528
    %v4074 = vsel %vm4072, %v4065, %v4010
    %v4077 = vsel %vm4072, %v4067, %v4011
    %v4080 = vsel %vm4072, %v4069, %v4012
    %v4083 = vsel %vm4072, %v4071, %v4013
    %v4085 = vld [vmem:[%s23] sm:$0xf]
    %v4086 = vld [vmem:[%s23 + $0x4] sm:$0xf]
    %v4087 = vld [vmem:[%s23 + $0x8] sm:$0xf]
    %v4088 = vld [vmem:[%s23 + $0xc] sm:$0xf]
    %v4089 = vld [vmem:[%s25] sm:$0xff]
    %v4090 = vld [vmem:[%s25 + $0x8] sm:$0xff]
    %v4091 = vld [vmem:[%s25 + $0x10] sm:$0xff]
    %v4092 = vld [vmem:[%s25 + $0x18] sm:$0xff]
    %4094 = vset.pattern.permute.xlu0 0
    %4095 = vperm.xlu0 %4094, %v4089
    %v4096 = vpop.permute.xlu0 %4095
    %4099 = vset.pattern.permute.xlu0 0
    %4100 = vperm.xlu0 %4099, %v4090
    %v4101 = vpop.permute.xlu0 %4100
    %4104 = vset.pattern.permute.xlu0 0
    %4105 = vperm.xlu0 %4104, %v4091
    %v4106 = vpop.permute.xlu0 %4105
    %4109 = vset.pattern.permute.xlu0 0
    %4110 = vperm.xlu0 %4109, %v4092
    %v4111 = vpop.permute.xlu0 %4110
    %v4117 = vunpack.c.l.b16 %v4085
    %v4118 = vunpack.c.l.b16 %v4086
    %v4119 = vunpack.c.l.b16 %v4087
    %v4120 = vunpack.c.l.b16 %v4088
    %v4121 = vpack.c.b16 %v4118, %v4117
    %v4122 = vpack.c.b16 %v4120, %v4119
    %vm4123 = vcmask 146432
    %v4125 = vsel %vm4123, %v4121, 0
    %v4128 = vsel %vm4123, %v4122, 0
    %v4131 = vsel %vm4014, %v3954, 0
    %v4134 = vsel %vm4014, %v3955, 0
    %v4137 = vsel %vm4014, %v3956, 0
    %v4140 = vsel %vm4014, %v3957, 0
    %4142 = vmatprep.subr.bf16.mxu0 0
    %4143 = vmatpush1.bf16.msra.mxu0 0
    %4144 = vmatprep.subr.bf16.mxu0 0
    %4145 = vmatpush1.bf16.msra.mxu0 0
    %4146 = vmatprep.subr.bf16.mxu0 0
    %4147 = vmatpush1.bf16.msra.mxu0 0
    %4148 = vmatprep.subr.bf16.mxu0 0
    %4149 = vmatpush1.bf16.msra.mxu0 0
    %4150 = vmatprep.subr.bf16.mxu0 0
    %4151 = vmatpush1.bf16.msra.mxu0 0
    %4152 = vmatprep.subr.bf16.mxu0 0
    %4153 = vmatpush1.bf16.msra.mxu0 0
    %4154 = vmatprep.subr.bf16.mxu0 %v4134
    %4155 = vmatpush1.bf16.msra.mxu0 %v4131
    %4156 = vmatprep.subr.bf16.mxu0 %v4077
    %4157 = vmatpush1.bf16.msra.mxu0 %v4074
    %4158 = vmatprep.subr.bf16.mxu0 0
    %4159 = vmatpush2.bf16.msra.mxu0 0
    %4160 = vmatprep.subr.bf16.mxu0 0
    %4161 = vmatpush2.bf16.msra.mxu0 0
    %4162 = vmatprep.subr.bf16.mxu0 0
    %4163 = vmatpush2.bf16.msra.mxu0 0
    %4164 = vmatprep.subr.bf16.mxu0 0
    %4165 = vmatpush2.bf16.msra.mxu0 0
    %4166 = vmatprep.subr.bf16.mxu0 0
    %4167 = vmatpush2.bf16.msra.mxu0 0
    %4168 = vmatprep.subr.bf16.mxu0 0
    %4169 = vmatpush2.bf16.msra.mxu0 0
    %4170 = vmatprep.subr.bf16.mxu0 0
    %4171 = vmatpush2.bf16.msra.mxu0 0
    %4172 = vmatprep.subr.bf16.mxu0 0
    %4173 = vmatpush2.bf16.msra.mxu0 0
    %4174 = vmatprep.mubr.bf16.mxu0 0
    %4175 = vmatmul.mubr.bf16.gmra.mxu0 %v4125
    %v4176 = vpop.f32.mrf.mxu0
    %v4177 = vadd.f32 %v4096, %v4176
    %v4178 = vpop.f32.mrf.mxu0
    %v4179 = vadd.f32 %v4096, %v4178
    %v4180 = vpop.f32.mrf.mxu0
    %v4181 = vadd.f32 %v4101, %v4180
    %v4182 = vpop.f32.mrf.mxu0
    %v4183 = vadd.f32 %v4101, %v4182
    %4184 = vmatprep.mubr.bf16.mxu0 0
    %4185 = vmatmul.mubr.bf16.gmra.mxu0 %v4128
    %v4186 = vpop.f32.mrf.mxu0
    %v4187 = vadd.f32 %v4106, %v4186
    %v4188 = vpop.f32.mrf.mxu0
    %v4189 = vadd.f32 %v4106, %v4188
    %v4190 = vpop.f32.mrf.mxu0
    %v4191 = vadd.f32 %v4111, %v4190
    %v4192 = vpop.f32.mrf.mxu0
    %v4193 = vadd.f32 %v4111, %v4192
    %4194 = vdwg.mxu0
    %4195 = vmatprep.subr.bf16.mxu0 0
    %4196 = vmatpush1.bf16.msra.mxu0 0
    %4197 = vmatprep.subr.bf16.mxu0 0
    %4198 = vmatpush1.bf16.msra.mxu0 0
    %4199 = vmatprep.subr.bf16.mxu0 0
    %4200 = vmatpush1.bf16.msra.mxu0 0
    %4201 = vmatprep.subr.bf16.mxu0 0
    %4202 = vmatpush1.bf16.msra.mxu0 0
    %4203 = vmatprep.subr.bf16.mxu0 0
    %4204 = vmatpush1.bf16.msra.mxu0 0
    %4205 = vmatprep.subr.bf16.mxu0 0
    %4206 = vmatpush1.bf16.msra.mxu0 0
    %4207 = vmatprep.subr.bf16.mxu0 %v4140
    %4208 = vmatpush1.bf16.msra.mxu0 %v4137
    %4209 = vmatprep.subr.bf16.mxu0 %v4083
    %4210 = vmatpush1.bf16.msra.mxu0 %v4080
    %4211 = vmatprep.subr.bf16.mxu0 0
    %4212 = vmatpush2.bf16.msra.mxu0 0
    %4213 = vmatprep.subr.bf16.mxu0 0
    %4214 = vmatpush2.bf16.msra.mxu0 0
    %4215 = vmatprep.subr.bf16.mxu0 0
    %4216 = vmatpush2.bf16.msra.mxu0 0
    %4217 = vmatprep.subr.bf16.mxu0 0
    %4218 = vmatpush2.bf16.msra.mxu0 0
    %4219 = vmatprep.subr.bf16.mxu0 0
    %4220 = vmatpush2.bf16.msra.mxu0 0
    %4221 = vmatprep.subr.bf16.mxu0 0
    %4222 = vmatpush2.bf16.msra.mxu0 0
    %4223 = vmatprep.subr.bf16.mxu0 0
    %4224 = vmatpush2.bf16.msra.mxu0 0
    %4225 = vmatprep.subr.bf16.mxu0 0
    %4226 = vmatpush2.bf16.msra.mxu0 0
    %4227 = vmatprep.mubr.bf16.mxu0 0
    %4228 = vmatmul.mubr.bf16.gmra.mxu0 %v4125
    %v4229 = vpop.f32.mrf.mxu0
    %v4230 = vadd.f32 %v4096, %v4229
    %v4231 = vpop.f32.mrf.mxu0
    %v4232 = vadd.f32 %v4096, %v4231
    %v4233 = vpop.f32.mrf.mxu0
    %v4234 = vadd.f32 %v4101, %v4233
    %v4235 = vpop.f32.mrf.mxu0
    %v4236 = vadd.f32 %v4101, %v4235
    %4237 = vmatprep.mubr.bf16.mxu0 0
    %4238 = vmatmul.mubr.bf16.gmra.mxu0 %v4128
    %v4239 = vpop.f32.mrf.mxu0
    %v4240 = vadd.f32 %v4106, %v4239
    %v4241 = vpop.f32.mrf.mxu0
    %v4242 = vadd.f32 %v4106, %v4241
    %v4243 = vpop.f32.mrf.mxu0
    %v4244 = vadd.f32 %v4111, %v4243
    %v4245 = vpop.f32.mrf.mxu0
    %v4246 = vadd.f32 %v4111, %v4245
    %4247 = vdwg.mxu0
    %v4248 = vmax.f32 %v4177, 0.0
    %v4249 = vmax.f32 %v4179, 0.0
    %v4250 = vmax.f32 %v4230, 0.0
    %v4251 = vmax.f32 %v4232, 0.0
    %v4252 = vmax.f32 %v4181, 0.0
    %v4253 = vmax.f32 %v4183, 0.0
    %v4254 = vmax.f32 %v4234, 0.0
    %v4255 = vmax.f32 %v4236, 0.0
    %v4256 = vmax.f32 %v4187, 0.0
    %v4257 = vmax.f32 %v4189, 0.0
    %v4258 = vmax.f32 %v4240, 0.0
    %v4259 = vmax.f32 %v4242, 0.0
    %v4260 = vmax.f32 %v4191, 0.0
    %v4261 = vmax.f32 %v4193, 0.0
    %v4262 = vmax.f32 %v4244, 0.0
    %v4263 = vmax.f32 %v4246, 0.0
    %v4264 = vld [vmem:[%s27] sm:$0xff]
    %v4265 = vld [vmem:[%s27 + $0x8] sm:$0xff]
    %v4266 = vld [vmem:[%s27 + $0x10] sm:$0xff]
    %v4267 = vld [vmem:[%s27 + $0x18] sm:$0xff]
    %4269 = vset.pattern.permute.xlu0 0
    %4270 = vperm.xlu0 %4269, %v4264
    %v4271 = vpop.permute.xlu0 %4270
    %4274 = vset.pattern.permute.xlu0 0
    %4275 = vperm.xlu0 %4274, %v4265
    %v4276 = vpop.permute.xlu0 %4275
    %4279 = vset.pattern.permute.xlu0 0
    %4280 = vperm.xlu0 %4279, %v4266
    %v4281 = vpop.permute.xlu0 %4280
    %4284 = vset.pattern.permute.xlu0 0
    %4285 = vperm.xlu0 %4284, %v4267
    %v4286 = vpop.permute.xlu0 %4285
    %v4288 = vmul.f32 %v4248, %v4271
    %v4289 = vmul.f32 %v4249, %v4271
    %v4290 = vmul.f32 %v4250, %v4271
    %v4291 = vmul.f32 %v4251, %v4271
    %v4292 = vmul.f32 %v4252, %v4276
    %v4293 = vmul.f32 %v4253, %v4276
    %v4294 = vmul.f32 %v4254, %v4276
    %v4295 = vmul.f32 %v4255, %v4276
    %v4296 = vmul.f32 %v4256, %v4281
    %v4297 = vmul.f32 %v4257, %v4281
    %v4298 = vmul.f32 %v4258, %v4281
    %v4299 = vmul.f32 %v4259, %v4281
    %v4300 = vmul.f32 %v4260, %v4286
    %v4301 = vmul.f32 %v4261, %v4286
    %v4302 = vmul.f32 %v4262, %v4286
    %v4303 = vmul.f32 %v4263, %v4286
    %v4304 = vld [vmem:[%s29] sm:$0xff]
    %v4305 = vld [vmem:[%s29 + $0x8] sm:$0xff]
    %v4306 = vld [vmem:[%s29 + $0x10] sm:$0xff]
    %v4307 = vld [vmem:[%s29 + $0x18] sm:$0xff]
    %4309 = vset.pattern.permute.xlu0 0
    %4310 = vperm.xlu0 %4309, %v4304
    %v4311 = vpop.permute.xlu0 %4310
    %4314 = vset.pattern.permute.xlu0 0
    %4315 = vperm.xlu0 %4314, %v4305
    %v4316 = vpop.permute.xlu0 %4315
    %4319 = vset.pattern.permute.xlu0 0
    %4320 = vperm.xlu0 %4319, %v4306
    %v4321 = vpop.permute.xlu0 %4320
    %4324 = vset.pattern.permute.xlu0 0
    %4325 = vperm.xlu0 %4324, %v4307
    %v4326 = vpop.permute.xlu0 %4325
    %v4328 = vadd.f32 %v4288, %v4311
    %v4329 = vadd.f32 %v4289, %v4311
    %v4330 = vadd.f32 %v4290, %v4311
    %v4331 = vadd.f32 %v4291, %v4311
    %v4332 = vadd.f32 %v4292, %v4316
    %v4333 = vadd.f32 %v4293, %v4316
    %v4334 = vadd.f32 %v4294, %v4316
    %v4335 = vadd.f32 %v4295, %v4316
    %v4336 = vadd.f32 %v4296, %v4321
    %v4337 = vadd.f32 %v4297, %v4321
    %v4338 = vadd.f32 %v4298, %v4321
    %v4339 = vadd.f32 %v4299, %v4321
    %v4340 = vadd.f32 %v4300, %v4326
    %v4341 = vadd.f32 %v4301, %v4326
    %v4342 = vadd.f32 %v4302, %v4326
    %v4343 = vadd.f32 %v4303, %v4326
    %4344 = vrot.lane.b32.xlu0 %v4328, 17
    %v4345 = vpop.permute.xlu0 %4344
    %4346 = vrot.lane.b32.xlu0 %v4332, 17
    %v4347 = vpop.permute.xlu0 %4346
    %4348 = vrot.lane.b32.xlu0 %v4336, 17
    %v4349 = vpop.permute.xlu0 %4348
    %4350 = vrot.lane.b32.xlu0 %v4340, 17
    %v4351 = vpop.permute.xlu0 %4350
    %4352 = vrot.lane.b32.xlu0 %v4329, 17
    %v4353 = vpop.permute.xlu0 %4352
    %4354 = vrot.lane.b32.xlu0 %v4333, 17
    %v4355 = vpop.permute.xlu0 %4354
    %4356 = vrot.lane.b32.xlu0 %v4337, 17
    %v4357 = vpop.permute.xlu0 %4356
    %4358 = vrot.lane.b32.xlu0 %v4341, 17
    %v4359 = vpop.permute.xlu0 %4358
    %4360 = vrot.lane.b32.xlu0 %v4330, 17
    %v4361 = vpop.permute.xlu0 %4360
    %4362 = vrot.lane.b32.xlu0 %v4334, 17
    %v4363 = vpop.permute.xlu0 %4362
    %4364 = vrot.lane.b32.xlu0 %v4338, 17
    %v4365 = vpop.permute.xlu0 %4364
    %4366 = vrot.lane.b32.xlu0 %v4342, 17
    %v4367 = vpop.permute.xlu0 %4366
    %4368 = vrot.lane.b32.xlu0 %v4331, 17
    %v4369 = vpop.permute.xlu0 %4368
    %4370 = vrot.lane.b32.xlu0 %v4335, 17
    %v4371 = vpop.permute.xlu0 %4370
    %4372 = vrot.lane.b32.xlu0 %v4339, 17
    %v4373 = vpop.permute.xlu0 %4372
    %4374 = vrot.lane.b32.xlu0 %v4343, 17
    %v4375 = vpop.permute.xlu0 %4374
    %v4376 = vsel %vm3626, %v4361, %v4369
    %v4377 = vsel %vm3626, %v4363, %v4371
    %v4378 = vsel %vm3626, %v4365, %v4373
    %v4379 = vsel %vm3626, %v4367, %v4375
    %v4380 = vsel %vm3626, %v4353, %v4361
    %v4381 = vsel %vm3626, %v4355, %v4363
    %v4382 = vsel %vm3626, %v4357, %v4365
    %v4383 = vsel %vm3626, %v4359, %v4367
    %v4384 = vsel %vm3626, %v4345, %v4353
    %v4385 = vsel %vm3626, %v4347, %v4355
    %v4386 = vsel %vm3626, %v4349, %v4357
    %v4387 = vsel %vm3626, %v4351, %v4359
    %v4388 = vsel %vm3626, %v4369, %v4345
    %v4389 = vsel %vm3626, %v4371, %v4347
    %v4390 = vsel %vm3626, %v4373, %v4349
    %v4391 = vsel %vm3626, %v4375, %v4351
    %v4392 = vmul.f32 %v4388, %v3635
    %v4393 = vmul.f32 %v4384, %v3639
    %v4394 = vmul.f32 %v4380, %v3643
    %v4395 = vmul.f32 %v4376, %v3647
    %v4396 = vmul.f32 %v4389, %v3635
    %v4397 = vmul.f32 %v4385, %v3639
    %v4398 = vmul.f32 %v4381, %v3643
    %v4399 = vmul.f32 %v4377, %v3647
    %v4400 = vmul.f32 %v4390, %v3635
    %v4401 = vmul.f32 %v4386, %v3639
    %v4402 = vmul.f32 %v4382, %v3643
    %v4403 = vmul.f32 %v4378, %v3647
    %v4404 = vmul.f32 %v4391, %v3635
    %v4405 = vmul.f32 %v4387, %v3639
    %v4406 = vmul.f32 %v4383, %v3643
    %v4407 = vmul.f32 %v4379, %v3647
    %v4408 = vpack.c.bf16 %v4396, %v4392
    %v4409 = vpack.c.bf16 %v4397, %v4393
    %v4410 = vpack.c.bf16 %v4398, %v4394
    %v4411 = vpack.c.bf16 %v4399, %v4395
    %v4412 = vpack.c.bf16 %v4404, %v4400
    %v4413 = vpack.c.bf16 %v4405, %v4401
    %v4414 = vpack.c.bf16 %v4406, %v4402
    %v4415 = vpack.c.bf16 %v4407, %v4403
    %4416 = vrot.lane.b32.xlu0 %v4328, 16
    %v4417 = vpop.permute.xlu0 %4416
    %4418 = vrot.lane.b32.xlu0 %v4332, 16
    %v4419 = vpop.permute.xlu0 %4418
    %4420 = vrot.lane.b32.xlu0 %v4336, 16
    %v4421 = vpop.permute.xlu0 %4420
    %4422 = vrot.lane.b32.xlu0 %v4340, 16
    %v4423 = vpop.permute.xlu0 %4422
    %4424 = vrot.lane.b32.xlu0 %v4329, 16
    %v4425 = vpop.permute.xlu0 %4424
    %4426 = vrot.lane.b32.xlu0 %v4333, 16
    %v4427 = vpop.permute.xlu0 %4426
    %4428 = vrot.lane.b32.xlu0 %v4337, 16
    %v4429 = vpop.permute.xlu0 %4428
    %4430 = vrot.lane.b32.xlu0 %v4341, 16
    %v4431 = vpop.permute.xlu0 %4430
    %4432 = vrot.lane.b32.xlu0 %v4330, 16
    %v4433 = vpop.permute.xlu0 %4432
    %4434 = vrot.lane.b32.xlu0 %v4334, 16
    %v4435 = vpop.permute.xlu0 %4434
    %4436 = vrot.lane.b32.xlu0 %v4338, 16
    %v4437 = vpop.permute.xlu0 %4436
    %4438 = vrot.lane.b32.xlu0 %v4342, 16
    %v4439 = vpop.permute.xlu0 %4438
    %4440 = vrot.lane.b32.xlu0 %v4331, 16
    %v4441 = vpop.permute.xlu0 %4440
    %4442 = vrot.lane.b32.xlu0 %v4335, 16
    %v4443 = vpop.permute.xlu0 %4442
    %4444 = vrot.lane.b32.xlu0 %v4339, 16
    %v4445 = vpop.permute.xlu0 %4444
    %4446 = vrot.lane.b32.xlu0 %v4343, 16
    %v4447 = vpop.permute.xlu0 %4446
    %v4448 = vsel %vm3668, %v4433, %v4441
    %v4449 = vsel %vm3668, %v4435, %v4443
    %v4450 = vsel %vm3668, %v4437, %v4445
    %v4451 = vsel %vm3668, %v4439, %v4447
    %v4452 = vsel %vm3668, %v4425, %v4433
    %v4453 = vsel %vm3668, %v4427, %v4435
    %v4454 = vsel %vm3668, %v4429, %v4437
    %v4455 = vsel %vm3668, %v4431, %v4439
    %v4456 = vsel %vm3668, %v4417, %v4425
    %v4457 = vsel %vm3668, %v4419, %v4427
    %v4458 = vsel %vm3668, %v4421, %v4429
    %v4459 = vsel %vm3668, %v4423, %v4431
    %v4460 = vsel %vm3668, %v4441, %v4417
    %v4461 = vsel %vm3668, %v4443, %v4419
    %v4462 = vsel %vm3668, %v4445, %v4421
    %v4463 = vsel %vm3668, %v4447, %v4423
    %v4464 = vmul.f32 %v4460, %v3677
    %v4465 = vmul.f32 %v4456, %v3681
    %v4466 = vmul.f32 %v4452, %v3685
    %v4467 = vmul.f32 %v4448, %v3689
    %v4468 = vmul.f32 %v4461, %v3677
    %v4469 = vmul.f32 %v4457, %v3681
    %v4470 = vmul.f32 %v4453, %v3685
    %v4471 = vmul.f32 %v4449, %v3689
    %v4472 = vmul.f32 %v4462, %v3677
    %v4473 = vmul.f32 %v4458, %v3681
    %v4474 = vmul.f32 %v4454, %v3685
    %v4475 = vmul.f32 %v4450, %v3689
    %v4476 = vmul.f32 %v4463, %v3677
    %v4477 = vmul.f32 %v4459, %v3681
    %v4478 = vmul.f32 %v4455, %v3685
    %v4479 = vmul.f32 %v4451, %v3689
    %v4480 = vpack.c.bf16 %v4468, %v4464
    %v4481 = vpack.c.bf16 %v4469, %v4465
    %v4482 = vpack.c.bf16 %v4470, %v4466
    %v4483 = vpack.c.bf16 %v4471, %v4467
    %v4484 = vpack.c.bf16 %v4476, %v4472
    %v4485 = vpack.c.bf16 %v4477, %v4473
    %v4486 = vpack.c.bf16 %v4478, %v4474
    %v4487 = vpack.c.bf16 %v4479, %v4475
    %4488 = vrot.lane.b32.xlu0 %v4328, 15
    %v4489 = vpop.permute.xlu0 %4488
    %4490 = vrot.lane.b32.xlu0 %v4332, 15
    %v4491 = vpop.permute.xlu0 %4490
    %4492 = vrot.lane.b32.xlu0 %v4336, 15
    %v4493 = vpop.permute.xlu0 %4492
    %4494 = vrot.lane.b32.xlu0 %v4340, 15
    %v4495 = vpop.permute.xlu0 %4494
    %4496 = vrot.lane.b32.xlu0 %v4329, 15
    %v4497 = vpop.permute.xlu0 %4496
    %4498 = vrot.lane.b32.xlu0 %v4333, 15
    %v4499 = vpop.permute.xlu0 %4498
    %4500 = vrot.lane.b32.xlu0 %v4337, 15
    %v4501 = vpop.permute.xlu0 %4500
    %4502 = vrot.lane.b32.xlu0 %v4341, 15
    %v4503 = vpop.permute.xlu0 %4502
    %4504 = vrot.lane.b32.xlu0 %v4330, 15
    %v4505 = vpop.permute.xlu0 %4504
    %4506 = vrot.lane.b32.xlu0 %v4334, 15
    %v4507 = vpop.permute.xlu0 %4506
    %4508 = vrot.lane.b32.xlu0 %v4338, 15
    %v4509 = vpop.permute.xlu0 %4508
    %4510 = vrot.lane.b32.xlu0 %v4342, 15
    %v4511 = vpop.permute.xlu0 %4510
    %4512 = vrot.lane.b32.xlu0 %v4331, 15
    %v4513 = vpop.permute.xlu0 %4512
    %4514 = vrot.lane.b32.xlu0 %v4335, 15
    %v4515 = vpop.permute.xlu0 %4514
    %4516 = vrot.lane.b32.xlu0 %v4339, 15
    %v4517 = vpop.permute.xlu0 %4516
    %4518 = vrot.lane.b32.xlu0 %v4343, 15
    %v4519 = vpop.permute.xlu0 %4518
    %v4520 = vsel %vm3710, %v4505, %v4513
    %v4521 = vsel %vm3710, %v4507, %v4515
    %v4522 = vsel %vm3710, %v4509, %v4517
    %v4523 = vsel %vm3710, %v4511, %v4519
    %v4524 = vsel %vm3710, %v4497, %v4505
    %v4525 = vsel %vm3710, %v4499, %v4507
    %v4526 = vsel %vm3710, %v4501, %v4509
    %v4527 = vsel %vm3710, %v4503, %v4511
    %v4528 = vsel %vm3710, %v4489, %v4497
    %v4529 = vsel %vm3710, %v4491, %v4499
    %v4530 = vsel %vm3710, %v4493, %v4501
    %v4531 = vsel %vm3710, %v4495, %v4503
    %v4532 = vsel %vm3710, %v4513, %v4489
    %v4533 = vsel %vm3710, %v4515, %v4491
    %v4534 = vsel %vm3710, %v4517, %v4493
    %v4535 = vsel %vm3710, %v4519, %v4495
    %v4536 = vmul.f32 %v4532, %v3719
    %v4537 = vmul.f32 %v4528, %v3723
    %v4538 = vmul.f32 %v4524, %v3727
    %v4539 = vmul.f32 %v4520, %v3731
    %v4540 = vmul.f32 %v4533, %v3719
    %v4541 = vmul.f32 %v4529, %v3723
    %v4542 = vmul.f32 %v4525, %v3727
    %v4543 = vmul.f32 %v4521, %v3731
    %v4544 = vmul.f32 %v4534, %v3719
    %v4545 = vmul.f32 %v4530, %v3723
    %v4546 = vmul.f32 %v4526, %v3727
    %v4547 = vmul.f32 %v4522, %v3731
    %v4548 = vmul.f32 %v4535, %v3719
    %v4549 = vmul.f32 %v4531, %v3723
    %v4550 = vmul.f32 %v4527, %v3727
    %v4551 = vmul.f32 %v4523, %v3731
    %v4552 = vpack.c.bf16 %v4540, %v4536
    %v4553 = vpack.c.bf16 %v4541, %v4537
    %v4554 = vpack.c.bf16 %v4542, %v4538
    %v4555 = vpack.c.bf16 %v4543, %v4539
    %v4556 = vpack.c.bf16 %v4548, %v4544
    %v4557 = vpack.c.bf16 %v4549, %v4545
    %v4558 = vpack.c.bf16 %v4550, %v4546
    %v4559 = vpack.c.bf16 %v4551, %v4547
    %4560 = vrot.lane.b32.xlu0 %v4328, 1
    %v4561 = vpop.permute.xlu0 %4560
    %4562 = vrot.lane.b32.xlu0 %v4332, 1
    %v4563 = vpop.permute.xlu0 %4562
    %4564 = vrot.lane.b32.xlu0 %v4336, 1
    %v4565 = vpop.permute.xlu0 %4564
    %4566 = vrot.lane.b32.xlu0 %v4340, 1
    %v4567 = vpop.permute.xlu0 %4566
    %4568 = vrot.lane.b32.xlu0 %v4329, 1
    %v4569 = vpop.permute.xlu0 %4568
    %4570 = vrot.lane.b32.xlu0 %v4333, 1
    %v4571 = vpop.permute.xlu0 %4570
    %4572 = vrot.lane.b32.xlu0 %v4337, 1
    %v4573 = vpop.permute.xlu0 %4572
    %4574 = vrot.lane.b32.xlu0 %v4341, 1
    %v4575 = vpop.permute.xlu0 %4574
    %4576 = vrot.lane.b32.xlu0 %v4330, 1
    %v4577 = vpop.permute.xlu0 %4576
    %4578 = vrot.lane.b32.xlu0 %v4334, 1
    %v4579 = vpop.permute.xlu0 %4578
    %4580 = vrot.lane.b32.xlu0 %v4338, 1
    %v4581 = vpop.permute.xlu0 %4580
    %4582 = vrot.lane.b32.xlu0 %v4342, 1
    %v4583 = vpop.permute.xlu0 %4582
    %4584 = vrot.lane.b32.xlu0 %v4331, 1
    %v4585 = vpop.permute.xlu0 %4584
    %4586 = vrot.lane.b32.xlu0 %v4335, 1
    %v4587 = vpop.permute.xlu0 %4586
    %4588 = vrot.lane.b32.xlu0 %v4339, 1
    %v4589 = vpop.permute.xlu0 %4588
    %4590 = vrot.lane.b32.xlu0 %v4343, 1
    %v4591 = vpop.permute.xlu0 %4590
    %v4592 = vsel %vm3752, %v4577, %v4585
    %v4593 = vsel %vm3752, %v4579, %v4587
    %v4594 = vsel %vm3752, %v4581, %v4589
    %v4595 = vsel %vm3752, %v4583, %v4591
    %v4596 = vsel %vm3752, %v4569, %v4577
    %v4597 = vsel %vm3752, %v4571, %v4579
    %v4598 = vsel %vm3752, %v4573, %v4581
    %v4599 = vsel %vm3752, %v4575, %v4583
    %v4600 = vsel %vm3752, %v4561, %v4569
    %v4601 = vsel %vm3752, %v4563, %v4571
    %v4602 = vsel %vm3752, %v4565, %v4573
    %v4603 = vsel %vm3752, %v4567, %v4575
    %v4604 = vsel %vm3752, %v4585, %v4561
    %v4605 = vsel %vm3752, %v4587, %v4563
    %v4606 = vsel %vm3752, %v4589, %v4565
    %v4607 = vsel %vm3752, %v4591, %v4567
    %v4608 = vmul.f32 %v4604, %v3761
    %v4609 = vmul.f32 %v4600, %v3765
    %v4610 = vmul.f32 %v4596, %v3769
    %v4611 = vmul.f32 %v4592, %v3773
    %v4612 = vmul.f32 %v4605, %v3761
    %v4613 = vmul.f32 %v4601, %v3765
    %v4614 = vmul.f32 %v4597, %v3769
    %v4615 = vmul.f32 %v4593, %v3773
    %v4616 = vmul.f32 %v4606, %v3761
    %v4617 = vmul.f32 %v4602, %v3765
    %v4618 = vmul.f32 %v4598, %v3769
    %v4619 = vmul.f32 %v4594, %v3773
    %v4620 = vmul.f32 %v4607, %v3761
    %v4621 = vmul.f32 %v4603, %v3765
    %v4622 = vmul.f32 %v4599, %v3769
    %v4623 = vmul.f32 %v4595, %v3773
    %v4624 = vpack.c.bf16 %v4612, %v4608
    %v4625 = vpack.c.bf16 %v4613, %v4609
    %v4626 = vpack.c.bf16 %v4614, %v4610
    %v4627 = vpack.c.bf16 %v4615, %v4611
    %v4628 = vpack.c.bf16 %v4620, %v4616
    %v4629 = vpack.c.bf16 %v4621, %v4617
    %v4630 = vpack.c.bf16 %v4622, %v4618
    %v4631 = vpack.c.bf16 %v4623, %v4619
    %v4632 = vpack.c.bf16 %v4332, %v4328
    %v4633 = vpack.c.bf16 %v4333, %v4329
    %v4634 = vpack.c.bf16 %v4334, %v4330
    %v4635 = vpack.c.bf16 %v4335, %v4331
    %v4636 = vpack.c.bf16 %v4340, %v4336
    %v4637 = vpack.c.bf16 %v4341, %v4337
    %v4638 = vpack.c.bf16 %v4342, %v4338
    %v4639 = vpack.c.bf16 %v4343, %v4339
    %4640 = vrot.lane.b32.xlu0 %v4328, 127
    %v4641 = vpop.permute.xlu0 %4640
    %4642 = vrot.lane.b32.xlu0 %v4332, 127
    %v4643 = vpop.permute.xlu0 %4642
    %4644 = vrot.lane.b32.xlu0 %v4336, 127
    %v4645 = vpop.permute.xlu0 %4644
    %4646 = vrot.lane.b32.xlu0 %v4340, 127
    %v4647 = vpop.permute.xlu0 %4646
    %4648 = vrot.lane.b32.xlu0 %v4329, 127
    %v4649 = vpop.permute.xlu0 %4648
    %4650 = vrot.lane.b32.xlu0 %v4333, 127
    %v4651 = vpop.permute.xlu0 %4650
    %4652 = vrot.lane.b32.xlu0 %v4337, 127
    %v4653 = vpop.permute.xlu0 %4652
    %4654 = vrot.lane.b32.xlu0 %v4341, 127
    %v4655 = vpop.permute.xlu0 %4654
    %4656 = vrot.lane.b32.xlu0 %v4330, 127
    %v4657 = vpop.permute.xlu0 %4656
    %4658 = vrot.lane.b32.xlu0 %v4334, 127
    %v4659 = vpop.permute.xlu0 %4658
    %4660 = vrot.lane.b32.xlu0 %v4338, 127
    %v4661 = vpop.permute.xlu0 %4660
    %4662 = vrot.lane.b32.xlu0 %v4342, 127
    %v4663 = vpop.permute.xlu0 %4662
    %4664 = vrot.lane.b32.xlu0 %v4331, 127
    %v4665 = vpop.permute.xlu0 %4664
    %4666 = vrot.lane.b32.xlu0 %v4335, 127
    %v4667 = vpop.permute.xlu0 %4666
    %4668 = vrot.lane.b32.xlu0 %v4339, 127
    %v4669 = vpop.permute.xlu0 %4668
    %4670 = vrot.lane.b32.xlu0 %v4343, 127
    %v4671 = vpop.permute.xlu0 %4670
    %v4672 = vsel %vm3798, %v4657, %v4665
    %v4673 = vsel %vm3798, %v4659, %v4667
    %v4674 = vsel %vm3798, %v4661, %v4669
    %v4675 = vsel %vm3798, %v4663, %v4671
    %v4676 = vsel %vm3798, %v4649, %v4657
    %v4677 = vsel %vm3798, %v4651, %v4659
    %v4678 = vsel %vm3798, %v4653, %v4661
    %v4679 = vsel %vm3798, %v4655, %v4663
    %v4680 = vsel %vm3798, %v4641, %v4649
    %v4681 = vsel %vm3798, %v4643, %v4651
    %v4682 = vsel %vm3798, %v4645, %v4653
    %v4683 = vsel %vm3798, %v4647, %v4655
    %v4684 = vsel %vm3798, %v4665, %v4641
    %v4685 = vsel %vm3798, %v4667, %v4643
    %v4686 = vsel %vm3798, %v4669, %v4645
    %v4687 = vsel %vm3798, %v4671, %v4647
    %v4688 = vmul.f32 %v4680, %v3807
    %v4689 = vmul.f32 %v4676, %v3811
    %v4690 = vmul.f32 %v4672, %v3815
    %v4691 = vmul.f32 %v4684, %v3819
    %v4692 = vmul.f32 %v4681, %v3807
    %v4693 = vmul.f32 %v4677, %v3811
    %v4694 = vmul.f32 %v4673, %v3815
    %v4695 = vmul.f32 %v4685, %v3819
    %v4696 = vmul.f32 %v4682, %v3807
    %v4697 = vmul.f32 %v4678, %v3811
    %v4698 = vmul.f32 %v4674, %v3815
    %v4699 = vmul.f32 %v4686, %v3819
    %v4700 = vmul.f32 %v4683, %v3807
    %v4701 = vmul.f32 %v4679, %v3811
    %v4702 = vmul.f32 %v4675, %v3815
    %v4703 = vmul.f32 %v4687, %v3819
    %v4704 = vpack.c.bf16 %v4692, %v4688
    %v4705 = vpack.c.bf16 %v4693, %v4689
    %v4706 = vpack.c.bf16 %v4694, %v4690
    %v4707 = vpack.c.bf16 %v4695, %v4691
    %v4708 = vpack.c.bf16 %v4700, %v4696
    %v4709 = vpack.c.bf16 %v4701, %v4697
    %v4710 = vpack.c.bf16 %v4702, %v4698
    %v4711 = vpack.c.bf16 %v4703, %v4699
    %4712 = vrot.lane.b32.xlu0 %v4328, 113
    %v4713 = vpop.permute.xlu0 %4712
    %4714 = vrot.lane.b32.xlu0 %v4332, 113
    %v4715 = vpop.permute.xlu0 %4714
    %4716 = vrot.lane.b32.xlu0 %v4336, 113
    %v4717 = vpop.permute.xlu0 %4716
    %4718 = vrot.lane.b32.xlu0 %v4340, 113
    %v4719 = vpop.permute.xlu0 %4718
    %4720 = vrot.lane.b32.xlu0 %v4329, 113
    %v4721 = vpop.permute.xlu0 %4720
    %4722 = vrot.lane.b32.xlu0 %v4333, 113
    %v4723 = vpop.permute.xlu0 %4722
    %4724 = vrot.lane.b32.xlu0 %v4337, 113
    %v4725 = vpop.permute.xlu0 %4724
    %4726 = vrot.lane.b32.xlu0 %v4341, 113
    %v4727 = vpop.permute.xlu0 %4726
    %4728 = vrot.lane.b32.xlu0 %v4330, 113
    %v4729 = vpop.permute.xlu0 %4728
    %4730 = vrot.lane.b32.xlu0 %v4334, 113
    %v4731 = vpop.permute.xlu0 %4730
    %4732 = vrot.lane.b32.xlu0 %v4338, 113
    %v4733 = vpop.permute.xlu0 %4732
    %4734 = vrot.lane.b32.xlu0 %v4342, 113
    %v4735 = vpop.permute.xlu0 %4734
    %4736 = vrot.lane.b32.xlu0 %v4331, 113
    %v4737 = vpop.permute.xlu0 %4736
    %4738 = vrot.lane.b32.xlu0 %v4335, 113
    %v4739 = vpop.permute.xlu0 %4738
    %4740 = vrot.lane.b32.xlu0 %v4339, 113
    %v4741 = vpop.permute.xlu0 %4740
    %4742 = vrot.lane.b32.xlu0 %v4343, 113
    %v4743 = vpop.permute.xlu0 %4742
    %v4744 = vsel %vm3840, %v4729, %v4737
    %v4745 = vsel %vm3840, %v4731, %v4739
    %v4746 = vsel %vm3840, %v4733, %v4741
    %v4747 = vsel %vm3840, %v4735, %v4743
    %v4748 = vsel %vm3840, %v4721, %v4729
    %v4749 = vsel %vm3840, %v4723, %v4731
    %v4750 = vsel %vm3840, %v4725, %v4733
    %v4751 = vsel %vm3840, %v4727, %v4735
    %v4752 = vsel %vm3840, %v4713, %v4721
    %v4753 = vsel %vm3840, %v4715, %v4723
    %v4754 = vsel %vm3840, %v4717, %v4725
    %v4755 = vsel %vm3840, %v4719, %v4727
    %v4756 = vsel %vm3840, %v4737, %v4713
    %v4757 = vsel %vm3840, %v4739, %v4715
    %v4758 = vsel %vm3840, %v4741, %v4717
    %v4759 = vsel %vm3840, %v4743, %v4719
    %v4760 = vmul.f32 %v4752, %v3849
    %v4761 = vmul.f32 %v4748, %v3853
    %v4762 = vmul.f32 %v4744, %v3857
    %v4763 = vmul.f32 %v4756, %v3861
    %v4764 = vmul.f32 %v4753, %v3849
    %v4765 = vmul.f32 %v4749, %v3853
    %v4766 = vmul.f32 %v4745, %v3857
    %v4767 = vmul.f32 %v4757, %v3861
    %v4768 = vmul.f32 %v4754, %v3849
    %v4769 = vmul.f32 %v4750, %v3853
    %v4770 = vmul.f32 %v4746, %v3857
    %v4771 = vmul.f32 %v4758, %v3861
    %v4772 = vmul.f32 %v4755, %v3849
    %v4773 = vmul.f32 %v4751, %v3853
    %v4774 = vmul.f32 %v4747, %v3857
    %v4775 = vmul.f32 %v4759, %v3861
    %v4776 = vpack.c.bf16 %v4764, %v4760
    %v4777 = vpack.c.bf16 %v4765, %v4761
    %v4778 = vpack.c.bf16 %v4766, %v4762
    %v4779 = vpack.c.bf16 %v4767, %v4763
    %v4780 = vpack.c.bf16 %v4772, %v4768
    %v4781 = vpack.c.bf16 %v4773, %v4769
    %v4782 = vpack.c.bf16 %v4774, %v4770
    %v4783 = vpack.c.bf16 %v4775, %v4771
    %4784 = vrot.lane.b32.xlu0 %v4328, 112
    %v4785 = vpop.permute.xlu0 %4784
    %4786 = vrot.lane.b32.xlu0 %v4332, 112
    %v4787 = vpop.permute.xlu0 %4786
    %4788 = vrot.lane.b32.xlu0 %v4336, 112
    %v4789 = vpop.permute.xlu0 %4788
    %4790 = vrot.lane.b32.xlu0 %v4340, 112
    %v4791 = vpop.permute.xlu0 %4790
    %4792 = vrot.lane.b32.xlu0 %v4329, 112
    %v4793 = vpop.permute.xlu0 %4792
    %4794 = vrot.lane.b32.xlu0 %v4333, 112
    %v4795 = vpop.permute.xlu0 %4794
    %4796 = vrot.lane.b32.xlu0 %v4337, 112
    %v4797 = vpop.permute.xlu0 %4796
    %4798 = vrot.lane.b32.xlu0 %v4341, 112
    %v4799 = vpop.permute.xlu0 %4798
    %4800 = vrot.lane.b32.xlu0 %v4330, 112
    %v4801 = vpop.permute.xlu0 %4800
    %4802 = vrot.lane.b32.xlu0 %v4334, 112
    %v4803 = vpop.permute.xlu0 %4802
    %4804 = vrot.lane.b32.xlu0 %v4338, 112
    %v4805 = vpop.permute.xlu0 %4804
    %4806 = vrot.lane.b32.xlu0 %v4342, 112
    %v4807 = vpop.permute.xlu0 %4806
    %4808 = vrot.lane.b32.xlu0 %v4331, 112
    %v4809 = vpop.permute.xlu0 %4808
    %4810 = vrot.lane.b32.xlu0 %v4335, 112
    %v4811 = vpop.permute.xlu0 %4810
    %4812 = vrot.lane.b32.xlu0 %v4339, 112
    %v4813 = vpop.permute.xlu0 %4812
    %4814 = vrot.lane.b32.xlu0 %v4343, 112
    %v4815 = vpop.permute.xlu0 %4814
    %v4816 = vsel %vm3882, %v4801, %v4809
    %v4817 = vsel %vm3882, %v4803, %v4811
    %v4818 = vsel %vm3882, %v4805, %v4813
    %v4819 = vsel %vm3882, %v4807, %v4815
    %v4820 = vsel %vm3882, %v4793, %v4801
    %v4821 = vsel %vm3882, %v4795, %v4803
    %v4822 = vsel %vm3882, %v4797, %v4805
    %v4823 = vsel %vm3882, %v4799, %v4807
    %v4824 = vsel %vm3882, %v4785, %v4793
    %v4825 = vsel %vm3882, %v4787, %v4795
    %v4826 = vsel %vm3882, %v4789, %v4797
    %v4827 = vsel %vm3882, %v4791, %v4799
    %v4828 = vsel %vm3882, %v4809, %v4785
    %v4829 = vsel %vm3882, %v4811, %v4787
    %v4830 = vsel %vm3882, %v4813, %v4789
    %v4831 = vsel %vm3882, %v4815, %v4791
    %v4832 = vmul.f32 %v4824, %v3891
    %v4833 = vmul.f32 %v4820, %v3895
    %v4834 = vmul.f32 %v4816, %v3899
    %v4835 = vmul.f32 %v4828, %v3903
    %v4836 = vmul.f32 %v4825, %v3891
    %v4837 = vmul.f32 %v4821, %v3895
    %v4838 = vmul.f32 %v4817, %v3899
    %v4839 = vmul.f32 %v4829, %v3903
    %v4840 = vmul.f32 %v4826, %v3891
    %v4841 = vmul.f32 %v4822, %v3895
    %v4842 = vmul.f32 %v4818, %v3899
    %v4843 = vmul.f32 %v4830, %v3903
    %v4844 = vmul.f32 %v4827, %v3891
    %v4845 = vmul.f32 %v4823, %v3895
    %v4846 = vmul.f32 %v4819, %v3899
    %v4847 = vmul.f32 %v4831, %v3903
    %v4848 = vpack.c.bf16 %v4836, %v4832
    %v4849 = vpack.c.bf16 %v4837, %v4833
    %v4850 = vpack.c.bf16 %v4838, %v4834
    %v4851 = vpack.c.bf16 %v4839, %v4835
    %v4852 = vpack.c.bf16 %v4844, %v4840
    %v4853 = vpack.c.bf16 %v4845, %v4841
    %v4854 = vpack.c.bf16 %v4846, %v4842
    %v4855 = vpack.c.bf16 %v4847, %v4843
    %4856 = vrot.lane.b32.xlu0 %v4328, 111
    %v4857 = vpop.permute.xlu0 %4856
    %4858 = vrot.lane.b32.xlu0 %v4332, 111
    %v4859 = vpop.permute.xlu0 %4858
    %4860 = vrot.lane.b32.xlu0 %v4336, 111
    %v4861 = vpop.permute.xlu0 %4860
    %4862 = vrot.lane.b32.xlu0 %v4340, 111
    %v4863 = vpop.permute.xlu0 %4862
    %4864 = vrot.lane.b32.xlu0 %v4329, 111
    %v4865 = vpop.permute.xlu0 %4864
    %4866 = vrot.lane.b32.xlu0 %v4333, 111
    %v4867 = vpop.permute.xlu0 %4866
    %4868 = vrot.lane.b32.xlu0 %v4337, 111
    %v4869 = vpop.permute.xlu0 %4868
    %4870 = vrot.lane.b32.xlu0 %v4341, 111
    %v4871 = vpop.permute.xlu0 %4870
    %4872 = vrot.lane.b32.xlu0 %v4330, 111
    %v4873 = vpop.permute.xlu0 %4872
    %4874 = vrot.lane.b32.xlu0 %v4334, 111
    %v4875 = vpop.permute.xlu0 %4874
    %4876 = vrot.lane.b32.xlu0 %v4338, 111
    %v4877 = vpop.permute.xlu0 %4876
    %4878 = vrot.lane.b32.xlu0 %v4342, 111
    %v4879 = vpop.permute.xlu0 %4878
    %4880 = vrot.lane.b32.xlu0 %v4331, 111
    %v4881 = vpop.permute.xlu0 %4880
    %4882 = vrot.lane.b32.xlu0 %v4335, 111
    %v4883 = vpop.permute.xlu0 %4882
    %4884 = vrot.lane.b32.xlu0 %v4339, 111
    %v4885 = vpop.permute.xlu0 %4884
    %4886 = vrot.lane.b32.xlu0 %v4343, 111
    %v4887 = vpop.permute.xlu0 %4886
    %v4888 = vsel %vm3924, %v4873, %v4881
    %v4889 = vsel %vm3924, %v4875, %v4883
    %v4890 = vsel %vm3924, %v4877, %v4885
    %v4891 = vsel %vm3924, %v4879, %v4887
    %v4892 = vsel %vm3924, %v4865, %v4873
    %v4893 = vsel %vm3924, %v4867, %v4875
    %v4894 = vsel %vm3924, %v4869, %v4877
    %v4895 = vsel %vm3924, %v4871, %v4879
    %v4896 = vsel %vm3924, %v4857, %v4865
    %v4897 = vsel %vm3924, %v4859, %v4867
    %v4898 = vsel %vm3924, %v4861, %v4869
    %v4899 = vsel %vm3924, %v4863, %v4871
    %v4900 = vsel %vm3924, %v4881, %v4857
    %v4901 = vsel %vm3924, %v4883, %v4859
    %v4902 = vsel %vm3924, %v4885, %v4861
    %v4903 = vsel %vm3924, %v4887, %v4863
    %v4904 = vmul.f32 %v4896, %v3933
    %v4905 = vmul.f32 %v4892, %v3937
    %v4906 = vmul.f32 %v4888, %v3941
    %v4907 = vmul.f32 %v4900, %v3945
    %v4908 = vmul.f32 %v4897, %v3933
    %v4909 = vmul.f32 %v4893, %v3937
    %v4910 = vmul.f32 %v4889, %v3941
    %v4911 = vmul.f32 %v4901, %v3945
    %v4912 = vmul.f32 %v4898, %v3933
    %v4913 = vmul.f32 %v4894, %v3937
    %v4914 = vmul.f32 %v4890, %v3941
    %v4915 = vmul.f32 %v4902, %v3945
    %v4916 = vmul.f32 %v4899, %v3933
    %v4917 = vmul.f32 %v4895, %v3937
    %v4918 = vmul.f32 %v4891, %v3941
    %v4919 = vmul.f32 %v4903, %v3945
    %v4920 = vpack.c.bf16 %v4908, %v4904
    %v4921 = vpack.c.bf16 %v4909, %v4905
    %v4922 = vpack.c.bf16 %v4910, %v4906
    %v4923 = vpack.c.bf16 %v4911, %v4907
    %v4924 = vpack.c.bf16 %v4916, %v4912
    %v4925 = vpack.c.bf16 %v4917, %v4913
    %v4926 = vpack.c.bf16 %v4918, %v4914
    %v4927 = vpack.c.bf16 %v4919, %v4915
    %v4928 = vld [vmem:[%s31] sm:$0xff]
    %v4929 = vld [vmem:[%s31 + $0x8] sm:$0xf]
    %v4930 = vld [vmem:[%s31 + $0xc] sm:$0xff]
    %v4931 = vld [vmem:[%s31 + $0x14] sm:$0xf]
    %v4932 = vld [vmem:[%s31 + $0x18] sm:$0xff]
    %v4933 = vld [vmem:[%s31 + $0x20] sm:$0xf]
    %v4934 = vld [vmem:[%s31 + $0x24] sm:$0xff]
    %v4935 = vld [vmem:[%s31 + $0x2c] sm:$0xf]
    %v4936 = vld [vmem:[%s33] sm:$0xff]
    %v4937 = vld [vmem:[%s33 + $0x8] sm:$0xff]
    %v4938 = vld [vmem:[%s33 + $0x10] sm:$0xff]
    %v4939 = vld [vmem:[%s33 + $0x18] sm:$0xff]
    %4941 = vset.pattern.permute.xlu0 0
    %4942 = vperm.xlu0 %4941, %v4936
    %v4943 = vpop.permute.xlu0 %4942
    %4946 = vset.pattern.permute.xlu0 0
    %4947 = vperm.xlu0 %4946, %v4937
    %v4948 = vpop.permute.xlu0 %4947
    %4951 = vset.pattern.permute.xlu0 0
    %4952 = vperm.xlu0 %4951, %v4938
    %v4953 = vpop.permute.xlu0 %4952
    %4956 = vset.pattern.permute.xlu0 0
    %4957 = vperm.xlu0 %4956, %v4939
    %v4958 = vpop.permute.xlu0 %4957
    %v4968 = vunpack.c.l.b16 %v4928
    %v4969 = vunpack.c.h.b16 %v4928
    %v4970 = vunpack.c.l.b16 %v4929
    %v4971 = vunpack.c.l.b16 %v4930
    %v4972 = vunpack.c.h.b16 %v4930
    %v4973 = vunpack.c.l.b16 %v4931
    %v4974 = vunpack.c.l.b16 %v4932
    %v4975 = vunpack.c.h.b16 %v4932
    %v4976 = vunpack.c.l.b16 %v4933
    %v4977 = vunpack.c.l.b16 %v4934
    %v4978 = vunpack.c.h.b16 %v4934
    %v4979 = vunpack.c.l.b16 %v4935
    %v4980 = vpack.c.b16 %v4971, %v4968
    %v4981 = vpack.c.b16 %v4972, %v4969
    %v4982 = vpack.c.b16 %v4973, %v4970
    %v4983 = vpack.c.b16 %v4977, %v4974
    %v4984 = vpack.c.b16 %v4978, %v4975
    %v4985 = vpack.c.b16 %v4979, %v4976
    %v4991 = vsel %vm3232, %v4982, 0
    %v4994 = vsel %vm3232, %v4985, 0
    %4996 = vmatprep.subr.bf16.mxu0 %v4629
    %4997 = vmatpush1.bf16.msra.mxu0 %v4628
    %4998 = vmatprep.subr.bf16.mxu0 %v4625
    %4999 = vmatpush1.bf16.msra.mxu0 %v4624
    %5000 = vmatprep.subr.bf16.mxu0 %v4557
    %5001 = vmatpush1.bf16.msra.mxu0 %v4556
    %5002 = vmatprep.subr.bf16.mxu0 %v4553
    %5003 = vmatpush1.bf16.msra.mxu0 %v4552
    %5004 = vmatprep.subr.bf16.mxu0 %v4485
    %5005 = vmatpush1.bf16.msra.mxu0 %v4484
    %5006 = vmatprep.subr.bf16.mxu0 %v4481
    %5007 = vmatpush1.bf16.msra.mxu0 %v4480
    %5008 = vmatprep.subr.bf16.mxu0 %v4413
    %5009 = vmatpush1.bf16.msra.mxu0 %v4412
    %5010 = vmatprep.subr.bf16.mxu0 %v4409
    %5011 = vmatpush1.bf16.msra.mxu0 %v4408
    %5012 = vmatprep.subr.bf16.mxu0 %v4853
    %5013 = vmatpush2.bf16.msra.mxu0 %v4852
    %5014 = vmatprep.subr.bf16.mxu0 %v4849
    %5015 = vmatpush2.bf16.msra.mxu0 %v4848
    %5016 = vmatprep.subr.bf16.mxu0 %v4781
    %5017 = vmatpush2.bf16.msra.mxu0 %v4780
    %5018 = vmatprep.subr.bf16.mxu0 %v4777
    %5019 = vmatpush2.bf16.msra.mxu0 %v4776
    %5020 = vmatprep.subr.bf16.mxu0 %v4709
    %5021 = vmatpush2.bf16.msra.mxu0 %v4708
    %5022 = vmatprep.subr.bf16.mxu0 %v4705
    %5023 = vmatpush2.bf16.msra.mxu0 %v4704
    %5024 = vmatprep.subr.bf16.mxu0 %v4637
    %5025 = vmatpush2.bf16.msra.mxu0 %v4636
    %5026 = vmatprep.subr.bf16.mxu0 %v4633
    %5027 = vmatpush2.bf16.msra.mxu0 %v4632
    %5028 = vmatprep.mubr.bf16.mxu0 %v4981
    %5029 = vmatmul.mubr.bf16.gmra.mxu0 %v4980
    %v5030 = vpop.f32.mrf.mxu0
    %v5031 = vadd.f32 %v4943, %v5030
    %v5032 = vpop.f32.mrf.mxu0
    %v5033 = vadd.f32 %v4943, %v5032
    %v5034 = vpop.f32.mrf.mxu0
    %v5035 = vadd.f32 %v4948, %v5034
    %v5036 = vpop.f32.mrf.mxu0
    %v5037 = vadd.f32 %v4948, %v5036
    %5038 = vmatprep.mubr.bf16.mxu0 %v4984
    %5039 = vmatmul.mubr.bf16.gmra.mxu0 %v4983
    %v5040 = vpop.f32.mrf.mxu0
    %v5041 = vadd.f32 %v4953, %v5040
    %v5042 = vpop.f32.mrf.mxu0
    %v5043 = vadd.f32 %v4953, %v5042
    %v5044 = vpop.f32.mrf.mxu0
    %v5045 = vadd.f32 %v4958, %v5044
    %v5046 = vpop.f32.mrf.mxu0
    %v5047 = vadd.f32 %v4958, %v5046
    %5048 = vdwg.mxu0
    %5049 = vmatprep.subr.bf16.mxu0 0
    %5050 = vmatpush1.bf16.msra.mxu0 0
    %5051 = vmatprep.subr.bf16.mxu0 0
    %5052 = vmatpush1.bf16.msra.mxu0 0
    %5053 = vmatprep.subr.bf16.mxu0 0
    %5054 = vmatpush1.bf16.msra.mxu0 0
    %5055 = vmatprep.subr.bf16.mxu0 0
    %5056 = vmatpush1.bf16.msra.mxu0 0
    %5057 = vmatprep.subr.bf16.mxu0 0
    %5058 = vmatpush1.bf16.msra.mxu0 0
    %5059 = vmatprep.subr.bf16.mxu0 0
    %5060 = vmatpush1.bf16.msra.mxu0 0
    %5061 = vmatprep.subr.bf16.mxu0 %v4925
    %5062 = vmatpush1.bf16.msra.mxu0 %v4924
    %5063 = vmatprep.subr.bf16.mxu0 %v4921
    %5064 = vmatpush1.bf16.msra.mxu0 %v4920
    %5065 = vmatprep.subr.bf16.mxu0 0
    %5066 = vmatpush2.bf16.msra.mxu0 0
    %5067 = vmatprep.subr.bf16.mxu0 0
    %5068 = vmatpush2.bf16.msra.mxu0 0
    %5069 = vmatprep.subr.bf16.mxu0 0
    %5070 = vmatpush2.bf16.msra.mxu0 0
    %5071 = vmatprep.subr.bf16.mxu0 0
    %5072 = vmatpush2.bf16.msra.mxu0 0
    %5073 = vmatprep.subr.bf16.mxu0 0
    %5074 = vmatpush2.bf16.msra.mxu0 0
    %5075 = vmatprep.subr.bf16.mxu0 0
    %5076 = vmatpush2.bf16.msra.mxu0 0
    %5077 = vmatprep.subr.bf16.mxu0 0
    %5078 = vmatpush2.bf16.msra.mxu0 0
    %5079 = vmatprep.subr.bf16.mxu0 0
    %5080 = vmatpush2.bf16.msra.mxu0 0
    %5081 = vmatprep.mubr.bf16.mxu0 0
    %5082 = vmatmul.mubr.bf16.gmra.mxu0 %v4991
    %v5083 = vpop.f32.mrf.mxu0
    %v5084 = vadd.f32 %v5031, %v5083
    %v5085 = vpop.f32.mrf.mxu0
    %v5086 = vadd.f32 %v5033, %v5085
    %v5087 = vpop.f32.mrf.mxu0
    %v5088 = vadd.f32 %v5035, %v5087
    %v5089 = vpop.f32.mrf.mxu0
    %v5090 = vadd.f32 %v5037, %v5089
    %5091 = vmatprep.mubr.bf16.mxu0 0
    %5092 = vmatmul.mubr.bf16.gmra.mxu0 %v4994
    %v5093 = vpop.f32.mrf.mxu0
    %v5094 = vadd.f32 %v5041, %v5093
    %v5095 = vpop.f32.mrf.mxu0
    %v5096 = vadd.f32 %v5043, %v5095
    %v5097 = vpop.f32.mrf.mxu0
    %v5098 = vadd.f32 %v5045, %v5097
    %v5099 = vpop.f32.mrf.mxu0
    %v5100 = vadd.f32 %v5047, %v5099
    %5101 = vdwg.mxu0
    %5102 = vmatprep.subr.bf16.mxu0 %v4631
    %5103 = vmatpush1.bf16.msra.mxu0 %v4630
    %5104 = vmatprep.subr.bf16.mxu0 %v4627
    %5105 = vmatpush1.bf16.msra.mxu0 %v4626
    %5106 = vmatprep.subr.bf16.mxu0 %v4559
    %5107 = vmatpush1.bf16.msra.mxu0 %v4558
    %5108 = vmatprep.subr.bf16.mxu0 %v4555
    %5109 = vmatpush1.bf16.msra.mxu0 %v4554
    %5110 = vmatprep.subr.bf16.mxu0 %v4487
    %5111 = vmatpush1.bf16.msra.mxu0 %v4486
    %5112 = vmatprep.subr.bf16.mxu0 %v4483
    %5113 = vmatpush1.bf16.msra.mxu0 %v4482
    %5114 = vmatprep.subr.bf16.mxu0 %v4415
    %5115 = vmatpush1.bf16.msra.mxu0 %v4414
    %5116 = vmatprep.subr.bf16.mxu0 %v4411
    %5117 = vmatpush1.bf16.msra.mxu0 %v4410
    %5118 = vmatprep.subr.bf16.mxu0 %v4855
    %5119 = vmatpush2.bf16.msra.mxu0 %v4854
    %5120 = vmatprep.subr.bf16.mxu0 %v4851
    %5121 = vmatpush2.bf16.msra.mxu0 %v4850
    %5122 = vmatprep.subr.bf16.mxu0 %v4783
    %5123 = vmatpush2.bf16.msra.mxu0 %v4782
    %5124 = vmatprep.subr.bf16.mxu0 %v4779
    %5125 = vmatpush2.bf16.msra.mxu0 %v4778
    %5126 = vmatprep.subr.bf16.mxu0 %v4711
    %5127 = vmatpush2.bf16.msra.mxu0 %v4710
    %5128 = vmatprep.subr.bf16.mxu0 %v4707
    %5129 = vmatpush2.bf16.msra.mxu0 %v4706
    %5130 = vmatprep.subr.bf16.mxu0 %v4639
    %5131 = vmatpush2.bf16.msra.mxu0 %v4638
    %5132 = vmatprep.subr.bf16.mxu0 %v4635
    %5133 = vmatpush2.bf16.msra.mxu0 %v4634
    %5134 = vmatprep.mubr.bf16.mxu0 %v4981
    %5135 = vmatmul.mubr.bf16.gmra.mxu0 %v4980
    %v5136 = vpop.f32.mrf.mxu0
    %v5137 = vadd.f32 %v4943, %v5136
    %v5138 = vpop.f32.mrf.mxu0
    %v5139 = vadd.f32 %v4943, %v5138
    %v5140 = vpop.f32.mrf.mxu0
    %v5141 = vadd.f32 %v4948, %v5140
    %v5142 = vpop.f32.mrf.mxu0
    %v5143 = vadd.f32 %v4948, %v5142
    %5144 = vmatprep.mubr.bf16.mxu0 %v4984
    %5145 = vmatmul.mubr.bf16.gmra.mxu0 %v4983
    %v5146 = vpop.f32.mrf.mxu0
    %v5147 = vadd.f32 %v4953, %v5146
    %v5148 = vpop.f32.mrf.mxu0
    %v5149 = vadd.f32 %v4953, %v5148
    %v5150 = vpop.f32.mrf.mxu0
    %v5151 = vadd.f32 %v4958, %v5150
    %v5152 = vpop.f32.mrf.mxu0
    %v5153 = vadd.f32 %v4958, %v5152
    %5154 = vdwg.mxu0
    %5155 = vmatprep.subr.bf16.mxu0 0
    %5156 = vmatpush1.bf16.msra.mxu0 0
    %5157 = vmatprep.subr.bf16.mxu0 0
    %5158 = vmatpush1.bf16.msra.mxu0 0
    %5159 = vmatprep.subr.bf16.mxu0 0
    %5160 = vmatpush1.bf16.msra.mxu0 0
    %5161 = vmatprep.subr.bf16.mxu0 0
    %5162 = vmatpush1.bf16.msra.mxu0 0
    %5163 = vmatprep.subr.bf16.mxu0 0
    %5164 = vmatpush1.bf16.msra.mxu0 0
    %5165 = vmatprep.subr.bf16.mxu0 0
    %5166 = vmatpush1.bf16.msra.mxu0 0
    %5167 = vmatprep.subr.bf16.mxu0 %v4927
    %5168 = vmatpush1.bf16.msra.mxu0 %v4926
    %5169 = vmatprep.subr.bf16.mxu0 %v4923
    %5170 = vmatpush1.bf16.msra.mxu0 %v4922
    %5171 = vmatprep.subr.bf16.mxu0 0
    %5172 = vmatpush2.bf16.msra.mxu0 0
    %5173 = vmatprep.subr.bf16.mxu0 0
    %5174 = vmatpush2.bf16.msra.mxu0 0
    %5175 = vmatprep.subr.bf16.mxu0 0
    %5176 = vmatpush2.bf16.msra.mxu0 0
    %5177 = vmatprep.subr.bf16.mxu0 0
    %5178 = vmatpush2.bf16.msra.mxu0 0
    %5179 = vmatprep.subr.bf16.mxu0 0
    %5180 = vmatpush2.bf16.msra.mxu0 0
    %5181 = vmatprep.subr.bf16.mxu0 0
    %5182 = vmatpush2.bf16.msra.mxu0 0
    %5183 = vmatprep.subr.bf16.mxu0 0
    %5184 = vmatpush2.bf16.msra.mxu0 0
    %5185 = vmatprep.subr.bf16.mxu0 0
    %5186 = vmatpush2.bf16.msra.mxu0 0
    %5187 = vmatprep.mubr.bf16.mxu0 0
    %5188 = vmatmul.mubr.bf16.gmra.mxu0 %v4991
    %v5189 = vpop.f32.mrf.mxu0
    %v5190 = vadd.f32 %v5137, %v5189
    %v5191 = vpop.f32.mrf.mxu0
    %v5192 = vadd.f32 %v5139, %v5191
    %v5193 = vpop.f32.mrf.mxu0
    %v5194 = vadd.f32 %v5141, %v5193
    %v5195 = vpop.f32.mrf.mxu0
    %v5196 = vadd.f32 %v5143, %v5195
    %5197 = vmatprep.mubr.bf16.mxu0 0
    %5198 = vmatmul.mubr.bf16.gmra.mxu0 %v4994
    %v5199 = vpop.f32.mrf.mxu0
    %v5200 = vadd.f32 %v5147, %v5199
    %v5201 = vpop.f32.mrf.mxu0
    %v5202 = vadd.f32 %v5149, %v5201
    %v5203 = vpop.f32.mrf.mxu0
    %v5204 = vadd.f32 %v5151, %v5203
    %v5205 = vpop.f32.mrf.mxu0
    %v5206 = vadd.f32 %v5153, %v5205
    %5207 = vdwg.mxu0
    %v5208 = vmax.f32 %v5084, 0.0
    %v5209 = vmax.f32 %v5086, 0.0
    %v5210 = vmax.f32 %v5190, 0.0
    %v5211 = vmax.f32 %v5192, 0.0
    %v5212 = vmax.f32 %v5088, 0.0
    %v5213 = vmax.f32 %v5090, 0.0
    %v5214 = vmax.f32 %v5194, 0.0
    %v5215 = vmax.f32 %v5196, 0.0
    %v5216 = vmax.f32 %v5094, 0.0
    %v5217 = vmax.f32 %v5096, 0.0
    %v5218 = vmax.f32 %v5200, 0.0
    %v5219 = vmax.f32 %v5202, 0.0
    %v5220 = vmax.f32 %v5098, 0.0
    %v5221 = vmax.f32 %v5100, 0.0
    %v5222 = vmax.f32 %v5204, 0.0
    %v5223 = vmax.f32 %v5206, 0.0
    %v5224 = vld [vmem:[%s35] sm:$0xff]
    %v5225 = vld [vmem:[%s35 + $0x8] sm:$0xff]
    %v5226 = vld [vmem:[%s35 + $0x10] sm:$0xff]
    %v5227 = vld [vmem:[%s35 + $0x18] sm:$0xff]
    %5229 = vset.pattern.permute.xlu0 0
    %5230 = vperm.xlu0 %5229, %v5224
    %v5231 = vpop.permute.xlu0 %5230
    %5234 = vset.pattern.permute.xlu0 0
    %5235 = vperm.xlu0 %5234, %v5225
    %v5236 = vpop.permute.xlu0 %5235
    %5239 = vset.pattern.permute.xlu0 0
    %5240 = vperm.xlu0 %5239, %v5226
    %v5241 = vpop.permute.xlu0 %5240
    %5244 = vset.pattern.permute.xlu0 0
    %5245 = vperm.xlu0 %5244, %v5227
    %v5246 = vpop.permute.xlu0 %5245
    %v5248 = vmul.f32 %v5208, %v5231
    %v5249 = vmul.f32 %v5209, %v5231
    %v5250 = vmul.f32 %v5210, %v5231
    %v5251 = vmul.f32 %v5211, %v5231
    %v5252 = vmul.f32 %v5212, %v5236
    %v5253 = vmul.f32 %v5213, %v5236
    %v5254 = vmul.f32 %v5214, %v5236
    %v5255 = vmul.f32 %v5215, %v5236
    %v5256 = vmul.f32 %v5216, %v5241
    %v5257 = vmul.f32 %v5217, %v5241
    %v5258 = vmul.f32 %v5218, %v5241
    %v5259 = vmul.f32 %v5219, %v5241
    %v5260 = vmul.f32 %v5220, %v5246
    %v5261 = vmul.f32 %v5221, %v5246
    %v5262 = vmul.f32 %v5222, %v5246
    %v5263 = vmul.f32 %v5223, %v5246
    %v5264 = vld [vmem:[%s37] sm:$0xff]
    %v5265 = vld [vmem:[%s37 + $0x8] sm:$0xff]
    %v5266 = vld [vmem:[%s37 + $0x10] sm:$0xff]
    %v5267 = vld [vmem:[%s37 + $0x18] sm:$0xff]
    %5269 = vset.pattern.permute.xlu0 0
    %5270 = vperm.xlu0 %5269, %v5264
    %v5271 = vpop.permute.xlu0 %5270
    %5274 = vset.pattern.permute.xlu0 0
    %5275 = vperm.xlu0 %5274, %v5265
    %v5276 = vpop.permute.xlu0 %5275
    %5279 = vset.pattern.permute.xlu0 0
    %5280 = vperm.xlu0 %5279, %v5266
    %v5281 = vpop.permute.xlu0 %5280
    %5284 = vset.pattern.permute.xlu0 0
    %5285 = vperm.xlu0 %5284, %v5267
    %v5286 = vpop.permute.xlu0 %5285
    %v5288 = vadd.f32 %v5248, %v5271
    %v5289 = vadd.f32 %v5249, %v5271
    %v5290 = vadd.f32 %v5250, %v5271
    %v5291 = vadd.f32 %v5251, %v5271
    %v5292 = vadd.f32 %v5252, %v5276
    %v5293 = vadd.f32 %v5253, %v5276
    %v5294 = vadd.f32 %v5254, %v5276
    %v5295 = vadd.f32 %v5255, %v5276
    %v5296 = vadd.f32 %v5256, %v5281
    %v5297 = vadd.f32 %v5257, %v5281
    %v5298 = vadd.f32 %v5258, %v5281
    %v5299 = vadd.f32 %v5259, %v5281
    %v5300 = vadd.f32 %v5260, %v5286
    %v5301 = vadd.f32 %v5261, %v5286
    %v5302 = vadd.f32 %v5262, %v5286
    %v5303 = vadd.f32 %v5263, %v5286
    %5304 = vrot.lane.b32.xlu0 %v5288, 17
    %v5305 = vpop.permute.xlu0 %5304
    %5306 = vrot.lane.b32.xlu0 %v5292, 17
    %v5307 = vpop.permute.xlu0 %5306
    %5308 = vrot.lane.b32.xlu0 %v5296, 17
    %v5309 = vpop.permute.xlu0 %5308
    %5310 = vrot.lane.b32.xlu0 %v5300, 17
    %v5311 = vpop.permute.xlu0 %5310
    %5312 = vrot.lane.b32.xlu0 %v5289, 17
    %v5313 = vpop.permute.xlu0 %5312
    %5314 = vrot.lane.b32.xlu0 %v5293, 17
    %v5315 = vpop.permute.xlu0 %5314
    %5316 = vrot.lane.b32.xlu0 %v5297, 17
    %v5317 = vpop.permute.xlu0 %5316
    %5318 = vrot.lane.b32.xlu0 %v5301, 17
    %v5319 = vpop.permute.xlu0 %5318
    %5320 = vrot.lane.b32.xlu0 %v5290, 17
    %v5321 = vpop.permute.xlu0 %5320
    %5322 = vrot.lane.b32.xlu0 %v5294, 17
    %v5323 = vpop.permute.xlu0 %5322
    %5324 = vrot.lane.b32.xlu0 %v5298, 17
    %v5325 = vpop.permute.xlu0 %5324
    %5326 = vrot.lane.b32.xlu0 %v5302, 17
    %v5327 = vpop.permute.xlu0 %5326
    %5328 = vrot.lane.b32.xlu0 %v5291, 17
    %v5329 = vpop.permute.xlu0 %5328
    %5330 = vrot.lane.b32.xlu0 %v5295, 17
    %v5331 = vpop.permute.xlu0 %5330
    %5332 = vrot.lane.b32.xlu0 %v5299, 17
    %v5333 = vpop.permute.xlu0 %5332
    %5334 = vrot.lane.b32.xlu0 %v5303, 17
    %v5335 = vpop.permute.xlu0 %5334
    %v5336 = vsel %vm3626, %v5321, %v5329
    %v5337 = vsel %vm3626, %v5323, %v5331
    %v5338 = vsel %vm3626, %v5325, %v5333
    %v5339 = vsel %vm3626, %v5327, %v5335
    %v5340 = vsel %vm3626, %v5313, %v5321
    %v5341 = vsel %vm3626, %v5315, %v5323
    %v5342 = vsel %vm3626, %v5317, %v5325
    %v5343 = vsel %vm3626, %v5319, %v5327
    %v5344 = vsel %vm3626, %v5305, %v5313
    %v5345 = vsel %vm3626, %v5307, %v5315
    %v5346 = vsel %vm3626, %v5309, %v5317
    %v5347 = vsel %vm3626, %v5311, %v5319
    %v5348 = vsel %vm3626, %v5329, %v5305
    %v5349 = vsel %vm3626, %v5331, %v5307
    %v5350 = vsel %vm3626, %v5333, %v5309
    %v5351 = vsel %vm3626, %v5335, %v5311
    %v5352 = vmul.f32 %v5348, %v3635
    %v5353 = vmul.f32 %v5344, %v3639
    %v5354 = vmul.f32 %v5340, %v3643
    %v5355 = vmul.f32 %v5336, %v3647
    %v5356 = vmul.f32 %v5349, %v3635
    %v5357 = vmul.f32 %v5345, %v3639
    %v5358 = vmul.f32 %v5341, %v3643
    %v5359 = vmul.f32 %v5337, %v3647
    %v5360 = vmul.f32 %v5350, %v3635
    %v5361 = vmul.f32 %v5346, %v3639
    %v5362 = vmul.f32 %v5342, %v3643
    %v5363 = vmul.f32 %v5338, %v3647
    %v5364 = vmul.f32 %v5351, %v3635
    %v5365 = vmul.f32 %v5347, %v3639
    %v5366 = vmul.f32 %v5343, %v3643
    %v5367 = vmul.f32 %v5339, %v3647
    %v5368 = vpack.c.bf16 %v5356, %v5352
    %v5369 = vpack.c.bf16 %v5357, %v5353
    %v5370 = vpack.c.bf16 %v5358, %v5354
    %v5371 = vpack.c.bf16 %v5359, %v5355
    %v5372 = vpack.c.bf16 %v5364, %v5360
    %v5373 = vpack.c.bf16 %v5365, %v5361
    %v5374 = vpack.c.bf16 %v5366, %v5362
    %v5375 = vpack.c.bf16 %v5367, %v5363
    %5376 = vrot.lane.b32.xlu0 %v5288, 16
    %v5377 = vpop.permute.xlu0 %5376
    %5378 = vrot.lane.b32.xlu0 %v5292, 16
    %v5379 = vpop.permute.xlu0 %5378
    %5380 = vrot.lane.b32.xlu0 %v5296, 16
    %v5381 = vpop.permute.xlu0 %5380
    %5382 = vrot.lane.b32.xlu0 %v5300, 16
    %v5383 = vpop.permute.xlu0 %5382
    %5384 = vrot.lane.b32.xlu0 %v5289, 16
    %v5385 = vpop.permute.xlu0 %5384
    %5386 = vrot.lane.b32.xlu0 %v5293, 16
    %v5387 = vpop.permute.xlu0 %5386
    %5388 = vrot.lane.b32.xlu0 %v5297, 16
    %v5389 = vpop.permute.xlu0 %5388
    %5390 = vrot.lane.b32.xlu0 %v5301, 16
    %v5391 = vpop.permute.xlu0 %5390
    %5392 = vrot.lane.b32.xlu0 %v5290, 16
    %v5393 = vpop.permute.xlu0 %5392
    %5394 = vrot.lane.b32.xlu0 %v5294, 16
    %v5395 = vpop.permute.xlu0 %5394
    %5396 = vrot.lane.b32.xlu0 %v5298, 16
    %v5397 = vpop.permute.xlu0 %5396
    %5398 = vrot.lane.b32.xlu0 %v5302, 16
    %v5399 = vpop.permute.xlu0 %5398
    %5400 = vrot.lane.b32.xlu0 %v5291, 16
    %v5401 = vpop.permute.xlu0 %5400
    %5402 = vrot.lane.b32.xlu0 %v5295, 16
    %v5403 = vpop.permute.xlu0 %5402
    %5404 = vrot.lane.b32.xlu0 %v5299, 16
    %v5405 = vpop.permute.xlu0 %5404
    %5406 = vrot.lane.b32.xlu0 %v5303, 16
    %v5407 = vpop.permute.xlu0 %5406
    %v5408 = vsel %vm3668, %v5393, %v5401
    %v5409 = vsel %vm3668, %v5395, %v5403
    %v5410 = vsel %vm3668, %v5397, %v5405
    %v5411 = vsel %vm3668, %v5399, %v5407
    %v5412 = vsel %vm3668, %v5385, %v5393
    %v5413 = vsel %vm3668, %v5387, %v5395
    %v5414 = vsel %vm3668, %v5389, %v5397
    %v5415 = vsel %vm3668, %v5391, %v5399
    %v5416 = vsel %vm3668, %v5377, %v5385
    %v5417 = vsel %vm3668, %v5379, %v5387
    %v5418 = vsel %vm3668, %v5381, %v5389
    %v5419 = vsel %vm3668, %v5383, %v5391
    %v5420 = vsel %vm3668, %v5401, %v5377
    %v5421 = vsel %vm3668, %v5403, %v5379
    %v5422 = vsel %vm3668, %v5405, %v5381
    %v5423 = vsel %vm3668, %v5407, %v5383
    %v5424 = vmul.f32 %v5420, %v3677
    %v5425 = vmul.f32 %v5416, %v3681
    %v5426 = vmul.f32 %v5412, %v3685
    %v5427 = vmul.f32 %v5408, %v3689
    %v5428 = vmul.f32 %v5421, %v3677
    %v5429 = vmul.f32 %v5417, %v3681
    %v5430 = vmul.f32 %v5413, %v3685
    %v5431 = vmul.f32 %v5409, %v3689
    %v5432 = vmul.f32 %v5422, %v3677
    %v5433 = vmul.f32 %v5418, %v3681
    %v5434 = vmul.f32 %v5414, %v3685
    %v5435 = vmul.f32 %v5410, %v3689
    %v5436 = vmul.f32 %v5423, %v3677
    %v5437 = vmul.f32 %v5419, %v3681
    %v5438 = vmul.f32 %v5415, %v3685
    %v5439 = vmul.f32 %v5411, %v3689
    %v5440 = vpack.c.bf16 %v5428, %v5424
    %v5441 = vpack.c.bf16 %v5429, %v5425
    %v5442 = vpack.c.bf16 %v5430, %v5426
    %v5443 = vpack.c.bf16 %v5431, %v5427
    %v5444 = vpack.c.bf16 %v5436, %v5432
    %v5445 = vpack.c.bf16 %v5437, %v5433
    %v5446 = vpack.c.bf16 %v5438, %v5434
    %v5447 = vpack.c.bf16 %v5439, %v5435
    %5448 = vrot.lane.b32.xlu0 %v5288, 15
    %v5449 = vpop.permute.xlu0 %5448
    %5450 = vrot.lane.b32.xlu0 %v5292, 15
    %v5451 = vpop.permute.xlu0 %5450
    %5452 = vrot.lane.b32.xlu0 %v5296, 15
    %v5453 = vpop.permute.xlu0 %5452
    %5454 = vrot.lane.b32.xlu0 %v5300, 15
    %v5455 = vpop.permute.xlu0 %5454
    %5456 = vrot.lane.b32.xlu0 %v5289, 15
    %v5457 = vpop.permute.xlu0 %5456
    %5458 = vrot.lane.b32.xlu0 %v5293, 15
    %v5459 = vpop.permute.xlu0 %5458
    %5460 = vrot.lane.b32.xlu0 %v5297, 15
    %v5461 = vpop.permute.xlu0 %5460
    %5462 = vrot.lane.b32.xlu0 %v5301, 15
    %v5463 = vpop.permute.xlu0 %5462
    %5464 = vrot.lane.b32.xlu0 %v5290, 15
    %v5465 = vpop.permute.xlu0 %5464
    %5466 = vrot.lane.b32.xlu0 %v5294, 15
    %v5467 = vpop.permute.xlu0 %5466
    %5468 = vrot.lane.b32.xlu0 %v5298, 15
    %v5469 = vpop.permute.xlu0 %5468
    %5470 = vrot.lane.b32.xlu0 %v5302, 15
    %v5471 = vpop.permute.xlu0 %5470
    %5472 = vrot.lane.b32.xlu0 %v5291, 15
    %v5473 = vpop.permute.xlu0 %5472
    %5474 = vrot.lane.b32.xlu0 %v5295, 15
    %v5475 = vpop.permute.xlu0 %5474
    %5476 = vrot.lane.b32.xlu0 %v5299, 15
    %v5477 = vpop.permute.xlu0 %5476
    %5478 = vrot.lane.b32.xlu0 %v5303, 15
    %v5479 = vpop.permute.xlu0 %5478
    %v5480 = vsel %vm3710, %v5465, %v5473
    %v5481 = vsel %vm3710, %v5467, %v5475
    %v5482 = vsel %vm3710, %v5469, %v5477
    %v5483 = vsel %vm3710, %v5471, %v5479
    %v5484 = vsel %vm3710, %v5457, %v5465
    %v5485 = vsel %vm3710, %v5459, %v5467
    %v5486 = vsel %vm3710, %v5461, %v5469
    %v5487 = vsel %vm3710, %v5463, %v5471
    %v5488 = vsel %vm3710, %v5449, %v5457
    %v5489 = vsel %vm3710, %v5451, %v5459
    %v5490 = vsel %vm3710, %v5453, %v5461
    %v5491 = vsel %vm3710, %v5455, %v5463
    %v5492 = vsel %vm3710, %v5473, %v5449
    %v5493 = vsel %vm3710, %v5475, %v5451
    %v5494 = vsel %vm3710, %v5477, %v5453
    %v5495 = vsel %vm3710, %v5479, %v5455
    %v5496 = vmul.f32 %v5492, %v3719
    %v5497 = vmul.f32 %v5488, %v3723
    %v5498 = vmul.f32 %v5484, %v3727
    %v5499 = vmul.f32 %v5480, %v3731
    %v5500 = vmul.f32 %v5493, %v3719
    %v5501 = vmul.f32 %v5489, %v3723
    %v5502 = vmul.f32 %v5485, %v3727
    %v5503 = vmul.f32 %v5481, %v3731
    %v5504 = vmul.f32 %v5494, %v3719
    %v5505 = vmul.f32 %v5490, %v3723
    %v5506 = vmul.f32 %v5486, %v3727
    %v5507 = vmul.f32 %v5482, %v3731
    %v5508 = vmul.f32 %v5495, %v3719
    %v5509 = vmul.f32 %v5491, %v3723
    %v5510 = vmul.f32 %v5487, %v3727
    %v5511 = vmul.f32 %v5483, %v3731
    %v5512 = vpack.c.bf16 %v5500, %v5496
    %v5513 = vpack.c.bf16 %v5501, %v5497
    %v5514 = vpack.c.bf16 %v5502, %v5498
    %v5515 = vpack.c.bf16 %v5503, %v5499
    %v5516 = vpack.c.bf16 %v5508, %v5504
    %v5517 = vpack.c.bf16 %v5509, %v5505
    %v5518 = vpack.c.bf16 %v5510, %v5506
    %v5519 = vpack.c.bf16 %v5511, %v5507
    %5520 = vrot.lane.b32.xlu0 %v5288, 1
    %v5521 = vpop.permute.xlu0 %5520
    %5522 = vrot.lane.b32.xlu0 %v5292, 1
    %v5523 = vpop.permute.xlu0 %5522
    %5524 = vrot.lane.b32.xlu0 %v5296, 1
    %v5525 = vpop.permute.xlu0 %5524
    %5526 = vrot.lane.b32.xlu0 %v5300, 1
    %v5527 = vpop.permute.xlu0 %5526
    %5528 = vrot.lane.b32.xlu0 %v5289, 1
    %v5529 = vpop.permute.xlu0 %5528
    %5530 = vrot.lane.b32.xlu0 %v5293, 1
    %v5531 = vpop.permute.xlu0 %5530
    %5532 = vrot.lane.b32.xlu0 %v5297, 1
    %v5533 = vpop.permute.xlu0 %5532
    %5534 = vrot.lane.b32.xlu0 %v5301, 1
    %v5535 = vpop.permute.xlu0 %5534
    %5536 = vrot.lane.b32.xlu0 %v5290, 1
    %v5537 = vpop.permute.xlu0 %5536
    %5538 = vrot.lane.b32.xlu0 %v5294, 1
    %v5539 = vpop.permute.xlu0 %5538
    %5540 = vrot.lane.b32.xlu0 %v5298, 1
    %v5541 = vpop.permute.xlu0 %5540
    %5542 = vrot.lane.b32.xlu0 %v5302, 1
    %v5543 = vpop.permute.xlu0 %5542
    %5544 = vrot.lane.b32.xlu0 %v5291, 1
    %v5545 = vpop.permute.xlu0 %5544
    %5546 = vrot.lane.b32.xlu0 %v5295, 1
    %v5547 = vpop.permute.xlu0 %5546
    %5548 = vrot.lane.b32.xlu0 %v5299, 1
    %v5549 = vpop.permute.xlu0 %5548
    %5550 = vrot.lane.b32.xlu0 %v5303, 1
    %v5551 = vpop.permute.xlu0 %5550
    %v5552 = vsel %vm3752, %v5537, %v5545
    %v5553 = vsel %vm3752, %v5539, %v5547
    %v5554 = vsel %vm3752, %v5541, %v5549
    %v5555 = vsel %vm3752, %v5543, %v5551
    %v5556 = vsel %vm3752, %v5529, %v5537
    %v5557 = vsel %vm3752, %v5531, %v5539
    %v5558 = vsel %vm3752, %v5533, %v5541
    %v5559 = vsel %vm3752, %v5535, %v5543
    %v5560 = vsel %vm3752, %v5521, %v5529
    %v5561 = vsel %vm3752, %v5523, %v5531
    %v5562 = vsel %vm3752, %v5525, %v5533
    %v5563 = vsel %vm3752, %v5527, %v5535
    %v5564 = vsel %vm3752, %v5545, %v5521
    %v5565 = vsel %vm3752, %v5547, %v5523
    %v5566 = vsel %vm3752, %v5549, %v5525
    %v5567 = vsel %vm3752, %v5551, %v5527
    %v5568 = vmul.f32 %v5564, %v3761
    %v5569 = vmul.f32 %v5560, %v3765
    %v5570 = vmul.f32 %v5556, %v3769
    %v5571 = vmul.f32 %v5552, %v3773
    %v5572 = vmul.f32 %v5565, %v3761
    %v5573 = vmul.f32 %v5561, %v3765
    %v5574 = vmul.f32 %v5557, %v3769
    %v5575 = vmul.f32 %v5553, %v3773
    %v5576 = vmul.f32 %v5566, %v3761
    %v5577 = vmul.f32 %v5562, %v3765
    %v5578 = vmul.f32 %v5558, %v3769
    %v5579 = vmul.f32 %v5554, %v3773
    %v5580 = vmul.f32 %v5567, %v3761
    %v5581 = vmul.f32 %v5563, %v3765
    %v5582 = vmul.f32 %v5559, %v3769
    %v5583 = vmul.f32 %v5555, %v3773
    %v5584 = vpack.c.bf16 %v5572, %v5568
    %v5585 = vpack.c.bf16 %v5573, %v5569
    %v5586 = vpack.c.bf16 %v5574, %v5570
    %v5587 = vpack.c.bf16 %v5575, %v5571
    %v5588 = vpack.c.bf16 %v5580, %v5576
    %v5589 = vpack.c.bf16 %v5581, %v5577
    %v5590 = vpack.c.bf16 %v5582, %v5578
    %v5591 = vpack.c.bf16 %v5583, %v5579
    %v5592 = vpack.c.bf16 %v5292, %v5288
    %v5593 = vpack.c.bf16 %v5293, %v5289
    %v5594 = vpack.c.bf16 %v5294, %v5290
    %v5595 = vpack.c.bf16 %v5295, %v5291
    %v5596 = vpack.c.bf16 %v5300, %v5296
    %v5597 = vpack.c.bf16 %v5301, %v5297
    %v5598 = vpack.c.bf16 %v5302, %v5298
    %v5599 = vpack.c.bf16 %v5303, %v5299
    %5600 = vrot.lane.b32.xlu0 %v5288, 127
    %v5601 = vpop.permute.xlu0 %5600
    %5602 = vrot.lane.b32.xlu0 %v5292, 127
    %v5603 = vpop.permute.xlu0 %5602
    %5604 = vrot.lane.b32.xlu0 %v5296, 127
    %v5605 = vpop.permute.xlu0 %5604
    %5606 = vrot.lane.b32.xlu0 %v5300, 127
    %v5607 = vpop.permute.xlu0 %5606
    %5608 = vrot.lane.b32.xlu0 %v5289, 127
    %v5609 = vpop.permute.xlu0 %5608
    %5610 = vrot.lane.b32.xlu0 %v5293, 127
    %v5611 = vpop.permute.xlu0 %5610
    %5612 = vrot.lane.b32.xlu0 %v5297, 127
    %v5613 = vpop.permute.xlu0 %5612
    %5614 = vrot.lane.b32.xlu0 %v5301, 127
    %v5615 = vpop.permute.xlu0 %5614
    %5616 = vrot.lane.b32.xlu0 %v5290, 127
    %v5617 = vpop.permute.xlu0 %5616
    %5618 = vrot.lane.b32.xlu0 %v5294, 127
    %v5619 = vpop.permute.xlu0 %5618
    %5620 = vrot.lane.b32.xlu0 %v5298, 127
    %v5621 = vpop.permute.xlu0 %5620
    %5622 = vrot.lane.b32.xlu0 %v5302, 127
    %v5623 = vpop.permute.xlu0 %5622
    %5624 = vrot.lane.b32.xlu0 %v5291, 127
    %v5625 = vpop.permute.xlu0 %5624
    %5626 = vrot.lane.b32.xlu0 %v5295, 127
    %v5627 = vpop.permute.xlu0 %5626
    %5628 = vrot.lane.b32.xlu0 %v5299, 127
    %v5629 = vpop.permute.xlu0 %5628
    %5630 = vrot.lane.b32.xlu0 %v5303, 127
    %v5631 = vpop.permute.xlu0 %5630
    %v5632 = vsel %vm3798, %v5617, %v5625
    %v5633 = vsel %vm3798, %v5619, %v5627
    %v5634 = vsel %vm3798, %v5621, %v5629
    %v5635 = vsel %vm3798, %v5623, %v5631
    %v5636 = vsel %vm3798, %v5609, %v5617
    %v5637 = vsel %vm3798, %v5611, %v5619
    %v5638 = vsel %vm3798, %v5613, %v5621
    %v5639 = vsel %vm3798, %v5615, %v5623
    %v5640 = vsel %vm3798, %v5601, %v5609
    %v5641 = vsel %vm3798, %v5603, %v5611
    %v5642 = vsel %vm3798, %v5605, %v5613
    %v5643 = vsel %vm3798, %v5607, %v5615
    %v5644 = vsel %vm3798, %v5625, %v5601
    %v5645 = vsel %vm3798, %v5627, %v5603
    %v5646 = vsel %vm3798, %v5629, %v5605
    %v5647 = vsel %vm3798, %v5631, %v5607
    %v5648 = vmul.f32 %v5640, %v3807
    %v5649 = vmul.f32 %v5636, %v3811
    %v5650 = vmul.f32 %v5632, %v3815
    %v5651 = vmul.f32 %v5644, %v3819
    %v5652 = vmul.f32 %v5641, %v3807
    %v5653 = vmul.f32 %v5637, %v3811
    %v5654 = vmul.f32 %v5633, %v3815
    %v5655 = vmul.f32 %v5645, %v3819
    %v5656 = vmul.f32 %v5642, %v3807
    %v5657 = vmul.f32 %v5638, %v3811
    %v5658 = vmul.f32 %v5634, %v3815
    %v5659 = vmul.f32 %v5646, %v3819
    %v5660 = vmul.f32 %v5643, %v3807
    %v5661 = vmul.f32 %v5639, %v3811
    %v5662 = vmul.f32 %v5635, %v3815
    %v5663 = vmul.f32 %v5647, %v3819
    %v5664 = vpack.c.bf16 %v5652, %v5648
    %v5665 = vpack.c.bf16 %v5653, %v5649
    %v5666 = vpack.c.bf16 %v5654, %v5650
    %v5667 = vpack.c.bf16 %v5655, %v5651
    %v5668 = vpack.c.bf16 %v5660, %v5656
    %v5669 = vpack.c.bf16 %v5661, %v5657
    %v5670 = vpack.c.bf16 %v5662, %v5658
    %v5671 = vpack.c.bf16 %v5663, %v5659
    %5672 = vrot.lane.b32.xlu0 %v5288, 113
    %v5673 = vpop.permute.xlu0 %5672
    %5674 = vrot.lane.b32.xlu0 %v5292, 113
    %v5675 = vpop.permute.xlu0 %5674
    %5676 = vrot.lane.b32.xlu0 %v5296, 113
    %v5677 = vpop.permute.xlu0 %5676
    %5678 = vrot.lane.b32.xlu0 %v5300, 113
    %v5679 = vpop.permute.xlu0 %5678
    %5680 = vrot.lane.b32.xlu0 %v5289, 113
    %v5681 = vpop.permute.xlu0 %5680
    %5682 = vrot.lane.b32.xlu0 %v5293, 113
    %v5683 = vpop.permute.xlu0 %5682
    %5684 = vrot.lane.b32.xlu0 %v5297, 113
    %v5685 = vpop.permute.xlu0 %5684
    %5686 = vrot.lane.b32.xlu0 %v5301, 113
    %v5687 = vpop.permute.xlu0 %5686
    %5688 = vrot.lane.b32.xlu0 %v5290, 113
    %v5689 = vpop.permute.xlu0 %5688
    %5690 = vrot.lane.b32.xlu0 %v5294, 113
    %v5691 = vpop.permute.xlu0 %5690
    %5692 = vrot.lane.b32.xlu0 %v5298, 113
    %v5693 = vpop.permute.xlu0 %5692
    %5694 = vrot.lane.b32.xlu0 %v5302, 113
    %v5695 = vpop.permute.xlu0 %5694
    %5696 = vrot.lane.b32.xlu0 %v5291, 113
    %v5697 = vpop.permute.xlu0 %5696
    %5698 = vrot.lane.b32.xlu0 %v5295, 113
    %v5699 = vpop.permute.xlu0 %5698
    %5700 = vrot.lane.b32.xlu0 %v5299, 113
    %v5701 = vpop.permute.xlu0 %5700
    %5702 = vrot.lane.b32.xlu0 %v5303, 113
    %v5703 = vpop.permute.xlu0 %5702
    %v5704 = vsel %vm3840, %v5689, %v5697
    %v5705 = vsel %vm3840, %v5691, %v5699
    %v5706 = vsel %vm3840, %v5693, %v5701
    %v5707 = vsel %vm3840, %v5695, %v5703
    %v5708 = vsel %vm3840, %v5681, %v5689
    %v5709 = vsel %vm3840, %v5683, %v5691
    %v5710 = vsel %vm3840, %v5685, %v5693
    %v5711 = vsel %vm3840, %v5687, %v5695
    %v5712 = vsel %vm3840, %v5673, %v5681
    %v5713 = vsel %vm3840, %v5675, %v5683
    %v5714 = vsel %vm3840, %v5677, %v5685
    %v5715 = vsel %vm3840, %v5679, %v5687
    %v5716 = vsel %vm3840, %v5697, %v5673
    %v5717 = vsel %vm3840, %v5699, %v5675
    %v5718 = vsel %vm3840, %v5701, %v5677
    %v5719 = vsel %vm3840, %v5703, %v5679
    %v5720 = vmul.f32 %v5712, %v3849
    %v5721 = vmul.f32 %v5708, %v3853
    %v5722 = vmul.f32 %v5704, %v3857
    %v5723 = vmul.f32 %v5716, %v3861
    %v5724 = vmul.f32 %v5713, %v3849
    %v5725 = vmul.f32 %v5709, %v3853
    %v5726 = vmul.f32 %v5705, %v3857
    %v5727 = vmul.f32 %v5717, %v3861
    %v5728 = vmul.f32 %v5714, %v3849
    %v5729 = vmul.f32 %v5710, %v3853
    %v5730 = vmul.f32 %v5706, %v3857
    %v5731 = vmul.f32 %v5718, %v3861
    %v5732 = vmul.f32 %v5715, %v3849
    %v5733 = vmul.f32 %v5711, %v3853
    %v5734 = vmul.f32 %v5707, %v3857
    %v5735 = vmul.f32 %v5719, %v3861
    %v5736 = vpack.c.bf16 %v5724, %v5720
    %v5737 = vpack.c.bf16 %v5725, %v5721
    %v5738 = vpack.c.bf16 %v5726, %v5722
    %v5739 = vpack.c.bf16 %v5727, %v5723
    %v5740 = vpack.c.bf16 %v5732, %v5728
    %v5741 = vpack.c.bf16 %v5733, %v5729
    %v5742 = vpack.c.bf16 %v5734, %v5730
    %v5743 = vpack.c.bf16 %v5735, %v5731
    %5744 = vrot.lane.b32.xlu0 %v5288, 112
    %v5745 = vpop.permute.xlu0 %5744
    %5746 = vrot.lane.b32.xlu0 %v5292, 112
    %v5747 = vpop.permute.xlu0 %5746
    %5748 = vrot.lane.b32.xlu0 %v5296, 112
    %v5749 = vpop.permute.xlu0 %5748
    %5750 = vrot.lane.b32.xlu0 %v5300, 112
    %v5751 = vpop.permute.xlu0 %5750
    %5752 = vrot.lane.b32.xlu0 %v5289, 112
    %v5753 = vpop.permute.xlu0 %5752
    %5754 = vrot.lane.b32.xlu0 %v5293, 112
    %v5755 = vpop.permute.xlu0 %5754
    %5756 = vrot.lane.b32.xlu0 %v5297, 112
    %v5757 = vpop.permute.xlu0 %5756
    %5758 = vrot.lane.b32.xlu0 %v5301, 112
    %v5759 = vpop.permute.xlu0 %5758
    %5760 = vrot.lane.b32.xlu0 %v5290, 112
    %v5761 = vpop.permute.xlu0 %5760
    %5762 = vrot.lane.b32.xlu0 %v5294, 112
    %v5763 = vpop.permute.xlu0 %5762
    %5764 = vrot.lane.b32.xlu0 %v5298, 112
    %v5765 = vpop.permute.xlu0 %5764
    %5766 = vrot.lane.b32.xlu0 %v5302, 112
    %v5767 = vpop.permute.xlu0 %5766
    %5768 = vrot.lane.b32.xlu0 %v5291, 112
    %v5769 = vpop.permute.xlu0 %5768
    %5770 = vrot.lane.b32.xlu0 %v5295, 112
    %v5771 = vpop.permute.xlu0 %5770
    %5772 = vrot.lane.b32.xlu0 %v5299, 112
    %v5773 = vpop.permute.xlu0 %5772
    %5774 = vrot.lane.b32.xlu0 %v5303, 112
    %v5775 = vpop.permute.xlu0 %5774
    %v5776 = vsel %vm3882, %v5761, %v5769
    %v5777 = vsel %vm3882, %v5763, %v5771
    %v5778 = vsel %vm3882, %v5765, %v5773
    %v5779 = vsel %vm3882, %v5767, %v5775
    %v5780 = vsel %vm3882, %v5753, %v5761
    %v5781 = vsel %vm3882, %v5755, %v5763
    %v5782 = vsel %vm3882, %v5757, %v5765
    %v5783 = vsel %vm3882, %v5759, %v5767
    %v5784 = vsel %vm3882, %v5745, %v5753
    %v5785 = vsel %vm3882, %v5747, %v5755
    %v5786 = vsel %vm3882, %v5749, %v5757
    %v5787 = vsel %vm3882, %v5751, %v5759
    %v5788 = vsel %vm3882, %v5769, %v5745
    %v5789 = vsel %vm3882, %v5771, %v5747
    %v5790 = vsel %vm3882, %v5773, %v5749
    %v5791 = vsel %vm3882, %v5775, %v5751
    %v5792 = vmul.f32 %v5784, %v3891
    %v5793 = vmul.f32 %v5780, %v3895
    %v5794 = vmul.f32 %v5776, %v3899
    %v5795 = vmul.f32 %v5788, %v3903
    %v5796 = vmul.f32 %v5785, %v3891
    %v5797 = vmul.f32 %v5781, %v3895
    %v5798 = vmul.f32 %v5777, %v3899
    %v5799 = vmul.f32 %v5789, %v3903
    %v5800 = vmul.f32 %v5786, %v3891
    %v5801 = vmul.f32 %v5782, %v3895
    %v5802 = vmul.f32 %v5778, %v3899
    %v5803 = vmul.f32 %v5790, %v3903
    %v5804 = vmul.f32 %v5787, %v3891
    %v5805 = vmul.f32 %v5783, %v3895
    %v5806 = vmul.f32 %v5779, %v3899
    %v5807 = vmul.f32 %v5791, %v3903
    %v5808 = vpack.c.bf16 %v5796, %v5792
    %v5809 = vpack.c.bf16 %v5797, %v5793
    %v5810 = vpack.c.bf16 %v5798, %v5794
    %v5811 = vpack.c.bf16 %v5799, %v5795
    %v5812 = vpack.c.bf16 %v5804, %v5800
    %v5813 = vpack.c.bf16 %v5805, %v5801
    %v5814 = vpack.c.bf16 %v5806, %v5802
    %v5815 = vpack.c.bf16 %v5807, %v5803
    %5816 = vrot.lane.b32.xlu0 %v5288, 111
    %v5817 = vpop.permute.xlu0 %5816
    %5818 = vrot.lane.b32.xlu0 %v5292, 111
    %v5819 = vpop.permute.xlu0 %5818
    %5820 = vrot.lane.b32.xlu0 %v5296, 111
    %v5821 = vpop.permute.xlu0 %5820
    %5822 = vrot.lane.b32.xlu0 %v5300, 111
    %v5823 = vpop.permute.xlu0 %5822
    %5824 = vrot.lane.b32.xlu0 %v5289, 111
    %v5825 = vpop.permute.xlu0 %5824
    %5826 = vrot.lane.b32.xlu0 %v5293, 111
    %v5827 = vpop.permute.xlu0 %5826
    %5828 = vrot.lane.b32.xlu0 %v5297, 111
    %v5829 = vpop.permute.xlu0 %5828
    %5830 = vrot.lane.b32.xlu0 %v5301, 111
    %v5831 = vpop.permute.xlu0 %5830
    %5832 = vrot.lane.b32.xlu0 %v5290, 111
    %v5833 = vpop.permute.xlu0 %5832
    %5834 = vrot.lane.b32.xlu0 %v5294, 111
    %v5835 = vpop.permute.xlu0 %5834
    %5836 = vrot.lane.b32.xlu0 %v5298, 111
    %v5837 = vpop.permute.xlu0 %5836
    %5838 = vrot.lane.b32.xlu0 %v5302, 111
    %v5839 = vpop.permute.xlu0 %5838
    %5840 = vrot.lane.b32.xlu0 %v5291, 111
    %v5841 = vpop.permute.xlu0 %5840
    %5842 = vrot.lane.b32.xlu0 %v5295, 111
    %v5843 = vpop.permute.xlu0 %5842
    %5844 = vrot.lane.b32.xlu0 %v5299, 111
    %v5845 = vpop.permute.xlu0 %5844
    %5846 = vrot.lane.b32.xlu0 %v5303, 111
    %v5847 = vpop.permute.xlu0 %5846
    %v5848 = vsel %vm3924, %v5833, %v5841
    %v5849 = vsel %vm3924, %v5835, %v5843
    %v5850 = vsel %vm3924, %v5837, %v5845
    %v5851 = vsel %vm3924, %v5839, %v5847
    %v5852 = vsel %vm3924, %v5825, %v5833
    %v5853 = vsel %vm3924, %v5827, %v5835
    %v5854 = vsel %vm3924, %v5829, %v5837
    %v5855 = vsel %vm3924, %v5831, %v5839
    %v5856 = vsel %vm3924, %v5817, %v5825
    %v5857 = vsel %vm3924, %v5819, %v5827
    %v5858 = vsel %vm3924, %v5821, %v5829
    %v5859 = vsel %vm3924, %v5823, %v5831
    %v5860 = vsel %vm3924, %v5841, %v5817
    %v5861 = vsel %vm3924, %v5843, %v5819
    %v5862 = vsel %vm3924, %v5845, %v5821
    %v5863 = vsel %vm3924, %v5847, %v5823
    %v5864 = vmul.f32 %v5856, %v3933
    %v5865 = vmul.f32 %v5852, %v3937
    %v5866 = vmul.f32 %v5848, %v3941
    %v5867 = vmul.f32 %v5860, %v3945
    %v5868 = vmul.f32 %v5857, %v3933
    %v5869 = vmul.f32 %v5853, %v3937
    %v5870 = vmul.f32 %v5849, %v3941
    %v5871 = vmul.f32 %v5861, %v3945
    %v5872 = vmul.f32 %v5858, %v3933
    %v5873 = vmul.f32 %v5854, %v3937
    %v5874 = vmul.f32 %v5850, %v3941
    %v5875 = vmul.f32 %v5862, %v3945
    %v5876 = vmul.f32 %v5859, %v3933
    %v5877 = vmul.f32 %v5855, %v3937
    %v5878 = vmul.f32 %v5851, %v3941
    %v5879 = vmul.f32 %v5863, %v3945
    %v5880 = vpack.c.bf16 %v5868, %v5864
    %v5881 = vpack.c.bf16 %v5869, %v5865
    %v5882 = vpack.c.bf16 %v5870, %v5866
    %v5883 = vpack.c.bf16 %v5871, %v5867
    %v5884 = vpack.c.bf16 %v5876, %v5872
    %v5885 = vpack.c.bf16 %v5877, %v5873
    %v5886 = vpack.c.bf16 %v5878, %v5874
    %v5887 = vpack.c.bf16 %v5879, %v5875
    %v5888 = vld [vmem:[%s39] sm:$0xff]
    %v5889 = vld [vmem:[%s39 + $0x8] sm:$0xf]
    %v5890 = vld [vmem:[%s39 + $0xc] sm:$0xff]
    %v5891 = vld [vmem:[%s39 + $0x14] sm:$0xf]
    %v5892 = vld [vmem:[%s39 + $0x18] sm:$0xff]
    %v5893 = vld [vmem:[%s39 + $0x20] sm:$0xf]
    %v5894 = vld [vmem:[%s39 + $0x24] sm:$0xff]
    %v5895 = vld [vmem:[%s39 + $0x2c] sm:$0xf]
    %v5896 = vld [vmem:[%s41] sm:$0xff]
    %v5897 = vld [vmem:[%s41 + $0x8] sm:$0xff]
    %v5898 = vld [vmem:[%s41 + $0x10] sm:$0xff]
    %v5899 = vld [vmem:[%s41 + $0x18] sm:$0xff]
    %5901 = vset.pattern.permute.xlu0 0
    %5902 = vperm.xlu0 %5901, %v5896
    %v5903 = vpop.permute.xlu0 %5902
    %5906 = vset.pattern.permute.xlu0 0
    %5907 = vperm.xlu0 %5906, %v5897
    %v5908 = vpop.permute.xlu0 %5907
    %5911 = vset.pattern.permute.xlu0 0
    %5912 = vperm.xlu0 %5911, %v5898
    %v5913 = vpop.permute.xlu0 %5912
    %5916 = vset.pattern.permute.xlu0 0
    %5917 = vperm.xlu0 %5916, %v5899
    %v5918 = vpop.permute.xlu0 %5917
    %v5928 = vunpack.c.l.b16 %v5888
    %v5929 = vunpack.c.h.b16 %v5888
    %v5930 = vunpack.c.l.b16 %v5889
    %v5931 = vunpack.c.l.b16 %v5890
    %v5932 = vunpack.c.h.b16 %v5890
    %v5933 = vunpack.c.l.b16 %v5891
    %v5934 = vunpack.c.l.b16 %v5892
    %v5935 = vunpack.c.h.b16 %v5892
    %v5936 = vunpack.c.l.b16 %v5893
    %v5937 = vunpack.c.l.b16 %v5894
    %v5938 = vunpack.c.h.b16 %v5894
    %v5939 = vunpack.c.l.b16 %v5895
    %v5940 = vpack.c.b16 %v5931, %v5928
    %v5941 = vpack.c.b16 %v5932, %v5929
    %v5942 = vpack.c.b16 %v5933, %v5930
    %v5943 = vpack.c.b16 %v5937, %v5934
    %v5944 = vpack.c.b16 %v5938, %v5935
    %v5945 = vpack.c.b16 %v5939, %v5936
    %v5951 = vsel %vm3232, %v5942, 0
    %v5954 = vsel %vm3232, %v5945, 0
    %5956 = vmatprep.subr.bf16.mxu0 %v5589
    %5957 = vmatpush1.bf16.msra.mxu0 %v5588
    %5958 = vmatprep.subr.bf16.mxu0 %v5585
    %5959 = vmatpush1.bf16.msra.mxu0 %v5584
    %5960 = vmatprep.subr.bf16.mxu0 %v5517
    %5961 = vmatpush1.bf16.msra.mxu0 %v5516
    %5962 = vmatprep.subr.bf16.mxu0 %v5513
    %5963 = vmatpush1.bf16.msra.mxu0 %v5512
    %5964 = vmatprep.subr.bf16.mxu0 %v5445
    %5965 = vmatpush1.bf16.msra.mxu0 %v5444
    %5966 = vmatprep.subr.bf16.mxu0 %v5441
    %5967 = vmatpush1.bf16.msra.mxu0 %v5440
    %5968 = vmatprep.subr.bf16.mxu0 %v5373
    %5969 = vmatpush1.bf16.msra.mxu0 %v5372
    %5970 = vmatprep.subr.bf16.mxu0 %v5369
    %5971 = vmatpush1.bf16.msra.mxu0 %v5368
    %5972 = vmatprep.subr.bf16.mxu0 %v5813
    %5973 = vmatpush2.bf16.msra.mxu0 %v5812
    %5974 = vmatprep.subr.bf16.mxu0 %v5809
    %5975 = vmatpush2.bf16.msra.mxu0 %v5808
    %5976 = vmatprep.subr.bf16.mxu0 %v5741
    %5977 = vmatpush2.bf16.msra.mxu0 %v5740
    %5978 = vmatprep.subr.bf16.mxu0 %v5737
    %5979 = vmatpush2.bf16.msra.mxu0 %v5736
    %5980 = vmatprep.subr.bf16.mxu0 %v5669
    %5981 = vmatpush2.bf16.msra.mxu0 %v5668
    %5982 = vmatprep.subr.bf16.mxu0 %v5665
    %5983 = vmatpush2.bf16.msra.mxu0 %v5664
    %5984 = vmatprep.subr.bf16.mxu0 %v5597
    %5985 = vmatpush2.bf16.msra.mxu0 %v5596
    %5986 = vmatprep.subr.bf16.mxu0 %v5593
    %5987 = vmatpush2.bf16.msra.mxu0 %v5592
    %5988 = vmatprep.mubr.bf16.mxu0 %v5941
    %5989 = vmatmul.mubr.bf16.gmra.mxu0 %v5940
    %v5990 = vpop.f32.mrf.mxu0
    %v5991 = vadd.f32 %v5903, %v5990
    %v5992 = vpop.f32.mrf.mxu0
    %v5993 = vadd.f32 %v5903, %v5992
    %v5994 = vpop.f32.mrf.mxu0
    %v5995 = vadd.f32 %v5908, %v5994
    %v5996 = vpop.f32.mrf.mxu0
    %v5997 = vadd.f32 %v5908, %v5996
    %5998 = vmatprep.mubr.bf16.mxu0 %v5944
    %5999 = vmatmul.mubr.bf16.gmra.mxu0 %v5943
    %v6000 = vpop.f32.mrf.mxu0
    %v6001 = vadd.f32 %v5913, %v6000
    %v6002 = vpop.f32.mrf.mxu0
    %v6003 = vadd.f32 %v5913, %v6002
    %v6004 = vpop.f32.mrf.mxu0
    %v6005 = vadd.f32 %v5918, %v6004
    %v6006 = vpop.f32.mrf.mxu0
    %v6007 = vadd.f32 %v5918, %v6006
    %6008 = vdwg.mxu0
    %6009 = vmatprep.subr.bf16.mxu0 0
    %6010 = vmatpush1.bf16.msra.mxu0 0
    %6011 = vmatprep.subr.bf16.mxu0 0
    %6012 = vmatpush1.bf16.msra.mxu0 0
    %6013 = vmatprep.subr.bf16.mxu0 0
    %6014 = vmatpush1.bf16.msra.mxu0 0
    %6015 = vmatprep.subr.bf16.mxu0 0
    %6016 = vmatpush1.bf16.msra.mxu0 0
    %6017 = vmatprep.subr.bf16.mxu0 0
    %6018 = vmatpush1.bf16.msra.mxu0 0
    %6019 = vmatprep.subr.bf16.mxu0 0
    %6020 = vmatpush1.bf16.msra.mxu0 0
    %6021 = vmatprep.subr.bf16.mxu0 %v5885
    %6022 = vmatpush1.bf16.msra.mxu0 %v5884
    %6023 = vmatprep.subr.bf16.mxu0 %v5881
    %6024 = vmatpush1.bf16.msra.mxu0 %v5880
    %6025 = vmatprep.subr.bf16.mxu0 0
    %6026 = vmatpush2.bf16.msra.mxu0 0
    %6027 = vmatprep.subr.bf16.mxu0 0
    %6028 = vmatpush2.bf16.msra.mxu0 0
    %6029 = vmatprep.subr.bf16.mxu0 0
    %6030 = vmatpush2.bf16.msra.mxu0 0
    %6031 = vmatprep.subr.bf16.mxu0 0
    %6032 = vmatpush2.bf16.msra.mxu0 0
    %6033 = vmatprep.subr.bf16.mxu0 0
    %6034 = vmatpush2.bf16.msra.mxu0 0
    %6035 = vmatprep.subr.bf16.mxu0 0
    %6036 = vmatpush2.bf16.msra.mxu0 0
    %6037 = vmatprep.subr.bf16.mxu0 0
    %6038 = vmatpush2.bf16.msra.mxu0 0
    %6039 = vmatprep.subr.bf16.mxu0 0
    %6040 = vmatpush2.bf16.msra.mxu0 0
    %6041 = vmatprep.mubr.bf16.mxu0 0
    %6042 = vmatmul.mubr.bf16.gmra.mxu0 %v5951
    %v6043 = vpop.f32.mrf.mxu0
    %v6044 = vadd.f32 %v5991, %v6043
    %v6045 = vpop.f32.mrf.mxu0
    %v6046 = vadd.f32 %v5993, %v6045
    %v6047 = vpop.f32.mrf.mxu0
    %v6048 = vadd.f32 %v5995, %v6047
    %v6049 = vpop.f32.mrf.mxu0
    %v6050 = vadd.f32 %v5997, %v6049
    %6051 = vmatprep.mubr.bf16.mxu0 0
    %6052 = vmatmul.mubr.bf16.gmra.mxu0 %v5954
    %v6053 = vpop.f32.mrf.mxu0
    %v6054 = vadd.f32 %v6001, %v6053
    %v6055 = vpop.f32.mrf.mxu0
    %v6056 = vadd.f32 %v6003, %v6055
    %v6057 = vpop.f32.mrf.mxu0
    %v6058 = vadd.f32 %v6005, %v6057
    %v6059 = vpop.f32.mrf.mxu0
    %v6060 = vadd.f32 %v6007, %v6059
    %6061 = vdwg.mxu0
    %6062 = vmatprep.subr.bf16.mxu0 %v5591
    %6063 = vmatpush1.bf16.msra.mxu0 %v5590
    %6064 = vmatprep.subr.bf16.mxu0 %v5587
    %6065 = vmatpush1.bf16.msra.mxu0 %v5586
    %6066 = vmatprep.subr.bf16.mxu0 %v5519
    %6067 = vmatpush1.bf16.msra.mxu0 %v5518
    %6068 = vmatprep.subr.bf16.mxu0 %v5515
    %6069 = vmatpush1.bf16.msra.mxu0 %v5514
    %6070 = vmatprep.subr.bf16.mxu0 %v5447
    %6071 = vmatpush1.bf16.msra.mxu0 %v5446
    %6072 = vmatprep.subr.bf16.mxu0 %v5443
    %6073 = vmatpush1.bf16.msra.mxu0 %v5442
    %6074 = vmatprep.subr.bf16.mxu0 %v5375
    %6075 = vmatpush1.bf16.msra.mxu0 %v5374
    %6076 = vmatprep.subr.bf16.mxu0 %v5371
    %6077 = vmatpush1.bf16.msra.mxu0 %v5370
    %6078 = vmatprep.subr.bf16.mxu0 %v5815
    %6079 = vmatpush2.bf16.msra.mxu0 %v5814
    %6080 = vmatprep.subr.bf16.mxu0 %v5811
    %6081 = vmatpush2.bf16.msra.mxu0 %v5810
    %6082 = vmatprep.subr.bf16.mxu0 %v5743
    %6083 = vmatpush2.bf16.msra.mxu0 %v5742
    %6084 = vmatprep.subr.bf16.mxu0 %v5739
    %6085 = vmatpush2.bf16.msra.mxu0 %v5738
    %6086 = vmatprep.subr.bf16.mxu0 %v5671
    %6087 = vmatpush2.bf16.msra.mxu0 %v5670
    %6088 = vmatprep.subr.bf16.mxu0 %v5667
    %6089 = vmatpush2.bf16.msra.mxu0 %v5666
    %6090 = vmatprep.subr.bf16.mxu0 %v5599
    %6091 = vmatpush2.bf16.msra.mxu0 %v5598
    %6092 = vmatprep.subr.bf16.mxu0 %v5595
    %6093 = vmatpush2.bf16.msra.mxu0 %v5594
    %6094 = vmatprep.mubr.bf16.mxu0 %v5941
    %6095 = vmatmul.mubr.bf16.gmra.mxu0 %v5940
    %v6096 = vpop.f32.mrf.mxu0
    %v6097 = vadd.f32 %v5903, %v6096
    %v6098 = vpop.f32.mrf.mxu0
    %v6099 = vadd.f32 %v5903, %v6098
    %v6100 = vpop.f32.mrf.mxu0
    %v6101 = vadd.f32 %v5908, %v6100
    %v6102 = vpop.f32.mrf.mxu0
    %v6103 = vadd.f32 %v5908, %v6102
    %6104 = vmatprep.mubr.bf16.mxu0 %v5944
    %6105 = vmatmul.mubr.bf16.gmra.mxu0 %v5943
    %v6106 = vpop.f32.mrf.mxu0
    %v6107 = vadd.f32 %v5913, %v6106
    %v6108 = vpop.f32.mrf.mxu0
    %v6109 = vadd.f32 %v5913, %v6108
    %v6110 = vpop.f32.mrf.mxu0
    %v6111 = vadd.f32 %v5918, %v6110
    %v6112 = vpop.f32.mrf.mxu0
    %v6113 = vadd.f32 %v5918, %v6112
    %6114 = vdwg.mxu0
    %6115 = vmatprep.subr.bf16.mxu0 0
    %6116 = vmatpush1.bf16.msra.mxu0 0
    %6117 = vmatprep.subr.bf16.mxu0 0
    %6118 = vmatpush1.bf16.msra.mxu0 0
    %6119 = vmatprep.subr.bf16.mxu0 0
    %6120 = vmatpush1.bf16.msra.mxu0 0
    %6121 = vmatprep.subr.bf16.mxu0 0
    %6122 = vmatpush1.bf16.msra.mxu0 0
    %6123 = vmatprep.subr.bf16.mxu0 0
    %6124 = vmatpush1.bf16.msra.mxu0 0
    %6125 = vmatprep.subr.bf16.mxu0 0
    %6126 = vmatpush1.bf16.msra.mxu0 0
    %6127 = vmatprep.subr.bf16.mxu0 %v5887
    %6128 = vmatpush1.bf16.msra.mxu0 %v5886
    %6129 = vmatprep.subr.bf16.mxu0 %v5883
    %6130 = vmatpush1.bf16.msra.mxu0 %v5882
    %6131 = vmatprep.subr.bf16.mxu0 0
    %6132 = vmatpush2.bf16.msra.mxu0 0
    %6133 = vmatprep.subr.bf16.mxu0 0
    %6134 = vmatpush2.bf16.msra.mxu0 0
    %6135 = vmatprep.subr.bf16.mxu0 0
    %6136 = vmatpush2.bf16.msra.mxu0 0
    %6137 = vmatprep.subr.bf16.mxu0 0
    %6138 = vmatpush2.bf16.msra.mxu0 0
    %6139 = vmatprep.subr.bf16.mxu0 0
    %6140 = vmatpush2.bf16.msra.mxu0 0
    %6141 = vmatprep.subr.bf16.mxu0 0
    %6142 = vmatpush2.bf16.msra.mxu0 0
    %6143 = vmatprep.subr.bf16.mxu0 0
    %6144 = vmatpush2.bf16.msra.mxu0 0
    %6145 = vmatprep.subr.bf16.mxu0 0
    %6146 = vmatpush2.bf16.msra.mxu0 0
    %6147 = vmatprep.mubr.bf16.mxu0 0
    %6148 = vmatmul.mubr.bf16.gmra.mxu0 %v5951
    %v6149 = vpop.f32.mrf.mxu0
    %v6150 = vadd.f32 %v6097, %v6149
    %v6151 = vpop.f32.mrf.mxu0
    %v6152 = vadd.f32 %v6099, %v6151
    %v6153 = vpop.f32.mrf.mxu0
    %v6154 = vadd.f32 %v6101, %v6153
    %v6155 = vpop.f32.mrf.mxu0
    %v6156 = vadd.f32 %v6103, %v6155
    %6157 = vmatprep.mubr.bf16.mxu0 0
    %6158 = vmatmul.mubr.bf16.gmra.mxu0 %v5954
    %v6159 = vpop.f32.mrf.mxu0
    %v6160 = vadd.f32 %v6107, %v6159
    %v6161 = vpop.f32.mrf.mxu0
    %v6162 = vadd.f32 %v6109, %v6161
    %v6163 = vpop.f32.mrf.mxu0
    %v6164 = vadd.f32 %v6111, %v6163
    %v6165 = vpop.f32.mrf.mxu0
    %v6166 = vadd.f32 %v6113, %v6165
    %6167 = vdwg.mxu0
    %v6168 = vmax.f32 %v6044, 0.0
    %v6169 = vmax.f32 %v6046, 0.0
    %v6170 = vmax.f32 %v6150, 0.0
    %v6171 = vmax.f32 %v6152, 0.0
    %v6172 = vmax.f32 %v6048, 0.0
    %v6173 = vmax.f32 %v6050, 0.0
    %v6174 = vmax.f32 %v6154, 0.0
    %v6175 = vmax.f32 %v6156, 0.0
    %v6176 = vmax.f32 %v6054, 0.0
    %v6177 = vmax.f32 %v6056, 0.0
    %v6178 = vmax.f32 %v6160, 0.0
    %v6179 = vmax.f32 %v6162, 0.0
    %v6180 = vmax.f32 %v6058, 0.0
    %v6181 = vmax.f32 %v6060, 0.0
    %v6182 = vmax.f32 %v6164, 0.0
    %v6183 = vmax.f32 %v6166, 0.0
    %v6184 = vld [vmem:[%s43] sm:$0xff]
    %v6185 = vld [vmem:[%s43 + $0x8] sm:$0xff]
    %v6186 = vld [vmem:[%s43 + $0x10] sm:$0xff]
    %v6187 = vld [vmem:[%s43 + $0x18] sm:$0xff]
    %6189 = vset.pattern.permute.xlu0 0
    %6190 = vperm.xlu0 %6189, %v6184
    %v6191 = vpop.permute.xlu0 %6190
    %6194 = vset.pattern.permute.xlu0 0
    %6195 = vperm.xlu0 %6194, %v6185
    %v6196 = vpop.permute.xlu0 %6195
    %6199 = vset.pattern.permute.xlu0 0
    %6200 = vperm.xlu0 %6199, %v6186
    %v6201 = vpop.permute.xlu0 %6200
    %6204 = vset.pattern.permute.xlu0 0
    %6205 = vperm.xlu0 %6204, %v6187
    %v6206 = vpop.permute.xlu0 %6205
    %v6208 = vmul.f32 %v6168, %v6191
    %v6209 = vmul.f32 %v6169, %v6191
    %v6210 = vmul.f32 %v6170, %v6191
    %v6211 = vmul.f32 %v6171, %v6191
    %v6212 = vmul.f32 %v6172, %v6196
    %v6213 = vmul.f32 %v6173, %v6196
    %v6214 = vmul.f32 %v6174, %v6196
    %v6215 = vmul.f32 %v6175, %v6196
    %v6216 = vmul.f32 %v6176, %v6201
    %v6217 = vmul.f32 %v6177, %v6201
    %v6218 = vmul.f32 %v6178, %v6201
    %v6219 = vmul.f32 %v6179, %v6201
    %v6220 = vmul.f32 %v6180, %v6206
    %v6221 = vmul.f32 %v6181, %v6206
    %v6222 = vmul.f32 %v6182, %v6206
    %v6223 = vmul.f32 %v6183, %v6206
    %v6224 = vld [vmem:[%s45] sm:$0xff]
    %v6225 = vld [vmem:[%s45 + $0x8] sm:$0xff]
    %v6226 = vld [vmem:[%s45 + $0x10] sm:$0xff]
    %v6227 = vld [vmem:[%s45 + $0x18] sm:$0xff]
    %6229 = vset.pattern.permute.xlu0 0
    %6230 = vperm.xlu0 %6229, %v6224
    %v6231 = vpop.permute.xlu0 %6230
    %6234 = vset.pattern.permute.xlu0 0
    %6235 = vperm.xlu0 %6234, %v6225
    %v6236 = vpop.permute.xlu0 %6235
    %6239 = vset.pattern.permute.xlu0 0
    %6240 = vperm.xlu0 %6239, %v6226
    %v6241 = vpop.permute.xlu0 %6240
    %6244 = vset.pattern.permute.xlu0 0
    %6245 = vperm.xlu0 %6244, %v6227
    %v6246 = vpop.permute.xlu0 %6245
    %v6248 = vadd.f32 %v6208, %v6231
    %v6249 = vadd.f32 %v6209, %v6231
    %v6250 = vadd.f32 %v6210, %v6231
    %v6251 = vadd.f32 %v6211, %v6231
    %v6252 = vadd.f32 %v6212, %v6236
    %v6253 = vadd.f32 %v6213, %v6236
    %v6254 = vadd.f32 %v6214, %v6236
    %v6255 = vadd.f32 %v6215, %v6236
    %v6256 = vadd.f32 %v6216, %v6241
    %v6257 = vadd.f32 %v6217, %v6241
    %v6258 = vadd.f32 %v6218, %v6241
    %v6259 = vadd.f32 %v6219, %v6241
    %v6260 = vadd.f32 %v6220, %v6246
    %v6261 = vadd.f32 %v6221, %v6246
    %v6262 = vadd.f32 %v6222, %v6246
    %v6263 = vadd.f32 %v6223, %v6246
    %6264 = vrot.lane.b32.xlu0 %v6248, 127
    %v6265 = vpop.permute.xlu0 %6264
    %6266 = vrot.lane.b32.xlu0 %v6252, 127
    %v6267 = vpop.permute.xlu0 %6266
    %6268 = vrot.lane.b32.xlu0 %v6256, 127
    %v6269 = vpop.permute.xlu0 %6268
    %6270 = vrot.lane.b32.xlu0 %v6260, 127
    %v6271 = vpop.permute.xlu0 %6270
    %6272 = vrot.lane.b32.xlu0 %v6249, 127
    %v6273 = vpop.permute.xlu0 %6272
    %6274 = vrot.lane.b32.xlu0 %v6253, 127
    %v6275 = vpop.permute.xlu0 %6274
    %6276 = vrot.lane.b32.xlu0 %v6257, 127
    %v6277 = vpop.permute.xlu0 %6276
    %6278 = vrot.lane.b32.xlu0 %v6261, 127
    %v6279 = vpop.permute.xlu0 %6278
    %6280 = vrot.lane.b32.xlu0 %v6250, 127
    %v6281 = vpop.permute.xlu0 %6280
    %6282 = vrot.lane.b32.xlu0 %v6254, 127
    %v6283 = vpop.permute.xlu0 %6282
    %6284 = vrot.lane.b32.xlu0 %v6258, 127
    %v6285 = vpop.permute.xlu0 %6284
    %6286 = vrot.lane.b32.xlu0 %v6262, 127
    %v6287 = vpop.permute.xlu0 %6286
    %6288 = vrot.lane.b32.xlu0 %v6251, 127
    %v6289 = vpop.permute.xlu0 %6288
    %6290 = vrot.lane.b32.xlu0 %v6255, 127
    %v6291 = vpop.permute.xlu0 %6290
    %6292 = vrot.lane.b32.xlu0 %v6259, 127
    %v6293 = vpop.permute.xlu0 %6292
    %6294 = vrot.lane.b32.xlu0 %v6263, 127
    %v6295 = vpop.permute.xlu0 %6294
    %v6296 = vsel %vm3798, %v6281, %v6289
    %v6297 = vsel %vm3798, %v6283, %v6291
    %v6298 = vsel %vm3798, %v6285, %v6293
    %v6299 = vsel %vm3798, %v6287, %v6295
    %v6300 = vsel %vm3798, %v6273, %v6281
    %v6301 = vsel %vm3798, %v6275, %v6283
    %v6302 = vsel %vm3798, %v6277, %v6285
    %v6303 = vsel %vm3798, %v6279, %v6287
    %v6304 = vsel %vm3798, %v6265, %v6273
    %v6305 = vsel %vm3798, %v6267, %v6275
    %v6306 = vsel %vm3798, %v6269, %v6277
    %v6307 = vsel %vm3798, %v6271, %v6279
    %v6308 = vsel %vm3798, %v6289, %v6265
    %v6309 = vsel %vm3798, %v6291, %v6267
    %v6310 = vsel %vm3798, %v6293, %v6269
    %v6311 = vsel %vm3798, %v6295, %v6271
    %v6312 = vmax.f32 %v6248, %v6304
    %v6313 = vmax.f32 %v6249, %v6300
    %v6314 = vmax.f32 %v6250, %v6296
    %v6315 = vmax.f32 %v6251, %v6308
    %v6316 = vmax.f32 %v6252, %v6305
    %v6317 = vmax.f32 %v6253, %v6301
    %v6318 = vmax.f32 %v6254, %v6297
    %v6319 = vmax.f32 %v6255, %v6309
    %v6320 = vmax.f32 %v6256, %v6306
    %v6321 = vmax.f32 %v6257, %v6302
    %v6322 = vmax.f32 %v6258, %v6298
    %v6323 = vmax.f32 %v6259, %v6310
    %v6324 = vmax.f32 %v6260, %v6307
    %v6325 = vmax.f32 %v6261, %v6303
    %v6326 = vmax.f32 %v6262, %v6299
    %v6327 = vmax.f32 %v6263, %v6311
    %6328 = vrot.lane.b32.xlu0 %v6248, 112
    %v6329 = vpop.permute.xlu0 %6328
    %6330 = vrot.lane.b32.xlu0 %v6252, 112
    %v6331 = vpop.permute.xlu0 %6330
    %6332 = vrot.lane.b32.xlu0 %v6256, 112
    %v6333 = vpop.permute.xlu0 %6332
    %6334 = vrot.lane.b32.xlu0 %v6260, 112
    %v6335 = vpop.permute.xlu0 %6334
    %6336 = vrot.lane.b32.xlu0 %v6249, 112
    %v6337 = vpop.permute.xlu0 %6336
    %6338 = vrot.lane.b32.xlu0 %v6253, 112
    %v6339 = vpop.permute.xlu0 %6338
    %6340 = vrot.lane.b32.xlu0 %v6257, 112
    %v6341 = vpop.permute.xlu0 %6340
    %6342 = vrot.lane.b32.xlu0 %v6261, 112
    %v6343 = vpop.permute.xlu0 %6342
    %6344 = vrot.lane.b32.xlu0 %v6250, 112
    %v6345 = vpop.permute.xlu0 %6344
    %6346 = vrot.lane.b32.xlu0 %v6254, 112
    %v6347 = vpop.permute.xlu0 %6346
    %6348 = vrot.lane.b32.xlu0 %v6258, 112
    %v6349 = vpop.permute.xlu0 %6348
    %6350 = vrot.lane.b32.xlu0 %v6262, 112
    %v6351 = vpop.permute.xlu0 %6350
    %6352 = vrot.lane.b32.xlu0 %v6251, 112
    %v6353 = vpop.permute.xlu0 %6352
    %6354 = vrot.lane.b32.xlu0 %v6255, 112
    %v6355 = vpop.permute.xlu0 %6354
    %6356 = vrot.lane.b32.xlu0 %v6259, 112
    %v6357 = vpop.permute.xlu0 %6356
    %6358 = vrot.lane.b32.xlu0 %v6263, 112
    %v6359 = vpop.permute.xlu0 %6358
    %v6360 = vsel %vm3882, %v6345, %v6353
    %v6361 = vsel %vm3882, %v6347, %v6355
    %v6362 = vsel %vm3882, %v6349, %v6357
    %v6363 = vsel %vm3882, %v6351, %v6359
    %v6364 = vsel %vm3882, %v6337, %v6345
    %v6365 = vsel %vm3882, %v6339, %v6347
    %v6366 = vsel %vm3882, %v6341, %v6349
    %v6367 = vsel %vm3882, %v6343, %v6351
    %v6368 = vsel %vm3882, %v6329, %v6337
    %v6369 = vsel %vm3882, %v6331, %v6339
    %v6370 = vsel %vm3882, %v6333, %v6341
    %v6371 = vsel %vm3882, %v6335, %v6343
    %v6372 = vsel %vm3882, %v6353, %v6329
    %v6373 = vsel %vm3882, %v6355, %v6331
    %v6374 = vsel %vm3882, %v6357, %v6333
    %v6375 = vsel %vm3882, %v6359, %v6335
    %v6376 = vmax.f32 %v6312, %v6368
    %v6377 = vmax.f32 %v6313, %v6364
    %v6378 = vmax.f32 %v6314, %v6360
    %v6379 = vmax.f32 %v6315, %v6372
    %v6380 = vmax.f32 %v6316, %v6369
    %v6381 = vmax.f32 %v6317, %v6365
    %v6382 = vmax.f32 %v6318, %v6361
    %v6383 = vmax.f32 %v6319, %v6373
    %v6384 = vmax.f32 %v6320, %v6370
    %v6385 = vmax.f32 %v6321, %v6366
    %v6386 = vmax.f32 %v6322, %v6362
    %v6387 = vmax.f32 %v6323, %v6374
    %v6388 = vmax.f32 %v6324, %v6371
    %v6389 = vmax.f32 %v6325, %v6367
    %v6390 = vmax.f32 %v6326, %v6363
    %v6391 = vmax.f32 %v6327, %v6375
    %6392 = vrot.lane.b32.xlu0 %v6248, 111
    %v6393 = vpop.permute.xlu0 %6392
    %6394 = vrot.lane.b32.xlu0 %v6252, 111
    %v6395 = vpop.permute.xlu0 %6394
    %6396 = vrot.lane.b32.xlu0 %v6256, 111
    %v6397 = vpop.permute.xlu0 %6396
    %6398 = vrot.lane.b32.xlu0 %v6260, 111
    %v6399 = vpop.permute.xlu0 %6398
    %6400 = vrot.lane.b32.xlu0 %v6249, 111
    %v6401 = vpop.permute.xlu0 %6400
    %6402 = vrot.lane.b32.xlu0 %v6253, 111
    %v6403 = vpop.permute.xlu0 %6402
    %6404 = vrot.lane.b32.xlu0 %v6257, 111
    %v6405 = vpop.permute.xlu0 %6404
    %6406 = vrot.lane.b32.xlu0 %v6261, 111
    %v6407 = vpop.permute.xlu0 %6406
    %6408 = vrot.lane.b32.xlu0 %v6250, 111
    %v6409 = vpop.permute.xlu0 %6408
    %6410 = vrot.lane.b32.xlu0 %v6254, 111
    %v6411 = vpop.permute.xlu0 %6410
    %6412 = vrot.lane.b32.xlu0 %v6258, 111
    %v6413 = vpop.permute.xlu0 %6412
    %6414 = vrot.lane.b32.xlu0 %v6262, 111
    %v6415 = vpop.permute.xlu0 %6414
    %6416 = vrot.lane.b32.xlu0 %v6251, 111
    %v6417 = vpop.permute.xlu0 %6416
    %6418 = vrot.lane.b32.xlu0 %v6255, 111
    %v6419 = vpop.permute.xlu0 %6418
    %6420 = vrot.lane.b32.xlu0 %v6259, 111
    %v6421 = vpop.permute.xlu0 %6420
    %6422 = vrot.lane.b32.xlu0 %v6263, 111
    %v6423 = vpop.permute.xlu0 %6422
    %v6424 = vsel %vm3924, %v6409, %v6417
    %v6425 = vsel %vm3924, %v6411, %v6419
    %v6426 = vsel %vm3924, %v6413, %v6421
    %v6427 = vsel %vm3924, %v6415, %v6423
    %v6428 = vsel %vm3924, %v6401, %v6409
    %v6429 = vsel %vm3924, %v6403, %v6411
    %v6430 = vsel %vm3924, %v6405, %v6413
    %v6431 = vsel %vm3924, %v6407, %v6415
    %v6432 = vsel %vm3924, %v6393, %v6401
    %v6433 = vsel %vm3924, %v6395, %v6403
    %v6434 = vsel %vm3924, %v6397, %v6405
    %v6435 = vsel %vm3924, %v6399, %v6407
    %v6436 = vsel %vm3924, %v6417, %v6393
    %v6437 = vsel %vm3924, %v6419, %v6395
    %v6438 = vsel %vm3924, %v6421, %v6397
    %v6439 = vsel %vm3924, %v6423, %v6399
    %v6440 = vmax.f32 %v6376, %v6432
    %v6441 = vmax.f32 %v6377, %v6428
    %v6442 = vmax.f32 %v6378, %v6424
    %v6443 = vmax.f32 %v6379, %v6436
    %v6444 = vmax.f32 %v6380, %v6433
    %v6445 = vmax.f32 %v6381, %v6429
    %v6446 = vmax.f32 %v6382, %v6425
    %v6447 = vmax.f32 %v6383, %v6437
    %v6448 = vmax.f32 %v6384, %v6434
    %v6449 = vmax.f32 %v6385, %v6430
    %v6450 = vmax.f32 %v6386, %v6426
    %v6451 = vmax.f32 %v6387, %v6438
    %v6452 = vmax.f32 %v6388, %v6435
    %v6453 = vmax.f32 %v6389, %v6431
    %v6454 = vmax.f32 %v6390, %v6427
    %v6455 = vmax.f32 %v6391, %v6439
    %v6456 = vld [vmem:[%s47] sm:$0xff]
    %v6457 = vld [vmem:[%s47 + $0x8] sm:$0xff]
    %v6458 = vld [vmem:[%s47 + $0x10] sm:$0xff]
    %v6459 = vld [vmem:[%s47 + $0x18] sm:$0xff]
    %v6460 = vld [vmem:[%s47 + $0x20] sm:$0xff]
    %v6461 = vld [vmem:[%s47 + $0x28] sm:$0xff]
    %v6462 = vld [vmem:[%s47 + $0x30] sm:$0xff]
    %v6463 = vld [vmem:[%s47 + $0x38] sm:$0xff]
    %v6464 = vld [vmem:[%s47 + $0x40] sm:$0xff]
    %v6465 = vld [vmem:[%s47 + $0x48] sm:$0xff]
    %v6466 = vld [vmem:[%s47 + $0x50] sm:$0xff]
    %v6467 = vld [vmem:[%s47 + $0x58] sm:$0xff]
    %v6468 = vld [vmem:[%s47 + $0x60] sm:$0xff]
    %v6469 = vld [vmem:[%s47 + $0x68] sm:$0xff]
    %v6470 = vld [vmem:[%s47 + $0x70] sm:$0xff]
    %v6471 = vld [vmem:[%s47 + $0x78] sm:$0xff]
    %v6472 = vld [vmem:[%s47 + $0x80] sm:$0xff]
    %v6473 = vld [vmem:[%s47 + $0x88] sm:$0xff]
    %v6474 = vld [vmem:[%s47 + $0x90] sm:$0xff]
    %v6475 = vld [vmem:[%s47 + $0x98] sm:$0xff]
    %v6476 = vld [vmem:[%s47 + $0xa0] sm:$0xff]
    %v6477 = vld [vmem:[%s47 + $0xa8] sm:$0xff]
    %v6478 = vld [vmem:[%s47 + $0xb0] sm:$0xff]
    %v6479 = vld [vmem:[%s47 + $0xb8] sm:$0xff]
    %v6480 = vld [vmem:[%s47 + $0xc0] sm:$0xff]
    %v6481 = vld [vmem:[%s47 + $0xc8] sm:$0xff]
    %v6482 = vld [vmem:[%s47 + $0xd0] sm:$0xff]
    %v6483 = vld [vmem:[%s47 + $0xd8] sm:$0xff]
    %v6484 = vld [vmem:[%s47 + $0xe0] sm:$0xff]
    %v6485 = vld [vmem:[%s47 + $0xe8] sm:$0xff]
    %v6486 = vld [vmem:[%s47 + $0xf0] sm:$0xff]
    %v6487 = vld [vmem:[%s47 + $0xf8] sm:$0xff]
    %v6488 = vld [vmem:[%s47 + $0x100] sm:$0xff]
    %v6489 = vld [vmem:[%s47 + $0x108] sm:$0xff]
    %v6490 = vld [vmem:[%s47 + $0x110] sm:$0xff]
    %v6491 = vld [vmem:[%s47 + $0x118] sm:$0xff]
    %v6492 = vld [vmem:[%s47 + $0x120] sm:$0xff]
    %v6493 = vld [vmem:[%s47 + $0x128] sm:$0xff]
    %v6494 = vld [vmem:[%s47 + $0x130] sm:$0xff]
    %v6495 = vld [vmem:[%s47 + $0x138] sm:$0xff]
    %v6496 = vld [vmem:[%s47 + $0x140] sm:$0xff]
    %v6497 = vld [vmem:[%s47 + $0x148] sm:$0xff]
    %v6498 = vld [vmem:[%s47 + $0x150] sm:$0xff]
    %v6499 = vld [vmem:[%s47 + $0x158] sm:$0xff]
    %v6500 = vld [vmem:[%s47 + $0x160] sm:$0xff]
    %v6501 = vld [vmem:[%s47 + $0x168] sm:$0xff]
    %v6502 = vld [vmem:[%s47 + $0x170] sm:$0xff]
    %v6503 = vld [vmem:[%s47 + $0x178] sm:$0xff]
    %v6504 = vld [vmem:[%s47 + $0x180] sm:$0xff]
    %v6505 = vld [vmem:[%s47 + $0x188] sm:$0xff]
    %v6506 = vld [vmem:[%s47 + $0x190] sm:$0xff]
    %v6507 = vld [vmem:[%s47 + $0x198] sm:$0xff]
    %v6508 = vld [vmem:[%s47 + $0x1a0] sm:$0xff]
    %v6509 = vld [vmem:[%s47 + $0x1a8] sm:$0xff]
    %v6510 = vld [vmem:[%s47 + $0x1b0] sm:$0xff]
    %v6511 = vld [vmem:[%s47 + $0x1b8] sm:$0xff]
    %v6512 = vld [vmem:[%s47 + $0x1c0] sm:$0xff]
    %v6513 = vld [vmem:[%s47 + $0x1c8] sm:$0xff]
    %v6514 = vld [vmem:[%s47 + $0x1d0] sm:$0xff]
    %v6515 = vld [vmem:[%s47 + $0x1d8] sm:$0xff]
    %v6516 = vld [vmem:[%s47 + $0x1e0] sm:$0xff]
    %v6517 = vld [vmem:[%s47 + $0x1e8] sm:$0xff]
    %v6518 = vld [vmem:[%s47 + $0x1f0] sm:$0xff]
    %v6519 = vld [vmem:[%s47 + $0x1f8] sm:$0xff]
    %6520 = vmatprep.subr.mxu0 0.0
    %6521 = vmatpush1.msra.mxu0 %v6471
    %6522 = vmatprep.subr.mxu0 0.0
    %6523 = vmatpush1.msra.mxu0 %v6470
    %6524 = vmatprep.subr.mxu0 0.0
    %6525 = vmatpush1.msra.mxu0 %v6469
    %6526 = vmatprep.subr.mxu0 0.0
    %6527 = vmatpush1.msra.mxu0 %v6468
    %6528 = vmatprep.subr.mxu0 0.0
    %6529 = vmatpush1.msra.mxu0 %v6467
    %6530 = vmatprep.subr.mxu0 0.0
    %6531 = vmatpush1.msra.mxu0 %v6466
    %6532 = vmatprep.subr.mxu0 0.0
    %6533 = vmatpush1.msra.mxu0 %v6465
    %6534 = vmatprep.subr.mxu0 0.0
    %6535 = vmatpush1.msra.mxu0 %v6464
    %6536 = vmatprep.subr.mxu0 0.0
    %6537 = vmatpush1.msra.mxu0 %v6463
    %6538 = vmatprep.subr.mxu0 0.0
    %6539 = vmatpush1.msra.mxu0 %v6462
    %6540 = vmatprep.subr.mxu0 0.0
    %6541 = vmatpush1.msra.mxu0 %v6461
    %6542 = vmatprep.subr.mxu0 0.0
    %6543 = vmatpush1.msra.mxu0 %v6460
    %6544 = vmatprep.subr.mxu0 0.0
    %6545 = vmatpush1.msra.mxu0 %v6459
    %6546 = vmatprep.subr.mxu0 0.0
    %6547 = vmatpush1.msra.mxu0 %v6458
    %6548 = vmatprep.subr.mxu0 0.0
    %6549 = vmatpush1.msra.mxu0 %v6457
    %6550 = vmatprep.subr.mxu0 0.0
    %6551 = vmatpush1.msra.mxu0 %v6456
    %6552 = vmatprep.subr.mxu0 0.0
    %6553 = vmatpush2.msra.mxu0 %v6487
    %6554 = vmatprep.subr.mxu0 0.0
    %6555 = vmatpush2.msra.mxu0 %v6486
    %6556 = vmatprep.subr.mxu0 0.0
    %6557 = vmatpush2.msra.mxu0 %v6485
    %6558 = vmatprep.subr.mxu0 0.0
    %6559 = vmatpush2.msra.mxu0 %v6484
    %6560 = vmatprep.subr.mxu0 0.0
    %6561 = vmatpush2.msra.mxu0 %v6483
    %6562 = vmatprep.subr.mxu0 0.0
    %6563 = vmatpush2.msra.mxu0 %v6482
    %6564 = vmatprep.subr.mxu0 0.0
    %6565 = vmatpush2.msra.mxu0 %v6481
    %6566 = vmatprep.subr.mxu0 0.0
    %6567 = vmatpush2.msra.mxu0 %v6480
    %6568 = vmatprep.subr.mxu0 0.0
    %6569 = vmatpush2.msra.mxu0 %v6479
    %6570 = vmatprep.subr.mxu0 0.0
    %6571 = vmatpush2.msra.mxu0 %v6478
    %6572 = vmatprep.subr.mxu0 0.0
    %6573 = vmatpush2.msra.mxu0 %v6477
    %6574 = vmatprep.subr.mxu0 0.0
    %6575 = vmatpush2.msra.mxu0 %v6476
    %6576 = vmatprep.subr.mxu0 0.0
    %6577 = vmatpush2.msra.mxu0 %v6475
    %6578 = vmatprep.subr.mxu0 0.0
    %6579 = vmatpush2.msra.mxu0 %v6474
    %6580 = vmatprep.subr.mxu0 0.0
    %6581 = vmatpush2.msra.mxu0 %v6473
    %6582 = vmatprep.subr.mxu0 0.0
    %6583 = vmatpush2.msra.mxu0 %v6472
    %6584 = vmatprep.mubr.f32.mxu0 %v6441
    %6585 = vmatmul.mubr.f32.gmra.mxu0 %v6440
    %v6586 = vpop.f32.mrf.mxu0
    %v6587 = vadd.f32 0.0, %v6586
    %v6588 = vpop.f32.mrf.mxu0
    %6589 = vmatprep.mubr.f32.mxu0 %v6445
    %6590 = vmatmul.mubr.f32.gmra.mxu0 %v6444
    %v6591 = vpop.f32.mrf.mxu0
    %v6592 = vadd.f32 0.0, %v6591
    %v6593 = vpop.f32.mrf.mxu0
    %6594 = vmatprep.mubr.f32.mxu0 %v6449
    %6595 = vmatmul.mubr.f32.gmra.mxu0 %v6448
    %v6596 = vpop.f32.mrf.mxu0
    %v6597 = vadd.f32 0.0, %v6596
    %v6598 = vpop.f32.mrf.mxu0
    %6599 = vmatprep.mubr.f32.mxu0 %v6453
    %6600 = vmatmul.mubr.f32.gmra.mxu0 %v6452
    %v6601 = vpop.f32.mrf.mxu0
    %v6602 = vadd.f32 0.0, %v6601
    %v6603 = vpop.f32.mrf.mxu0
    %6604 = vdwg.mxu0
    %6605 = vmatprep.subr.mxu0 0.0
    %6606 = vmatpush1.msra.mxu0 %v6503
    %6607 = vmatprep.subr.mxu0 0.0
    %6608 = vmatpush1.msra.mxu0 %v6502
    %6609 = vmatprep.subr.mxu0 0.0
    %6610 = vmatpush1.msra.mxu0 %v6501
    %6611 = vmatprep.subr.mxu0 0.0
    %6612 = vmatpush1.msra.mxu0 %v6500
    %6613 = vmatprep.subr.mxu0 0.0
    %6614 = vmatpush1.msra.mxu0 %v6499
    %6615 = vmatprep.subr.mxu0 0.0
    %6616 = vmatpush1.msra.mxu0 %v6498
    %6617 = vmatprep.subr.mxu0 0.0
    %6618 = vmatpush1.msra.mxu0 %v6497
    %6619 = vmatprep.subr.mxu0 0.0
    %6620 = vmatpush1.msra.mxu0 %v6496
    %6621 = vmatprep.subr.mxu0 0.0
    %6622 = vmatpush1.msra.mxu0 %v6495
    %6623 = vmatprep.subr.mxu0 0.0
    %6624 = vmatpush1.msra.mxu0 %v6494
    %6625 = vmatprep.subr.mxu0 0.0
    %6626 = vmatpush1.msra.mxu0 %v6493
    %6627 = vmatprep.subr.mxu0 0.0
    %6628 = vmatpush1.msra.mxu0 %v6492
    %6629 = vmatprep.subr.mxu0 0.0
    %6630 = vmatpush1.msra.mxu0 %v6491
    %6631 = vmatprep.subr.mxu0 0.0
    %6632 = vmatpush1.msra.mxu0 %v6490
    %6633 = vmatprep.subr.mxu0 0.0
    %6634 = vmatpush1.msra.mxu0 %v6489
    %6635 = vmatprep.subr.mxu0 0.0
    %6636 = vmatpush1.msra.mxu0 %v6488
    %6637 = vmatprep.subr.mxu0 0.0
    %6638 = vmatpush2.msra.mxu0 %v6519
    %6639 = vmatprep.subr.mxu0 0.0
    %6640 = vmatpush2.msra.mxu0 %v6518
    %6641 = vmatprep.subr.mxu0 0.0
    %6642 = vmatpush2.msra.mxu0 %v6517
    %6643 = vmatprep.subr.mxu0 0.0
    %6644 = vmatpush2.msra.mxu0 %v6516
    %6645 = vmatprep.subr.mxu0 0.0
    %6646 = vmatpush2.msra.mxu0 %v6515
    %6647 = vmatprep.subr.mxu0 0.0
    %6648 = vmatpush2.msra.mxu0 %v6514
    %6649 = vmatprep.subr.mxu0 0.0
    %6650 = vmatpush2.msra.mxu0 %v6513
    %6651 = vmatprep.subr.mxu0 0.0
    %6652 = vmatpush2.msra.mxu0 %v6512
    %6653 = vmatprep.subr.mxu0 0.0
    %6654 = vmatpush2.msra.mxu0 %v6511
    %6655 = vmatprep.subr.mxu0 0.0
    %6656 = vmatpush2.msra.mxu0 %v6510
    %6657 = vmatprep.subr.mxu0 0.0
    %6658 = vmatpush2.msra.mxu0 %v6509
    %6659 = vmatprep.subr.mxu0 0.0
    %6660 = vmatpush2.msra.mxu0 %v6508
    %6661 = vmatprep.subr.mxu0 0.0
    %6662 = vmatpush2.msra.mxu0 %v6507
    %6663 = vmatprep.subr.mxu0 0.0
    %6664 = vmatpush2.msra.mxu0 %v6506
    %6665 = vmatprep.subr.mxu0 0.0
    %6666 = vmatpush2.msra.mxu0 %v6505
    %6667 = vmatprep.subr.mxu0 0.0
    %6668 = vmatpush2.msra.mxu0 %v6504
    %6669 = vmatprep.mubr.f32.mxu0 %v6443
    %6670 = vmatmul.mubr.f32.gmra.mxu0 %v6442
    %v6671 = vpop.f32.mrf.mxu0
    %v6672 = vadd.f32 %v6587, %v6671
    %v6673 = vpop.f32.mrf.mxu0
    %6674 = vmatprep.mubr.f32.mxu0 %v6447
    %6675 = vmatmul.mubr.f32.gmra.mxu0 %v6446
    %v6676 = vpop.f32.mrf.mxu0
    %v6677 = vadd.f32 %v6592, %v6676
    %v6678 = vpop.f32.mrf.mxu0
    %6679 = vmatprep.mubr.f32.mxu0 %v6451
    %6680 = vmatmul.mubr.f32.gmra.mxu0 %v6450
    %v6681 = vpop.f32.mrf.mxu0
    %v6682 = vadd.f32 %v6597, %v6681
    %v6683 = vpop.f32.mrf.mxu0
    %6684 = vmatprep.mubr.f32.mxu0 %v6455
    %6685 = vmatmul.mubr.f32.gmra.mxu0 %v6454
    %v6686 = vpop.f32.mrf.mxu0
    %v6687 = vadd.f32 %v6602, %v6686
    %v6688 = vpop.f32.mrf.mxu0
    %6689 = vdwg.mxu0
    %6690 = vrot.lane.b32.xlu0 %v6672, 127
    %v6691 = vpop.permute.xlu0 %6690
    %6692 = vrot.lane.b32.xlu0 %v6677, 127
    %v6693 = vpop.permute.xlu0 %6692
    %6694 = vrot.lane.b32.xlu0 %v6682, 127
    %v6695 = vpop.permute.xlu0 %6694
    %6696 = vrot.lane.b32.xlu0 %v6687, 127
    %v6697 = vpop.permute.xlu0 %6696
    %v6698 = vmax.f32 %v6672, %v6691
    %v6699 = vmax.f32 %v6677, %v6693
    %v6700 = vmax.f32 %v6682, %v6695
    %v6701 = vmax.f32 %v6687, %v6697
    %6702 = vrot.lane.b32.xlu0 %v6672, 120
    %v6703 = vpop.permute.xlu0 %6702
    %6704 = vrot.lane.b32.xlu0 %v6677, 120
    %v6705 = vpop.permute.xlu0 %6704
    %6706 = vrot.lane.b32.xlu0 %v6682, 120
    %v6707 = vpop.permute.xlu0 %6706
    %6708 = vrot.lane.b32.xlu0 %v6687, 120
    %v6709 = vpop.permute.xlu0 %6708
    %v6710 = vmax.f32 %v6698, %v6703
    %v6711 = vmax.f32 %v6699, %v6705
    %v6712 = vmax.f32 %v6700, %v6707
    %v6713 = vmax.f32 %v6701, %v6709
    %6714 = vrot.lane.b32.xlu0 %v6672, 119
    %v6715 = vpop.permute.xlu0 %6714
    %6716 = vrot.lane.b32.xlu0 %v6677, 119
    %v6717 = vpop.permute.xlu0 %6716
    %6718 = vrot.lane.b32.xlu0 %v6682, 119
    %v6719 = vpop.permute.xlu0 %6718
    %6720 = vrot.lane.b32.xlu0 %v6687, 119
    %v6721 = vpop.permute.xlu0 %6720
    %v6722 = vmax.f32 %v6710, %v6715
    %v6723 = vmax.f32 %v6711, %v6717
    %v6724 = vmax.f32 %v6712, %v6719
    %v6725 = vmax.f32 %v6713, %v6721
    %v6726 = vld [vmem:[%s49] sm:$0xff]
    %v6727 = vld [vmem:[%s49 + $0x8] sm:$0xff]
    %v6728 = vld [vmem:[%s49 + $0x10] sm:$0xff]
    %v6729 = vld [vmem:[%s49 + $0x18] sm:$0xff]
    %v6730 = vld [vmem:[%s49 + $0x20] sm:$0xff]
    %v6731 = vld [vmem:[%s49 + $0x28] sm:$0xff]
    %v6732 = vld [vmem:[%s49 + $0x30] sm:$0xff]
    %v6733 = vld [vmem:[%s49 + $0x38] sm:$0xff]
    %v6734 = vld [vmem:[%s49 + $0x40] sm:$0xff]
    %v6735 = vld [vmem:[%s49 + $0x48] sm:$0xff]
    %v6736 = vld [vmem:[%s49 + $0x50] sm:$0xff]
    %v6737 = vld [vmem:[%s49 + $0x58] sm:$0xff]
    %v6738 = vld [vmem:[%s49 + $0x60] sm:$0xff]
    %v6739 = vld [vmem:[%s49 + $0x68] sm:$0xff]
    %v6740 = vld [vmem:[%s49 + $0x70] sm:$0xff]
    %v6741 = vld [vmem:[%s49 + $0x78] sm:$0xff]
    %6742 = vmatprep.subr.mxu0 0.0
    %6743 = vmatpush1.msra.mxu0 %v6741
    %6744 = vmatprep.subr.mxu0 0.0
    %6745 = vmatpush1.msra.mxu0 %v6740
    %6746 = vmatprep.subr.mxu0 0.0
    %6747 = vmatpush1.msra.mxu0 %v6739
    %6748 = vmatprep.subr.mxu0 0.0
    %6749 = vmatpush1.msra.mxu0 %v6738
    %6750 = vmatprep.subr.mxu0 0.0
    %6751 = vmatpush1.msra.mxu0 %v6737
    %6752 = vmatprep.subr.mxu0 0.0
    %6753 = vmatpush1.msra.mxu0 %v6736
    %6754 = vmatprep.subr.mxu0 0.0
    %6755 = vmatpush1.msra.mxu0 %v6735
    %6756 = vmatprep.subr.mxu0 0.0
    %6757 = vmatpush1.msra.mxu0 %v6734
    %6758 = vmatprep.subr.mxu0 0.0
    %6759 = vmatpush1.msra.mxu0 %v6733
    %6760 = vmatprep.subr.mxu0 0.0
    %6761 = vmatpush1.msra.mxu0 %v6732
    %6762 = vmatprep.subr.mxu0 0.0
    %6763 = vmatpush1.msra.mxu0 %v6731
    %6764 = vmatprep.subr.mxu0 0.0
    %6765 = vmatpush1.msra.mxu0 %v6730
    %6766 = vmatprep.subr.mxu0 0.0
    %6767 = vmatpush1.msra.mxu0 %v6729
    %6768 = vmatprep.subr.mxu0 0.0
    %6769 = vmatpush1.msra.mxu0 %v6728
    %6770 = vmatprep.subr.mxu0 0.0
    %6771 = vmatpush1.msra.mxu0 %v6727
    %6772 = vmatprep.subr.mxu0 0.0
    %6773 = vmatpush1.msra.mxu0 %v6726
    %6774 = vmatprep.subr.mxu0 0.0
    %6775 = vmatpush2.msra.mxu0 0.0
    %6776 = vmatprep.subr.mxu0 0.0
    %6777 = vmatpush2.msra.mxu0 0.0
    %6778 = vmatprep.subr.mxu0 0.0
    %6779 = vmatpush2.msra.mxu0 0.0
    %6780 = vmatprep.subr.mxu0 0.0
    %6781 = vmatpush2.msra.mxu0 0.0
    %6782 = vmatprep.subr.mxu0 0.0
    %6783 = vmatpush2.msra.mxu0 0.0
    %6784 = vmatprep.subr.mxu0 0.0
    %6785 = vmatpush2.msra.mxu0 0.0
    %6786 = vmatprep.subr.mxu0 0.0
    %6787 = vmatpush2.msra.mxu0 0.0
    %6788 = vmatprep.subr.mxu0 0.0
    %6789 = vmatpush2.msra.mxu0 0.0
    %6790 = vmatprep.subr.mxu0 0.0
    %6791 = vmatpush2.msra.mxu0 0.0
    %6792 = vmatprep.subr.mxu0 0.0
    %6793 = vmatpush2.msra.mxu0 0.0
    %6794 = vmatprep.subr.mxu0 0.0
    %6795 = vmatpush2.msra.mxu0 0.0
    %6796 = vmatprep.subr.mxu0 0.0
    %6797 = vmatpush2.msra.mxu0 0.0
    %6798 = vmatprep.subr.mxu0 0.0
    %6799 = vmatpush2.msra.mxu0 0.0
    %6800 = vmatprep.subr.mxu0 0.0
    %6801 = vmatpush2.msra.mxu0 0.0
    %6802 = vmatprep.subr.mxu0 0.0
    %6803 = vmatpush2.msra.mxu0 0.0
    %6804 = vmatprep.subr.mxu0 0.0
    %6805 = vmatpush2.msra.mxu0 0.0
    %6806 = vmatprep.mubr.f32.mxu0 0.0
    %6807 = vmatmul.mubr.f32.gmra.mxu0 %v6722
    %v6808 = vpop.f32.mrf.mxu0
    %v6809 = vadd.f32 0.0, %v6808
    %v6810 = vpop.f32.mrf.mxu0
    %6811 = vmatprep.mubr.f32.mxu0 0.0
    %6812 = vmatmul.mubr.f32.gmra.mxu0 %v6723
    %v6813 = vpop.f32.mrf.mxu0
    %v6814 = vadd.f32 0.0, %v6813
    %v6815 = vpop.f32.mrf.mxu0
    %6816 = vmatprep.mubr.f32.mxu0 0.0
    %6817 = vmatmul.mubr.f32.gmra.mxu0 %v6724
    %v6818 = vpop.f32.mrf.mxu0
    %v6819 = vadd.f32 0.0, %v6818
    %v6820 = vpop.f32.mrf.mxu0
    %6821 = vmatprep.mubr.f32.mxu0 0.0
    %6822 = vmatmul.mubr.f32.gmra.mxu0 %v6725
    %v6823 = vpop.f32.mrf.mxu0
    %v6824 = vadd.f32 0.0, %v6823
    %v6825 = vpop.f32.mrf.mxu0
    %6826 = vdwg.mxu0
    %vm6827 = vcmask 1047808
    %6828 = vrot.lane.b32.xlu0 %v6809, 32
    %v6829 = vpop.permute.xlu0 %6828
    %v6830 = vsel %vm6827, %v6829, %v6809
    %6831 = vrot.lane.b32.xlu0 %v6814, 32
    %v6832 = vpop.permute.xlu0 %6831
    %v6833 = vsel %vm6827, %v6832, %v6814
    %6834 = vrot.lane.b32.xlu0 %v6819, 32
    %v6835 = vpop.permute.xlu0 %6834
    %v6836 = vsel %vm6827, %v6835, %v6819
    %6837 = vrot.lane.b32.xlu0 %v6824, 32
    %v6838 = vpop.permute.xlu0 %6837
    %v6839 = vsel %vm6827, %v6838, %v6824
    %6840 = vrot.lane.b32.xlu0 %v6830, 32
    %v6841 = vpop.permute.xlu0 %6840
    %6842 = vrot.lane.b32.xlu0 %v6833, 32
    %v6843 = vpop.permute.xlu0 %6842
    %6844 = vrot.lane.b32.xlu0 %v6836, 32
    %v6845 = vpop.permute.xlu0 %6844
    %6846 = vrot.lane.b32.xlu0 %v6839, 32
    %v6847 = vpop.permute.xlu0 %6846
    %v6848 = vsel %vm6827, %v6841, %v6809
    %v6849 = vsel %vm6827, %v6843, %v6814
    %v6850 = vsel %vm6827, %v6845, %v6819
    %v6851 = vsel %vm6827, %v6847, %v6824
    %6856 = vrot.lane.b32.xlu0 %v6848, 127
    %v6857 = vpop.permute.xlu0 %6856
    %6858 = vrot.lane.b32.xlu0 %v6849, 127
    %v6859 = vpop.permute.xlu0 %6858
    %6860 = vrot.lane.b32.xlu0 %v6850, 127
    %v6861 = vpop.permute.xlu0 %6860
    %6862 = vrot.lane.b32.xlu0 %v6851, 127
    %v6863 = vpop.permute.xlu0 %6862
    %v6868 = vmax.f32 %v6809, %v6857
    %v6869 = vmax.f32 %v6814, %v6859
    %v6870 = vmax.f32 %v6819, %v6861
    %v6871 = vmax.f32 %v6824, %v6863
    %6872 = vrot.lane.b32.xlu0 %v6848, 124
    %v6873 = vpop.permute.xlu0 %6872
    %6874 = vrot.lane.b32.xlu0 %v6849, 124
    %v6875 = vpop.permute.xlu0 %6874
    %6876 = vrot.lane.b32.xlu0 %v6850, 124
    %v6877 = vpop.permute.xlu0 %6876
    %6878 = vrot.lane.b32.xlu0 %v6851, 124
    %v6879 = vpop.permute.xlu0 %6878
    %v6884 = vmax.f32 %v6868, %v6873
    %v6885 = vmax.f32 %v6869, %v6875
    %v6886 = vmax.f32 %v6870, %v6877
    %v6887 = vmax.f32 %v6871, %v6879
    %6888 = vrot.lane.b32.xlu0 %v6848, 123
    %v6889 = vpop.permute.xlu0 %6888
    %6890 = vrot.lane.b32.xlu0 %v6849, 123
    %v6891 = vpop.permute.xlu0 %6890
    %6892 = vrot.lane.b32.xlu0 %v6850, 123
    %v6893 = vpop.permute.xlu0 %6892
    %6894 = vrot.lane.b32.xlu0 %v6851, 123
    %v6895 = vpop.permute.xlu0 %6894
    %v6900 = vmax.f32 %v6884, %v6889
    %v6901 = vmax.f32 %v6885, %v6891
    %v6902 = vmax.f32 %v6886, %v6893
    %v6903 = vmax.f32 %v6887, %v6895
    %6904 = vrot.lane.b32.xlu0 %v6868, 32
    %v6905 = vpop.permute.xlu0 %6904
    %v6906 = vsel %vm6827, %v6905, %v6868
    %6907 = vrot.lane.b32.xlu0 %v6869, 32
    %v6908 = vpop.permute.xlu0 %6907
    %v6909 = vsel %vm6827, %v6908, %v6869
    %6910 = vrot.lane.b32.xlu0 %v6870, 32
    %v6911 = vpop.permute.xlu0 %6910
    %v6912 = vsel %vm6827, %v6911, %v6870
    %6913 = vrot.lane.b32.xlu0 %v6871, 32
    %v6914 = vpop.permute.xlu0 %6913
    %v6915 = vsel %vm6827, %v6914, %v6871
    %6916 = vrot.lane.b32.xlu0 %v6906, 32
    %v6917 = vpop.permute.xlu0 %6916
    %6918 = vrot.lane.b32.xlu0 %v6909, 32
    %v6919 = vpop.permute.xlu0 %6918
    %6920 = vrot.lane.b32.xlu0 %v6912, 32
    %v6921 = vpop.permute.xlu0 %6920
    %6922 = vrot.lane.b32.xlu0 %v6915, 32
    %v6923 = vpop.permute.xlu0 %6922
    %v6924 = vsel %vm6827, %v6917, %v6868
    %v6925 = vsel %vm6827, %v6919, %v6869
    %v6926 = vsel %vm6827, %v6921, %v6870
    %v6927 = vsel %vm6827, %v6923, %v6871
    %6932 = vrot.lane.b32.xlu0 %v6924, 126
    %v6933 = vpop.permute.xlu0 %6932
    %6934 = vrot.lane.b32.xlu0 %v6925, 126
    %v6935 = vpop.permute.xlu0 %6934
    %6936 = vrot.lane.b32.xlu0 %v6926, 126
    %v6937 = vpop.permute.xlu0 %6936
    %6938 = vrot.lane.b32.xlu0 %v6927, 126
    %v6939 = vpop.permute.xlu0 %6938
    %v6944 = vmax.f32 %v6868, %v6933
    %v6945 = vmax.f32 %v6869, %v6935
    %v6946 = vmax.f32 %v6870, %v6937
    %v6947 = vmax.f32 %v6871, %v6939
    %6948 = vrot.lane.b32.xlu0 %v6944, 32
    %v6949 = vpop.permute.xlu0 %6948
    %v6950 = vsel %vm6827, %v6949, %v6944
    %6951 = vrot.lane.b32.xlu0 %v6945, 32
    %v6952 = vpop.permute.xlu0 %6951
    %v6953 = vsel %vm6827, %v6952, %v6945
    %6954 = vrot.lane.b32.xlu0 %v6946, 32
    %v6955 = vpop.permute.xlu0 %6954
    %v6956 = vsel %vm6827, %v6955, %v6946
    %6957 = vrot.lane.b32.xlu0 %v6947, 32
    %v6958 = vpop.permute.xlu0 %6957
    %v6959 = vsel %vm6827, %v6958, %v6947
    %6960 = vrot.lane.b32.xlu0 %v6950, 32
    %v6961 = vpop.permute.xlu0 %6960
    %6962 = vrot.lane.b32.xlu0 %v6953, 32
    %v6963 = vpop.permute.xlu0 %6962
    %6964 = vrot.lane.b32.xlu0 %v6956, 32
    %v6965 = vpop.permute.xlu0 %6964
    %6966 = vrot.lane.b32.xlu0 %v6959, 32
    %v6967 = vpop.permute.xlu0 %6966
    %v6968 = vsel %vm6827, %v6961, %v6944
    %v6969 = vsel %vm6827, %v6963, %v6945
    %v6970 = vsel %vm6827, %v6965, %v6946
    %v6971 = vsel %vm6827, %v6967, %v6947
    %6976 = vrot.lane.b32.xlu0 %v6968, 124
    %v6977 = vpop.permute.xlu0 %6976
    %6978 = vrot.lane.b32.xlu0 %v6969, 124
    %v6979 = vpop.permute.xlu0 %6978
    %6980 = vrot.lane.b32.xlu0 %v6970, 124
    %v6981 = vpop.permute.xlu0 %6980
    %6982 = vrot.lane.b32.xlu0 %v6971, 124
    %v6983 = vpop.permute.xlu0 %6982
    %v6988 = vmax.f32 %v6944, %v6977
    %v6989 = vmax.f32 %v6945, %v6979
    %v6990 = vmax.f32 %v6946, %v6981
    %v6991 = vmax.f32 %v6947, %v6983
    %6992 = vrot.lane.b32.xlu0 %v6988, 32
    %v6993 = vpop.permute.xlu0 %6992
    %v6994 = vsel %vm6827, %v6993, %v6988
    %6995 = vrot.lane.b32.xlu0 %v6989, 32
    %v6996 = vpop.permute.xlu0 %6995
    %v6997 = vsel %vm6827, %v6996, %v6989
    %6998 = vrot.lane.b32.xlu0 %v6990, 32
    %v6999 = vpop.permute.xlu0 %6998
    %v7000 = vsel %vm6827, %v6999, %v6990
    %7001 = vrot.lane.b32.xlu0 %v6991, 32
    %v7002 = vpop.permute.xlu0 %7001
    %v7003 = vsel %vm6827, %v7002, %v6991
    %7004 = vrot.lane.b32.xlu0 %v6994, 32
    %v7005 = vpop.permute.xlu0 %7004
    %7006 = vrot.lane.b32.xlu0 %v6997, 32
    %v7007 = vpop.permute.xlu0 %7006
    %7008 = vrot.lane.b32.xlu0 %v7000, 32
    %v7009 = vpop.permute.xlu0 %7008
    %7010 = vrot.lane.b32.xlu0 %v7003, 32
    %v7011 = vpop.permute.xlu0 %7010
    %v7012 = vsel %vm6827, %v7005, %v6988
    %v7013 = vsel %vm6827, %v7007, %v6989
    %v7014 = vsel %vm6827, %v7009, %v6990
    %v7015 = vsel %vm6827, %v7011, %v6991
    %7020 = vrot.lane.b32.xlu0 %v7012, 120
    %v7021 = vpop.permute.xlu0 %7020
    %7022 = vrot.lane.b32.xlu0 %v7013, 120
    %v7023 = vpop.permute.xlu0 %7022
    %7024 = vrot.lane.b32.xlu0 %v7014, 120
    %v7025 = vpop.permute.xlu0 %7024
    %7026 = vrot.lane.b32.xlu0 %v7015, 120
    %v7027 = vpop.permute.xlu0 %7026
    %v7032 = vmax.f32 %v6988, %v7021
    %v7033 = vmax.f32 %v6989, %v7023
    %v7034 = vmax.f32 %v6990, %v7025
    %v7035 = vmax.f32 %v6991, %v7027
    %v7036 = vld [vmem:[%s51] sm:$0xff]
    %v7037 = vld [vmem:[%s51 + $0x8] sm:$0xff]
    %v7038 = vld [vmem:[%s51 + $0x10] sm:$0xff]
    %v7039 = vld [vmem:[%s51 + $0x18] sm:$0xff]
    %v7040 = vld [vmem:[%s51 + $0x20] sm:$0xff]
    %v7041 = vld [vmem:[%s51 + $0x28] sm:$0xff]
    %v7042 = vld [vmem:[%s51 + $0x30] sm:$0xff]
    %v7043 = vld [vmem:[%s51 + $0x38] sm:$0xff]
    %v7044 = vld [vmem:[%s51 + $0x40] sm:$0xff]
    %v7045 = vld [vmem:[%s51 + $0x48] sm:$0xff]
    %v7046 = vld [vmem:[%s51 + $0x50] sm:$0xff]
    %v7047 = vld [vmem:[%s51 + $0x58] sm:$0xff]
    %v7048 = vld [vmem:[%s51 + $0x60] sm:$0xff]
    %v7049 = vld [vmem:[%s51 + $0x68] sm:$0xff]
    %v7050 = vld [vmem:[%s51 + $0x70] sm:$0xff]
    %v7051 = vld [vmem:[%s51 + $0x78] sm:$0xff]
    %v7052 = vld [vmem:[%s51 + $0x80] sm:$0xff]
    %v7053 = vld [vmem:[%s51 + $0x88] sm:$0xff]
    %v7054 = vld [vmem:[%s51 + $0x90] sm:$0xff]
    %v7055 = vld [vmem:[%s51 + $0x98] sm:$0xff]
    %v7056 = vld [vmem:[%s51 + $0xa0] sm:$0xff]
    %v7057 = vld [vmem:[%s51 + $0xa8] sm:$0xff]
    %v7058 = vld [vmem:[%s51 + $0xb0] sm:$0xff]
    %v7059 = vld [vmem:[%s51 + $0xb8] sm:$0xff]
    %v7060 = vld [vmem:[%s51 + $0xc0] sm:$0xff]
    %v7061 = vld [vmem:[%s51 + $0xc8] sm:$0xff]
    %v7062 = vld [vmem:[%s51 + $0xd0] sm:$0xff]
    %v7063 = vld [vmem:[%s51 + $0xd8] sm:$0xff]
    %v7064 = vld [vmem:[%s51 + $0xe0] sm:$0xff]
    %v7065 = vld [vmem:[%s51 + $0xe8] sm:$0xff]
    %v7066 = vld [vmem:[%s51 + $0xf0] sm:$0xff]
    %v7067 = vld [vmem:[%s51 + $0xf8] sm:$0xff]
    %v7068 = vld [vmem:[%s53] sm:$0xff]
    %v7069 = vld [vmem:[%s53 + $0x8] sm:$0xff]
    %v7070 = vld [vmem:[%s53 + $0x10] sm:$0xff]
    %v7071 = vld [vmem:[%s53 + $0x18] sm:$0xff]
    %v7072 = vld [vmem:[%s53 + $0x20] sm:$0xff]
    %v7073 = vld [vmem:[%s53 + $0x28] sm:$0xff]
    %v7074 = vld [vmem:[%s53 + $0x30] sm:$0xff]
    %v7075 = vld [vmem:[%s53 + $0x38] sm:$0xff]
    %v7077 = vsel %vm3232, %v6809, 0
    %v7080 = vsel %vm3232, %v6814, 0
    %v7083 = vsel %vm3232, %v6819, 0
    %v7086 = vsel %vm3232, %v6824, 0
    %7088 = vmatprep.subr.mxu0 0.0
    %7089 = vmatpush1.msra.mxu0 0.0
    %7090 = vmatprep.subr.mxu0 0.0
    %7091 = vmatpush1.msra.mxu0 0.0
    %7092 = vmatprep.subr.mxu0 0.0
    %7093 = vmatpush1.msra.mxu0 0.0
    %7094 = vmatprep.subr.mxu0 0.0
    %7095 = vmatpush1.msra.mxu0 0.0
    %7096 = vmatprep.subr.mxu0 0.0
    %7097 = vmatpush1.msra.mxu0 0.0
    %7098 = vmatprep.subr.mxu0 0.0
    %7099 = vmatpush1.msra.mxu0 0.0
    %7100 = vmatprep.subr.mxu0 0.0
    %7101 = vmatpush1.msra.mxu0 0.0
    %7102 = vmatprep.subr.mxu0 0.0
    %7103 = vmatpush1.msra.mxu0 0.0
    %7104 = vmatprep.subr.mxu0 0.0
    %7105 = vmatpush1.msra.mxu0 0.0
    %7106 = vmatprep.subr.mxu0 0.0
    %7107 = vmatpush1.msra.mxu0 0.0
    %7108 = vmatprep.subr.mxu0 0.0
    %7109 = vmatpush1.msra.mxu0 0.0
    %7110 = vmatprep.subr.mxu0 0.0
    %7111 = vmatpush1.msra.mxu0 0.0
    %7112 = vmatprep.subr.mxu0 %v7075
    %7113 = vmatpush1.msra.mxu0 %v7074
    %7114 = vmatprep.subr.mxu0 %v7073
    %7115 = vmatpush1.msra.mxu0 %v7072
    %7116 = vmatprep.subr.mxu0 %v7071
    %7117 = vmatpush1.msra.mxu0 %v7070
    %7118 = vmatprep.subr.mxu0 %v7069
    %7119 = vmatpush1.msra.mxu0 %v7068
    %7120 = vmatprep.subr.mxu0 0.0
    %7121 = vmatpush2.msra.mxu0 0.0
    %7122 = vmatprep.subr.mxu0 0.0
    %7123 = vmatpush2.msra.mxu0 0.0
    %7124 = vmatprep.subr.mxu0 0.0
    %7125 = vmatpush2.msra.mxu0 0.0
    %7126 = vmatprep.subr.mxu0 0.0
    %7127 = vmatpush2.msra.mxu0 0.0
    %7128 = vmatprep.subr.mxu0 0.0
    %7129 = vmatpush2.msra.mxu0 0.0
    %7130 = vmatprep.subr.mxu0 0.0
    %7131 = vmatpush2.msra.mxu0 0.0
    %7132 = vmatprep.subr.mxu0 0.0
    %7133 = vmatpush2.msra.mxu0 0.0
    %7134 = vmatprep.subr.mxu0 0.0
    %7135 = vmatpush2.msra.mxu0 0.0
    %7136 = vmatprep.subr.mxu0 0.0
    %7137 = vmatpush2.msra.mxu0 0.0
    %7138 = vmatprep.subr.mxu0 0.0
    %7139 = vmatpush2.msra.mxu0 0.0
    %7140 = vmatprep.subr.mxu0 0.0
    %7141 = vmatpush2.msra.mxu0 0.0
    %7142 = vmatprep.subr.mxu0 0.0
    %7143 = vmatpush2.msra.mxu0 0.0
    %7144 = vmatprep.subr.mxu0 0.0
    %7145 = vmatpush2.msra.mxu0 0.0
    %7146 = vmatprep.subr.mxu0 0.0
    %7147 = vmatpush2.msra.mxu0 0.0
    %7148 = vmatprep.subr.mxu0 0.0
    %7149 = vmatpush2.msra.mxu0 0.0
    %7150 = vmatprep.subr.mxu0 0.0
    %7151 = vmatpush2.msra.mxu0 0.0
    %7152 = vmatprep.mubr.f32.mxu0 0.0
    %7153 = vmatmul.mubr.f32.gmra.mxu0 %v7077
    %v7154 = vpop.f32.mrf.mxu0
    %v7155 = vadd.f32 0.0, %v7154
    %v7156 = vpop.f32.mrf.mxu0
    %v7157 = vadd.f32 0.0, %v7156
    %7158 = vmatprep.mubr.f32.mxu0 0.0
    %7159 = vmatmul.mubr.f32.gmra.mxu0 %v7080
    %v7160 = vpop.f32.mrf.mxu0
    %v7161 = vadd.f32 0.0, %v7160
    %v7162 = vpop.f32.mrf.mxu0
    %v7163 = vadd.f32 0.0, %v7162
    %7164 = vmatprep.mubr.f32.mxu0 0.0
    %7165 = vmatmul.mubr.f32.gmra.mxu0 %v7083
    %v7166 = vpop.f32.mrf.mxu0
    %v7167 = vadd.f32 0.0, %v7166
    %v7168 = vpop.f32.mrf.mxu0
    %v7169 = vadd.f32 0.0, %v7168
    %7170 = vmatprep.mubr.f32.mxu0 0.0
    %7171 = vmatmul.mubr.f32.gmra.mxu0 %v7086
    %v7172 = vpop.f32.mrf.mxu0
    %v7173 = vadd.f32 0.0, %v7172
    %v7174 = vpop.f32.mrf.mxu0
    %v7175 = vadd.f32 0.0, %v7174
    %7176 = vdwg.mxu0
    %7177 = vmatprep.subr.mxu0 %v7067
    %7178 = vmatpush1.msra.mxu0 %v7066
    %7179 = vmatprep.subr.mxu0 %v7065
    %7180 = vmatpush1.msra.mxu0 %v7064
    %7181 = vmatprep.subr.mxu0 %v7063
    %7182 = vmatpush1.msra.mxu0 %v7062
    %7183 = vmatprep.subr.mxu0 %v7061
    %7184 = vmatpush1.msra.mxu0 %v7060
    %7185 = vmatprep.subr.mxu0 %v7059
    %7186 = vmatpush1.msra.mxu0 %v7058
    %7187 = vmatprep.subr.mxu0 %v7057
    %7188 = vmatpush1.msra.mxu0 %v7056
    %7189 = vmatprep.subr.mxu0 %v7055
    %7190 = vmatpush1.msra.mxu0 %v7054
    %7191 = vmatprep.subr.mxu0 %v7053
    %7192 = vmatpush1.msra.mxu0 %v7052
    %7193 = vmatprep.subr.mxu0 %v7051
    %7194 = vmatpush1.msra.mxu0 %v7050
    %7195 = vmatprep.subr.mxu0 %v7049
    %7196 = vmatpush1.msra.mxu0 %v7048
    %7197 = vmatprep.subr.mxu0 %v7047
    %7198 = vmatpush1.msra.mxu0 %v7046
    %7199 = vmatprep.subr.mxu0 %v7045
    %7200 = vmatpush1.msra.mxu0 %v7044
    %7201 = vmatprep.subr.mxu0 %v7043
    %7202 = vmatpush1.msra.mxu0 %v7042
    %7203 = vmatprep.subr.mxu0 %v7041
    %7204 = vmatpush1.msra.mxu0 %v7040
    %7205 = vmatprep.subr.mxu0 %v7039
    %7206 = vmatpush1.msra.mxu0 %v7038
    %7207 = vmatprep.subr.mxu0 %v7037
    %7208 = vmatpush1.msra.mxu0 %v7036
    %7209 = vmatprep.subr.mxu0 0.0
    %7210 = vmatpush2.msra.mxu0 0.0
    %7211 = vmatprep.subr.mxu0 0.0
    %7212 = vmatpush2.msra.mxu0 0.0
    %7213 = vmatprep.subr.mxu0 0.0
    %7214 = vmatpush2.msra.mxu0 0.0
    %7215 = vmatprep.subr.mxu0 0.0
    %7216 = vmatpush2.msra.mxu0 0.0
    %7217 = vmatprep.subr.mxu0 0.0
    %7218 = vmatpush2.msra.mxu0 0.0
    %7219 = vmatprep.subr.mxu0 0.0
    %7220 = vmatpush2.msra.mxu0 0.0
    %7221 = vmatprep.subr.mxu0 0.0
    %7222 = vmatpush2.msra.mxu0 0.0
    %7223 = vmatprep.subr.mxu0 0.0
    %7224 = vmatpush2.msra.mxu0 0.0
    %7225 = vmatprep.subr.mxu0 0.0
    %7226 = vmatpush2.msra.mxu0 0.0
    %7227 = vmatprep.subr.mxu0 0.0
    %7228 = vmatpush2.msra.mxu0 0.0
    %7229 = vmatprep.subr.mxu0 0.0
    %7230 = vmatpush2.msra.mxu0 0.0
    %7231 = vmatprep.subr.mxu0 0.0
    %7232 = vmatpush2.msra.mxu0 0.0
    %7233 = vmatprep.subr.mxu0 0.0
    %7234 = vmatpush2.msra.mxu0 0.0
    %7235 = vmatprep.subr.mxu0 0.0
    %7236 = vmatpush2.msra.mxu0 0.0
    %7237 = vmatprep.subr.mxu0 0.0
    %7238 = vmatpush2.msra.mxu0 0.0
    %7239 = vmatprep.subr.mxu0 0.0
    %7240 = vmatpush2.msra.mxu0 0.0
    %7241 = vmatprep.mubr.f32.mxu0 0.0
    %7242 = vmatmul.mubr.f32.gmra.mxu0 %v6672
    %v7243 = vpop.f32.mrf.mxu0
    %v7244 = vadd.f32 %v7155, %v7243
    %v7245 = vpop.f32.mrf.mxu0
    %v7246 = vadd.f32 %v7157, %v7245
    %7247 = vmatprep.mubr.f32.mxu0 0.0
    %7248 = vmatmul.mubr.f32.gmra.mxu0 %v6677
    %v7249 = vpop.f32.mrf.mxu0
    %v7250 = vadd.f32 %v7161, %v7249
    %v7251 = vpop.f32.mrf.mxu0
    %v7252 = vadd.f32 %v7163, %v7251
    %7253 = vmatprep.mubr.f32.mxu0 0.0
    %7254 = vmatmul.mubr.f32.gmra.mxu0 %v6682
    %v7255 = vpop.f32.mrf.mxu0
    %v7256 = vadd.f32 %v7167, %v7255
    %v7257 = vpop.f32.mrf.mxu0
    %v7258 = vadd.f32 %v7169, %v7257
    %7259 = vmatprep.mubr.f32.mxu0 0.0
    %7260 = vmatmul.mubr.f32.gmra.mxu0 %v6687
    %v7261 = vpop.f32.mrf.mxu0
    %v7262 = vadd.f32 %v7173, %v7261
    %v7263 = vpop.f32.mrf.mxu0
    %v7264 = vadd.f32 %v7175, %v7263
    %7265 = vdwg.mxu0
    %v7266 = vld [vmem:[#allocation8] sm:$0xff]
    %v7267 = vld [vmem:[#allocation8 + $0x8] sm:$0xff]
    %v7268 = vld [vmem:[#allocation8 + $0x10] sm:$0xff]
    %v7269 = vld [vmem:[#allocation8 + $0x18] sm:$0xff]
    %v7270 = vld [vmem:[#allocation8 + $0x20] sm:$0xff]
    %v7271 = vld [vmem:[#allocation8 + $0x28] sm:$0xff]
    %v7272 = vld [vmem:[#allocation8 + $0x30] sm:$0xff]
    %v7273 = vld [vmem:[#allocation8 + $0x38] sm:$0xff]
    %v7275 = vsel %vm3232, %v6900, 0
    %v7278 = vsel %vm3232, %v6901, 0
    %v7281 = vsel %vm3232, %v6902, 0
    %v7284 = vsel %vm3232, %v6903, 0
    %7286 = vmatprep.subr.mxu0 0.0
    %7287 = vmatpush1.msra.mxu0 0.0
    %7288 = vmatprep.subr.mxu0 0.0
    %7289 = vmatpush1.msra.mxu0 0.0
    %7290 = vmatprep.subr.mxu0 0.0
    %7291 = vmatpush1.msra.mxu0 0.0
    %7292 = vmatprep.subr.mxu0 0.0
    %7293 = vmatpush1.msra.mxu0 0.0
    %7294 = vmatprep.subr.mxu0 0.0
    %7295 = vmatpush1.msra.mxu0 0.0
    %7296 = vmatprep.subr.mxu0 0.0
    %7297 = vmatpush1.msra.mxu0 0.0
    %7298 = vmatprep.subr.mxu0 0.0
    %7299 = vmatpush1.msra.mxu0 0.0
    %7300 = vmatprep.subr.mxu0 0.0
    %7301 = vmatpush1.msra.mxu0 0.0
    %7302 = vmatprep.subr.mxu0 0.0
    %7303 = vmatpush1.msra.mxu0 0.0
    %7304 = vmatprep.subr.mxu0 0.0
    %7305 = vmatpush1.msra.mxu0 0.0
    %7306 = vmatprep.subr.mxu0 0.0
    %7307 = vmatpush1.msra.mxu0 0.0
    %7308 = vmatprep.subr.mxu0 0.0
    %7309 = vmatpush1.msra.mxu0 0.0
    %7310 = vmatprep.subr.mxu0 %v7273
    %7311 = vmatpush1.msra.mxu0 %v7272
    %7312 = vmatprep.subr.mxu0 %v7271
    %7313 = vmatpush1.msra.mxu0 %v7270
    %7314 = vmatprep.subr.mxu0 %v7269
    %7315 = vmatpush1.msra.mxu0 %v7268
    %7316 = vmatprep.subr.mxu0 %v7267
    %7317 = vmatpush1.msra.mxu0 %v7266
    %7318 = vmatprep.subr.mxu0 0.0
    %7319 = vmatpush2.msra.mxu0 0.0
    %7320 = vmatprep.subr.mxu0 0.0
    %7321 = vmatpush2.msra.mxu0 0.0
    %7322 = vmatprep.subr.mxu0 0.0
    %7323 = vmatpush2.msra.mxu0 0.0
    %7324 = vmatprep.subr.mxu0 0.0
    %7325 = vmatpush2.msra.mxu0 0.0
    %7326 = vmatprep.subr.mxu0 0.0
    %7327 = vmatpush2.msra.mxu0 0.0
    %7328 = vmatprep.subr.mxu0 0.0
    %7329 = vmatpush2.msra.mxu0 0.0
    %7330 = vmatprep.subr.mxu0 0.0
    %7331 = vmatpush2.msra.mxu0 0.0
    %7332 = vmatprep.subr.mxu0 0.0
    %7333 = vmatpush2.msra.mxu0 0.0
    %7334 = vmatprep.subr.mxu0 0.0
    %7335 = vmatpush2.msra.mxu0 0.0
    %7336 = vmatprep.subr.mxu0 0.0
    %7337 = vmatpush2.msra.mxu0 0.0
    %7338 = vmatprep.subr.mxu0 0.0
    %7339 = vmatpush2.msra.mxu0 0.0
    %7340 = vmatprep.subr.mxu0 0.0
    %7341 = vmatpush2.msra.mxu0 0.0
    %7342 = vmatprep.subr.mxu0 0.0
    %7343 = vmatpush2.msra.mxu0 0.0
    %7344 = vmatprep.subr.mxu0 0.0
    %7345 = vmatpush2.msra.mxu0 0.0
    %7346 = vmatprep.subr.mxu0 0.0
    %7347 = vmatpush2.msra.mxu0 0.0
    %7348 = vmatprep.subr.mxu0 0.0
    %7349 = vmatpush2.msra.mxu0 0.0
    %7350 = vmatprep.mubr.f32.mxu0 0.0
    %7351 = vmatmul.mubr.f32.gmra.mxu0 %v7275
    %v7352 = vpop.f32.mrf.mxu0
    %v7353 = vadd.f32 0.0, %v7352
    %v7354 = vpop.f32.mrf.mxu0
    %v7355 = vadd.f32 0.0, %v7354
    %7356 = vmatprep.mubr.f32.mxu0 0.0
    %7357 = vmatmul.mubr.f32.gmra.mxu0 %v7278
    %v7358 = vpop.f32.mrf.mxu0
    %v7359 = vadd.f32 0.0, %v7358
    %v7360 = vpop.f32.mrf.mxu0
    %v7361 = vadd.f32 0.0, %v7360
    %7362 = vmatprep.mubr.f32.mxu0 0.0
    %7363 = vmatmul.mubr.f32.gmra.mxu0 %v7281
    %v7364 = vpop.f32.mrf.mxu0
    %v7365 = vadd.f32 0.0, %v7364
    %v7366 = vpop.f32.mrf.mxu0
    %v7367 = vadd.f32 0.0, %v7366
    %7368 = vmatprep.mubr.f32.mxu0 0.0
    %7369 = vmatmul.mubr.f32.gmra.mxu0 %v7284
    %v7370 = vpop.f32.mrf.mxu0
    %v7371 = vadd.f32 0.0, %v7370
    %v7372 = vpop.f32.mrf.mxu0
    %v7373 = vadd.f32 0.0, %v7372
    %7374 = vdwg.mxu0
    %v7375 = vadd.f32 %v7244, %v7353
    %v7376 = vadd.f32 %v7246, %v7355
    %v7377 = vadd.f32 %v7250, %v7359
    %v7378 = vadd.f32 %v7252, %v7361
    %v7379 = vadd.f32 %v7256, %v7365
    %v7380 = vadd.f32 %v7258, %v7367
    %v7381 = vadd.f32 %v7262, %v7371
    %v7382 = vadd.f32 %v7264, %v7373
    %v7383 = vld [vmem:[#allocation10] sm:$0xff]
    %v7384 = vld [vmem:[#allocation10 + $0x8] sm:$0xff]
    %v7385 = vld [vmem:[#allocation10 + $0x10] sm:$0xff]
    %v7386 = vld [vmem:[#allocation10 + $0x18] sm:$0xff]
    %v7387 = vld [vmem:[#allocation10 + $0x20] sm:$0xff]
    %v7388 = vld [vmem:[#allocation10 + $0x28] sm:$0xff]
    %v7389 = vld [vmem:[#allocation10 + $0x30] sm:$0xff]
    %v7390 = vld [vmem:[#allocation10 + $0x38] sm:$0xff]
    %v7392 = vsel %vm3232, %v7032, 0
    %v7395 = vsel %vm3232, %v7033, 0
    %v7398 = vsel %vm3232, %v7034, 0
    %v7401 = vsel %vm3232, %v7035, 0
    %7403 = vmatprep.subr.mxu0 0.0
    %7404 = vmatpush1.msra.mxu0 0.0
    %7405 = vmatprep.subr.mxu0 0.0
    %7406 = vmatpush1.msra.mxu0 0.0
    %7407 = vmatprep.subr.mxu0 0.0
    %7408 = vmatpush1.msra.mxu0 0.0
    %7409 = vmatprep.subr.mxu0 0.0
    %7410 = vmatpush1.msra.mxu0 0.0
    %7411 = vmatprep.subr.mxu0 0.0
    %7412 = vmatpush1.msra.mxu0 0.0
    %7413 = vmatprep.subr.mxu0 0.0
    %7414 = vmatpush1.msra.mxu0 0.0
    %7415 = vmatprep.subr.mxu0 0.0
    %7416 = vmatpush1.msra.mxu0 0.0
    %7417 = vmatprep.subr.mxu0 0.0
    %7418 = vmatpush1.msra.mxu0 0.0
    %7419 = vmatprep.subr.mxu0 0.0
    %7420 = vmatpush1.msra.mxu0 0.0
    %7421 = vmatprep.subr.mxu0 0.0
    %7422 = vmatpush1.msra.mxu0 0.0
    %7423 = vmatprep.subr.mxu0 0.0
    %7424 = vmatpush1.msra.mxu0 0.0
    %7425 = vmatprep.subr.mxu0 0.0
    %7426 = vmatpush1.msra.mxu0 0.0
    %7427 = vmatprep.subr.mxu0 %v7390
    %7428 = vmatpush1.msra.mxu0 %v7389
    %7429 = vmatprep.subr.mxu0 %v7388
    %7430 = vmatpush1.msra.mxu0 %v7387
    %7431 = vmatprep.subr.mxu0 %v7386
    %7432 = vmatpush1.msra.mxu0 %v7385
    %7433 = vmatprep.subr.mxu0 %v7384
    %7434 = vmatpush1.msra.mxu0 %v7383
    %7435 = vmatprep.subr.mxu0 0.0
    %7436 = vmatpush2.msra.mxu0 0.0
    %7437 = vmatprep.subr.mxu0 0.0
    %7438 = vmatpush2.msra.mxu0 0.0
    %7439 = vmatprep.subr.mxu0 0.0
    %7440 = vmatpush2.msra.mxu0 0.0
    %7441 = vmatprep.subr.mxu0 0.0
    %7442 = vmatpush2.msra.mxu0 0.0
    %7443 = vmatprep.subr.mxu0 0.0
    %7444 = vmatpush2.msra.mxu0 0.0
    %7445 = vmatprep.subr.mxu0 0.0
    %7446 = vmatpush2.msra.mxu0 0.0
    %7447 = vmatprep.subr.mxu0 0.0
    %7448 = vmatpush2.msra.mxu0 0.0
    %7449 = vmatprep.subr.mxu0 0.0
    %7450 = vmatpush2.msra.mxu0 0.0
    %7451 = vmatprep.subr.mxu0 0.0
    %7452 = vmatpush2.msra.mxu0 0.0
    %7453 = vmatprep.subr.mxu0 0.0
    %7454 = vmatpush2.msra.mxu0 0.0
    %7455 = vmatprep.subr.mxu0 0.0
    %7456 = vmatpush2.msra.mxu0 0.0
    %7457 = vmatprep.subr.mxu0 0.0
    %7458 = vmatpush2.msra.mxu0 0.0
    %7459 = vmatprep.subr.mxu0 0.0
    %7460 = vmatpush2.msra.mxu0 0.0
    %7461 = vmatprep.subr.mxu0 0.0
    %7462 = vmatpush2.msra.mxu0 0.0
    %7463 = vmatprep.subr.mxu0 0.0
    %7464 = vmatpush2.msra.mxu0 0.0
    %7465 = vmatprep.subr.mxu0 0.0
    %7466 = vmatpush2.msra.mxu0 0.0
    %7467 = vmatprep.mubr.f32.mxu0 0.0
    %7468 = vmatmul.mubr.f32.gmra.mxu0 %v7392
    %v7469 = vpop.f32.mrf.mxu0
    %v7470 = vadd.f32 0.0, %v7469
    %v7471 = vpop.f32.mrf.mxu0
    %v7472 = vadd.f32 0.0, %v7471
    %7473 = vmatprep.mubr.f32.mxu0 0.0
    %7474 = vmatmul.mubr.f32.gmra.mxu0 %v7395
    %v7475 = vpop.f32.mrf.mxu0
    %v7476 = vadd.f32 0.0, %v7475
    %v7477 = vpop.f32.mrf.mxu0
    %v7478 = vadd.f32 0.0, %v7477
    %7479 = vmatprep.mubr.f32.mxu0 0.0
    %7480 = vmatmul.mubr.f32.gmra.mxu0 %v7398
    %v7481 = vpop.f32.mrf.mxu0
    %v7482 = vadd.f32 0.0, %v7481
    %v7483 = vpop.f32.mrf.mxu0
    %v7484 = vadd.f32 0.0, %v7483
    %7485 = vmatprep.mubr.f32.mxu0 0.0
    %7486 = vmatmul.mubr.f32.gmra.mxu0 %v7401
    %v7487 = vpop.f32.mrf.mxu0
    %v7488 = vadd.f32 0.0, %v7487
    %v7489 = vpop.f32.mrf.mxu0
    %v7490 = vadd.f32 0.0, %v7489
    %7491 = vdwg.mxu0
    %v7492 = vadd.f32 %v7375, %v7470
    %v7493 = vadd.f32 %v7376, %v7472
    %v7494 = vadd.f32 %v7377, %v7476
    %v7495 = vadd.f32 %v7378, %v7478
    %v7496 = vadd.f32 %v7379, %v7482
    %v7497 = vadd.f32 %v7380, %v7484
    %v7498 = vadd.f32 %v7381, %v7488
    %v7499 = vadd.f32 %v7382, %v7490
    %7500 = vst [vmem:[%s59] sm:$0xff] %v7492
    %7501 = vst [vmem:[%s59 + $0x8] sm:$0xff] %v7493
    %7502 = vst [vmem:[%s59 + $0x10] sm:$0xff] %v7494
    %7503 = vst [vmem:[%s59 + $0x18] sm:$0xff] %v7495
    %7504 = vst [vmem:[%s59 + $0x20] sm:$0xff] %v7496
    %7505 = vst [vmem:[%s59 + $0x28] sm:$0xff] %v7497
    %7506 = vst [vmem:[%s59 + $0x30] sm:$0xff] %v7498
    %7507 = vst [vmem:[%s59 + $0x38] sm:$0xff] %v7499
    // Predicated region
    $region138: #{spacial_recurrence_forward.1} parent=1 // pred_check
      _
    $region139: #{spacial_recurrence_forward.1} parent=1 // pred_check_branch
      %7509 = sbr.rel (0) target = $region141
    $region140: #{spacial_recurrence_forward.1} parent=1 // pred_region
      _
    $region141: #{spacial_recurrence_forward.1} parent=1 // pred_fallthru
      _
    // Predicated region
    $region142: #{spacial_recurrence_forward.1} parent=1 // pred_check
      _
    $region143: #{spacial_recurrence_forward.1} parent=1 // pred_check_branch
      %7511 = sbr.rel (0) target = $region145
    $region144: #{spacial_recurrence_forward.1} parent=1 // pred_region
      _
    $region145: #{spacial_recurrence_forward.1} parent=1 // pred_fallthru
      _
    %7512 = vsyncpa [#allocation3], 1
    %7513 = vsyncpa [#allocation9], 1
    %7514 = vsyncpa [#allocation4], 1
    %7515 = vsyncpa [#allocation6], 1

</llo_original>
